<compile_context>
chip_gen: v6e
topology: v6e:2x2x1
jax: 0.10.0
libtpu: 0.0.40
codegen_flags: <defaults>
</compile_context>

<pallas_src>
import math
import numpy as np
import jax
import jax.numpy as jnp
from jax import lax
from jax.experimental import pallas as pl
from jax.experimental.pallas import tpu as pltpu

F32 = jnp.float32


# ----------------------------- config ("opt") -----------------------------
class Opt:
    seq_len = 9              # image sequence length -> 8 transition frames
    nhead = 1                # MHA heads (kernel implements the nhead=1 case)
    i_f_len = 32             # IMU feature length (== MHA hidden dim)
    feature_channels = 32    # visual feature length / LSTM input size
    rnn_hidden_size = 64
    rnn_dropout_between = 0.0
    rnn_dropout_out = 0.0
    imu_dropout = 0.0
    skip_frames = 1          # IMU window length = skip_frames*10 + 1 = 11


# Order in which parameters are passed to the fused kernel.
PARAM_ORDER = (
    'g0',                    # (L*S, imu_len) window gather, position-major rows
    'vh_w',                  # visual head weight
    'c1_taps', 'c2_taps', 'c3_taps',   # conv taps (3, cin, cout), BN folded in
    'proj_w3',               # (L, 256, IF) per-window-position projection
    'mha_w',                 # (4, E, E): wq, wk, wv, wo
    'mha_vec',               # (9, E): bq, bk, bv, bo, g1, be1, g2, be2, ff_b2
    'ff_w1', 'ff_w2',        # MHA feed-forward weights
    'vec32',                 # (3, 32): vh_b, proj_b, ff_b1
    'w256',                  # (FC+4H, 256): l0_wih, l0_whh, l1_wih, l1_whh, head_w1
    'b256',                  # (4, 256): c3_shift, l0_b, l1_b, head_b1
    'vec128',                # (2, 128): c2_shift, head_b2(padded)
    'c1_shift',              # (1, 64)
    'head_w2',               # (256, 128): block-diag t/q heads, zero-padded lanes
)


# ------------------------------ fused kernel -------------------------------
def cross_vio_kernel(
        # per-sample inputs (grid over batch)
        flow_ref, imu_ref,
        # packed parameters (same block every grid step -> DMA'd once)
        g0_ref, vhw_ref, c1_ref, c2_ref, c3_ref, projw_ref,
        mhaw_ref, mhav_ref, ffw1_ref, ffw2_ref,
        vec32_ref, w256_ref, b256_ref, vec128_ref, c1sh_ref, hw2_ref,
        # outputs
        pose_ref, h_ref, c_ref):
    S = pose_ref.shape[1]              # transition frames (= seq_len - 1)
    FC = vhw_ref.shape[1]              # visual feature channels / LSTM input
    IF = projw_ref.shape[2]            # IMU feature length
    E = mhaw_ref.shape[1]              # MHA feature dim (== S), nhead == 1
    Hh = h_ref.shape[2]                # rnn hidden size
    L = projw_ref.shape[0]             # IMU window length (11)

    def mm(a, b):
        return jnp.dot(a, b, preferred_element_type=F32)

    def leaky(x):                      # LeakyReLU(0.1)
        return jnp.where(x > 0.0, x, 0.1 * x)

    def layernorm(x, g, b, eps=1e-5):
        mu = jnp.mean(x, axis=-1, keepdims=True)
        xc = x - mu
        var = jnp.mean(xc * xc, axis=-1, keepdims=True)
        return xc * lax.rsqrt(var + eps) * g + b

    def gelu(x):
        # TODO(synk): tanh-form GELU; F.gelu default is the erf form (~1e-3 rel diff).
        return 0.5 * x * (1.0 + jnp.tanh(
            0.7978845608028654 * (x + 0.044715 * x * x * x)))

    # Window-position-major layout: row r = l*S + i  (window i, position l).
    # x[l-1] / x[l+1] are shifts by +-S rows; the zero pad lands exactly on the
    # l=0 / l=L-1 rows, which is the Conv1d(k=3, padding=1) zero padding.
    def shift_prev(x):
        return jnp.concatenate(
            [jnp.zeros((S, x.shape[1]), F32), x[:-S, :]], axis=0)

    def shift_next(x):
        return jnp.concatenate(
            [x[S:, :], jnp.zeros((S, x.shape[1]), F32)], axis=0)

    def conv_bn_lrelu(x, taps_ref, shift_row):
        # taps_ref[k]: k=0 multiplies x[l-1], k=1 x[l], k=2 x[l+1] (BN folded)
        y = (mm(shift_prev(x), taps_ref[0]) + mm(x, taps_ref[1])
             + mm(shift_next(x), taps_ref[2]) + shift_row)
        return leaky(y)

    vec32 = vec32_ref[...]
    vh_b, proj_b, ff_b1 = vec32[0:1, :], vec32[1:2, :], vec32[2:3, :]

    # ------------------------------ visual head ------------------------------
    img_f = mm(flow_ref[0], vhw_ref[...]) + vh_b                  # (S, FC)

    # --------------------------- inertial encoder ----------------------------
    x0 = mm(g0_ref[...], imu_ref[0])                              # (L*S, 15)
    a1 = conv_bn_lrelu(x0, c1_ref, c1sh_ref[...])                 # (L*S, 64)
    a2 = conv_bn_lrelu(a1, c2_ref, vec128_ref[0:1, :])            # (L*S, 128)
    a3 = conv_bn_lrelu(a2, c3_ref, b256_ref[0:1, :])              # (L*S, 256)

    # proj Linear(256*L -> IF): torch channel-major flatten == sum over window
    # position l of a3's l-block times the per-position weight.
    acc = jnp.zeros((S, IF), F32)
    for l in range(L):                                            # static, L = 11
        acc = acc + mm(a3[l * S:(l + 1) * S, :], projw_ref[l])
    imu_f = acc + proj_b                                          # (S, IF)

    # --------------------- cross fusion (channel-wise MHA) -------------------
    mhav = mhav_ref[...]
    bq, bk, bv, bo = mhav[0:1], mhav[1:2], mhav[2:3], mhav[3:4]
    g1, be1, g2, be2, ff_b2 = (mhav[4:5], mhav[5:6], mhav[6:7],
                               mhav[7:8], mhav[8:9])

    qt = img_f.T                                                  # (FC, E) tokens = channels
    kvt = imu_f.T                                                 # (IF, E)
    q = mm(qt, mhaw_ref[0]) + bq
    k = mm(kvt, mhaw_ref[1]) + bk
    v = mm(kvt, mhaw_ref[2]) + bv
    s = lax.dot_general(q, k, (((1,), (1,)), ((), ())),
                        preferred_element_type=F32) * (1.0 / math.sqrt(float(E)))
    s = s - jnp.max(s, axis=-1, keepdims=True)
    pexp = jnp.exp(s)
    attn = pexp / jnp.sum(pexp, axis=-1, keepdims=True)           # (FC, IF), exact softmax
    z = mm(attn, v)                                               # (FC, E)
    z = mm(z, mhaw_ref[3]) + bo
    x1 = layernorm(z + qt, g1, be1)
    ff = gelu(mm(x1, ffw1_ref[...]) + ff_b1)                      # (FC, NH)
    ff = mm(ff, ffw2_ref[...]) + ff_b2                            # (FC, E)
    y = layernorm(ff + x1, g2, be2)                               # (FC, E)
    fused = y.T                                                   # (S, FC)

    # --------------- fused pose LSTM (2 layers) + regressor heads ------------
    w256 = w256_ref[...]
    l0_wih = w256[0:FC, :]
    l0_whh = w256[FC:FC + Hh, :]
    l1_wih = w256[FC + Hh:FC + 2 * Hh, :]
    l1_whh = w256[FC + 2 * Hh:FC + 3 * Hh, :]
    head_w1 = w256[FC + 3 * Hh:FC + 4 * Hh, :]
    b256 = b256_ref[...]
    l0_b, l1_b, head_b1 = b256[1:2, :], b256[2:3, :], b256[3:4, :]
    head_b2 = vec128_ref[1:2, :]

    def cell(x, h, c, wih, whh, b):                # torch gate order i, f, g, o
        g = mm(x, wih) + mm(h, whh) + b            # (1, 4*Hh) gate-fused
        ig = jax.nn.sigmoid(g[:, 0:Hh])
        fg = jax.nn.sigmoid(g[:, Hh:2 * Hh])
        gg = jnp.tanh(g[:, 2 * Hh:3 * Hh])
        og = jax.nn.sigmoid(g[:, 3 * Hh:4 * Hh])
        cn = fg * c + ig * gg
        return og * jnp.tanh(cn), cn

    h0 = jnp.zeros((1, Hh), F32)
    c0 = jnp.zeros((1, Hh), F32)
    h1 = jnp.zeros((1, Hh), F32)
    c1 = jnp.zeros((1, Hh), F32)
    outs = []
    for t in range(S):                             # bounded unroll, S = 8
        xt = fused[t:t + 1, :]
        h0, c0 = cell(xt, h0, c0, l0_wih, l0_whh, l0_b)
        h1, c1 = cell(h0, h1, c1, l1_wih, l1_whh, l1_b)
        outs.append(h1)
    out_all = jnp.concatenate(outs, axis=0)        # (S, Hh), never leaves vregs

    hid = leaky(mm(out_all, head_w1) + head_b1)    # (S, 256): both heads packed
    pose = mm(hid, hw2_ref[...]) + head_b2         # (S, 128): cols 0:3 t, 3:6 q
    pose_ref[...] = pose.reshape(1, S, pose.shape[1])   # lane-dense store
    h_ref[...] = jnp.concatenate([h0, h1], axis=0).reshape(1, 2, Hh)
    c_ref[...] = jnp.concatenate([c0, c1], axis=0).reshape(1, 2, Hh)


# ------------------------------- wrapper ------------------------------------
def cross_vio_forward(p, img, imu, opt):
    B, SL, C, H, W = img.shape
    S = SL - 1
    Hh = opt.rnn_hidden_size

    # ----- visual branch (placeholder flow; see TODO at top) -----
    img1 = img[:, :-1].reshape(B * S, C, H, W)
    img2 = img[:, 1:].reshape(B * S, C, H, W)
    flow = jnp.stack([jnp.mean(img2 - img1, axis=1),
                      0.5 * jnp.mean(img2 + img1, axis=1)], axis=1)   # (B*S, 2, H, W)
    flow_flat = flow.reshape(B, S, -1)                                # (B, S, 2*H*W)
    Fd = flow_flat.shape[-1]
    imu_len, imu_ch = imu.shape[1], imu.shape[2]
    PW = p['head_w2'].shape[1]                                        # padded pose lanes

    def full_spec(shape):
        if len(shape) == 2:
            return pl.BlockSpec(shape, lambda b: (0, 0))
        return pl.BlockSpec(shape, lambda b: (0, 0, 0))

    args = [flow_flat, imu] + [p[k] for k in PARAM_ORDER]
    in_specs = ([pl.BlockSpec((1, S, Fd), lambda b: (b, 0, 0)),
                 pl.BlockSpec((1, imu_len, imu_ch), lambda b: (b, 0, 0))]
                + [full_spec(p[k].shape) for k in PARAM_ORDER])

    pose_pad, h, c = pl.pallas_call(
        cross_vio_kernel,
        out_shape=(jax.ShapeDtypeStruct((B, S, PW), F32),
                   jax.ShapeDtypeStruct((B, 2, Hh), F32),
                   jax.ShapeDtypeStruct((B, 2, Hh), F32)),
        grid=(B,),
        in_specs=in_specs,
        out_specs=(pl.BlockSpec((1, S, PW), lambda b: (b, 0, 0)),
                   pl.BlockSpec((1, 2, Hh), lambda b: (b, 0, 0)),
                   pl.BlockSpec((1, 2, Hh), lambda b: (b, 0, 0))),
        compiler_params=pltpu.CompilerParams(
            dimension_semantics=("parallel",),
            vmem_limit_bytes=32 * 1024 * 1024),
    )(*args)

    pose = pose_pad[:, :, :6]          # strip the lane padding of the heads
    # h/c already in the PyTorch-returned (B, num_layers, H) layout.
    return pose, (h, c)


# ---------------------------- parameter setup -------------------------------
def _kaiming(key, fan_in, shape):
    return jax.random.normal(key, shape, F32) * np.float32(np.sqrt(2.0 / fan_in))


def _window_gather(S, L, stride, imu_len):
    """0/1 matrix producing the window-position-major IMU layout:
    out[l*S + i, :] = imu[i*stride + l, :]."""
    g = np.zeros((L * S, imu_len), np.float32)
    for i in range(S):
        for l in range(L):
            g[l * S + i, i * stride + l] = 1.0
    return jnp.asarray(g)


def init_params(key, opt, flow_flat_dim):
    ks = iter(jax.random.split(key, 64))
    FC = opt.feature_channels
    IF = opt.i_f_len
    S = opt.seq_len - 1
    Hh = opt.rnn_hidden_size
    L = opt.skip_frames * 10 + 1       # 11; forward slices stride-10/len-11 windows
    E, NH = S, IF                      # MHA: n_features = seq_len-1, n_hidden = i_f_len
    eps = 1e-5
    # slab packing below assumes these (true for the reference Opt):
    assert FC == IF == NH and 4 * Hh == 256 and 2 * 128 == 4 * Hh
    p = {}

    # batch-independent window gather (position-major rows)
    p['g0'] = _window_gather(S, L, 10, S * 10 + 1)

    # visual_head : Linear(flow_flat_dim -> FC)
    p['vh_w'] = _kaiming(next(ks), flow_flat_dim, (flow_flat_dim, FC))
    vh_b = jnp.zeros((1, FC), F32)

    # Inertial_encoder conv stack; eval-mode BN folded into taps + shift.
    conv_shift = {}
    for idx, (cin, cout) in enumerate([(15, 64), (64, 128), (128, 256)], start=1):
        k0, k1, k2 = jax.random.split(next(ks), 3)
        fan = cin * 3
        gamma = np.ones((cout,), np.float32)
        beta = np.zeros((cout,), np.float32)
        rmean = np.zeros((cout,), np.float32)
        rvar = np.ones((cout,), np.float32)
        conv_bias = np.zeros((cout,), np.float32)
        scale = gamma / np.sqrt(rvar + eps)
        shift = (conv_bias - rmean) * scale + beta
        scale_j = jnp.asarray(scale.reshape(1, cout))
        p[f'c{idx}_taps'] = jnp.stack(
            [_kaiming(k0, fan, (cin, cout)) * scale_j,     # multiplies x[l-1]
             _kaiming(k1, fan, (cin, cout)) * scale_j,     # multiplies x[l]
             _kaiming(k2, fan, (cin, cout)) * scale_j],    # multiplies x[l+1]
            axis=0)
        conv_shift[idx] = jnp.asarray(shift.reshape(1, cout))

    # Inertial_encoder projection Linear(256*L -> IF):
    #   proj_w3[l, c, f] == torch proj.weight[f, c*L + l]
    p['proj_w3'] = _kaiming(next(ks), 256 * L, (L, 256, IF))
    proj_b = jnp.zeros((1, IF), F32)

    # CrossFusion MHABlock (weights stored for right-multiplication)
    wq = _kaiming(next(ks), E, (E, E))
    wk = _kaiming(next(ks), E, (E, E))
    wv = _kaiming(next(ks), E, (E, E))
    wo = _kaiming(next(ks), E, (E, E))
    p['mha_w'] = jnp.stack([wq, wk, wv, wo], axis=0)
    zE, oE = jnp.zeros((E,), F32), jnp.ones((E,), F32)
    # rows: bq, bk, bv, bo, ln1_g, ln1_b, ln2_g, ln2_b, ff_b2
    p['mha_vec'] = jnp.stack([zE, zE, zE, zE, oE, zE, oE, zE, zE], axis=0)
    p['ff_w1'] = _kaiming(next(ks), E, (E, NH))
    ff_b1 = jnp.zeros((1, NH), F32)
    p['ff_w2'] = _kaiming(next(ks), NH, (NH, E))

    # FusedPoseRNN: 2-layer LSTM, gate-fused layout (i, f, g, o along 4H).
    # NOTE: when importing torch weights use wih = weight_ih.T, whh = weight_hh.T,
    #       b = (bias_ih + bias_hh) per gate.
    def lstm_layer(key_, in_dim):
        k1, k2 = jax.random.split(key_)
        wih = _kaiming(k1, in_dim, (in_dim, 4 * Hh))
        whh = _kaiming(k2, Hh, (Hh, 4 * Hh))
        b = jnp.zeros((1, 4 * Hh), F32).at[:, Hh:2 * Hh].set(1.0)  # forget bias = 1
        return wih, whh, b

    l0_wih, l0_whh, l0_b = lstm_layer(next(ks), FC)
    l1_wih, l1_whh, l1_b = lstm_layer(next(ks), Hh)

    # regressor_t / regressor_q packed: one (Hh,256) hidden layer + block-diag
    # (256,128) head, lane-padded so the pose store is lane-dense.
    kt1, kq1, kt2, kq2 = jax.random.split(next(ks), 4)
    t1 = _kaiming(kt1, Hh, (Hh, 128))
    q1 = _kaiming(kq1, Hh, (Hh, 128))
    t2 = _kaiming(kt2, 128, (128, 3))
    q2 = _kaiming(kq2, 128, (128, 3))
    head_w1 = jnp.concatenate([t1, q1], axis=1)                    # (Hh, 256)
    head_b1 = jnp.zeros((1, 256), F32)
    p['head_w2'] = (jnp.zeros((256, 128), F32)
                    .at[0:128, 0:3].set(t2)
                    .at[128:256, 3:6].set(q2))
    head_b2 = jnp.zeros((1, 128), F32)

    # ----- parameter slabs (fewer prologue DMAs) -----
    p['vec32'] = jnp.concatenate([vh_b, proj_b, ff_b1], axis=0)            # (3, 32)
    p['w256'] = jnp.concatenate([l0_wih, l0_whh, l1_wih, l1_whh, head_w1],
                                axis=0)                                    # (FC+4H, 256)
    p['b256'] = jnp.concatenate([conv_shift[3], l0_b, l1_b, head_b1],
                                axis=0)                                    # (4, 256)
    p['vec128'] = jnp.concatenate([conv_shift[2], head_b2], axis=0)        # (2, 128)
    p['c1_shift'] = conv_shift[1]                                          # (1, 64)
    return p


# --------------------------------- main --------------------------------------
if __name__ == "__main__":
    opt = Opt()
    B, S_img, C, H, W = 2, opt.seq_len, 3, 8, 8
    S = S_img - 1

    key = jax.random.PRNGKey(0)
    k_img, k_imu, k_par = jax.random.split(key, 3)
    img = jax.random.normal(k_img, (B, S_img, C, H, W), F32)
    imu = jax.random.normal(k_imu, (B, S * 10 + 1, 15), F32)

    params = init_params(k_par, opt, flow_flat_dim=2 * H * W)

    fwd = jax.jit(lambda p_, a, b: cross_vio_forward(p_, a, b, opt))
    pose, hc = fwd(params, img, imu)
    jax.block_until_ready((pose, hc))

    assert pose.shape == (B, S, 6), pose.shape
    assert hc[0].shape == (B, 2, opt.rnn_hidden_size), hc[0].shape
    assert hc[1].shape == (B, 2, opt.rnn_hidden_size), hc[1].shape
    assert bool(jnp.all(jnp.isfinite(pose)))
    assert bool(jnp.all(jnp.isfinite(hc[0]))) and bool(jnp.all(jnp.isfinite(hc[1])))
    print("KERNEL_OK")
</pallas_src>

<mosaic_0001>
module attributes {stable_mosaic.version = 11 : i64} {
  func.func @cross_vio_kernel(%arg0: i32, %arg1: memref<1x8x128xf32, #tpu.memory_space<vmem>>, %arg2: memref<1x81x15xf32, #tpu.memory_space<vmem>>, %arg3: memref<88x81xf32, #tpu.memory_space<vmem>>, %arg4: memref<128x32xf32, #tpu.memory_space<vmem>>, %arg5: memref<3x15x64xf32, #tpu.memory_space<vmem>>, %arg6: memref<3x64x128xf32, #tpu.memory_space<vmem>>, %arg7: memref<3x128x256xf32, #tpu.memory_space<vmem>>, %arg8: memref<11x256x32xf32, #tpu.memory_space<vmem>>, %arg9: memref<4x8x8xf32, #tpu.memory_space<vmem>>, %arg10: memref<9x8xf32, #tpu.memory_space<vmem>>, %arg11: memref<8x32xf32, #tpu.memory_space<vmem>>, %arg12: memref<32x8xf32, #tpu.memory_space<vmem>>, %arg13: memref<3x32xf32, #tpu.memory_space<vmem>>, %arg14: memref<288x256xf32, #tpu.memory_space<vmem>>, %arg15: memref<4x256xf32, #tpu.memory_space<vmem>>, %arg16: memref<2x128xf32, #tpu.memory_space<vmem>>, %arg17: memref<1x64xf32, #tpu.memory_space<vmem>>, %arg18: memref<256x128xf32, #tpu.memory_space<vmem>>, %arg19: memref<1x8x128xf32, #tpu.memory_space<vmem>>, %arg20: memref<1x2x64xf32, #tpu.memory_space<vmem>>, %arg21: memref<1x2x64xf32, #tpu.memory_space<vmem>>) attributes {dimension_semantics = [#tpu.dimension_semantics<parallel>], iteration_bounds = array<i64: 2>, scalar_prefetch = 0 : i64, scratch_operands = 0 : i64, tpu.core_type = #tpu.core_type<tc>, window_params = [{transform_indices = @transform_0, window_bounds = array<i64: 1, 8, 128>}, {transform_indices = @transform_1, window_bounds = array<i64: 1, 81, 15>}, {pipeline_mode = #tpu.pipeline_mode<synchronous>, transform_indices = @transform_2, window_bounds = array<i64: 88, 81>}, {pipeline_mode = #tpu.pipeline_mode<synchronous>, transform_indices = @transform_3, window_bounds = array<i64: 128, 32>}, {pipeline_mode = #tpu.pipeline_mode<synchronous>, transform_indices = @transform_4, window_bounds = array<i64: 3, 15, 64>}, {pipeline_mode = #tpu.pipeline_mode<synchronous>, transform_indices = @transform_5, window_bounds = array<i64: 3, 64, 128>}, {pipeline_mode = #tpu.pipeline_mode<synchronous>, transform_indices = @transform_6, window_bounds = array<i64: 3, 128, 256>}, {pipeline_mode = #tpu.pipeline_mode<synchronous>, transform_indices = @transform_7, window_bounds = array<i64: 11, 256, 32>}, {pipeline_mode = #tpu.pipeline_mode<synchronous>, transform_indices = @transform_8, window_bounds = array<i64: 4, 8, 8>}, {pipeline_mode = #tpu.pipeline_mode<synchronous>, transform_indices = @transform_9, window_bounds = array<i64: 9, 8>}, {pipeline_mode = #tpu.pipeline_mode<synchronous>, transform_indices = @transform_10, window_bounds = array<i64: 8, 32>}, {pipeline_mode = #tpu.pipeline_mode<synchronous>, transform_indices = @transform_11, window_bounds = array<i64: 32, 8>}, {pipeline_mode = #tpu.pipeline_mode<synchronous>, transform_indices = @transform_12, window_bounds = array<i64: 3, 32>}, {pipeline_mode = #tpu.pipeline_mode<synchronous>, transform_indices = @transform_13, window_bounds = array<i64: 288, 256>}, {pipeline_mode = #tpu.pipeline_mode<synchronous>, transform_indices = @transform_14, window_bounds = array<i64: 4, 256>}, {pipeline_mode = #tpu.pipeline_mode<synchronous>, transform_indices = @transform_15, window_bounds = array<i64: 2, 128>}, {pipeline_mode = #tpu.pipeline_mode<synchronous>, transform_indices = @transform_16, window_bounds = array<i64: 1, 64>}, {pipeline_mode = #tpu.pipeline_mode<synchronous>, transform_indices = @transform_17, window_bounds = array<i64: 256, 128>}, {transform_indices = @transform_18, window_bounds = array<i64: 1, 8, 128>}, {transform_indices = @transform_19, window_bounds = array<i64: 1, 2, 64>}, {transform_indices = @transform_20, window_bounds = array<i64: 1, 2, 64>}]} {
    %c0 = arith.constant 0 : index
    %c0_0 = arith.constant 0 : index
    %0 = vector.load %arg13[%c0, %c0_0] : memref<3x32xf32, #tpu.memory_space<vmem>>, vector<3x32xf32>
    %1 = vector.extract_strided_slice %0 {offsets = [0, 0], sizes = [1, 32], strides = [1, 1]} : vector<3x32xf32> to vector<1x32xf32>
    %2 = vector.extract_strided_slice %0 {offsets = [1, 0], sizes = [1, 32], strides = [1, 1]} : vector<3x32xf32> to vector<1x32xf32>
    %3 = vector.extract_strided_slice %0 {offsets = [2, 0], sizes = [1, 32], strides = [1, 1]} : vector<3x32xf32> to vector<1x32xf32>
    %c0_1 = arith.constant 0 : index
    %c0_2 = arith.constant 0 : index
    %c0_3 = arith.constant 0 : index
    %4 = vector.load %arg1[%c0_1, %c0_2, %c0_3] : memref<1x8x128xf32, #tpu.memory_space<vmem>>, vector<1x8x128xf32>
    %5 = vector.shape_cast %4 : vector<1x8x128xf32> to vector<8x128xf32>
    %c0_4 = arith.constant 0 : index
    %c0_5 = arith.constant 0 : index
    %6 = vector.load %arg4[%c0_4, %c0_5] : memref<128x32xf32, #tpu.memory_space<vmem>>, vector<128x32xf32>
    %cst = arith.constant dense<0.000000e+00> : vector<8x32xf32>
    %7 = tpu.matmul %5, %6, %cst {dimension_numbers = #tpu.dot_dimension_numbers<[1], [0], [0], [1], [0, 0, 1, 1], [], []>} : vector<8x128xf32>, vector<128x32xf32>, vector<8x32xf32> -> vector<8x32xf32>
    %8 = vector.broadcast %1 : vector<1x32xf32> to vector<8x32xf32>
    %9 = arith.addf %7, %8 : vector<8x32xf32>
    %c0_6 = arith.constant 0 : index
    %c0_7 = arith.constant 0 : index
    %10 = vector.load %arg3[%c0_6, %c0_7] : memref<88x81xf32, #tpu.memory_space<vmem>>, vector<88x81xf32>
    %c0_8 = arith.constant 0 : index
    %c0_9 = arith.constant 0 : index
    %c0_10 = arith.constant 0 : index
    %11 = vector.load %arg2[%c0_8, %c0_9, %c0_10] : memref<1x81x15xf32, #tpu.memory_space<vmem>>, vector<1x81x15xf32>
    %12 = vector.shape_cast %11 : vector<1x81x15xf32> to vector<81x15xf32>
    %cst_11 = arith.constant dense<0.000000e+00> : vector<88x15xf32>
    %13 = tpu.matmul %10, %12, %cst_11 {dimension_numbers = #tpu.dot_dimension_numbers<[1], [0], [0], [1], [0, 0, 1, 1], [], []>} : vector<88x81xf32>, vector<81x15xf32>, vector<88x15xf32> -> vector<88x15xf32>
    %c0_12 = arith.constant 0 : index
    %c0_13 = arith.constant 0 : index
    %14 = vector.load %arg17[%c0_12, %c0_13] : memref<1x64xf32, #tpu.memory_space<vmem>>, vector<1x64xf32>
    %cst_14 = arith.constant 0.000000e+00 : f32
    %15 = vector.broadcast %cst_14 : f32 to vector<8x15xf32>
    %16 = vector.extract_strided_slice %13 {offsets = [0, 0], sizes = [80, 15], strides = [1, 1]} : vector<88x15xf32> to vector<80x15xf32>
    %17 = tpu.concatenate %15, %16 in 0 : vector<8x15xf32>, vector<80x15xf32> -> vector<88x15xf32>
    %c0_15 = arith.constant 0 : index
    %c0_16 = arith.constant 0 : index
    %c0_17 = arith.constant 0 : index
    %18 = vector.load %arg5[%c0_15, %c0_16, %c0_17] : memref<3x15x64xf32, #tpu.memory_space<vmem>>, vector<1x15x64xf32>
    %19 = vector.shape_cast %18 : vector<1x15x64xf32> to vector<15x64xf32>
    %cst_18 = arith.constant dense<0.000000e+00> : vector<88x64xf32>
    %20 = tpu.matmul %17, %19, %cst_18 {dimension_numbers = #tpu.dot_dimension_numbers<[1], [0], [0], [1], [0, 0, 1, 1], [], []>} : vector<88x15xf32>, vector<15x64xf32>, vector<88x64xf32> -> vector<88x64xf32>
    %c1 = arith.constant 1 : index
    %c0_19 = arith.constant 0 : index
    %c0_20 = arith.constant 0 : index
    %21 = vector.load %arg5[%c1, %c0_19, %c0_20] : memref<3x15x64xf32, #tpu.memory_space<vmem>>, vector<1x15x64xf32>
    %22 = vector.shape_cast %21 : vector<1x15x64xf32> to vector<15x64xf32>
    %cst_21 = arith.constant dense<0.000000e+00> : vector<88x64xf32>
    %23 = tpu.matmul %13, %22, %cst_21 {dimension_numbers = #tpu.dot_dimension_numbers<[1], [0], [0], [1], [0, 0, 1, 1], [], []>} : vector<88x15xf32>, vector<15x64xf32>, vector<88x64xf32> -> vector<88x64xf32>
    %24 = arith.addf %20, %23 : vector<88x64xf32>
    %25 = vector.extract_strided_slice %13 {offsets = [8, 0], sizes = [80, 15], strides = [1, 1]} : vector<88x15xf32> to vector<80x15xf32>
    %cst_22 = arith.constant 0.000000e+00 : f32
    %26 = vector.broadcast %cst_22 : f32 to vector<8x15xf32>
    %27 = tpu.concatenate %25, %26 in 0 : vector<80x15xf32>, vector<8x15xf32> -> vector<88x15xf32>
    %c2 = arith.constant 2 : index
    %c0_23 = arith.constant 0 : index
    %c0_24 = arith.constant 0 : index
    %28 = vector.load %arg5[%c2, %c0_23, %c0_24] : memref<3x15x64xf32, #tpu.memory_space<vmem>>, vector<1x15x64xf32>
    %29 = vector.shape_cast %28 : vector<1x15x64xf32> to vector<15x64xf32>
    %cst_25 = arith.constant dense<0.000000e+00> : vector<88x64xf32>
    %30 = tpu.matmul %27, %29, %cst_25 {dimension_numbers = #tpu.dot_dimension_numbers<[1], [0], [0], [1], [0, 0, 1, 1], [], []>} : vector<88x15xf32>, vector<15x64xf32>, vector<88x64xf32> -> vector<88x64xf32>
    %31 = arith.addf %24, %30 : vector<88x64xf32>
    %32 = vector.broadcast %14 : vector<1x64xf32> to vector<88x64xf32>
    %33 = arith.addf %31, %32 : vector<88x64xf32>
    %cst_26 = arith.constant 0.000000e+00 : f32
    %34 = vector.broadcast %cst_26 : f32 to vector<88x64xf32>
    %35 = arith.cmpf ogt, %33, %34 : vector<88x64xf32>
    %cst_27 = arith.constant 1.000000e-01 : f32
    %36 = vector.broadcast %cst_27 : f32 to vector<88x64xf32>
    %37 = arith.mulf %36, %33 : vector<88x64xf32>
    %38 = arith.select %35, %33, %37 : vector<88x64xi1>, vector<88x64xf32>
    %c0_28 = arith.constant 0 : index
    %c0_29 = arith.constant 0 : index
    %39 = vector.load %arg16[%c0_28, %c0_29] : memref<2x128xf32, #tpu.memory_space<vmem>>, vector<1x128xf32>
    %cst_30 = arith.constant 0.000000e+00 : f32
    %40 = vector.broadcast %cst_30 : f32 to vector<8x64xf32>
    %41 = vector.extract_strided_slice %38 {offsets = [0, 0], sizes = [80, 64], strides = [1, 1]} : vector<88x64xf32> to vector<80x64xf32>
    %42 = tpu.concatenate %40, %41 in 0 : vector<8x64xf32>, vector<80x64xf32> -> vector<88x64xf32>
    %c0_31 = arith.constant 0 : index
    %c0_32 = arith.constant 0 : index
    %c0_33 = arith.constant 0 : index
    %43 = vector.load %arg6[%c0_31, %c0_32, %c0_33] : memref<3x64x128xf32, #tpu.memory_space<vmem>>, vector<1x64x128xf32>
    %44 = vector.shape_cast %43 : vector<1x64x128xf32> to vector<64x128xf32>
    %cst_34 = arith.constant dense<0.000000e+00> : vector<88x128xf32>
    %45 = tpu.matmul %42, %44, %cst_34 {dimension_numbers = #tpu.dot_dimension_numbers<[1], [0], [0], [1], [0, 0, 1, 1], [], []>} : vector<88x64xf32>, vector<64x128xf32>, vector<88x128xf32> -> vector<88x128xf32>
    %c1_35 = arith.constant 1 : index
    %c0_36 = arith.constant 0 : index
    %c0_37 = arith.constant 0 : index
    %46 = vector.load %arg6[%c1_35, %c0_36, %c0_37] : memref<3x64x128xf32, #tpu.memory_space<vmem>>, vector<1x64x128xf32>
    %47 = vector.shape_cast %46 : vector<1x64x128xf32> to vector<64x128xf32>
    %cst_38 = arith.constant dense<0.000000e+00> : vector<88x128xf32>
    %48 = tpu.matmul %38, %47, %cst_38 {dimension_numbers = #tpu.dot_dimension_numbers<[1], [0], [0], [1], [0, 0, 1, 1], [], []>} : vector<88x64xf32>, vector<64x128xf32>, vector<88x128xf32> -> vector<88x128xf32>
    %49 = arith.addf %45, %48 : vector<88x128xf32>
    %50 = vector.extract_strided_slice %38 {offsets = [8, 0], sizes = [80, 64], strides = [1, 1]} : vector<88x64xf32> to vector<80x64xf32>
    %cst_39 = arith.constant 0.000000e+00 : f32
    %51 = vector.broadcast %cst_39 : f32 to vector<8x64xf32>
    %52 = tpu.concatenate %50, %51 in 0 : vector<80x64xf32>, vector<8x64xf32> -> vector<88x64xf32>
    %c2_40 = arith.constant 2 : index
    %c0_41 = arith.constant 0 : index
    %c0_42 = arith.constant 0 : index
    %53 = vector.load %arg6[%c2_40, %c0_41, %c0_42] : memref<3x64x128xf32, #tpu.memory_space<vmem>>, vector<1x64x128xf32>
    %54 = vector.shape_cast %53 : vector<1x64x128xf32> to vector<64x128xf32>
    %cst_43 = arith.constant dense<0.000000e+00> : vector<88x128xf32>
    %55 = tpu.matmul %52, %54, %cst_43 {dimension_numbers = #tpu.dot_dimension_numbers<[1], [0], [0], [1], [0, 0, 1, 1], [], []>} : vector<88x64xf32>, vector<64x128xf32>, vector<88x128xf32> -> vector<88x128xf32>
    %56 = arith.addf %49, %55 : vector<88x128xf32>
    %57 = vector.broadcast %39 : vector<1x128xf32> to vector<88x128xf32>
    %58 = arith.addf %56, %57 : vector<88x128xf32>
    %cst_44 = arith.constant 0.000000e+00 : f32
    %59 = vector.broadcast %cst_44 : f32 to vector<88x128xf32>
    %60 = arith.cmpf ogt, %58, %59 : vector<88x128xf32>
    %cst_45 = arith.constant 1.000000e-01 : f32
    %61 = vector.broadcast %cst_45 : f32 to vector<88x128xf32>
    %62 = arith.mulf %61, %58 : vector<88x128xf32>
    %63 = arith.select %60, %58, %62 : vector<88x128xi1>, vector<88x128xf32>
    %c0_46 = arith.constant 0 : index
    %c0_47 = arith.constant 0 : index
    %64 = vector.load %arg15[%c0_46, %c0_47] : memref<4x256xf32, #tpu.memory_space<vmem>>, vector<1x256xf32>
    %cst_48 = arith.constant 0.000000e+00 : f32
    %65 = vector.broadcast %cst_48 : f32 to vector<8x128xf32>
    %66 = vector.extract_strided_slice %63 {offsets = [0, 0], sizes = [80, 128], strides = [1, 1]} : vector<88x128xf32> to vector<80x128xf32>
    %67 = tpu.concatenate %65, %66 in 0 : vector<8x128xf32>, vector<80x128xf32> -> vector<88x128xf32>
    %c0_49 = arith.constant 0 : index
    %c0_50 = arith.constant 0 : index
    %c0_51 = arith.constant 0 : index
    %68 = vector.load %arg7[%c0_49, %c0_50, %c0_51] : memref<3x128x256xf32, #tpu.memory_space<vmem>>, vector<1x128x256xf32>
    %69 = vector.shape_cast %68 : vector<1x128x256xf32> to vector<128x256xf32>
    %cst_52 = arith.constant dense<0.000000e+00> : vector<88x256xf32>
    %70 = tpu.matmul %67, %69, %cst_52 {dimension_numbers = #tpu.dot_dimension_numbers<[1], [0], [0], [1], [0, 0, 1, 1], [], []>} : vector<88x128xf32>, vector<128x256xf32>, vector<88x256xf32> -> vector<88x256xf32>
    %c1_53 = arith.constant 1 : index
    %c0_54 = arith.constant 0 : index
    %c0_55 = arith.constant 0 : index
    %71 = vector.load %arg7[%c1_53, %c0_54, %c0_55] : memref<3x128x256xf32, #tpu.memory_space<vmem>>, vector<1x128x256xf32>
    %72 = vector.shape_cast %71 : vector<1x128x256xf32> to vector<128x256xf32>
    %cst_56 = arith.constant dense<0.000000e+00> : vector<88x256xf32>
    %73 = tpu.matmul %63, %72, %cst_56 {dimension_numbers = #tpu.dot_dimension_numbers<[1], [0], [0], [1], [0, 0, 1, 1], [], []>} : vector<88x128xf32>, vector<128x256xf32>, vector<88x256xf32> -> vector<88x256xf32>
    %74 = arith.addf %70, %73 : vector<88x256xf32>
    %75 = vector.extract_strided_slice %63 {offsets = [8, 0], sizes = [80, 128], strides = [1, 1]} : vector<88x128xf32> to vector<80x128xf32>
    %cst_57 = arith.constant 0.000000e+00 : f32
    %76 = vector.broadcast %cst_57 : f32 to vector<8x128xf32>
    %77 = tpu.concatenate %75, %76 in 0 : vector<80x128xf32>, vector<8x128xf32> -> vector<88x128xf32>
    %c2_58 = arith.constant 2 : index
    %c0_59 = arith.constant 0 : index
    %c0_60 = arith.constant 0 : index
    %78 = vector.load %arg7[%c2_58, %c0_59, %c0_60] : memref<3x128x256xf32, #tpu.memory_space<vmem>>, vector<1x128x256xf32>
    %79 = vector.shape_cast %78 : vector<1x128x256xf32> to vector<128x256xf32>
    %cst_61 = arith.constant dense<0.000000e+00> : vector<88x256xf32>
    %80 = tpu.matmul %77, %79, %cst_61 {dimension_numbers = #tpu.dot_dimension_numbers<[1], [0], [0], [1], [0, 0, 1, 1], [], []>} : vector<88x128xf32>, vector<128x256xf32>, vector<88x256xf32> -> vector<88x256xf32>
    %81 = arith.addf %74, %80 : vector<88x256xf32>
    %82 = vector.broadcast %64 : vector<1x256xf32> to vector<88x256xf32>
    %83 = arith.addf %81, %82 : vector<88x256xf32>
    %cst_62 = arith.constant 0.000000e+00 : f32
    %84 = vector.broadcast %cst_62 : f32 to vector<88x256xf32>
    %85 = arith.cmpf ogt, %83, %84 : vector<88x256xf32>
    %cst_63 = arith.constant 1.000000e-01 : f32
    %86 = vector.broadcast %cst_63 : f32 to vector<88x256xf32>
    %87 = arith.mulf %86, %83 : vector<88x256xf32>
    %88 = arith.select %85, %83, %87 : vector<88x256xi1>, vector<88x256xf32>
    %cst_64 = arith.constant 0.000000e+00 : f32
    %89 = vector.broadcast %cst_64 : f32 to vector<8x32xf32>
    %90 = vector.extract_strided_slice %88 {offsets = [0, 0], sizes = [8, 256], strides = [1, 1]} : vector<88x256xf32> to vector<8x256xf32>
    %c0_65 = arith.constant 0 : index
    %c0_66 = arith.constant 0 : index
    %c0_67 = arith.constant 0 : index
    %91 = vector.load %arg8[%c0_65, %c0_66, %c0_67] : memref<11x256x32xf32, #tpu.memory_space<vmem>>, vector<1x256x32xf32>
    %92 = vector.shape_cast %91 : vector<1x256x32xf32> to vector<256x32xf32>
    %cst_68 = arith.constant dense<0.000000e+00> : vector<8x32xf32>
    %93 = tpu.matmul %90, %92, %cst_68 {dimension_numbers = #tpu.dot_dimension_numbers<[1], [0], [0], [1], [0, 0, 1, 1], [], []>} : vector<8x256xf32>, vector<256x32xf32>, vector<8x32xf32> -> vector<8x32xf32>
    %94 = arith.addf %89, %93 : vector<8x32xf32>
    %95 = vector.extract_strided_slice %88 {offsets = [8, 0], sizes = [8, 256], strides = [1, 1]} : vector<88x256xf32> to vector<8x256xf32>
    %c1_69 = arith.constant 1 : index
    %c0_70 = arith.constant 0 : index
    %c0_71 = arith.constant 0 : index
    %96 = vector.load %arg8[%c1_69, %c0_70, %c0_71] : memref<11x256x32xf32, #tpu.memory_space<vmem>>, vector<1x256x32xf32>
    %97 = vector.shape_cast %96 : vector<1x256x32xf32> to vector<256x32xf32>
    %cst_72 = arith.constant dense<0.000000e+00> : vector<8x32xf32>
    %98 = tpu.matmul %95, %97, %cst_72 {dimension_numbers = #tpu.dot_dimension_numbers<[1], [0], [0], [1], [0, 0, 1, 1], [], []>} : vector<8x256xf32>, vector<256x32xf32>, vector<8x32xf32> -> vector<8x32xf32>
    %99 = arith.addf %94, %98 : vector<8x32xf32>
    %100 = vector.extract_strided_slice %88 {offsets = [16, 0], sizes = [8, 256], strides = [1, 1]} : vector<88x256xf32> to vector<8x256xf32>
    %c2_73 = arith.constant 2 : index
    %c0_74 = arith.constant 0 : index
    %c0_75 = arith.constant 0 : index
    %101 = vector.load %arg8[%c2_73, %c0_74, %c0_75] : memref<11x256x32xf32, #tpu.memory_space<vmem>>, vector<1x256x32xf32>
    %102 = vector.shape_cast %101 : vector<1x256x32xf32> to vector<256x32xf32>
    %cst_76 = arith.constant dense<0.000000e+00> : vector<8x32xf32>
    %103 = tpu.matmul %100, %102, %cst_76 {dimension_numbers = #tpu.dot_dimension_numbers<[1], [0], [0], [1], [0, 0, 1, 1], [], []>} : vector<8x256xf32>, vector<256x32xf32>, vector<8x32xf32> -> vector<8x32xf32>
    %104 = arith.addf %99, %103 : vector<8x32xf32>
    %105 = vector.extract_strided_slice %88 {offsets = [24, 0], sizes = [8, 256], strides = [1, 1]} : vector<88x256xf32> to vector<8x256xf32>
    %c3 = arith.constant 3 : index
    %c0_77 = arith.constant 0 : index
    %c0_78 = arith.constant 0 : index
    %106 = vector.load %arg8[%c3, %c0_77, %c0_78] : memref<11x256x32xf32, #tpu.memory_space<vmem>>, vector<1x256x32xf32>
    %107 = vector.shape_cast %106 : vector<1x256x32xf32> to vector<256x32xf32>
    %cst_79 = arith.constant dense<0.000000e+00> : vector<8x32xf32>
    %108 = tpu.matmul %105, %107, %cst_79 {dimension_numbers = #tpu.dot_dimension_numbers<[1], [0], [0], [1], [0, 0, 1, 1], [], []>} : vector<8x256xf32>, vector<256x32xf32>, vector<8x32xf32> -> vector<8x32xf32>
    %109 = arith.addf %104, %108 : vector<8x32xf32>
    %110 = vector.extract_strided_slice %88 {offsets = [32, 0], sizes = [8, 256], strides = [1, 1]} : vector<88x256xf32> to vector<8x256xf32>
    %c4 = arith.constant 4 : index
    %c0_80 = arith.constant 0 : index
    %c0_81 = arith.constant 0 : index
    %111 = vector.load %arg8[%c4, %c0_80, %c0_81] : memref<11x256x32xf32, #tpu.memory_space<vmem>>, vector<1x256x32xf32>
    %112 = vector.shape_cast %111 : vector<1x256x32xf32> to vector<256x32xf32>
    %cst_82 = arith.constant dense<0.000000e+00> : vector<8x32xf32>
    %113 = tpu.matmul %110, %112, %cst_82 {dimension_numbers = #tpu.dot_dimension_numbers<[1], [0], [0], [1], [0, 0, 1, 1], [], []>} : vector<8x256xf32>, vector<256x32xf32>, vector<8x32xf32> -> vector<8x32xf32>
    %114 = arith.addf %109, %113 : vector<8x32xf32>
    %115 = vector.extract_strided_slice %88 {offsets = [40, 0], sizes = [8, 256], strides = [1, 1]} : vector<88x256xf32> to vector<8x256xf32>
    %c5 = arith.constant 5 : index
    %c0_83 = arith.constant 0 : index
    %c0_84 = arith.constant 0 : index
    %116 = vector.load %arg8[%c5, %c0_83, %c0_84] : memref<11x256x32xf32, #tpu.memory_space<vmem>>, vector<1x256x32xf32>
    %117 = vector.shape_cast %116 : vector<1x256x32xf32> to vector<256x32xf32>
    %cst_85 = arith.constant dense<0.000000e+00> : vector<8x32xf32>
    %118 = tpu.matmul %115, %117, %cst_85 {dimension_numbers = #tpu.dot_dimension_numbers<[1], [0], [0], [1], [0, 0, 1, 1], [], []>} : vector<8x256xf32>, vector<256x32xf32>, vector<8x32xf32> -> vector<8x32xf32>
    %119 = arith.addf %114, %118 : vector<8x32xf32>
    %120 = vector.extract_strided_slice %88 {offsets = [48, 0], sizes = [8, 256], strides = [1, 1]} : vector<88x256xf32> to vector<8x256xf32>
    %c6 = arith.constant 6 : index
    %c0_86 = arith.constant 0 : index
    %c0_87 = arith.constant 0 : index
    %121 = vector.load %arg8[%c6, %c0_86, %c0_87] : memref<11x256x32xf32, #tpu.memory_space<vmem>>, vector<1x256x32xf32>
    %122 = vector.shape_cast %121 : vector<1x256x32xf32> to vector<256x32xf32>
    %cst_88 = arith.constant dense<0.000000e+00> : vector<8x32xf32>
    %123 = tpu.matmul %120, %122, %cst_88 {dimension_numbers = #tpu.dot_dimension_numbers<[1], [0], [0], [1], [0, 0, 1, 1], [], []>} : vector<8x256xf32>, vector<256x32xf32>, vector<8x32xf32> -> vector<8x32xf32>
    %124 = arith.addf %119, %123 : vector<8x32xf32>
    %125 = vector.extract_strided_slice %88 {offsets = [56, 0], sizes = [8, 256], strides = [1, 1]} : vector<88x256xf32> to vector<8x256xf32>
    %c7 = arith.constant 7 : index
    %c0_89 = arith.constant 0 : index
    %c0_90 = arith.constant 0 : index
    %126 = vector.load %arg8[%c7, %c0_89, %c0_90] : memref<11x256x32xf32, #tpu.memory_space<vmem>>, vector<1x256x32xf32>
    %127 = vector.shape_cast %126 : vector<1x256x32xf32> to vector<256x32xf32>
    %cst_91 = arith.constant dense<0.000000e+00> : vector<8x32xf32>
    %128 = tpu.matmul %125, %127, %cst_91 {dimension_numbers = #tpu.dot_dimension_numbers<[1], [0], [0], [1], [0, 0, 1, 1], [], []>} : vector<8x256xf32>, vector<256x32xf32>, vector<8x32xf32> -> vector<8x32xf32>
    %129 = arith.addf %124, %128 : vector<8x32xf32>
    %130 = vector.extract_strided_slice %88 {offsets = [64, 0], sizes = [8, 256], strides = [1, 1]} : vector<88x256xf32> to vector<8x256xf32>
    %c8 = arith.constant 8 : index
    %c0_92 = arith.constant 0 : index
    %c0_93 = arith.constant 0 : index
    %131 = vector.load %arg8[%c8, %c0_92, %c0_93] : memref<11x256x32xf32, #tpu.memory_space<vmem>>, vector<1x256x32xf32>
    %132 = vector.shape_cast %131 : vector<1x256x32xf32> to vector<256x32xf32>
    %cst_94 = arith.constant dense<0.000000e+00> : vector<8x32xf32>
    %133 = tpu.matmul %130, %132, %cst_94 {dimension_numbers = #tpu.dot_dimension_numbers<[1], [0], [0], [1], [0, 0, 1, 1], [], []>} : vector<8x256xf32>, vector<256x32xf32>, vector<8x32xf32> -> vector<8x32xf32>
    %134 = arith.addf %129, %133 : vector<8x32xf32>
    %135 = vector.extract_strided_slice %88 {offsets = [72, 0], sizes = [8, 256], strides = [1, 1]} : vector<88x256xf32> to vector<8x256xf32>
    %c9 = arith.constant 9 : index
    %c0_95 = arith.constant 0 : index
    %c0_96 = arith.constant 0 : index
    %136 = vector.load %arg8[%c9, %c0_95, %c0_96] : memref<11x256x32xf32, #tpu.memory_space<vmem>>, vector<1x256x32xf32>
    %137 = vector.shape_cast %136 : vector<1x256x32xf32> to vector<256x32xf32>
    %cst_97 = arith.constant dense<0.000000e+00> : vector<8x32xf32>
    %138 = tpu.matmul %135, %137, %cst_97 {dimension_numbers = #tpu.dot_dimension_numbers<[1], [0], [0], [1], [0, 0, 1, 1], [], []>} : vector<8x256xf32>, vector<256x32xf32>, vector<8x32xf32> -> vector<8x32xf32>
    %139 = arith.addf %134, %138 : vector<8x32xf32>
    %140 = vector.extract_strided_slice %88 {offsets = [80, 0], sizes = [8, 256], strides = [1, 1]} : vector<88x256xf32> to vector<8x256xf32>
    %c10 = arith.constant 10 : index
    %c0_98 = arith.constant 0 : index
    %c0_99 = arith.constant 0 : index
    %141 = vector.load %arg8[%c10, %c0_98, %c0_99] : memref<11x256x32xf32, #tpu.memory_space<vmem>>, vector<1x256x32xf32>
    %142 = vector.shape_cast %141 : vector<1x256x32xf32> to vector<256x32xf32>
    %cst_100 = arith.constant dense<0.000000e+00> : vector<8x32xf32>
    %143 = tpu.matmul %140, %142, %cst_100 {dimension_numbers = #tpu.dot_dimension_numbers<[1], [0], [0], [1], [0, 0, 1, 1], [], []>} : vector<8x256xf32>, vector<256x32xf32>, vector<8x32xf32> -> vector<8x32xf32>
    %144 = arith.addf %139, %143 : vector<8x32xf32>
    %145 = vector.broadcast %2 : vector<1x32xf32> to vector<8x32xf32>
    %146 = arith.addf %144, %145 : vector<8x32xf32>
    %c0_101 = arith.constant 0 : index
    %c0_102 = arith.constant 0 : index
    %147 = vector.load %arg10[%c0_101, %c0_102] : memref<9x8xf32, #tpu.memory_space<vmem>>, vector<9x8xf32>
    %148 = vector.extract_strided_slice %147 {offsets = [0, 0], sizes = [1, 8], strides = [1, 1]} : vector<9x8xf32> to vector<1x8xf32>
    %149 = vector.extract_strided_slice %147 {offsets = [1, 0], sizes = [1, 8], strides = [1, 1]} : vector<9x8xf32> to vector<1x8xf32>
    %150 = vector.extract_strided_slice %147 {offsets = [2, 0], sizes = [1, 8], strides = [1, 1]} : vector<9x8xf32> to vector<1x8xf32>
    %151 = vector.extract_strided_slice %147 {offsets = [3, 0], sizes = [1, 8], strides = [1, 1]} : vector<9x8xf32> to vector<1x8xf32>
    %152 = vector.extract_strided_slice %147 {offsets = [4, 0], sizes = [1, 8], strides = [1, 1]} : vector<9x8xf32> to vector<1x8xf32>
    %153 = vector.extract_strided_slice %147 {offsets = [5, 0], sizes = [1, 8], strides = [1, 1]} : vector<9x8xf32> to vector<1x8xf32>
    %154 = vector.extract_strided_slice %147 {offsets = [6, 0], sizes = [1, 8], strides = [1, 1]} : vector<9x8xf32> to vector<1x8xf32>
    %155 = vector.extract_strided_slice %147 {offsets = [7, 0], sizes = [1, 8], strides = [1, 1]} : vector<9x8xf32> to vector<1x8xf32>
    %156 = vector.extract_strided_slice %147 {offsets = [8, 0], sizes = [1, 8], strides = [1, 1]} : vector<9x8xf32> to vector<1x8xf32>
    %157 = tpu.transpose %9, [1, 0] : vector<8x32xf32> -> vector<32x8xf32>
    %158 = tpu.transpose %146, [1, 0] : vector<8x32xf32> -> vector<32x8xf32>
    %c0_103 = arith.constant 0 : index
    %c0_104 = arith.constant 0 : index
    %c0_105 = arith.constant 0 : index
    %159 = vector.load %arg9[%c0_103, %c0_104, %c0_105] : memref<4x8x8xf32, #tpu.memory_space<vmem>>, vector<1x8x8xf32>
    %160 = vector.shape_cast %159 : vector<1x8x8xf32> to vector<8x8xf32>
    %cst_106 = arith.constant dense<0.000000e+00> : vector<32x8xf32>
    %161 = tpu.matmul %157, %160, %cst_106 {dimension_numbers = #tpu.dot_dimension_numbers<[1], [0], [0], [1], [0, 0, 1, 1], [], []>} : vector<32x8xf32>, vector<8x8xf32>, vector<32x8xf32> -> vector<32x8xf32>
    %162 = vector.broadcast %148 : vector<1x8xf32> to vector<32x8xf32>
    %163 = arith.addf %161, %162 : vector<32x8xf32>
    %c1_107 = arith.constant 1 : index
    %c0_108 = arith.constant 0 : index
    %c0_109 = arith.constant 0 : index
    %164 = vector.load %arg9[%c1_107, %c0_108, %c0_109] : memref<4x8x8xf32, #tpu.memory_space<vmem>>, vector<1x8x8xf32>
    %165 = vector.shape_cast %164 : vector<1x8x8xf32> to vector<8x8xf32>
    %cst_110 = arith.constant dense<0.000000e+00> : vector<32x8xf32>
    %166 = tpu.matmul %158, %165, %cst_110 {dimension_numbers = #tpu.dot_dimension_numbers<[1], [0], [0], [1], [0, 0, 1, 1], [], []>} : vector<32x8xf32>, vector<8x8xf32>, vector<32x8xf32> -> vector<32x8xf32>
    %167 = vector.broadcast %149 : vector<1x8xf32> to vector<32x8xf32>
    %168 = arith.addf %166, %167 : vector<32x8xf32>
    %c2_111 = arith.constant 2 : index
    %c0_112 = arith.constant 0 : index
    %c0_113 = arith.constant 0 : index
    %169 = vector.load %arg9[%c2_111, %c0_112, %c0_113] : memref<4x8x8xf32, #tpu.memory_space<vmem>>, vector<1x8x8xf32>
    %170 = vector.shape_cast %169 : vector<1x8x8xf32> to vector<8x8xf32>
    %cst_114 = arith.constant dense<0.000000e+00> : vector<32x8xf32>
    %171 = tpu.matmul %158, %170, %cst_114 {dimension_numbers = #tpu.dot_dimension_numbers<[1], [0], [0], [1], [0, 0, 1, 1], [], []>} : vector<32x8xf32>, vector<8x8xf32>, vector<32x8xf32> -> vector<32x8xf32>
    %172 = vector.broadcast %150 : vector<1x8xf32> to vector<32x8xf32>
    %173 = arith.addf %171, %172 : vector<32x8xf32>
    %cst_115 = arith.constant dense<0.000000e+00> : vector<32x32xf32>
    %174 = tpu.matmul %163, %168, %cst_115 {dimension_numbers = #tpu.dot_dimension_numbers<[1], [1], [0], [0], [0, 0, 1, 0], [], []>} : vector<32x8xf32>, vector<32x8xf32>, vector<32x32xf32> -> vector<32x32xf32>
    %cst_116 = arith.constant 0.353553385 : f32
    %175 = vector.broadcast %cst_116 : f32 to vector<32x32xf32>
    %176 = arith.mulf %174, %175 : vector<32x32xf32>
    %cst_117 = arith.constant dense<0xFF800000> : vector<32xf32>
    %177 = vector.multi_reduction <maximumf>, %176, %cst_117 [1] : vector<32x32xf32> to vector<32xf32>
    %178 = vector.shape_cast %177 : vector<32xf32> to vector<32x1xf32>
    %179 = vector.broadcast %178 : vector<32x1xf32> to vector<32x32xf32>
    %180 = arith.subf %176, %179 : vector<32x32xf32>
    %181 = math.exp %180 : vector<32x32xf32>
    %cst_118 = arith.constant dense<0.000000e+00> : vector<32xf32>
    %182 = vector.multi_reduction <add>, %181, %cst_118 [1] : vector<32x32xf32> to vector<32xf32>
    %183 = vector.shape_cast %182 : vector<32xf32> to vector<32x1xf32>
    %184 = vector.broadcast %183 : vector<32x1xf32> to vector<32x32xf32>
    %185 = arith.divf %181, %184 : vector<32x32xf32>
    %cst_119 = arith.constant dense<0.000000e+00> : vector<32x8xf32>
    %186 = tpu.matmul %185, %173, %cst_119 {dimension_numbers = #tpu.dot_dimension_numbers<[1], [0], [0], [1], [0, 0, 1, 1], [], []>} : vector<32x32xf32>, vector<32x8xf32>, vector<32x8xf32> -> vector<32x8xf32>
    %c3_120 = arith.constant 3 : index
    %c0_121 = arith.constant 0 : index
    %c0_122 = arith.constant 0 : index
    %187 = vector.load %arg9[%c3_120, %c0_121, %c0_122] : memref<4x8x8xf32, #tpu.memory_space<vmem>>, vector<1x8x8xf32>
    %188 = vector.shape_cast %187 : vector<1x8x8xf32> to vector<8x8xf32>
    %cst_123 = arith.constant dense<0.000000e+00> : vector<32x8xf32>
    %189 = tpu.matmul %186, %188, %cst_123 {dimension_numbers = #tpu.dot_dimension_numbers<[1], [0], [0], [1], [0, 0, 1, 1], [], []>} : vector<32x8xf32>, vector<8x8xf32>, vector<32x8xf32> -> vector<32x8xf32>
    %190 = vector.broadcast %151 : vector<1x8xf32> to vector<32x8xf32>
    %191 = arith.addf %189, %190 : vector<32x8xf32>
    %192 = arith.addf %191, %157 : vector<32x8xf32>
    %cst_124 = arith.constant dense<0.000000e+00> : vector<32xf32>
    %193 = vector.multi_reduction <add>, %192, %cst_124 [1] : vector<32x8xf32> to vector<32xf32>
    %194 = vector.shape_cast %193 : vector<32xf32> to vector<32x1xf32>
    %cst_125 = arith.constant 8.000000e+00 : f32
    %195 = vector.broadcast %cst_125 : f32 to vector<32x1xf32>
    %196 = arith.divf %194, %195 : vector<32x1xf32>
    %197 = vector.broadcast %196 : vector<32x1xf32> to vector<32x8xf32>
    %198 = arith.subf %192, %197 : vector<32x8xf32>
    %199 = arith.mulf %198, %198 : vector<32x8xf32>
    %cst_126 = arith.constant dense<0.000000e+00> : vector<32xf32>
    %200 = vector.multi_reduction <add>, %199, %cst_126 [1] : vector<32x8xf32> to vector<32xf32>
    %201 = vector.shape_cast %200 : vector<32xf32> to vector<32x1xf32>
    %cst_127 = arith.constant 8.000000e+00 : f32
    %202 = vector.broadcast %cst_127 : f32 to vector<32x1xf32>
    %203 = arith.divf %201, %202 : vector<32x1xf32>
    %cst_128 = arith.constant 9.99999974E-6 : f32
    %204 = vector.broadcast %cst_128 : f32 to vector<32x1xf32>
    %205 = arith.addf %203, %204 : vector<32x1xf32>
    %206 = math.rsqrt %205 : vector<32x1xf32>
    %207 = vector.broadcast %206 : vector<32x1xf32> to vector<32x8xf32>
    %208 = arith.mulf %198, %207 : vector<32x8xf32>
    %209 = vector.broadcast %152 : vector<1x8xf32> to vector<32x8xf32>
    %210 = arith.mulf %208, %209 : vector<32x8xf32>
    %211 = vector.broadcast %153 : vector<1x8xf32> to vector<32x8xf32>
    %212 = arith.addf %210, %211 : vector<32x8xf32>
    %c0_129 = arith.constant 0 : index
    %c0_130 = arith.constant 0 : index
    %213 = vector.load %arg11[%c0_129, %c0_130] : memref<8x32xf32, #tpu.memory_space<vmem>>, vector<8x32xf32>
    %cst_131 = arith.constant dense<0.000000e+00> : vector<32x32xf32>
    %214 = tpu.matmul %212, %213, %cst_131 {dimension_numbers = #tpu.dot_dimension_numbers<[1], [0], [0], [1], [0, 0, 1, 1], [], []>} : vector<32x8xf32>, vector<8x32xf32>, vector<32x32xf32> -> vector<32x32xf32>
    %215 = vector.broadcast %3 : vector<1x32xf32> to vector<32x32xf32>
    %216 = arith.addf %214, %215 : vector<32x32xf32>
    %cst_132 = arith.constant 5.000000e-01 : f32
    %217 = vector.broadcast %cst_132 : f32 to vector<32x32xf32>
    %218 = arith.mulf %217, %216 : vector<32x32xf32>
    %cst_133 = arith.constant 4.471500e-02 : f32
    %219 = vector.broadcast %cst_133 : f32 to vector<32x32xf32>
    %220 = arith.mulf %219, %216 : vector<32x32xf32>
    %221 = arith.mulf %220, %216 : vector<32x32xf32>
    %222 = arith.mulf %221, %216 : vector<32x32xf32>
    %223 = arith.addf %216, %222 : vector<32x32xf32>
    %cst_134 = arith.constant 0.797884583 : f32
    %224 = vector.broadcast %cst_134 : f32 to vector<32x32xf32>
    %225 = arith.mulf %224, %223 : vector<32x32xf32>
    %226 = math.tanh %225 : vector<32x32xf32>
    %cst_135 = arith.constant 1.000000e+00 : f32
    %227 = vector.broadcast %cst_135 : f32 to vector<32x32xf32>
    %228 = arith.addf %227, %226 : vector<32x32xf32>
    %229 = arith.mulf %218, %228 : vector<32x32xf32>
    %c0_136 = arith.constant 0 : index
    %c0_137 = arith.constant 0 : index
    %230 = vector.load %arg12[%c0_136, %c0_137] : memref<32x8xf32, #tpu.memory_space<vmem>>, vector<32x8xf32>
    %cst_138 = arith.constant dense<0.000000e+00> : vector<32x8xf32>
    %231 = tpu.matmul %229, %230, %cst_138 {dimension_numbers = #tpu.dot_dimension_numbers<[1], [0], [0], [1], [0, 0, 1, 1], [], []>} : vector<32x32xf32>, vector<32x8xf32>, vector<32x8xf32> -> vector<32x8xf32>
    %232 = vector.broadcast %156 : vector<1x8xf32> to vector<32x8xf32>
    %233 = arith.addf %231, %232 : vector<32x8xf32>
    %234 = arith.addf %233, %212 : vector<32x8xf32>
    %cst_139 = arith.constant dense<0.000000e+00> : vector<32xf32>
    %235 = vector.multi_reduction <add>, %234, %cst_139 [1] : vector<32x8xf32> to vector<32xf32>
    %236 = vector.shape_cast %235 : vector<32xf32> to vector<32x1xf32>
    %cst_140 = arith.constant 8.000000e+00 : f32
    %237 = vector.broadcast %cst_140 : f32 to vector<32x1xf32>
    %238 = arith.divf %236, %237 : vector<32x1xf32>
    %239 = vector.broadcast %238 : vector<32x1xf32> to vector<32x8xf32>
    %240 = arith.subf %234, %239 : vector<32x8xf32>
    %241 = arith.mulf %240, %240 : vector<32x8xf32>
    %cst_141 = arith.constant dense<0.000000e+00> : vector<32xf32>
    %242 = vector.multi_reduction <add>, %241, %cst_141 [1] : vector<32x8xf32> to vector<32xf32>
    %243 = vector.shape_cast %242 : vector<32xf32> to vector<32x1xf32>
    %cst_142 = arith.constant 8.000000e+00 : f32
    %244 = vector.broadcast %cst_142 : f32 to vector<32x1xf32>
    %245 = arith.divf %243, %244 : vector<32x1xf32>
    %cst_143 = arith.constant 9.99999974E-6 : f32
    %246 = vector.broadcast %cst_143 : f32 to vector<32x1xf32>
    %247 = arith.addf %245, %246 : vector<32x1xf32>
    %248 = math.rsqrt %247 : vector<32x1xf32>
    %249 = vector.broadcast %248 : vector<32x1xf32> to vector<32x8xf32>
    %250 = arith.mulf %240, %249 : vector<32x8xf32>
    %251 = vector.broadcast %154 : vector<1x8xf32> to vector<32x8xf32>
    %252 = arith.mulf %250, %251 : vector<32x8xf32>
    %253 = vector.broadcast %155 : vector<1x8xf32> to vector<32x8xf32>
    %254 = arith.addf %252, %253 : vector<32x8xf32>
    %255 = tpu.transpose %254, [1, 0] : vector<32x8xf32> -> vector<8x32xf32>
    %c0_144 = arith.constant 0 : index
    %c0_145 = arith.constant 0 : index
    %256 = vector.load %arg14[%c0_144, %c0_145] : memref<288x256xf32, #tpu.memory_space<vmem>>, vector<288x256xf32>
    %257 = vector.extract_strided_slice %256 {offsets = [0, 0], sizes = [32, 256], strides = [1, 1]} : vector<288x256xf32> to vector<32x256xf32>
    %258 = vector.extract_strided_slice %256 {offsets = [32, 0], sizes = [64, 256], strides = [1, 1]} : vector<288x256xf32> to vector<64x256xf32>
    %259 = vector.extract_strided_slice %256 {offsets = [96, 0], sizes = [64, 256], strides = [1, 1]} : vector<288x256xf32> to vector<64x256xf32>
    %260 = vector.extract_strided_slice %256 {offsets = [160, 0], sizes = [64, 256], strides = [1, 1]} : vector<288x256xf32> to vector<64x256xf32>
    %261 = vector.extract_strided_slice %256 {offsets = [224, 0], sizes = [64, 256], strides = [1, 1]} : vector<288x256xf32> to vector<64x256xf32>
    %c0_146 = arith.constant 0 : index
    %c0_147 = arith.constant 0 : index
    %262 = vector.load %arg15[%c0_146, %c0_147] : memref<4x256xf32, #tpu.memory_space<vmem>>, vector<4x256xf32>
    %263 = vector.extract_strided_slice %262 {offsets = [1, 0], sizes = [1, 256], strides = [1, 1]} : vector<4x256xf32> to vector<1x256xf32>
    %264 = vector.extract_strided_slice %262 {offsets = [2, 0], sizes = [1, 256], strides = [1, 1]} : vector<4x256xf32> to vector<1x256xf32>
    %265 = vector.extract_strided_slice %262 {offsets = [3, 0], sizes = [1, 256], strides = [1, 1]} : vector<4x256xf32> to vector<1x256xf32>
    %c1_148 = arith.constant 1 : index
    %c0_149 = arith.constant 0 : index
    %266 = vector.load %arg16[%c1_148, %c0_149] : memref<2x128xf32, #tpu.memory_space<vmem>>, vector<1x128xf32>
    %cst_150 = arith.constant 0.000000e+00 : f32
    %267 = vector.broadcast %cst_150 : f32 to vector<1x64xf32>
    %cst_151 = arith.constant 0.000000e+00 : f32
    %268 = vector.broadcast %cst_151 : f32 to vector<1x64xf32>
    %cst_152 = arith.constant 0.000000e+00 : f32
    %269 = vector.broadcast %cst_152 : f32 to vector<1x64xf32>
    %cst_153 = arith.constant 0.000000e+00 : f32
    %270 = vector.broadcast %cst_153 : f32 to vector<1x64xf32>
    %271 = vector.extract_strided_slice %255 {offsets = [0, 0], sizes = [1, 32], strides = [1, 1]} : vector<8x32xf32> to vector<1x32xf32>
    %cst_154 = arith.constant dense<0.000000e+00> : vector<1x256xf32>
    %272 = tpu.matmul %271, %257, %cst_154 {dimension_numbers = #tpu.dot_dimension_numbers<[1], [0], [0], [1], [0, 0, 1, 1], [], []>} : vector<1x32xf32>, vector<32x256xf32>, vector<1x256xf32> -> vector<1x256xf32>
    %cst_155 = arith.constant dense<0.000000e+00> : vector<1x256xf32>
    %273 = tpu.matmul %267, %258, %cst_155 {dimension_numbers = #tpu.dot_dimension_numbers<[1], [0], [0], [1], [0, 0, 1, 1], [], []>} : vector<1x64xf32>, vector<64x256xf32>, vector<1x256xf32> -> vector<1x256xf32>
    %274 = arith.addf %272, %273 : vector<1x256xf32>
    %275 = arith.addf %274, %263 : vector<1x256xf32>
    %276 = vector.extract_strided_slice %275 {offsets = [0, 0], sizes = [1, 64], strides = [1, 1]} : vector<1x256xf32> to vector<1x64xf32>
    %277 = arith.negf %276 : vector<1x64xf32>
    %278 = math.exp %277 : vector<1x64xf32>
    %cst_156 = arith.constant 1.000000e+00 : f32
    %279 = vector.broadcast %cst_156 : f32 to vector<1x64xf32>
    %280 = arith.addf %279, %278 : vector<1x64xf32>
    %281 = arith.divf %279, %280 : vector<1x64xf32>
    %282 = vector.extract_strided_slice %275 {offsets = [0, 64], sizes = [1, 64], strides = [1, 1]} : vector<1x256xf32> to vector<1x64xf32>
    %283 = arith.negf %282 : vector<1x64xf32>
    %284 = math.exp %283 : vector<1x64xf32>
    %cst_157 = arith.constant 1.000000e+00 : f32
    %285 = vector.broadcast %cst_157 : f32 to vector<1x64xf32>
    %286 = arith.addf %285, %284 : vector<1x64xf32>
    %287 = arith.divf %285, %286 : vector<1x64xf32>
    %288 = vector.extract_strided_slice %275 {offsets = [0, 128], sizes = [1, 64], strides = [1, 1]} : vector<1x256xf32> to vector<1x64xf32>
    %289 = math.tanh %288 : vector<1x64xf32>
    %290 = vector.extract_strided_slice %275 {offsets = [0, 192], sizes = [1, 64], strides = [1, 1]} : vector<1x256xf32> to vector<1x64xf32>
    %291 = arith.negf %290 : vector<1x64xf32>
    %292 = math.exp %291 : vector<1x64xf32>
    %cst_158 = arith.constant 1.000000e+00 : f32
    %293 = vector.broadcast %cst_158 : f32 to vector<1x64xf32>
    %294 = arith.addf %293, %292 : vector<1x64xf32>
    %295 = arith.divf %293, %294 : vector<1x64xf32>
    %296 = arith.mulf %287, %268 : vector<1x64xf32>
    %297 = arith.mulf %281, %289 : vector<1x64xf32>
    %298 = arith.addf %296, %297 : vector<1x64xf32>
    %299 = math.tanh %298 : vector<1x64xf32>
    %300 = arith.mulf %295, %299 : vector<1x64xf32>
    %cst_159 = arith.constant dense<0.000000e+00> : vector<1x256xf32>
    %301 = tpu.matmul %300, %259, %cst_159 {dimension_numbers = #tpu.dot_dimension_numbers<[1], [0], [0], [1], [0, 0, 1, 1], [], []>} : vector<1x64xf32>, vector<64x256xf32>, vector<1x256xf32> -> vector<1x256xf32>
    %cst_160 = arith.constant dense<0.000000e+00> : vector<1x256xf32>
    %302 = tpu.matmul %269, %260, %cst_160 {dimension_numbers = #tpu.dot_dimension_numbers<[1], [0], [0], [1], [0, 0, 1, 1], [], []>} : vector<1x64xf32>, vector<64x256xf32>, vector<1x256xf32> -> vector<1x256xf32>
    %303 = arith.addf %301, %302 : vector<1x256xf32>
    %304 = arith.addf %303, %264 : vector<1x256xf32>
    %305 = vector.extract_strided_slice %304 {offsets = [0, 0], sizes = [1, 64], strides = [1, 1]} : vector<1x256xf32> to vector<1x64xf32>
    %306 = arith.negf %305 : vector<1x64xf32>
    %307 = math.exp %306 : vector<1x64xf32>
    %cst_161 = arith.constant 1.000000e+00 : f32
    %308 = vector.broadcast %cst_161 : f32 to vector<1x64xf32>
    %309 = arith.addf %308, %307 : vector<1x64xf32>
    %310 = arith.divf %308, %309 : vector<1x64xf32>
    %311 = vector.extract_strided_slice %304 {offsets = [0, 64], sizes = [1, 64], strides = [1, 1]} : vector<1x256xf32> to vector<1x64xf32>
    %312 = arith.negf %311 : vector<1x64xf32>
    %313 = math.exp %312 : vector<1x64xf32>
    %cst_162 = arith.constant 1.000000e+00 : f32
    %314 = vector.broadcast %cst_162 : f32 to vector<1x64xf32>
    %315 = arith.addf %314, %313 : vector<1x64xf32>
    %316 = arith.divf %314, %315 : vector<1x64xf32>
    %317 = vector.extract_strided_slice %304 {offsets = [0, 128], sizes = [1, 64], strides = [1, 1]} : vector<1x256xf32> to vector<1x64xf32>
    %318 = math.tanh %317 : vector<1x64xf32>
    %319 = vector.extract_strided_slice %304 {offsets = [0, 192], sizes = [1, 64], strides = [1, 1]} : vector<1x256xf32> to vector<1x64xf32>
    %320 = arith.negf %319 : vector<1x64xf32>
    %321 = math.exp %320 : vector<1x64xf32>
    %cst_163 = arith.constant 1.000000e+00 : f32
    %322 = vector.broadcast %cst_163 : f32 to vector<1x64xf32>
    %323 = arith.addf %322, %321 : vector<1x64xf32>
    %324 = arith.divf %322, %323 : vector<1x64xf32>
    %325 = arith.mulf %316, %270 : vector<1x64xf32>
    %326 = arith.mulf %310, %318 : vector<1x64xf32>
    %327 = arith.addf %325, %326 : vector<1x64xf32>
    %328 = math.tanh %327 : vector<1x64xf32>
    %329 = arith.mulf %324, %328 : vector<1x64xf32>
    %330 = vector.extract_strided_slice %255 {offsets = [1, 0], sizes = [1, 32], strides = [1, 1]} : vector<8x32xf32> to vector<1x32xf32>
    %cst_164 = arith.constant dense<0.000000e+00> : vector<1x256xf32>
    %331 = tpu.matmul %330, %257, %cst_164 {dimension_numbers = #tpu.dot_dimension_numbers<[1], [0], [0], [1], [0, 0, 1, 1], [], []>} : vector<1x32xf32>, vector<32x256xf32>, vector<1x256xf32> -> vector<1x256xf32>
    %cst_165 = arith.constant dense<0.000000e+00> : vector<1x256xf32>
    %332 = tpu.matmul %300, %258, %cst_165 {dimension_numbers = #tpu.dot_dimension_numbers<[1], [0], [0], [1], [0, 0, 1, 1], [], []>} : vector<1x64xf32>, vector<64x256xf32>, vector<1x256xf32> -> vector<1x256xf32>
    %333 = arith.addf %331, %332 : vector<1x256xf32>
    %334 = arith.addf %333, %263 : vector<1x256xf32>
    %335 = vector.extract_strided_slice %334 {offsets = [0, 0], sizes = [1, 64], strides = [1, 1]} : vector<1x256xf32> to vector<1x64xf32>
    %336 = arith.negf %335 : vector<1x64xf32>
    %337 = math.exp %336 : vector<1x64xf32>
    %cst_166 = arith.constant 1.000000e+00 : f32
    %338 = vector.broadcast %cst_166 : f32 to vector<1x64xf32>
    %339 = arith.addf %338, %337 : vector<1x64xf32>
    %340 = arith.divf %338, %339 : vector<1x64xf32>
    %341 = vector.extract_strided_slice %334 {offsets = [0, 64], sizes = [1, 64], strides = [1, 1]} : vector<1x256xf32> to vector<1x64xf32>
    %342 = arith.negf %341 : vector<1x64xf32>
    %343 = math.exp %342 : vector<1x64xf32>
    %cst_167 = arith.constant 1.000000e+00 : f32
    %344 = vector.broadcast %cst_167 : f32 to vector<1x64xf32>
    %345 = arith.addf %344, %343 : vector<1x64xf32>
    %346 = arith.divf %344, %345 : vector<1x64xf32>
    %347 = vector.extract_strided_slice %334 {offsets = [0, 128], sizes = [1, 64], strides = [1, 1]} : vector<1x256xf32> to vector<1x64xf32>
    %348 = math.tanh %347 : vector<1x64xf32>
    %349 = vector.extract_strided_slice %334 {offsets = [0, 192], sizes = [1, 64], strides = [1, 1]} : vector<1x256xf32> to vector<1x64xf32>
    %350 = arith.negf %349 : vector<1x64xf32>
    %351 = math.exp %350 : vector<1x64xf32>
    %cst_168 = arith.constant 1.000000e+00 : f32
    %352 = vector.broadcast %cst_168 : f32 to vector<1x64xf32>
    %353 = arith.addf %352, %351 : vector<1x64xf32>
    %354 = arith.divf %352, %353 : vector<1x64xf32>
    %355 = arith.mulf %346, %298 : vector<1x64xf32>
    %356 = arith.mulf %340, %348 : vector<1x64xf32>
    %357 = arith.addf %355, %356 : vector<1x64xf32>
    %358 = math.tanh %357 : vector<1x64xf32>
    %359 = arith.mulf %354, %358 : vector<1x64xf32>
    %cst_169 = arith.constant dense<0.000000e+00> : vector<1x256xf32>
    %360 = tpu.matmul %359, %259, %cst_169 {dimension_numbers = #tpu.dot_dimension_numbers<[1], [0], [0], [1], [0, 0, 1, 1], [], []>} : vector<1x64xf32>, vector<64x256xf32>, vector<1x256xf32> -> vector<1x256xf32>
    %cst_170 = arith.constant dense<0.000000e+00> : vector<1x256xf32>
    %361 = tpu.matmul %329, %260, %cst_170 {dimension_numbers = #tpu.dot_dimension_numbers<[1], [0], [0], [1], [0, 0, 1, 1], [], []>} : vector<1x64xf32>, vector<64x256xf32>, vector<1x256xf32> -> vector<1x256xf32>
    %362 = arith.addf %360, %361 : vector<1x256xf32>
    %363 = arith.addf %362, %264 : vector<1x256xf32>
    %364 = vector.extract_strided_slice %363 {offsets = [0, 0], sizes = [1, 64], strides = [1, 1]} : vector<1x256xf32> to vector<1x64xf32>
    %365 = arith.negf %364 : vector<1x64xf32>
    %366 = math.exp %365 : vector<1x64xf32>
    %cst_171 = arith.constant 1.000000e+00 : f32
    %367 = vector.broadcast %cst_171 : f32 to vector<1x64xf32>
    %368 = arith.addf %367, %366 : vector<1x64xf32>
    %369 = arith.divf %367, %368 : vector<1x64xf32>
    %370 = vector.extract_strided_slice %363 {offsets = [0, 64], sizes = [1, 64], strides = [1, 1]} : vector<1x256xf32> to vector<1x64xf32>
    %371 = arith.negf %370 : vector<1x64xf32>
    %372 = math.exp %371 : vector<1x64xf32>
    %cst_172 = arith.constant 1.000000e+00 : f32
    %373 = vector.broadcast %cst_172 : f32 to vector<1x64xf32>
    %374 = arith.addf %373, %372 : vector<1x64xf32>
    %375 = arith.divf %373, %374 : vector<1x64xf32>
    %376 = vector.extract_strided_slice %363 {offsets = [0, 128], sizes = [1, 64], strides = [1, 1]} : vector<1x256xf32> to vector<1x64xf32>
    %377 = math.tanh %376 : vector<1x64xf32>
    %378 = vector.extract_strided_slice %363 {offsets = [0, 192], sizes = [1, 64], strides = [1, 1]} : vector<1x256xf32> to vector<1x64xf32>
    %379 = arith.negf %378 : vector<1x64xf32>
    %380 = math.exp %379 : vector<1x64xf32>
    %cst_173 = arith.constant 1.000000e+00 : f32
    %381 = vector.broadcast %cst_173 : f32 to vector<1x64xf32>
    %382 = arith.addf %381, %380 : vector<1x64xf32>
    %383 = arith.divf %381, %382 : vector<1x64xf32>
    %384 = arith.mulf %375, %327 : vector<1x64xf32>
    %385 = arith.mulf %369, %377 : vector<1x64xf32>
    %386 = arith.addf %384, %385 : vector<1x64xf32>
    %387 = math.tanh %386 : vector<1x64xf32>
    %388 = arith.mulf %383, %387 : vector<1x64xf32>
    %389 = vector.extract_strided_slice %255 {offsets = [2, 0], sizes = [1, 32], strides = [1, 1]} : vector<8x32xf32> to vector<1x32xf32>
    %cst_174 = arith.constant dense<0.000000e+00> : vector<1x256xf32>
    %390 = tpu.matmul %389, %257, %cst_174 {dimension_numbers = #tpu.dot_dimension_numbers<[1], [0], [0], [1], [0, 0, 1, 1], [], []>} : vector<1x32xf32>, vector<32x256xf32>, vector<1x256xf32> -> vector<1x256xf32>
    %cst_175 = arith.constant dense<0.000000e+00> : vector<1x256xf32>
    %391 = tpu.matmul %359, %258, %cst_175 {dimension_numbers = #tpu.dot_dimension_numbers<[1], [0], [0], [1], [0, 0, 1, 1], [], []>} : vector<1x64xf32>, vector<64x256xf32>, vector<1x256xf32> -> vector<1x256xf32>
    %392 = arith.addf %390, %391 : vector<1x256xf32>
    %393 = arith.addf %392, %263 : vector<1x256xf32>
    %394 = vector.extract_strided_slice %393 {offsets = [0, 0], sizes = [1, 64], strides = [1, 1]} : vector<1x256xf32> to vector<1x64xf32>
    %395 = arith.negf %394 : vector<1x64xf32>
    %396 = math.exp %395 : vector<1x64xf32>
    %cst_176 = arith.constant 1.000000e+00 : f32
    %397 = vector.broadcast %cst_176 : f32 to vector<1x64xf32>
    %398 = arith.addf %397, %396 : vector<1x64xf32>
    %399 = arith.divf %397, %398 : vector<1x64xf32>
    %400 = vector.extract_strided_slice %393 {offsets = [0, 64], sizes = [1, 64], strides = [1, 1]} : vector<1x256xf32> to vector<1x64xf32>
    %401 = arith.negf %400 : vector<1x64xf32>
    %402 = math.exp %401 : vector<1x64xf32>
    %cst_177 = arith.constant 1.000000e+00 : f32
    %403 = vector.broadcast %cst_177 : f32 to vector<1x64xf32>
    %404 = arith.addf %403, %402 : vector<1x64xf32>
    %405 = arith.divf %403, %404 : vector<1x64xf32>
    %406 = vector.extract_strided_slice %393 {offsets = [0, 128], sizes = [1, 64], strides = [1, 1]} : vector<1x256xf32> to vector<1x64xf32>
    %407 = math.tanh %406 : vector<1x64xf32>
    %408 = vector.extract_strided_slice %393 {offsets = [0, 192], sizes = [1, 64], strides = [1, 1]} : vector<1x256xf32> to vector<1x64xf32>
    %409 = arith.negf %408 : vector<1x64xf32>
    %410 = math.exp %409 : vector<1x64xf32>
    %cst_178 = arith.constant 1.000000e+00 : f32
    %411 = vector.broadcast %cst_178 : f32 to vector<1x64xf32>
    %412 = arith.addf %411, %410 : vector<1x64xf32>
    %413 = arith.divf %411, %412 : vector<1x64xf32>
    %414 = arith.mulf %405, %357 : vector<1x64xf32>
    %415 = arith.mulf %399, %407 : vector<1x64xf32>
    %416 = arith.addf %414, %415 : vector<1x64xf32>
    %417 = math.tanh %416 : vector<1x64xf32>
    %418 = arith.mulf %413, %417 : vector<1x64xf32>
    %cst_179 = arith.constant dense<0.000000e+00> : vector<1x256xf32>
    %419 = tpu.matmul %418, %259, %cst_179 {dimension_numbers = #tpu.dot_dimension_numbers<[1], [0], [0], [1], [0, 0, 1, 1], [], []>} : vector<1x64xf32>, vector<64x256xf32>, vector<1x256xf32> -> vector<1x256xf32>
    %cst_180 = arith.constant dense<0.000000e+00> : vector<1x256xf32>
    %420 = tpu.matmul %388, %260, %cst_180 {dimension_numbers = #tpu.dot_dimension_numbers<[1], [0], [0], [1], [0, 0, 1, 1], [], []>} : vector<1x64xf32>, vector<64x256xf32>, vector<1x256xf32> -> vector<1x256xf32>
    %421 = arith.addf %419, %420 : vector<1x256xf32>
    %422 = arith.addf %421, %264 : vector<1x256xf32>
    %423 = vector.extract_strided_slice %422 {offsets = [0, 0], sizes = [1, 64], strides = [1, 1]} : vector<1x256xf32> to vector<1x64xf32>
    %424 = arith.negf %423 : vector<1x64xf32>
    %425 = math.exp %424 : vector<1x64xf32>
    %cst_181 = arith.constant 1.000000e+00 : f32
    %426 = vector.broadcast %cst_181 : f32 to vector<1x64xf32>
    %427 = arith.addf %426, %425 : vector<1x64xf32>
    %428 = arith.divf %426, %427 : vector<1x64xf32>
    %429 = vector.extract_strided_slice %422 {offsets = [0, 64], sizes = [1, 64], strides = [1, 1]} : vector<1x256xf32> to vector<1x64xf32>
    %430 = arith.negf %429 : vector<1x64xf32>
    %431 = math.exp %430 : vector<1x64xf32>
    %cst_182 = arith.constant 1.000000e+00 : f32
    %432 = vector.broadcast %cst_182 : f32 to vector<1x64xf32>
    %433 = arith.addf %432, %431 : vector<1x64xf32>
    %434 = arith.divf %432, %433 : vector<1x64xf32>
    %435 = vector.extract_strided_slice %422 {offsets = [0, 128], sizes = [1, 64], strides = [1, 1]} : vector<1x256xf32> to vector<1x64xf32>
    %436 = math.tanh %435 : vector<1x64xf32>
    %437 = vector.extract_strided_slice %422 {offsets = [0, 192], sizes = [1, 64], strides = [1, 1]} : vector<1x256xf32> to vector<1x64xf32>
    %438 = arith.negf %437 : vector<1x64xf32>
    %439 = math.exp %438 : vector<1x64xf32>
    %cst_183 = arith.constant 1.000000e+00 : f32
    %440 = vector.broadcast %cst_183 : f32 to vector<1x64xf32>
    %441 = arith.addf %440, %439 : vector<1x64xf32>
    %442 = arith.divf %440, %441 : vector<1x64xf32>
    %443 = arith.mulf %434, %386 : vector<1x64xf32>
    %444 = arith.mulf %428, %436 : vector<1x64xf32>
    %445 = arith.addf %443, %444 : vector<1x64xf32>
    %446 = math.tanh %445 : vector<1x64xf32>
    %447 = arith.mulf %442, %446 : vector<1x64xf32>
    %448 = vector.extract_strided_slice %255 {offsets = [3, 0], sizes = [1, 32], strides = [1, 1]} : vector<8x32xf32> to vector<1x32xf32>
    %cst_184 = arith.constant dense<0.000000e+00> : vector<1x256xf32>
    %449 = tpu.matmul %448, %257, %cst_184 {dimension_numbers = #tpu.dot_dimension_numbers<[1], [0], [0], [1], [0, 0, 1, 1], [], []>} : vector<1x32xf32>, vector<32x256xf32>, vector<1x256xf32> -> vector<1x256xf32>
    %cst_185 = arith.constant dense<0.000000e+00> : vector<1x256xf32>
    %450 = tpu.matmul %418, %258, %cst_185 {dimension_numbers = #tpu.dot_dimension_numbers<[1], [0], [0], [1], [0, 0, 1, 1], [], []>} : vector<1x64xf32>, vector<64x256xf32>, vector<1x256xf32> -> vector<1x256xf32>
    %451 = arith.addf %449, %450 : vector<1x256xf32>
    %452 = arith.addf %451, %263 : vector<1x256xf32>
    %453 = vector.extract_strided_slice %452 {offsets = [0, 0], sizes = [1, 64], strides = [1, 1]} : vector<1x256xf32> to vector<1x64xf32>
    %454 = arith.negf %453 : vector<1x64xf32>
    %455 = math.exp %454 : vector<1x64xf32>
    %cst_186 = arith.constant 1.000000e+00 : f32
    %456 = vector.broadcast %cst_186 : f32 to vector<1x64xf32>
    %457 = arith.addf %456, %455 : vector<1x64xf32>
    %458 = arith.divf %456, %457 : vector<1x64xf32>
    %459 = vector.extract_strided_slice %452 {offsets = [0, 64], sizes = [1, 64], strides = [1, 1]} : vector<1x256xf32> to vector<1x64xf32>
    %460 = arith.negf %459 : vector<1x64xf32>
    %461 = math.exp %460 : vector<1x64xf32>
    %cst_187 = arith.constant 1.000000e+00 : f32
    %462 = vector.broadcast %cst_187 : f32 to vector<1x64xf32>
    %463 = arith.addf %462, %461 : vector<1x64xf32>
    %464 = arith.divf %462, %463 : vector<1x64xf32>
    %465 = vector.extract_strided_slice %452 {offsets = [0, 128], sizes = [1, 64], strides = [1, 1]} : vector<1x256xf32> to vector<1x64xf32>
    %466 = math.tanh %465 : vector<1x64xf32>
    %467 = vector.extract_strided_slice %452 {offsets = [0, 192], sizes = [1, 64], strides = [1, 1]} : vector<1x256xf32> to vector<1x64xf32>
    %468 = arith.negf %467 : vector<1x64xf32>
    %469 = math.exp %468 : vector<1x64xf32>
    %cst_188 = arith.constant 1.000000e+00 : f32
    %470 = vector.broadcast %cst_188 : f32 to vector<1x64xf32>
    %471 = arith.addf %470, %469 : vector<1x64xf32>
    %472 = arith.divf %470, %471 : vector<1x64xf32>
    %473 = arith.mulf %464, %416 : vector<1x64xf32>
    %474 = arith.mulf %458, %466 : vector<1x64xf32>
    %475 = arith.addf %473, %474 : vector<1x64xf32>
    %476 = math.tanh %475 : vector<1x64xf32>
    %477 = arith.mulf %472, %476 : vector<1x64xf32>
    %cst_189 = arith.constant dense<0.000000e+00> : vector<1x256xf32>
    %478 = tpu.matmul %477, %259, %cst_189 {dimension_numbers = #tpu.dot_dimension_numbers<[1], [0], [0], [1], [0, 0, 1, 1], [], []>} : vector<1x64xf32>, vector<64x256xf32>, vector<1x256xf32> -> vector<1x256xf32>
    %cst_190 = arith.constant dense<0.000000e+00> : vector<1x256xf32>
    %479 = tpu.matmul %447, %260, %cst_190 {dimension_numbers = #tpu.dot_dimension_numbers<[1], [0], [0], [1], [0, 0, 1, 1], [], []>} : vector<1x64xf32>, vector<64x256xf32>, vector<1x256xf32> -> vector<1x256xf32>
    %480 = arith.addf %478, %479 : vector<1x256xf32>
    %481 = arith.addf %480, %264 : vector<1x256xf32>
    %482 = vector.extract_strided_slice %481 {offsets = [0, 0], sizes = [1, 64], strides = [1, 1]} : vector<1x256xf32> to vector<1x64xf32>
    %483 = arith.negf %482 : vector<1x64xf32>
    %484 = math.exp %483 : vector<1x64xf32>
    %cst_191 = arith.constant 1.000000e+00 : f32
    %485 = vector.broadcast %cst_191 : f32 to vector<1x64xf32>
    %486 = arith.addf %485, %484 : vector<1x64xf32>
    %487 = arith.divf %485, %486 : vector<1x64xf32>
    %488 = vector.extract_strided_slice %481 {offsets = [0, 64], sizes = [1, 64], strides = [1, 1]} : vector<1x256xf32> to vector<1x64xf32>
    %489 = arith.negf %488 : vector<1x64xf32>
    %490 = math.exp %489 : vector<1x64xf32>
    %cst_192 = arith.constant 1.000000e+00 : f32
    %491 = vector.broadcast %cst_192 : f32 to vector<1x64xf32>
    %492 = arith.addf %491, %490 : vector<1x64xf32>
    %493 = arith.divf %491, %492 : vector<1x64xf32>
    %494 = vector.extract_strided_slice %481 {offsets = [0, 128], sizes = [1, 64], strides = [1, 1]} : vector<1x256xf32> to vector<1x64xf32>
    %495 = math.tanh %494 : vector<1x64xf32>
    %496 = vector.extract_strided_slice %481 {offsets = [0, 192], sizes = [1, 64], strides = [1, 1]} : vector<1x256xf32> to vector<1x64xf32>
    %497 = arith.negf %496 : vector<1x64xf32>
    %498 = math.exp %497 : vector<1x64xf32>
    %cst_193 = arith.constant 1.000000e+00 : f32
    %499 = vector.broadcast %cst_193 : f32 to vector<1x64xf32>
    %500 = arith.addf %499, %498 : vector<1x64xf32>
    %501 = arith.divf %499, %500 : vector<1x64xf32>
    %502 = arith.mulf %493, %445 : vector<1x64xf32>
    %503 = arith.mulf %487, %495 : vector<1x64xf32>
    %504 = arith.addf %502, %503 : vector<1x64xf32>
    %505 = math.tanh %504 : vector<1x64xf32>
    %506 = arith.mulf %501, %505 : vector<1x64xf32>
    %507 = vector.extract_strided_slice %255 {offsets = [4, 0], sizes = [1, 32], strides = [1, 1]} : vector<8x32xf32> to vector<1x32xf32>
    %cst_194 = arith.constant dense<0.000000e+00> : vector<1x256xf32>
    %508 = tpu.matmul %507, %257, %cst_194 {dimension_numbers = #tpu.dot_dimension_numbers<[1], [0], [0], [1], [0, 0, 1, 1], [], []>} : vector<1x32xf32>, vector<32x256xf32>, vector<1x256xf32> -> vector<1x256xf32>
    %cst_195 = arith.constant dense<0.000000e+00> : vector<1x256xf32>
    %509 = tpu.matmul %477, %258, %cst_195 {dimension_numbers = #tpu.dot_dimension_numbers<[1], [0], [0], [1], [0, 0, 1, 1], [], []>} : vector<1x64xf32>, vector<64x256xf32>, vector<1x256xf32> -> vector<1x256xf32>
    %510 = arith.addf %508, %509 : vector<1x256xf32>
    %511 = arith.addf %510, %263 : vector<1x256xf32>
    %512 = vector.extract_strided_slice %511 {offsets = [0, 0], sizes = [1, 64], strides = [1, 1]} : vector<1x256xf32> to vector<1x64xf32>
    %513 = arith.negf %512 : vector<1x64xf32>
    %514 = math.exp %513 : vector<1x64xf32>
    %cst_196 = arith.constant 1.000000e+00 : f32
    %515 = vector.broadcast %cst_196 : f32 to vector<1x64xf32>
    %516 = arith.addf %515, %514 : vector<1x64xf32>
    %517 = arith.divf %515, %516 : vector<1x64xf32>
    %518 = vector.extract_strided_slice %511 {offsets = [0, 64], sizes = [1, 64], strides = [1, 1]} : vector<1x256xf32> to vector<1x64xf32>
    %519 = arith.negf %518 : vector<1x64xf32>
    %520 = math.exp %519 : vector<1x64xf32>
    %cst_197 = arith.constant 1.000000e+00 : f32
    %521 = vector.broadcast %cst_197 : f32 to vector<1x64xf32>
    %522 = arith.addf %521, %520 : vector<1x64xf32>
    %523 = arith.divf %521, %522 : vector<1x64xf32>
    %524 = vector.extract_strided_slice %511 {offsets = [0, 128], sizes = [1, 64], strides = [1, 1]} : vector<1x256xf32> to vector<1x64xf32>
    %525 = math.tanh %524 : vector<1x64xf32>
    %526 = vector.extract_strided_slice %511 {offsets = [0, 192], sizes = [1, 64], strides = [1, 1]} : vector<1x256xf32> to vector<1x64xf32>
    %527 = arith.negf %526 : vector<1x64xf32>
    %528 = math.exp %527 : vector<1x64xf32>
    %cst_198 = arith.constant 1.000000e+00 : f32
    %529 = vector.broadcast %cst_198 : f32 to vector<1x64xf32>
    %530 = arith.addf %529, %528 : vector<1x64xf32>
    %531 = arith.divf %529, %530 : vector<1x64xf32>
    %532 = arith.mulf %523, %475 : vector<1x64xf32>
    %533 = arith.mulf %517, %525 : vector<1x64xf32>
    %534 = arith.addf %532, %533 : vector<1x64xf32>
    %535 = math.tanh %534 : vector<1x64xf32>
    %536 = arith.mulf %531, %535 : vector<1x64xf32>
    %cst_199 = arith.constant dense<0.000000e+00> : vector<1x256xf32>
    %537 = tpu.matmul %536, %259, %cst_199 {dimension_numbers = #tpu.dot_dimension_numbers<[1], [0], [0], [1], [0, 0, 1, 1], [], []>} : vector<1x64xf32>, vector<64x256xf32>, vector<1x256xf32> -> vector<1x256xf32>
    %cst_200 = arith.constant dense<0.000000e+00> : vector<1x256xf32>
    %538 = tpu.matmul %506, %260, %cst_200 {dimension_numbers = #tpu.dot_dimension_numbers<[1], [0], [0], [1], [0, 0, 1, 1], [], []>} : vector<1x64xf32>, vector<64x256xf32>, vector<1x256xf32> -> vector<1x256xf32>
    %539 = arith.addf %537, %538 : vector<1x256xf32>
    %540 = arith.addf %539, %264 : vector<1x256xf32>
    %541 = vector.extract_strided_slice %540 {offsets = [0, 0], sizes = [1, 64], strides = [1, 1]} : vector<1x256xf32> to vector<1x64xf32>
    %542 = arith.negf %541 : vector<1x64xf32>
    %543 = math.exp %542 : vector<1x64xf32>
    %cst_201 = arith.constant 1.000000e+00 : f32
    %544 = vector.broadcast %cst_201 : f32 to vector<1x64xf32>
    %545 = arith.addf %544, %543 : vector<1x64xf32>
    %546 = arith.divf %544, %545 : vector<1x64xf32>
    %547 = vector.extract_strided_slice %540 {offsets = [0, 64], sizes = [1, 64], strides = [1, 1]} : vector<1x256xf32> to vector<1x64xf32>
    %548 = arith.negf %547 : vector<1x64xf32>
    %549 = math.exp %548 : vector<1x64xf32>
    %cst_202 = arith.constant 1.000000e+00 : f32
    %550 = vector.broadcast %cst_202 : f32 to vector<1x64xf32>
    %551 = arith.addf %550, %549 : vector<1x64xf32>
    %552 = arith.divf %550, %551 : vector<1x64xf32>
    %553 = vector.extract_strided_slice %540 {offsets = [0, 128], sizes = [1, 64], strides = [1, 1]} : vector<1x256xf32> to vector<1x64xf32>
    %554 = math.tanh %553 : vector<1x64xf32>
    %555 = vector.extract_strided_slice %540 {offsets = [0, 192], sizes = [1, 64], strides = [1, 1]} : vector<1x256xf32> to vector<1x64xf32>
    %556 = arith.negf %555 : vector<1x64xf32>
    %557 = math.exp %556 : vector<1x64xf32>
    %cst_203 = arith.constant 1.000000e+00 : f32
    %558 = vector.broadcast %cst_203 : f32 to vector<1x64xf32>
    %559 = arith.addf %558, %557 : vector<1x64xf32>
    %560 = arith.divf %558, %559 : vector<1x64xf32>
    %561 = arith.mulf %552, %504 : vector<1x64xf32>
    %562 = arith.mulf %546, %554 : vector<1x64xf32>
    %563 = arith.addf %561, %562 : vector<1x64xf32>
    %564 = math.tanh %563 : vector<1x64xf32>
    %565 = arith.mulf %560, %564 : vector<1x64xf32>
    %566 = vector.extract_strided_slice %255 {offsets = [5, 0], sizes = [1, 32], strides = [1, 1]} : vector<8x32xf32> to vector<1x32xf32>
    %cst_204 = arith.constant dense<0.000000e+00> : vector<1x256xf32>
    %567 = tpu.matmul %566, %257, %cst_204 {dimension_numbers = #tpu.dot_dimension_numbers<[1], [0], [0], [1], [0, 0, 1, 1], [], []>} : vector<1x32xf32>, vector<32x256xf32>, vector<1x256xf32> -> vector<1x256xf32>
    %cst_205 = arith.constant dense<0.000000e+00> : vector<1x256xf32>
    %568 = tpu.matmul %536, %258, %cst_205 {dimension_numbers = #tpu.dot_dimension_numbers<[1], [0], [0], [1], [0, 0, 1, 1], [], []>} : vector<1x64xf32>, vector<64x256xf32>, vector<1x256xf32> -> vector<1x256xf32>
    %569 = arith.addf %567, %568 : vector<1x256xf32>
    %570 = arith.addf %569, %263 : vector<1x256xf32>
    %571 = vector.extract_strided_slice %570 {offsets = [0, 0], sizes = [1, 64], strides = [1, 1]} : vector<1x256xf32> to vector<1x64xf32>
    %572 = arith.negf %571 : vector<1x64xf32>
    %573 = math.exp %572 : vector<1x64xf32>
    %cst_206 = arith.constant 1.000000e+00 : f32
    %574 = vector.broadcast %cst_206 : f32 to vector<1x64xf32>
    %575 = arith.addf %574, %573 : vector<1x64xf32>
    %576 = arith.divf %574, %575 : vector<1x64xf32>
    %577 = vector.extract_strided_slice %570 {offsets = [0, 64], sizes = [1, 64], strides = [1, 1]} : vector<1x256xf32> to vector<1x64xf32>
    %578 = arith.negf %577 : vector<1x64xf32>
    %579 = math.exp %578 : vector<1x64xf32>
    %cst_207 = arith.constant 1.000000e+00 : f32
    %580 = vector.broadcast %cst_207 : f32 to vector<1x64xf32>
    %581 = arith.addf %580, %579 : vector<1x64xf32>
    %582 = arith.divf %580, %581 : vector<1x64xf32>
    %583 = vector.extract_strided_slice %570 {offsets = [0, 128], sizes = [1, 64], strides = [1, 1]} : vector<1x256xf32> to vector<1x64xf32>
    %584 = math.tanh %583 : vector<1x64xf32>
    %585 = vector.extract_strided_slice %570 {offsets = [0, 192], sizes = [1, 64], strides = [1, 1]} : vector<1x256xf32> to vector<1x64xf32>
    %586 = arith.negf %585 : vector<1x64xf32>
    %587 = math.exp %586 : vector<1x64xf32>
    %cst_208 = arith.constant 1.000000e+00 : f32
    %588 = vector.broadcast %cst_208 : f32 to vector<1x64xf32>
    %589 = arith.addf %588, %587 : vector<1x64xf32>
    %590 = arith.divf %588, %589 : vector<1x64xf32>
    %591 = arith.mulf %582, %534 : vector<1x64xf32>
    %592 = arith.mulf %576, %584 : vector<1x64xf32>
    %593 = arith.addf %591, %592 : vector<1x64xf32>
    %594 = math.tanh %593 : vector<1x64xf32>
    %595 = arith.mulf %590, %594 : vector<1x64xf32>
    %cst_209 = arith.constant dense<0.000000e+00> : vector<1x256xf32>
    %596 = tpu.matmul %595, %259, %cst_209 {dimension_numbers = #tpu.dot_dimension_numbers<[1], [0], [0], [1], [0, 0, 1, 1], [], []>} : vector<1x64xf32>, vector<64x256xf32>, vector<1x256xf32> -> vector<1x256xf32>
    %cst_210 = arith.constant dense<0.000000e+00> : vector<1x256xf32>
    %597 = tpu.matmul %565, %260, %cst_210 {dimension_numbers = #tpu.dot_dimension_numbers<[1], [0], [0], [1], [0, 0, 1, 1], [], []>} : vector<1x64xf32>, vector<64x256xf32>, vector<1x256xf32> -> vector<1x256xf32>
    %598 = arith.addf %596, %597 : vector<1x256xf32>
    %599 = arith.addf %598, %264 : vector<1x256xf32>
    %600 = vector.extract_strided_slice %599 {offsets = [0, 0], sizes = [1, 64], strides = [1, 1]} : vector<1x256xf32> to vector<1x64xf32>
    %601 = arith.negf %600 : vector<1x64xf32>
    %602 = math.exp %601 : vector<1x64xf32>
    %cst_211 = arith.constant 1.000000e+00 : f32
    %603 = vector.broadcast %cst_211 : f32 to vector<1x64xf32>
    %604 = arith.addf %603, %602 : vector<1x64xf32>
    %605 = arith.divf %603, %604 : vector<1x64xf32>
    %606 = vector.extract_strided_slice %599 {offsets = [0, 64], sizes = [1, 64], strides = [1, 1]} : vector<1x256xf32> to vector<1x64xf32>
    %607 = arith.negf %606 : vector<1x64xf32>
    %608 = math.exp %607 : vector<1x64xf32>
    %cst_212 = arith.constant 1.000000e+00 : f32
    %609 = vector.broadcast %cst_212 : f32 to vector<1x64xf32>
    %610 = arith.addf %609, %608 : vector<1x64xf32>
    %611 = arith.divf %609, %610 : vector<1x64xf32>
    %612 = vector.extract_strided_slice %599 {offsets = [0, 128], sizes = [1, 64], strides = [1, 1]} : vector<1x256xf32> to vector<1x64xf32>
    %613 = math.tanh %612 : vector<1x64xf32>
    %614 = vector.extract_strided_slice %599 {offsets = [0, 192], sizes = [1, 64], strides = [1, 1]} : vector<1x256xf32> to vector<1x64xf32>
    %615 = arith.negf %614 : vector<1x64xf32>
    %616 = math.exp %615 : vector<1x64xf32>
    %cst_213 = arith.constant 1.000000e+00 : f32
    %617 = vector.broadcast %cst_213 : f32 to vector<1x64xf32>
    %618 = arith.addf %617, %616 : vector<1x64xf32>
    %619 = arith.divf %617, %618 : vector<1x64xf32>
    %620 = arith.mulf %611, %563 : vector<1x64xf32>
    %621 = arith.mulf %605, %613 : vector<1x64xf32>
    %622 = arith.addf %620, %621 : vector<1x64xf32>
    %623 = math.tanh %622 : vector<1x64xf32>
    %624 = arith.mulf %619, %623 : vector<1x64xf32>
    %625 = vector.extract_strided_slice %255 {offsets = [6, 0], sizes = [1, 32], strides = [1, 1]} : vector<8x32xf32> to vector<1x32xf32>
    %cst_214 = arith.constant dense<0.000000e+00> : vector<1x256xf32>
    %626 = tpu.matmul %625, %257, %cst_214 {dimension_numbers = #tpu.dot_dimension_numbers<[1], [0], [0], [1], [0, 0, 1, 1], [], []>} : vector<1x32xf32>, vector<32x256xf32>, vector<1x256xf32> -> vector<1x256xf32>
    %cst_215 = arith.constant dense<0.000000e+00> : vector<1x256xf32>
    %627 = tpu.matmul %595, %258, %cst_215 {dimension_numbers = #tpu.dot_dimension_numbers<[1], [0], [0], [1], [0, 0, 1, 1], [], []>} : vector<1x64xf32>, vector<64x256xf32>, vector<1x256xf32> -> vector<1x256xf32>
    %628 = arith.addf %626, %627 : vector<1x256xf32>
    %629 = arith.addf %628, %263 : vector<1x256xf32>
    %630 = vector.extract_strided_slice %629 {offsets = [0, 0], sizes = [1, 64], strides = [1, 1]} : vector<1x256xf32> to vector<1x64xf32>
    %631 = arith.negf %630 : vector<1x64xf32>
    %632 = math.exp %631 : vector<1x64xf32>
    %cst_216 = arith.constant 1.000000e+00 : f32
    %633 = vector.broadcast %cst_216 : f32 to vector<1x64xf32>
    %634 = arith.addf %633, %632 : vector<1x64xf32>
    %635 = arith.divf %633, %634 : vector<1x64xf32>
    %636 = vector.extract_strided_slice %629 {offsets = [0, 64], sizes = [1, 64], strides = [1, 1]} : vector<1x256xf32> to vector<1x64xf32>
    %637 = arith.negf %636 : vector<1x64xf32>
    %638 = math.exp %637 : vector<1x64xf32>
    %cst_217 = arith.constant 1.000000e+00 : f32
    %639 = vector.broadcast %cst_217 : f32 to vector<1x64xf32>
    %640 = arith.addf %639, %638 : vector<1x64xf32>
    %641 = arith.divf %639, %640 : vector<1x64xf32>
    %642 = vector.extract_strided_slice %629 {offsets = [0, 128], sizes = [1, 64], strides = [1, 1]} : vector<1x256xf32> to vector<1x64xf32>
    %643 = math.tanh %642 : vector<1x64xf32>
    %644 = vector.extract_strided_slice %629 {offsets = [0, 192], sizes = [1, 64], strides = [1, 1]} : vector<1x256xf32> to vector<1x64xf32>
    %645 = arith.negf %644 : vector<1x64xf32>
    %646 = math.exp %645 : vector<1x64xf32>
    %cst_218 = arith.constant 1.000000e+00 : f32
    %647 = vector.broadcast %cst_218 : f32 to vector<1x64xf32>
    %648 = arith.addf %647, %646 : vector<1x64xf32>
    %649 = arith.divf %647, %648 : vector<1x64xf32>
    %650 = arith.mulf %641, %593 : vector<1x64xf32>
    %651 = arith.mulf %635, %643 : vector<1x64xf32>
    %652 = arith.addf %650, %651 : vector<1x64xf32>
    %653 = math.tanh %652 : vector<1x64xf32>
    %654 = arith.mulf %649, %653 : vector<1x64xf32>
    %cst_219 = arith.constant dense<0.000000e+00> : vector<1x256xf32>
    %655 = tpu.matmul %654, %259, %cst_219 {dimension_numbers = #tpu.dot_dimension_numbers<[1], [0], [0], [1], [0, 0, 1, 1], [], []>} : vector<1x64xf32>, vector<64x256xf32>, vector<1x256xf32> -> vector<1x256xf32>
    %cst_220 = arith.constant dense<0.000000e+00> : vector<1x256xf32>
    %656 = tpu.matmul %624, %260, %cst_220 {dimension_numbers = #tpu.dot_dimension_numbers<[1], [0], [0], [1], [0, 0, 1, 1], [], []>} : vector<1x64xf32>, vector<64x256xf32>, vector<1x256xf32> -> vector<1x256xf32>
    %657 = arith.addf %655, %656 : vector<1x256xf32>
    %658 = arith.addf %657, %264 : vector<1x256xf32>
    %659 = vector.extract_strided_slice %658 {offsets = [0, 0], sizes = [1, 64], strides = [1, 1]} : vector<1x256xf32> to vector<1x64xf32>
    %660 = arith.negf %659 : vector<1x64xf32>
    %661 = math.exp %660 : vector<1x64xf32>
    %cst_221 = arith.constant 1.000000e+00 : f32
    %662 = vector.broadcast %cst_221 : f32 to vector<1x64xf32>
    %663 = arith.addf %662, %661 : vector<1x64xf32>
    %664 = arith.divf %662, %663 : vector<1x64xf32>
    %665 = vector.extract_strided_slice %658 {offsets = [0, 64], sizes = [1, 64], strides = [1, 1]} : vector<1x256xf32> to vector<1x64xf32>
    %666 = arith.negf %665 : vector<1x64xf32>
    %667 = math.exp %666 : vector<1x64xf32>
    %cst_222 = arith.constant 1.000000e+00 : f32
    %668 = vector.broadcast %cst_222 : f32 to vector<1x64xf32>
    %669 = arith.addf %668, %667 : vector<1x64xf32>
    %670 = arith.divf %668, %669 : vector<1x64xf32>
    %671 = vector.extract_strided_slice %658 {offsets = [0, 128], sizes = [1, 64], strides = [1, 1]} : vector<1x256xf32> to vector<1x64xf32>
    %672 = math.tanh %671 : vector<1x64xf32>
    %673 = vector.extract_strided_slice %658 {offsets = [0, 192], sizes = [1, 64], strides = [1, 1]} : vector<1x256xf32> to vector<1x64xf32>
    %674 = arith.negf %673 : vector<1x64xf32>
    %675 = math.exp %674 : vector<1x64xf32>
    %cst_223 = arith.constant 1.000000e+00 : f32
    %676 = vector.broadcast %cst_223 : f32 to vector<1x64xf32>
    %677 = arith.addf %676, %675 : vector<1x64xf32>
    %678 = arith.divf %676, %677 : vector<1x64xf32>
    %679 = arith.mulf %670, %622 : vector<1x64xf32>
    %680 = arith.mulf %664, %672 : vector<1x64xf32>
    %681 = arith.addf %679, %680 : vector<1x64xf32>
    %682 = math.tanh %681 : vector<1x64xf32>
    %683 = arith.mulf %678, %682 : vector<1x64xf32>
    %684 = vector.extract_strided_slice %255 {offsets = [7, 0], sizes = [1, 32], strides = [1, 1]} : vector<8x32xf32> to vector<1x32xf32>
    %cst_224 = arith.constant dense<0.000000e+00> : vector<1x256xf32>
    %685 = tpu.matmul %684, %257, %cst_224 {dimension_numbers = #tpu.dot_dimension_numbers<[1], [0], [0], [1], [0, 0, 1, 1], [], []>} : vector<1x32xf32>, vector<32x256xf32>, vector<1x256xf32> -> vector<1x256xf32>
    %cst_225 = arith.constant dense<0.000000e+00> : vector<1x256xf32>
    %686 = tpu.matmul %654, %258, %cst_225 {dimension_numbers = #tpu.dot_dimension_numbers<[1], [0], [0], [1], [0, 0, 1, 1], [], []>} : vector<1x64xf32>, vector<64x256xf32>, vector<1x256xf32> -> vector<1x256xf32>
    %687 = arith.addf %685, %686 : vector<1x256xf32>
    %688 = arith.addf %687, %263 : vector<1x256xf32>
    %689 = vector.extract_strided_slice %688 {offsets = [0, 0], sizes = [1, 64], strides = [1, 1]} : vector<1x256xf32> to vector<1x64xf32>
    %690 = arith.negf %689 : vector<1x64xf32>
    %691 = math.exp %690 : vector<1x64xf32>
    %cst_226 = arith.constant 1.000000e+00 : f32
    %692 = vector.broadcast %cst_226 : f32 to vector<1x64xf32>
    %693 = arith.addf %692, %691 : vector<1x64xf32>
    %694 = arith.divf %692, %693 : vector<1x64xf32>
    %695 = vector.extract_strided_slice %688 {offsets = [0, 64], sizes = [1, 64], strides = [1, 1]} : vector<1x256xf32> to vector<1x64xf32>
    %696 = arith.negf %695 : vector<1x64xf32>
    %697 = math.exp %696 : vector<1x64xf32>
    %cst_227 = arith.constant 1.000000e+00 : f32
    %698 = vector.broadcast %cst_227 : f32 to vector<1x64xf32>
    %699 = arith.addf %698, %697 : vector<1x64xf32>
    %700 = arith.divf %698, %699 : vector<1x64xf32>
    %701 = vector.extract_strided_slice %688 {offsets = [0, 128], sizes = [1, 64], strides = [1, 1]} : vector<1x256xf32> to vector<1x64xf32>
    %702 = math.tanh %701 : vector<1x64xf32>
    %703 = vector.extract_strided_slice %688 {offsets = [0, 192], sizes = [1, 64], strides = [1, 1]} : vector<1x256xf32> to vector<1x64xf32>
    %704 = arith.negf %703 : vector<1x64xf32>
    %705 = math.exp %704 : vector<1x64xf32>
    %cst_228 = arith.constant 1.000000e+00 : f32
    %706 = vector.broadcast %cst_228 : f32 to vector<1x64xf32>
    %707 = arith.addf %706, %705 : vector<1x64xf32>
    %708 = arith.divf %706, %707 : vector<1x64xf32>
    %709 = arith.mulf %700, %652 : vector<1x64xf32>
    %710 = arith.mulf %694, %702 : vector<1x64xf32>
    %711 = arith.addf %709, %710 : vector<1x64xf32>
    %712 = math.tanh %711 : vector<1x64xf32>
    %713 = arith.mulf %708, %712 : vector<1x64xf32>
    %cst_229 = arith.constant dense<0.000000e+00> : vector<1x256xf32>
    %714 = tpu.matmul %713, %259, %cst_229 {dimension_numbers = #tpu.dot_dimension_numbers<[1], [0], [0], [1], [0, 0, 1, 1], [], []>} : vector<1x64xf32>, vector<64x256xf32>, vector<1x256xf32> -> vector<1x256xf32>
    %cst_230 = arith.constant dense<0.000000e+00> : vector<1x256xf32>
    %715 = tpu.matmul %683, %260, %cst_230 {dimension_numbers = #tpu.dot_dimension_numbers<[1], [0], [0], [1], [0, 0, 1, 1], [], []>} : vector<1x64xf32>, vector<64x256xf32>, vector<1x256xf32> -> vector<1x256xf32>
    %716 = arith.addf %714, %715 : vector<1x256xf32>
    %717 = arith.addf %716, %264 : vector<1x256xf32>
    %718 = vector.extract_strided_slice %717 {offsets = [0, 0], sizes = [1, 64], strides = [1, 1]} : vector<1x256xf32> to vector<1x64xf32>
    %719 = arith.negf %718 : vector<1x64xf32>
    %720 = math.exp %719 : vector<1x64xf32>
    %cst_231 = arith.constant 1.000000e+00 : f32
    %721 = vector.broadcast %cst_231 : f32 to vector<1x64xf32>
    %722 = arith.addf %721, %720 : vector<1x64xf32>
    %723 = arith.divf %721, %722 : vector<1x64xf32>
    %724 = vector.extract_strided_slice %717 {offsets = [0, 64], sizes = [1, 64], strides = [1, 1]} : vector<1x256xf32> to vector<1x64xf32>
    %725 = arith.negf %724 : vector<1x64xf32>
    %726 = math.exp %725 : vector<1x64xf32>
    %cst_232 = arith.constant 1.000000e+00 : f32
    %727 = vector.broadcast %cst_232 : f32 to vector<1x64xf32>
    %728 = arith.addf %727, %726 : vector<1x64xf32>
    %729 = arith.divf %727, %728 : vector<1x64xf32>
    %730 = vector.extract_strided_slice %717 {offsets = [0, 128], sizes = [1, 64], strides = [1, 1]} : vector<1x256xf32> to vector<1x64xf32>
    %731 = math.tanh %730 : vector<1x64xf32>
    %732 = vector.extract_strided_slice %717 {offsets = [0, 192], sizes = [1, 64], strides = [1, 1]} : vector<1x256xf32> to vector<1x64xf32>
    %733 = arith.negf %732 : vector<1x64xf32>
    %734 = math.exp %733 : vector<1x64xf32>
    %cst_233 = arith.constant 1.000000e+00 : f32
    %735 = vector.broadcast %cst_233 : f32 to vector<1x64xf32>
    %736 = arith.addf %735, %734 : vector<1x64xf32>
    %737 = arith.divf %735, %736 : vector<1x64xf32>
    %738 = arith.mulf %729, %681 : vector<1x64xf32>
    %739 = arith.mulf %723, %731 : vector<1x64xf32>
    %740 = arith.addf %738, %739 : vector<1x64xf32>
    %741 = math.tanh %740 : vector<1x64xf32>
    %742 = arith.mulf %737, %741 : vector<1x64xf32>
    %743 = tpu.concatenate %329, %388, %447, %506, %565, %624, %683, %742 in 0 : vector<1x64xf32>, vector<1x64xf32>, vector<1x64xf32>, vector<1x64xf32>, vector<1x64xf32>, vector<1x64xf32>, vector<1x64xf32>, vector<1x64xf32> -> vector<8x64xf32>
    %cst_234 = arith.constant dense<0.000000e+00> : vector<8x256xf32>
    %744 = tpu.matmul %743, %261, %cst_234 {dimension_numbers = #tpu.dot_dimension_numbers<[1], [0], [0], [1], [0, 0, 1, 1], [], []>} : vector<8x64xf32>, vector<64x256xf32>, vector<8x256xf32> -> vector<8x256xf32>
    %745 = vector.broadcast %265 : vector<1x256xf32> to vector<8x256xf32>
    %746 = arith.addf %744, %745 : vector<8x256xf32>
    %cst_235 = arith.constant 0.000000e+00 : f32
    %747 = vector.broadcast %cst_235 : f32 to vector<8x256xf32>
    %748 = arith.cmpf ogt, %746, %747 : vector<8x256xf32>
    %cst_236 = arith.constant 1.000000e-01 : f32
    %749 = vector.broadcast %cst_236 : f32 to vector<8x256xf32>
    %750 = arith.mulf %749, %746 : vector<8x256xf32>
    %751 = arith.select %748, %746, %750 : vector<8x256xi1>, vector<8x256xf32>
    %c0_237 = arith.constant 0 : index
    %c0_238 = arith.constant 0 : index
    %752 = vector.load %arg18[%c0_237, %c0_238] : memref<256x128xf32, #tpu.memory_space<vmem>>, vector<256x128xf32>
    %cst_239 = arith.constant dense<0.000000e+00> : vector<8x128xf32>
    %753 = tpu.matmul %751, %752, %cst_239 {dimension_numbers = #tpu.dot_dimension_numbers<[1], [0], [0], [1], [0, 0, 1, 1], [], []>} : vector<8x256xf32>, vector<256x128xf32>, vector<8x128xf32> -> vector<8x128xf32>
    %754 = vector.broadcast %266 : vector<1x128xf32> to vector<8x128xf32>
    %755 = arith.addf %753, %754 : vector<8x128xf32>
    %756 = vector.shape_cast %755 : vector<8x128xf32> to vector<1x8x128xf32>
    %c0_240 = arith.constant 0 : index
    %c0_241 = arith.constant 0 : index
    %c0_242 = arith.constant 0 : index
    %757 = vector.load %arg19[%c0_240, %c0_241, %c0_242] : memref<1x8x128xf32, #tpu.memory_space<vmem>>, vector<1x8x128xf32>
    tpu.vector_store %arg19[%c0_240, %c0_241, %c0_242], %756 {strides = array<i32>} : memref<1x8x128xf32, #tpu.memory_space<vmem>>, vector<1x8x128xf32>,
    %758 = tpu.concatenate %713, %742 in 0 : vector<1x64xf32>, vector<1x64xf32> -> vector<2x64xf32>
    %759 = vector.shape_cast %758 : vector<2x64xf32> to vector<1x2x64xf32>
    %c0_243 = arith.constant 0 : index
    %c0_244 = arith.constant 0 : index
    %c0_245 = arith.constant 0 : index
    %760 = vector.load %arg20[%c0_243, %c0_244, %c0_245] : memref<1x2x64xf32, #tpu.memory_space<vmem>>, vector<1x2x64xf32>
    tpu.vector_store %arg20[%c0_243, %c0_244, %c0_245], %759 {strides = array<i32>} : memref<1x2x64xf32, #tpu.memory_space<vmem>>, vector<1x2x64xf32>,
    %761 = tpu.concatenate %711, %740 in 0 : vector<1x64xf32>, vector<1x64xf32> -> vector<2x64xf32>
    %762 = vector.shape_cast %761 : vector<2x64xf32> to vector<1x2x64xf32>
    %c0_246 = arith.constant 0 : index
    %c0_247 = arith.constant 0 : index
    %c0_248 = arith.constant 0 : index
    %763 = vector.load %arg21[%c0_246, %c0_247, %c0_248] : memref<1x2x64xf32, #tpu.memory_space<vmem>>, vector<1x2x64xf32>
    tpu.vector_store %arg21[%c0_246, %c0_247, %c0_248], %762 {strides = array<i32>} : memref<1x2x64xf32, #tpu.memory_space<vmem>>, vector<1x2x64xf32>,
    return
  }
  func.func @transform_0(%arg0: i32) -> (i32, i32, i32) {
    %c0_i32 = arith.constant 0 : i32
    %c0_i32_0 = arith.constant 0 : i32
    %c0_i32_1 = arith.constant 0 : i32
    return %arg0, %c0_i32, %c0_i32_0 : i32, i32, i32
  }
  func.func @transform_1(%arg0: i32) -> (i32, i32, i32) {
    %c0_i32 = arith.constant 0 : i32
    %c0_i32_0 = arith.constant 0 : i32
    %c0_i32_1 = arith.constant 0 : i32
    return %arg0, %c0_i32, %c0_i32_0 : i32, i32, i32
  }
  func.func @transform_2(%arg0: i32) -> (i32, i32) {
    %c0_i32 = arith.constant 0 : i32
    %c0_i32_0 = arith.constant 0 : i32
    %c0_i32_1 = arith.constant 0 : i32
    return %c0_i32, %c0_i32_0 : i32, i32
  }
  func.func @transform_3(%arg0: i32) -> (i32, i32) {
    %c0_i32 = arith.constant 0 : i32
    %c0_i32_0 = arith.constant 0 : i32
    %c0_i32_1 = arith.constant 0 : i32
    return %c0_i32, %c0_i32_0 : i32, i32
  }
  func.func @transform_4(%arg0: i32) -> (i32, i32, i32) {
    %c0_i32 = arith.constant 0 : i32
    %c0_i32_0 = arith.constant 0 : i32
    %c0_i32_1 = arith.constant 0 : i32
    %c0_i32_2 = arith.constant 0 : i32
    return %c0_i32, %c0_i32_0, %c0_i32_1 : i32, i32, i32
  }
  func.func @transform_5(%arg0: i32) -> (i32, i32, i32) {
    %c0_i32 = arith.constant 0 : i32
    %c0_i32_0 = arith.constant 0 : i32
    %c0_i32_1 = arith.constant 0 : i32
    %c0_i32_2 = arith.constant 0 : i32
    return %c0_i32, %c0_i32_0, %c0_i32_1 : i32, i32, i32
  }
  func.func @transform_6(%arg0: i32) -> (i32, i32, i32) {
    %c0_i32 = arith.constant 0 : i32
    %c0_i32_0 = arith.constant 0 : i32
    %c0_i32_1 = arith.constant 0 : i32
    %c0_i32_2 = arith.constant 0 : i32
    return %c0_i32, %c0_i32_0, %c0_i32_1 : i32, i32, i32
  }
  func.func @transform_7(%arg0: i32) -> (i32, i32, i32) {
    %c0_i32 = arith.constant 0 : i32
    %c0_i32_0 = arith.constant 0 : i32
    %c0_i32_1 = arith.constant 0 : i32
    %c0_i32_2 = arith.constant 0 : i32
    return %c0_i32, %c0_i32_0, %c0_i32_1 : i32, i32, i32
  }
  func.func @transform_8(%arg0: i32) -> (i32, i32, i32) {
    %c0_i32 = arith.constant 0 : i32
    %c0_i32_0 = arith.constant 0 : i32
    %c0_i32_1 = arith.constant 0 : i32
    %c0_i32_2 = arith.constant 0 : i32
    return %c0_i32, %c0_i32_0, %c0_i32_1 : i32, i32, i32
  }
  func.func @transform_9(%arg0: i32) -> (i32, i32) {
    %c0_i32 = arith.constant 0 : i32
    %c0_i32_0 = arith.constant 0 : i32
    %c0_i32_1 = arith.constant 0 : i32
    return %c0_i32, %c0_i32_0 : i32, i32
  }
  func.func @transform_10(%arg0: i32) -> (i32, i32) {
    %c0_i32 = arith.constant 0 : i32
    %c0_i32_0 = arith.constant 0 : i32
    %c0_i32_1 = arith.constant 0 : i32
    return %c0_i32, %c0_i32_0 : i32, i32
  }
  func.func @transform_11(%arg0: i32) -> (i32, i32) {
    %c0_i32 = arith.constant 0 : i32
    %c0_i32_0 = arith.constant 0 : i32
    %c0_i32_1 = arith.constant 0 : i32
    return %c0_i32, %c0_i32_0 : i32, i32
  }
  func.func @transform_12(%arg0: i32) -> (i32, i32) {
    %c0_i32 = arith.constant 0 : i32
    %c0_i32_0 = arith.constant 0 : i32
    %c0_i32_1 = arith.constant 0 : i32
    return %c0_i32, %c0_i32_0 : i32, i32
  }
  func.func @transform_13(%arg0: i32) -> (i32, i32) {
    %c0_i32 = arith.constant 0 : i32
    %c0_i32_0 = arith.constant 0 : i32
    %c0_i32_1 = arith.constant 0 : i32
    return %c0_i32, %c0_i32_0 : i32, i32
  }
  func.func @transform_14(%arg0: i32) -> (i32, i32) {
    %c0_i32 = arith.constant 0 : i32
    %c0_i32_0 = arith.constant 0 : i32
    %c0_i32_1 = arith.constant 0 : i32
    return %c0_i32, %c0_i32_0 : i32, i32
  }
  func.func @transform_15(%arg0: i32) -> (i32, i32) {
    %c0_i32 = arith.constant 0 : i32
    %c0_i32_0 = arith.constant 0 : i32
    %c0_i32_1 = arith.constant 0 : i32
    return %c0_i32, %c0_i32_0 : i32, i32
  }
  func.func @transform_16(%arg0: i32) -> (i32, i32) {
    %c0_i32 = arith.constant 0 : i32
    %c0_i32_0 = arith.constant 0 : i32
    %c0_i32_1 = arith.constant 0 : i32
    return %c0_i32, %c0_i32_0 : i32, i32
  }
  func.func @transform_17(%arg0: i32) -> (i32, i32) {
    %c0_i32 = arith.constant 0 : i32
    %c0_i32_0 = arith.constant 0 : i32
    %c0_i32_1 = arith.constant 0 : i32
    return %c0_i32, %c0_i32_0 : i32, i32
  }
  func.func @transform_18(%arg0: i32) -> (i32, i32, i32) {
    %c0_i32 = arith.constant 0 : i32
    %c0_i32_0 = arith.constant 0 : i32
    %c0_i32_1 = arith.constant 0 : i32
    return %arg0, %c0_i32, %c0_i32_0 : i32, i32, i32
  }
  func.func @transform_19(%arg0: i32) -> (i32, i32, i32) {
    %c0_i32 = arith.constant 0 : i32
    %c0_i32_0 = arith.constant 0 : i32
    %c0_i32_1 = arith.constant 0 : i32
    return %arg0, %c0_i32, %c0_i32_0 : i32, i32, i32
  }
  func.func @transform_20(%arg0: i32) -> (i32, i32, i32) {
    %c0_i32 = arith.constant 0 : i32
    %c0_i32_0 = arith.constant 0 : i32
    %c0_i32_1 = arith.constant 0 : i32
    return %arg0, %c0_i32, %c0_i32_0 : i32, i32, i32
  }
}

</mosaic_0001>

<llo_original>
// kernel: _lambda_.1
$region0: #{_lambda_.1}
  #allocation0 [shape = 'u32[]', space=smem, size = 0x4, offset = 0x4, fixed_abs, tag = 'smem constant byte address 0x4 - core index']
  #allocation1 [shape = 'u32[144,128]{1,0:T(1,128)}', space=vmem, size = 0x12000, scoped, tag = 'internal scratch']
  %s0 = inlined_call_operand.vmem [shape: f32[2,8,128], index: 0, kind: input, shape index: {}]
  %s1 = inlined_call_operand.vmem [shape: f32[2,81,15], index: 1, kind: input, shape index: {}]
  %s2 = inlined_call_operand.vmem [shape: f32[88,81], index: 2, kind: input, shape index: {}]
  %s3 = inlined_call_operand.vmem [shape: f32[128,32], index: 3, kind: input, shape index: {}]
  %s4 = inlined_call_operand.vmem [shape: f32[3,15,64], index: 4, kind: input, shape index: {}]
  %s5 = inlined_call_operand.vmem [shape: f32[3,64,128], index: 5, kind: input, shape index: {}]
  %s6 = inlined_call_operand.vmem [shape: f32[3,128,256], index: 6, kind: input, shape index: {}]
  %s7 = inlined_call_operand.vmem [shape: f32[11,256,32], index: 7, kind: input, shape index: {}]
  %s8 = inlined_call_operand.vmem [shape: f32[4,8,8], index: 8, kind: input, shape index: {}]
  %s9 = inlined_call_operand.vmem [shape: f32[9,8], index: 9, kind: input, shape index: {}]
  %s10 = inlined_call_operand.vmem [shape: f32[8,32], index: 10, kind: input, shape index: {}]
  %s11 = inlined_call_operand.vmem [shape: f32[32,8], index: 11, kind: input, shape index: {}]
  %s12 = inlined_call_operand.vmem [shape: f32[3,32], index: 12, kind: input, shape index: {}]
  %s13 = inlined_call_operand.vmem [shape: f32[288,256], index: 13, kind: input, shape index: {}]
  %s14 = inlined_call_operand.vmem [shape: f32[4,256], index: 14, kind: input, shape index: {}]
  %s15 = inlined_call_operand.vmem [shape: f32[2,128], index: 15, kind: input, shape index: {}]
  %s16 = inlined_call_operand.vmem [shape: f32[1,64], index: 16, kind: input, shape index: {}]
  %s17 = inlined_call_operand.vmem [shape: f32[256,128], index: 17, kind: input, shape index: {}]
  %s18 = inlined_call_operand.vmem [shape: f32[2,8,128], index: 18, kind: output, shape index: {0}]
  %s19 = inlined_call_operand.hbm [shape: f32[2,2,64], index: 19, kind: output, shape index: {1}]
  %s20 = inlined_call_operand.hbm [shape: f32[2,2,64], index: 20, kind: output, shape index: {2}]
  %21 = xla_tuple %s18, %s19, %s20
  %s22 = sld [smem:[#allocation0]]
  $region121: #{_lambda_.1} parent=0
    _
  %s24 = ssub.s32 1, %s22
  %s25 = scalar_select 0, %s24, %s22
  $region1: #{_lambda_.1} parent=0
    #allocation2 [shape = 'u8[2048]{0}', space=vmem, size = 0x800, scoped, tag = 'output window, operand 1']
    #allocation3 [shape = 's32[2]{0}', space=sflag, size = 0x8, scoped, tag = 'scoped memory for _lambda_.1']
    #allocation4 [shape = 'u8[2048]{0}', space=vmem, size = 0x800, scoped, tag = 'output window, operand 2']
    #allocation5 [shape = 's32[2]{0}', space=sflag, size = 0x8, scoped, tag = 'scoped memory for _lambda_.1']
    %26 = vsyncpa [#allocation3], 0
    %s27 = scalar_lea.sflag [#allocation3], 1
    %28 = vsyncpa %s27, 0
    %29 = vsyncpa [#allocation5], 0
    %s30 = scalar_lea.sflag [#allocation5], 1
    %31 = vsyncpa %s30, 0
    loop: start=0, step=1, limit=4
    $region2: #{_lambda_.1} parent=1 // loop_pre_header
      _
    $region3: #{_lambda_.1} parent=1 // loop_header
      %s33 = sphi 0, %s37
      %p34 = scmp.ge.s32.totalorder %s33, 4
      %s43 = sphi 0, %s45
      %s46 = sphi 0, %s43
      %s47 = sphi 0, %s46
      %s63 = sphi 0, %s47
      %s69 = sphi 0, %s71
      %s72 = sphi 0, %s69
      %s73 = sphi 0, %s72
      %s89 = sphi 0, %s73
      %s93 = sphi 0, %s93
      %s95 = sphi 0, %s93
      %s96 = sphi 0, %s95
      %s110 = sphi 0, %s96
      %s114 = sphi 0, %s114
      %s116 = sphi 0, %s114
      %s117 = sphi 0, %s116
      %s131 = sphi 0, %s117
      %s135 = sphi 0, %s135
      %s137 = sphi 0, %s135
      %s138 = sphi 0, %s137
      %s152 = sphi 0, %s138
      %s156 = sphi 0, %s156
      %s158 = sphi 0, %s156
      %s159 = sphi 0, %s158
      %s173 = sphi 0, %s159
      %s177 = sphi 0, %s177
      %s179 = sphi 0, %s177
      %s180 = sphi 0, %s179
      %s194 = sphi 0, %s180
      %s198 = sphi 0, %s198
      %s200 = sphi 0, %s198
      %s201 = sphi 0, %s200
      %s215 = sphi 0, %s201
      %s219 = sphi 0, %s219
      %s221 = sphi 0, %s219
      %s222 = sphi 0, %s221
      %s236 = sphi 0, %s222
      %s240 = sphi 0, %s240
      %s242 = sphi 0, %s240
      %s243 = sphi 0, %s242
      %s257 = sphi 0, %s243
      %s261 = sphi 0, %s261
      %s263 = sphi 0, %s261
      %s264 = sphi 0, %s263
      %s278 = sphi 0, %s264
      %s282 = sphi 0, %s282
      %s284 = sphi 0, %s282
      %s285 = sphi 0, %s284
      %s299 = sphi 0, %s285
      %s303 = sphi 0, %s303
      %s305 = sphi 0, %s303
      %s306 = sphi 0, %s305
      %s320 = sphi 0, %s306
      %s324 = sphi 0, %s324
      %s326 = sphi 0, %s324
      %s327 = sphi 0, %s326
      %s341 = sphi 0, %s327
      %s345 = sphi 0, %s345
      %s347 = sphi 0, %s345
      %s348 = sphi 0, %s347
      %s362 = sphi 0, %s348
      %s366 = sphi 0, %s366
      %s368 = sphi 0, %s366
      %s369 = sphi 0, %s368
      %s383 = sphi 0, %s369
      %s387 = sphi 0, %s387
      %s389 = sphi 0, %s387
      %s390 = sphi 0, %s389
      %s404 = sphi 0, %s390
      %s408 = sphi 0, %s408
      %s410 = sphi 0, %s408
      %s411 = sphi 0, %s410
      %s425 = sphi 0, %s411
      %s431 = sphi 0, %s433
      %s434 = sphi 0, %s431
      %s435 = sphi 0, %s434
      %s451 = sphi 0, %s435
      %s457 = sphi 0, %s459
      %s460 = sphi 0, %s457
      %s461 = sphi 0, %s460
      %s477 = sphi 0, %s461
      %s483 = sphi 0, %s485
      %s486 = sphi 0, %s483
      %s487 = sphi 0, %s486
      %s503 = sphi 0, %s487
    $region4: #{_lambda_.1} parent=1 // loop_header_branch
      %36 = sbr.rel (%p34) target = $region8
    $region5: #{_lambda_.1} parent=1 // loop_body
      %s38 = ssub.s32 %s33, 1
      %s39 = ssub.s32 %s33, 2
      %s40 = sadd.s32 %s33, 1
      %s41 = ssub.s32 %s33, %s40
      %p42 = scmp.eq.s32.totalorder %s41, 0
      %s44 = sadd.s32 %s43, 1
      %s45 = scalar_select %p42, %s43, %s44
      %p48 = pneg %p42
      %p49 = scmp.eq.s32.totalorder %s33, 1
      %p50 = por %p48, %p49
      %p51 = scmp.ne.s32.totalorder %s43, %s46
      %p52 = scmp.eq.s32.totalorder %s33, 0
      %p53 = por %p51, %p52
      %p54 = scmp.ne.s32.totalorder %s43, %s46
      %p55 = scmp.eq.s32.totalorder %s38, 1
      %p56 = por %p54, %p55
      %p57 = scmp.ne.s32.totalorder %s46, %s47
      %p58 = scmp.eq.s32.totalorder %s38, 0
      %p59 = por %p57, %p58
      %p60 = scmp.ne.s32.totalorder %s46, %s47
      %p61 = scmp.eq.s32.totalorder %s39, 1
      %p62 = por %p60, %p61
      %p64 = scmp.ne.s32.totalorder %s47, %s63
      %p65 = scmp.eq.s32.totalorder %s39, 0
      %p66 = por %p64, %p65
      %s67 = ssub.s32 %s33, %s40
      %p68 = scmp.eq.s32.totalorder %s67, 0
      %s70 = sadd.s32 %s69, 1
      %s71 = scalar_select %p68, %s69, %s70
      %p74 = pneg %p68
      %p75 = scmp.eq.s32.totalorder %s33, 1
      %p76 = por %p74, %p75
      %p77 = scmp.ne.s32.totalorder %s69, %s72
      %p78 = scmp.eq.s32.totalorder %s33, 0
      %p79 = por %p77, %p78
      %p80 = scmp.ne.s32.totalorder %s69, %s72
      %p81 = scmp.eq.s32.totalorder %s38, 1
      %p82 = por %p80, %p81
      %p83 = scmp.ne.s32.totalorder %s72, %s73
      %p84 = scmp.eq.s32.totalorder %s38, 0
      %p85 = por %p83, %p84
      %p86 = scmp.ne.s32.totalorder %s72, %s73
      %p87 = scmp.eq.s32.totalorder %s39, 1
      %p88 = por %p86, %p87
      %p90 = scmp.ne.s32.totalorder %s73, %s89
      %p91 = scmp.eq.s32.totalorder %s39, 0
      %p92 = por %p90, %p91
      %s94 = sadd.s32 %s93, 1
      %p97 = scmp.eq.s32.totalorder %s33, 1
      %p98 = scmp.ne.s32.totalorder %s93, %s95
      %p99 = scmp.eq.s32.totalorder %s33, 0
      %p100 = por %p98, %p99
      %p101 = scmp.ne.s32.totalorder %s93, %s95
      %p102 = scmp.eq.s32.totalorder %s38, 1
      %p103 = por %p101, %p102
      %p104 = scmp.ne.s32.totalorder %s95, %s96
      %p105 = scmp.eq.s32.totalorder %s38, 0
      %p106 = por %p104, %p105
      %p107 = scmp.ne.s32.totalorder %s95, %s96
      %p108 = scmp.eq.s32.totalorder %s39, 1
      %p109 = por %p107, %p108
      %p111 = scmp.ne.s32.totalorder %s96, %s110
      %p112 = scmp.eq.s32.totalorder %s39, 0
      %p113 = por %p111, %p112
      %s115 = sadd.s32 %s114, 1
      %p118 = scmp.eq.s32.totalorder %s33, 1
      %p119 = scmp.ne.s32.totalorder %s114, %s116
      %p120 = scmp.eq.s32.totalorder %s33, 0
      %p121 = por %p119, %p120
      %p122 = scmp.ne.s32.totalorder %s114, %s116
      %p123 = scmp.eq.s32.totalorder %s38, 1
      %p124 = por %p122, %p123
      %p125 = scmp.ne.s32.totalorder %s116, %s117
      %p126 = scmp.eq.s32.totalorder %s38, 0
      %p127 = por %p125, %p126
      %p128 = scmp.ne.s32.totalorder %s116, %s117
      %p129 = scmp.eq.s32.totalorder %s39, 1
      %p130 = por %p128, %p129
      %p132 = scmp.ne.s32.totalorder %s117, %s131
      %p133 = scmp.eq.s32.totalorder %s39, 0
      %p134 = por %p132, %p133
      %s136 = sadd.s32 %s135, 1
      %p139 = scmp.eq.s32.totalorder %s33, 1
      %p140 = scmp.ne.s32.totalorder %s135, %s137
      %p141 = scmp.eq.s32.totalorder %s33, 0
      %p142 = por %p140, %p141
      %p143 = scmp.ne.s32.totalorder %s135, %s137
      %p144 = scmp.eq.s32.totalorder %s38, 1
      %p145 = por %p143, %p144
      %p146 = scmp.ne.s32.totalorder %s137, %s138
      %p147 = scmp.eq.s32.totalorder %s38, 0
      %p148 = por %p146, %p147
      %p149 = scmp.ne.s32.totalorder %s137, %s138
      %p150 = scmp.eq.s32.totalorder %s39, 1
      %p151 = por %p149, %p150
      %p153 = scmp.ne.s32.totalorder %s138, %s152
      %p154 = scmp.eq.s32.totalorder %s39, 0
      %p155 = por %p153, %p154
      %s157 = sadd.s32 %s156, 1
      %p160 = scmp.eq.s32.totalorder %s33, 1
      %p161 = scmp.ne.s32.totalorder %s156, %s158
      %p162 = scmp.eq.s32.totalorder %s33, 0
      %p163 = por %p161, %p162
      %p164 = scmp.ne.s32.totalorder %s156, %s158
      %p165 = scmp.eq.s32.totalorder %s38, 1
      %p166 = por %p164, %p165
      %p167 = scmp.ne.s32.totalorder %s158, %s159
      %p168 = scmp.eq.s32.totalorder %s38, 0
      %p169 = por %p167, %p168
      %p170 = scmp.ne.s32.totalorder %s158, %s159
      %p171 = scmp.eq.s32.totalorder %s39, 1
      %p172 = por %p170, %p171
      %p174 = scmp.ne.s32.totalorder %s159, %s173
      %p175 = scmp.eq.s32.totalorder %s39, 0
      %p176 = por %p174, %p175
      %s178 = sadd.s32 %s177, 1
      %p181 = scmp.eq.s32.totalorder %s33, 1
      %p182 = scmp.ne.s32.totalorder %s177, %s179
      %p183 = scmp.eq.s32.totalorder %s33, 0
      %p184 = por %p182, %p183
      %p185 = scmp.ne.s32.totalorder %s177, %s179
      %p186 = scmp.eq.s32.totalorder %s38, 1
      %p187 = por %p185, %p186
      %p188 = scmp.ne.s32.totalorder %s179, %s180
      %p189 = scmp.eq.s32.totalorder %s38, 0
      %p190 = por %p188, %p189
      %p191 = scmp.ne.s32.totalorder %s179, %s180
      %p192 = scmp.eq.s32.totalorder %s39, 1
      %p193 = por %p191, %p192
      %p195 = scmp.ne.s32.totalorder %s180, %s194
      %p196 = scmp.eq.s32.totalorder %s39, 0
      %p197 = por %p195, %p196
      %s199 = sadd.s32 %s198, 1
      %p202 = scmp.eq.s32.totalorder %s33, 1
      %p203 = scmp.ne.s32.totalorder %s198, %s200
      %p204 = scmp.eq.s32.totalorder %s33, 0
      %p205 = por %p203, %p204
      %p206 = scmp.ne.s32.totalorder %s198, %s200
      %p207 = scmp.eq.s32.totalorder %s38, 1
      %p208 = por %p206, %p207
      %p209 = scmp.ne.s32.totalorder %s200, %s201
      %p210 = scmp.eq.s32.totalorder %s38, 0
      %p211 = por %p209, %p210
      %p212 = scmp.ne.s32.totalorder %s200, %s201
      %p213 = scmp.eq.s32.totalorder %s39, 1
      %p214 = por %p212, %p213
      %p216 = scmp.ne.s32.totalorder %s201, %s215
      %p217 = scmp.eq.s32.totalorder %s39, 0
      %p218 = por %p216, %p217
      %s220 = sadd.s32 %s219, 1
      %p223 = scmp.eq.s32.totalorder %s33, 1
      %p224 = scmp.ne.s32.totalorder %s219, %s221
      %p225 = scmp.eq.s32.totalorder %s33, 0
      %p226 = por %p224, %p225
      %p227 = scmp.ne.s32.totalorder %s219, %s221
      %p228 = scmp.eq.s32.totalorder %s38, 1
      %p229 = por %p227, %p228
      %p230 = scmp.ne.s32.totalorder %s221, %s222
      %p231 = scmp.eq.s32.totalorder %s38, 0
      %p232 = por %p230, %p231
      %p233 = scmp.ne.s32.totalorder %s221, %s222
      %p234 = scmp.eq.s32.totalorder %s39, 1
      %p235 = por %p233, %p234
      %p237 = scmp.ne.s32.totalorder %s222, %s236
      %p238 = scmp.eq.s32.totalorder %s39, 0
      %p239 = por %p237, %p238
      %s241 = sadd.s32 %s240, 1
      %p244 = scmp.eq.s32.totalorder %s33, 1
      %p245 = scmp.ne.s32.totalorder %s240, %s242
      %p246 = scmp.eq.s32.totalorder %s33, 0
      %p247 = por %p245, %p246
      %p248 = scmp.ne.s32.totalorder %s240, %s242
      %p249 = scmp.eq.s32.totalorder %s38, 1
      %p250 = por %p248, %p249
      %p251 = scmp.ne.s32.totalorder %s242, %s243
      %p252 = scmp.eq.s32.totalorder %s38, 0
      %p253 = por %p251, %p252
      %p254 = scmp.ne.s32.totalorder %s242, %s243
      %p255 = scmp.eq.s32.totalorder %s39, 1
      %p256 = por %p254, %p255
      %p258 = scmp.ne.s32.totalorder %s243, %s257
      %p259 = scmp.eq.s32.totalorder %s39, 0
      %p260 = por %p258, %p259
      %s262 = sadd.s32 %s261, 1
      %p265 = scmp.eq.s32.totalorder %s33, 1
      %p266 = scmp.ne.s32.totalorder %s261, %s263
      %p267 = scmp.eq.s32.totalorder %s33, 0
      %p268 = por %p266, %p267
      %p269 = scmp.ne.s32.totalorder %s261, %s263
      %p270 = scmp.eq.s32.totalorder %s38, 1
      %p271 = por %p269, %p270
      %p272 = scmp.ne.s32.totalorder %s263, %s264
      %p273 = scmp.eq.s32.totalorder %s38, 0
      %p274 = por %p272, %p273
      %p275 = scmp.ne.s32.totalorder %s263, %s264
      %p276 = scmp.eq.s32.totalorder %s39, 1
      %p277 = por %p275, %p276
      %p279 = scmp.ne.s32.totalorder %s264, %s278
      %p280 = scmp.eq.s32.totalorder %s39, 0
      %p281 = por %p279, %p280
      %s283 = sadd.s32 %s282, 1
      %p286 = scmp.eq.s32.totalorder %s33, 1
      %p287 = scmp.ne.s32.totalorder %s282, %s284
      %p288 = scmp.eq.s32.totalorder %s33, 0
      %p289 = por %p287, %p288
      %p290 = scmp.ne.s32.totalorder %s282, %s284
      %p291 = scmp.eq.s32.totalorder %s38, 1
      %p292 = por %p290, %p291
      %p293 = scmp.ne.s32.totalorder %s284, %s285
      %p294 = scmp.eq.s32.totalorder %s38, 0
      %p295 = por %p293, %p294
      %p296 = scmp.ne.s32.totalorder %s284, %s285
      %p297 = scmp.eq.s32.totalorder %s39, 1
      %p298 = por %p296, %p297
      %p300 = scmp.ne.s32.totalorder %s285, %s299
      %p301 = scmp.eq.s32.totalorder %s39, 0
      %p302 = por %p300, %p301
      %s304 = sadd.s32 %s303, 1
      %p307 = scmp.eq.s32.totalorder %s33, 1
      %p308 = scmp.ne.s32.totalorder %s303, %s305
      %p309 = scmp.eq.s32.totalorder %s33, 0
      %p310 = por %p308, %p309
      %p311 = scmp.ne.s32.totalorder %s303, %s305
      %p312 = scmp.eq.s32.totalorder %s38, 1
      %p313 = por %p311, %p312
      %p314 = scmp.ne.s32.totalorder %s305, %s306
      %p315 = scmp.eq.s32.totalorder %s38, 0
      %p316 = por %p314, %p315
      %p317 = scmp.ne.s32.totalorder %s305, %s306
      %p318 = scmp.eq.s32.totalorder %s39, 1
      %p319 = por %p317, %p318
      %p321 = scmp.ne.s32.totalorder %s306, %s320
      %p322 = scmp.eq.s32.totalorder %s39, 0
      %p323 = por %p321, %p322
      %s325 = sadd.s32 %s324, 1
      %p328 = scmp.eq.s32.totalorder %s33, 1
      %p329 = scmp.ne.s32.totalorder %s324, %s326
      %p330 = scmp.eq.s32.totalorder %s33, 0
      %p331 = por %p329, %p330
      %p332 = scmp.ne.s32.totalorder %s324, %s326
      %p333 = scmp.eq.s32.totalorder %s38, 1
      %p334 = por %p332, %p333
      %p335 = scmp.ne.s32.totalorder %s326, %s327
      %p336 = scmp.eq.s32.totalorder %s38, 0
      %p337 = por %p335, %p336
      %p338 = scmp.ne.s32.totalorder %s326, %s327
      %p339 = scmp.eq.s32.totalorder %s39, 1
      %p340 = por %p338, %p339
      %p342 = scmp.ne.s32.totalorder %s327, %s341
      %p343 = scmp.eq.s32.totalorder %s39, 0
      %p344 = por %p342, %p343
      %s346 = sadd.s32 %s345, 1
      %p349 = scmp.eq.s32.totalorder %s33, 1
      %p350 = scmp.ne.s32.totalorder %s345, %s347
      %p351 = scmp.eq.s32.totalorder %s33, 0
      %p352 = por %p350, %p351
      %p353 = scmp.ne.s32.totalorder %s345, %s347
      %p354 = scmp.eq.s32.totalorder %s38, 1
      %p355 = por %p353, %p354
      %p356 = scmp.ne.s32.totalorder %s347, %s348
      %p357 = scmp.eq.s32.totalorder %s38, 0
      %p358 = por %p356, %p357
      %p359 = scmp.ne.s32.totalorder %s347, %s348
      %p360 = scmp.eq.s32.totalorder %s39, 1
      %p361 = por %p359, %p360
      %p363 = scmp.ne.s32.totalorder %s348, %s362
      %p364 = scmp.eq.s32.totalorder %s39, 0
      %p365 = por %p363, %p364
      %s367 = sadd.s32 %s366, 1
      %p370 = scmp.eq.s32.totalorder %s33, 1
      %p371 = scmp.ne.s32.totalorder %s366, %s368
      %p372 = scmp.eq.s32.totalorder %s33, 0
      %p373 = por %p371, %p372
      %p374 = scmp.ne.s32.totalorder %s366, %s368
      %p375 = scmp.eq.s32.totalorder %s38, 1
      %p376 = por %p374, %p375
      %p377 = scmp.ne.s32.totalorder %s368, %s369
      %p378 = scmp.eq.s32.totalorder %s38, 0
      %p379 = por %p377, %p378
      %p380 = scmp.ne.s32.totalorder %s368, %s369
      %p381 = scmp.eq.s32.totalorder %s39, 1
      %p382 = por %p380, %p381
      %p384 = scmp.ne.s32.totalorder %s369, %s383
      %p385 = scmp.eq.s32.totalorder %s39, 0
      %p386 = por %p384, %p385
      %s388 = sadd.s32 %s387, 1
      %p391 = scmp.eq.s32.totalorder %s33, 1
      %p392 = scmp.ne.s32.totalorder %s387, %s389
      %p393 = scmp.eq.s32.totalorder %s33, 0
      %p394 = por %p392, %p393
      %p395 = scmp.ne.s32.totalorder %s387, %s389
      %p396 = scmp.eq.s32.totalorder %s38, 1
      %p397 = por %p395, %p396
      %p398 = scmp.ne.s32.totalorder %s389, %s390
      %p399 = scmp.eq.s32.totalorder %s38, 0
      %p400 = por %p398, %p399
      %p401 = scmp.ne.s32.totalorder %s389, %s390
      %p402 = scmp.eq.s32.totalorder %s39, 1
      %p403 = por %p401, %p402
      %p405 = scmp.ne.s32.totalorder %s390, %s404
      %p406 = scmp.eq.s32.totalorder %s39, 0
      %p407 = por %p405, %p406
      %s409 = sadd.s32 %s408, 1
      %p412 = scmp.eq.s32.totalorder %s33, 1
      %p413 = scmp.ne.s32.totalorder %s408, %s410
      %p414 = scmp.eq.s32.totalorder %s33, 0
      %p415 = por %p413, %p414
      %p416 = scmp.ne.s32.totalorder %s408, %s410
      %p417 = scmp.eq.s32.totalorder %s38, 1
      %p418 = por %p416, %p417
      %p419 = scmp.ne.s32.totalorder %s410, %s411
      %p420 = scmp.eq.s32.totalorder %s38, 0
      %p421 = por %p419, %p420
      %p422 = scmp.ne.s32.totalorder %s410, %s411
      %p423 = scmp.eq.s32.totalorder %s39, 1
      %p424 = por %p422, %p423
      %p426 = scmp.ne.s32.totalorder %s411, %s425
      %p427 = scmp.eq.s32.totalorder %s39, 0
      %p428 = por %p426, %p427
      %s429 = ssub.s32 %s33, %s40
      %p430 = scmp.eq.s32.totalorder %s429, 0
      %s432 = sadd.s32 %s431, 1
      %s433 = scalar_select %p430, %s431, %s432
      %p436 = pneg %p430
      %p437 = scmp.eq.s32.totalorder %s33, 1
      %p438 = por %p436, %p437
      %p439 = scmp.ne.s32.totalorder %s431, %s434
      %p440 = scmp.eq.s32.totalorder %s33, 0
      %p441 = por %p439, %p440
      %p442 = scmp.ne.s32.totalorder %s431, %s434
      %p443 = scmp.eq.s32.totalorder %s38, 1
      %p444 = por %p442, %p443
      %p445 = scmp.ne.s32.totalorder %s434, %s435
      %p446 = scmp.eq.s32.totalorder %s38, 0
      %p447 = por %p445, %p446
      %p448 = scmp.ne.s32.totalorder %s434, %s435
      %p449 = scmp.eq.s32.totalorder %s39, 1
      %p450 = por %p448, %p449
      %p452 = scmp.ne.s32.totalorder %s435, %s451
      %p453 = scmp.eq.s32.totalorder %s39, 0
      %p454 = por %p452, %p453
      %s455 = ssub.s32 %s33, %s40
      %p456 = scmp.eq.s32.totalorder %s455, 0
      %s458 = sadd.s32 %s457, 1
      %s459 = scalar_select %p456, %s457, %s458
      %p462 = pneg %p456
      %p463 = scmp.eq.s32.totalorder %s33, 1
      %p464 = por %p462, %p463
      %p465 = scmp.ne.s32.totalorder %s457, %s460
      %p466 = scmp.eq.s32.totalorder %s33, 0
      %p467 = por %p465, %p466
      %p468 = scmp.ne.s32.totalorder %s457, %s460
      %p469 = scmp.eq.s32.totalorder %s38, 1
      %p470 = por %p468, %p469
      %p471 = scmp.ne.s32.totalorder %s460, %s461
      %p472 = scmp.eq.s32.totalorder %s38, 0
      %p473 = por %p471, %p472
      %p474 = scmp.ne.s32.totalorder %s460, %s461
      %p475 = scmp.eq.s32.totalorder %s39, 1
      %p476 = por %p474, %p475
      %p478 = scmp.ne.s32.totalorder %s461, %s477
      %p479 = scmp.eq.s32.totalorder %s39, 0
      %p480 = por %p478, %p479
      %s481 = ssub.s32 %s33, %s40
      %p482 = scmp.eq.s32.totalorder %s481, 0
      %s484 = sadd.s32 %s483, 1
      %s485 = scalar_select %p482, %s483, %s484
      %p488 = pneg %p482
      %p489 = scmp.eq.s32.totalorder %s33, 1
      %p490 = por %p488, %p489
      %p491 = scmp.ne.s32.totalorder %s483, %s486
      %p492 = scmp.eq.s32.totalorder %s33, 0
      %p493 = por %p491, %p492
      %p494 = scmp.ne.s32.totalorder %s483, %s486
      %p495 = scmp.eq.s32.totalorder %s38, 1
      %p496 = por %p494, %p495
      %p497 = scmp.ne.s32.totalorder %s486, %s487
      %p498 = scmp.eq.s32.totalorder %s38, 0
      %p499 = por %p497, %p498
      %p500 = scmp.ne.s32.totalorder %s486, %s487
      %p501 = scmp.eq.s32.totalorder %s39, 1
      %p502 = por %p500, %p501
      %p504 = scmp.ne.s32.totalorder %s487, %s503
      %p505 = scmp.eq.s32.totalorder %s39, 0
      %p506 = por %p504, %p505
      %p507 = scmp.le.s32.totalorder 1, %s33
      %p508 = scmp.lt.s32.totalorder %s33, 3
      %p509 = pnand %p507, %p508
      %p510 = pneg %p509
      // Predicated region
      $region9: #{_lambda_.1} parent=5 // pred_check
        _
      $region10: #{_lambda_.1} parent=5 // pred_check_branch
        %512 = sbr.rel (%p509) target = $region12
      $region11: #{_lambda_.1} parent=5 // pred_region
        %s513 = ssub.s32 %s33, 1
        // Predicated region
        $region13: #{_lambda_.1} parent=11 // pred_check
          %p514 = pneg %p106
        $region14: #{_lambda_.1} parent=11 // pred_check_branch
          %516 = sbr.rel (%p514) target = $region16
        $region15: #{_lambda_.1} parent=11 // pred_region
          _
        $region16: #{_lambda_.1} parent=11 // pred_fallthru
          _
        // Predicated region
        $region17: #{_lambda_.1} parent=11 // pred_check
          %p517 = pneg %p127
        $region18: #{_lambda_.1} parent=11 // pred_check_branch
          %519 = sbr.rel (%p517) target = $region20
        $region19: #{_lambda_.1} parent=11 // pred_region
          _
        $region20: #{_lambda_.1} parent=11 // pred_fallthru
          _
        // Predicated region
        $region21: #{_lambda_.1} parent=11 // pred_check
          %p520 = pneg %p148
        $region22: #{_lambda_.1} parent=11 // pred_check_branch
          %522 = sbr.rel (%p520) target = $region24
        $region23: #{_lambda_.1} parent=11 // pred_region
          _
        $region24: #{_lambda_.1} parent=11 // pred_fallthru
          _
        // Predicated region
        $region25: #{_lambda_.1} parent=11 // pred_check
          %p523 = pneg %p169
        $region26: #{_lambda_.1} parent=11 // pred_check_branch
          %525 = sbr.rel (%p523) target = $region28
        $region27: #{_lambda_.1} parent=11 // pred_region
          _
        $region28: #{_lambda_.1} parent=11 // pred_fallthru
          _
        // Predicated region
        $region29: #{_lambda_.1} parent=11 // pred_check
          %p526 = pneg %p190
        $region30: #{_lambda_.1} parent=11 // pred_check_branch
          %528 = sbr.rel (%p526) target = $region32
        $region31: #{_lambda_.1} parent=11 // pred_region
          _
        $region32: #{_lambda_.1} parent=11 // pred_fallthru
          _
        // Predicated region
        $region33: #{_lambda_.1} parent=11 // pred_check
          %p529 = pneg %p211
        $region34: #{_lambda_.1} parent=11 // pred_check_branch
          %531 = sbr.rel (%p529) target = $region36
        $region35: #{_lambda_.1} parent=11 // pred_region
          _
        $region36: #{_lambda_.1} parent=11 // pred_fallthru
          _
        // Predicated region
        $region37: #{_lambda_.1} parent=11 // pred_check
          %p532 = pneg %p232
        $region38: #{_lambda_.1} parent=11 // pred_check_branch
          %534 = sbr.rel (%p532) target = $region40
        $region39: #{_lambda_.1} parent=11 // pred_region
          _
        $region40: #{_lambda_.1} parent=11 // pred_fallthru
          _
        // Predicated region
        $region41: #{_lambda_.1} parent=11 // pred_check
          %p535 = pneg %p253
        $region42: #{_lambda_.1} parent=11 // pred_check_branch
          %537 = sbr.rel (%p535) target = $region44
        $region43: #{_lambda_.1} parent=11 // pred_region
          _
        $region44: #{_lambda_.1} parent=11 // pred_fallthru
          _
        // Predicated region
        $region45: #{_lambda_.1} parent=11 // pred_check
          %p538 = pneg %p274
        $region46: #{_lambda_.1} parent=11 // pred_check_branch
          %540 = sbr.rel (%p538) target = $region48
        $region47: #{_lambda_.1} parent=11 // pred_region
          _
        $region48: #{_lambda_.1} parent=11 // pred_fallthru
          _
        // Predicated region
        $region49: #{_lambda_.1} parent=11 // pred_check
          %p541 = pneg %p295
        $region50: #{_lambda_.1} parent=11 // pred_check_branch
          %543 = sbr.rel (%p541) target = $region52
        $region51: #{_lambda_.1} parent=11 // pred_region
          _
        $region52: #{_lambda_.1} parent=11 // pred_fallthru
          _
        // Predicated region
        $region53: #{_lambda_.1} parent=11 // pred_check
          %p544 = pneg %p316
        $region54: #{_lambda_.1} parent=11 // pred_check_branch
          %546 = sbr.rel (%p544) target = $region56
        $region55: #{_lambda_.1} parent=11 // pred_region
          _
        $region56: #{_lambda_.1} parent=11 // pred_fallthru
          _
        // Predicated region
        $region57: #{_lambda_.1} parent=11 // pred_check
          %p547 = pneg %p337
        $region58: #{_lambda_.1} parent=11 // pred_check_branch
          %549 = sbr.rel (%p547) target = $region60
        $region59: #{_lambda_.1} parent=11 // pred_region
          _
        $region60: #{_lambda_.1} parent=11 // pred_fallthru
          _
        // Predicated region
        $region61: #{_lambda_.1} parent=11 // pred_check
          %p550 = pneg %p358
        $region62: #{_lambda_.1} parent=11 // pred_check_branch
          %552 = sbr.rel (%p550) target = $region64
        $region63: #{_lambda_.1} parent=11 // pred_region
          _
        $region64: #{_lambda_.1} parent=11 // pred_fallthru
          _
        // Predicated region
        $region65: #{_lambda_.1} parent=11 // pred_check
          %p553 = pneg %p379
        $region66: #{_lambda_.1} parent=11 // pred_check_branch
          %555 = sbr.rel (%p553) target = $region68
        $region67: #{_lambda_.1} parent=11 // pred_region
          _
        $region68: #{_lambda_.1} parent=11 // pred_fallthru
          _
        // Predicated region
        $region69: #{_lambda_.1} parent=11 // pred_check
          %p556 = pneg %p400
        $region70: #{_lambda_.1} parent=11 // pred_check_branch
          %558 = sbr.rel (%p556) target = $region72
        $region71: #{_lambda_.1} parent=11 // pred_region
          _
        $region72: #{_lambda_.1} parent=11 // pred_fallthru
          _
        // Predicated region
        $region73: #{_lambda_.1} parent=11 // pred_check
          %p559 = pneg %p421
        $region74: #{_lambda_.1} parent=11 // pred_check_branch
          %561 = sbr.rel (%p559) target = $region76
        $region75: #{_lambda_.1} parent=11 // pred_region
          _
        $region76: #{_lambda_.1} parent=11 // pred_fallthru
          _
      $region12: #{_lambda_.1} parent=5 // pred_fallthru
        _
      %p562 = scmp.lt.s32.totalorder %s33, 2
      // Predicated region
      $region77: #{_lambda_.1} parent=5 // pred_check
        %p563 = pneg %p562
      $region78: #{_lambda_.1} parent=5 // pred_check_branch
        %565 = sbr.rel (%p563) target = $region80
      $region79: #{_lambda_.1} parent=5 // pred_region
        // Predicated region
        $region81: #{_lambda_.1} parent=79 // pred_check
          %p566 = pneg %p53
        $region82: #{_lambda_.1} parent=79 // pred_check_branch
          %568 = sbr.rel (%p566) target = $region84
        $region83: #{_lambda_.1} parent=79 // pred_region
          %p569 = scmp.lt.s32.totalorder %s33, 1
          %s570 = scalar_select %p569, %s33, 1
          %s571 = smul.addr %s570, 8
          %s572 = scalar_lea.vmem %s0, %s571
        $region84: #{_lambda_.1} parent=79 // pred_fallthru
          _
        // Predicated region
        $region85: #{_lambda_.1} parent=79 // pred_check
          %p573 = pneg %p79
        $region86: #{_lambda_.1} parent=79 // pred_check_branch
          %575 = sbr.rel (%p573) target = $region88
        $region87: #{_lambda_.1} parent=79 // pred_region
          %p576 = scmp.lt.s32.totalorder %s33, 1
          %s577 = scalar_select %p576, %s33, 1
          %s578 = smul.addr %s577, 11
          %s579 = smul.addr %s578, 8
          %s580 = scalar_lea.vmem %s1, %s579
        $region88: #{_lambda_.1} parent=79 // pred_fallthru
          _
      $region80: #{_lambda_.1} parent=5 // pred_fallthru
        _
      %p581 = scmp.le.s32.totalorder 1, %s33
      %p582 = scmp.lt.s32.totalorder %s33, 3
      %p583 = pnand %p581, %p582
      %p584 = pneg %p583
      // Predicated region
      $region89: #{_lambda_.1} parent=5 // pred_check
        _
      $region90: #{_lambda_.1} parent=5 // pred_check_branch
        %586 = sbr.rel (%p583) target = $region92
      $region91: #{_lambda_.1} parent=5 // pred_region
        %s587 = ssub.s32 %s33, 1
        %p588 = scmp.lt.s32.totalorder %s38, 1
        %s589 = scalar_select %p588, %s38, 1
        %s590 = smul.addr %s589, 8
        %s591 = scalar_lea.vmem %s0, %s590
        %p592 = pneg %p59
        %p593 = pneg %p56
        %p594 = scmp.lt.s32.totalorder %s38, 1
        %s595 = scalar_select %p594, %s38, 1
        %s596 = smul.addr %s595, 11
        %s597 = smul.addr %s596, 8
        %s598 = scalar_lea.vmem %s1, %s597
        %p599 = pneg %p85
        %p600 = pneg %p82
        %p601 = pneg %p106
        %p602 = pneg %p103
        %p603 = pneg %p127
        %p604 = pneg %p124
        %p605 = pneg %p148
        %p606 = pneg %p145
        %p607 = pneg %p169
        %p608 = pneg %p166
        %p609 = pneg %p190
        %p610 = pneg %p187
        %p611 = pneg %p211
        %p612 = pneg %p208
        %p613 = pneg %p232
        %p614 = pneg %p229
        %p615 = pneg %p253
        %p616 = pneg %p250
        %p617 = pneg %p274
        %p618 = pneg %p271
        %p619 = pneg %p295
        %p620 = pneg %p292
        %p621 = pneg %p316
        %p622 = pneg %p313
        %p623 = pneg %p337
        %p624 = pneg %p334
        %p625 = pneg %p358
        %p626 = pneg %p355
        %p627 = pneg %p379
        %p628 = pneg %p376
        %p629 = pneg %p400
        %p630 = pneg %p397
        %p631 = pneg %p421
        %p632 = pneg %p418
        %p633 = pneg %p447
        %p634 = pneg %p444
        %p635 = scmp.lt.s32.totalorder %s38, 1
        %s636 = scalar_select %p635, %s38, 1
        %s637 = smul.addr %s636, 8
        %s638 = scalar_lea.vmem %s18, %s637
        %p639 = pneg %p473
        %p640 = pneg %p470
        %s641 = sand.u32 %s460, 1
        %s642 = scalar_lea.sflag [#allocation3], %s641
        %s643 = sand.u32 %s460, 1
        %s644 = smul.addr %s643, 2
        %s645 = scalar_lea.vmem [#allocation2], %s644
        %p646 = pneg %p499
        %p647 = pneg %p496
        %s648 = sand.u32 %s486, 1
        %s649 = scalar_lea.sflag [#allocation5], %s648
        %s650 = sand.u32 %s486, 1
        %s651 = smul.addr %s650, 2
        %s652 = scalar_lea.vmem [#allocation4], %s651
        %p653 = scmp.lt.s32.totalorder %s38, 1
        %s654 = scalar_select %p653, %s38, 1
        %s655 = smul.addr %s654, 8
        %s656 = scalar_lea.vmem %s0, %s655
        %p657 = scmp.lt.s32.totalorder %s38, 1
        %s658 = scalar_select %p657, %s38, 1
        %s659 = smul.addr %s658, 11
        %s660 = smul.addr %s659, 8
        %s661 = scalar_lea.vmem %s1, %s660
        %p662 = scmp.lt.s32.totalorder %s38, 1
        %s663 = scalar_select %p662, %s38, 1
        %s664 = smul.addr %s663, 8
        %s665 = scalar_lea.vmem %s18, %s664
        %v666 = vld [vmem:[%s12] sm:$0x7]
        %v667 = vld [vmem:[%s656] sm:$0xff]
        %v668 = vld [vmem:[%s3] sm:$0xff]
        %v669 = vld [vmem:[%s3 + $0x8] sm:$0xff]
        %v670 = vld [vmem:[%s3 + $0x10] sm:$0xff]
        %v671 = vld [vmem:[%s3 + $0x18] sm:$0xff]
        %v672 = vld [vmem:[%s3 + $0x20] sm:$0xff]
        %v673 = vld [vmem:[%s3 + $0x28] sm:$0xff]
        %v674 = vld [vmem:[%s3 + $0x30] sm:$0xff]
        %v675 = vld [vmem:[%s3 + $0x38] sm:$0xff]
        %v676 = vld [vmem:[%s3 + $0x40] sm:$0xff]
        %v677 = vld [vmem:[%s3 + $0x48] sm:$0xff]
        %v678 = vld [vmem:[%s3 + $0x50] sm:$0xff]
        %v679 = vld [vmem:[%s3 + $0x58] sm:$0xff]
        %v680 = vld [vmem:[%s3 + $0x60] sm:$0xff]
        %v681 = vld [vmem:[%s3 + $0x68] sm:$0xff]
        %v682 = vld [vmem:[%s3 + $0x70] sm:$0xff]
        %v683 = vld [vmem:[%s3 + $0x78] sm:$0xff]
        %v684 = vlaneseq
        %v685 = vshrl.u32 %v684, 7
        %v686 = vsub.s32 0, %v685
        %v687 = vrot.slane %v666, %v686
        %688 = vmatprep.subr.mxu0 0.0
        %689 = vmatpush1.msra.mxu0 %v683
        %690 = vmatprep.subr.mxu0 0.0
        %691 = vmatpush1.msra.mxu0 %v682
        %692 = vmatprep.subr.mxu0 0.0
        %693 = vmatpush1.msra.mxu0 %v681
        %694 = vmatprep.subr.mxu0 0.0
        %695 = vmatpush1.msra.mxu0 %v680
        %696 = vmatprep.subr.mxu0 0.0
        %697 = vmatpush1.msra.mxu0 %v679
        %698 = vmatprep.subr.mxu0 0.0
        %699 = vmatpush1.msra.mxu0 %v678
        %700 = vmatprep.subr.mxu0 0.0
        %701 = vmatpush1.msra.mxu0 %v677
        %702 = vmatprep.subr.mxu0 0.0
        %703 = vmatpush1.msra.mxu0 %v676
        %704 = vmatprep.subr.mxu0 0.0
        %705 = vmatpush1.msra.mxu0 %v675
        %706 = vmatprep.subr.mxu0 0.0
        %707 = vmatpush1.msra.mxu0 %v674
        %708 = vmatprep.subr.mxu0 0.0
        %709 = vmatpush1.msra.mxu0 %v673
        %710 = vmatprep.subr.mxu0 0.0
        %711 = vmatpush1.msra.mxu0 %v672
        %712 = vmatprep.subr.mxu0 0.0
        %713 = vmatpush1.msra.mxu0 %v671
        %714 = vmatprep.subr.mxu0 0.0
        %715 = vmatpush1.msra.mxu0 %v670
        %716 = vmatprep.subr.mxu0 0.0
        %717 = vmatpush1.msra.mxu0 %v669
        %718 = vmatprep.subr.mxu0 0.0
        %719 = vmatpush1.msra.mxu0 %v668
        %720 = vmatprep.subr.mxu0 0.0
        %721 = vmatpush2.msra.mxu0 0.0
        %722 = vmatprep.subr.mxu0 0.0
        %723 = vmatpush2.msra.mxu0 0.0
        %724 = vmatprep.subr.mxu0 0.0
        %725 = vmatpush2.msra.mxu0 0.0
        %726 = vmatprep.subr.mxu0 0.0
        %727 = vmatpush2.msra.mxu0 0.0
        %728 = vmatprep.subr.mxu0 0.0
        %729 = vmatpush2.msra.mxu0 0.0
        %730 = vmatprep.subr.mxu0 0.0
        %731 = vmatpush2.msra.mxu0 0.0
        %732 = vmatprep.subr.mxu0 0.0
        %733 = vmatpush2.msra.mxu0 0.0
        %734 = vmatprep.subr.mxu0 0.0
        %735 = vmatpush2.msra.mxu0 0.0
        %736 = vmatprep.subr.mxu0 0.0
        %737 = vmatpush2.msra.mxu0 0.0
        %738 = vmatprep.subr.mxu0 0.0
        %739 = vmatpush2.msra.mxu0 0.0
        %740 = vmatprep.subr.mxu0 0.0
        %741 = vmatpush2.msra.mxu0 0.0
        %742 = vmatprep.subr.mxu0 0.0
        %743 = vmatpush2.msra.mxu0 0.0
        %744 = vmatprep.subr.mxu0 0.0
        %745 = vmatpush2.msra.mxu0 0.0
        %746 = vmatprep.subr.mxu0 0.0
        %747 = vmatpush2.msra.mxu0 0.0
        %748 = vmatprep.subr.mxu0 0.0
        %749 = vmatpush2.msra.mxu0 0.0
        %750 = vmatprep.subr.mxu0 0.0
        %751 = vmatpush2.msra.mxu0 0.0
        %752 = vmatprep.mubr.f32.mxu0 0.0
        %753 = vmatmul.mubr.f32.gmra.mxu0 %v667
        %v754 = vpop.f32.mrf.mxu0
        %v755 = vadd.f32 %v687, %v754
        %v756 = vpop.f32.mrf.mxu0
        %757 = vdwg.mxu0
        %v758 = vld [vmem:[%s2] sm:$0xff]
        %v759 = vld [vmem:[%s2 + $0x8] sm:$0xff]
        %v760 = vld [vmem:[%s2 + $0x10] sm:$0xff]
        %v761 = vld [vmem:[%s2 + $0x18] sm:$0xff]
        %v762 = vld [vmem:[%s2 + $0x20] sm:$0xff]
        %v763 = vld [vmem:[%s2 + $0x28] sm:$0xff]
        %v764 = vld [vmem:[%s2 + $0x30] sm:$0xff]
        %v765 = vld [vmem:[%s2 + $0x38] sm:$0xff]
        %v766 = vld [vmem:[%s2 + $0x40] sm:$0xff]
        %v767 = vld [vmem:[%s2 + $0x48] sm:$0xff]
        %v768 = vld [vmem:[%s2 + $0x50] sm:$0xff]
        %v769 = vld [vmem:[%s661] sm:$0xff]
        %v770 = vld [vmem:[%s661 + $0x8] sm:$0xff]
        %v771 = vld [vmem:[%s661 + $0x10] sm:$0xff]
        %v772 = vld [vmem:[%s661 + $0x18] sm:$0xff]
        %v773 = vld [vmem:[%s661 + $0x20] sm:$0xff]
        %v774 = vld [vmem:[%s661 + $0x28] sm:$0xff]
        %v775 = vld [vmem:[%s661 + $0x30] sm:$0xff]
        %v776 = vld [vmem:[%s661 + $0x38] sm:$0xff]
        %v777 = vld [vmem:[%s661 + $0x40] sm:$0xff]
        %v778 = vld [vmem:[%s661 + $0x48] sm:$0xff]
        %v779 = vld [vmem:[%s661 + $0x50] sm:$0x1]
        %vm780 = vcmask 662528
        %v782 = vsel %vm780, %v758, 0
        %v785 = vsel %vm780, %v759, 0
        %v788 = vsel %vm780, %v760, 0
        %v791 = vsel %vm780, %v761, 0
        %v794 = vsel %vm780, %v762, 0
        %v797 = vsel %vm780, %v763, 0
        %v800 = vsel %vm780, %v764, 0
        %v803 = vsel %vm780, %v765, 0
        %v806 = vsel %vm780, %v766, 0
        %v809 = vsel %vm780, %v767, 0
        %v812 = vsel %vm780, %v768, 0
        %vm814 = vcmask 1040384
        %v816 = vsel %vm814, %v779, 0
        %818 = vmatprep.subr.mxu0 0.0
        %819 = vmatpush1.msra.mxu0 0.0
        %820 = vmatprep.subr.mxu0 0.0
        %821 = vmatpush1.msra.mxu0 0.0
        %822 = vmatprep.subr.mxu0 0.0
        %823 = vmatpush1.msra.mxu0 0.0
        %824 = vmatprep.subr.mxu0 0.0
        %825 = vmatpush1.msra.mxu0 0.0
        %826 = vmatprep.subr.mxu0 0.0
        %827 = vmatpush1.msra.mxu0 0.0
        %828 = vmatprep.subr.mxu0 0.0
        %829 = vmatpush1.msra.mxu0 %v816
        %830 = vmatprep.subr.mxu0 0.0
        %831 = vmatpush1.msra.mxu0 %v778
        %832 = vmatprep.subr.mxu0 0.0
        %833 = vmatpush1.msra.mxu0 %v777
        %834 = vmatprep.subr.mxu0 0.0
        %835 = vmatpush1.msra.mxu0 %v776
        %836 = vmatprep.subr.mxu0 0.0
        %837 = vmatpush1.msra.mxu0 %v775
        %838 = vmatprep.subr.mxu0 0.0
        %839 = vmatpush1.msra.mxu0 %v774
        %840 = vmatprep.subr.mxu0 0.0
        %841 = vmatpush1.msra.mxu0 %v773
        %842 = vmatprep.subr.mxu0 0.0
        %843 = vmatpush1.msra.mxu0 %v772
        %844 = vmatprep.subr.mxu0 0.0
        %845 = vmatpush1.msra.mxu0 %v771
        %846 = vmatprep.subr.mxu0 0.0
        %847 = vmatpush1.msra.mxu0 %v770
        %848 = vmatprep.subr.mxu0 0.0
        %849 = vmatpush1.msra.mxu0 %v769
        %850 = vmatprep.subr.mxu0 0.0
        %851 = vmatpush2.msra.mxu0 0.0
        %852 = vmatprep.subr.mxu0 0.0
        %853 = vmatpush2.msra.mxu0 0.0
        %854 = vmatprep.subr.mxu0 0.0
        %855 = vmatpush2.msra.mxu0 0.0
        %856 = vmatprep.subr.mxu0 0.0
        %857 = vmatpush2.msra.mxu0 0.0
        %858 = vmatprep.subr.mxu0 0.0
        %859 = vmatpush2.msra.mxu0 0.0
        %860 = vmatprep.subr.mxu0 0.0
        %861 = vmatpush2.msra.mxu0 0.0
        %862 = vmatprep.subr.mxu0 0.0
        %863 = vmatpush2.msra.mxu0 0.0
        %864 = vmatprep.subr.mxu0 0.0
        %865 = vmatpush2.msra.mxu0 0.0
        %866 = vmatprep.subr.mxu0 0.0
        %867 = vmatpush2.msra.mxu0 0.0
        %868 = vmatprep.subr.mxu0 0.0
        %869 = vmatpush2.msra.mxu0 0.0
        %870 = vmatprep.subr.mxu0 0.0
        %871 = vmatpush2.msra.mxu0 0.0
        %872 = vmatprep.subr.mxu0 0.0
        %873 = vmatpush2.msra.mxu0 0.0
        %874 = vmatprep.subr.mxu0 0.0
        %875 = vmatpush2.msra.mxu0 0.0
        %876 = vmatprep.subr.mxu0 0.0
        %877 = vmatpush2.msra.mxu0 0.0
        %878 = vmatprep.subr.mxu0 0.0
        %879 = vmatpush2.msra.mxu0 0.0
        %880 = vmatprep.subr.mxu0 0.0
        %881 = vmatpush2.msra.mxu0 0.0
        %882 = vmatprep.mubr.f32.mxu0 0.0
        %883 = vmatmul.mubr.f32.gmra.mxu0 %v782
        %v884 = vpop.f32.mrf.mxu0
        %v885 = vadd.f32 0.0, %v884
        %v886 = vpop.f32.mrf.mxu0
        %887 = vmatprep.mubr.f32.mxu0 0.0
        %888 = vmatmul.mubr.f32.gmra.mxu0 %v785
        %v889 = vpop.f32.mrf.mxu0
        %v890 = vadd.f32 0.0, %v889
        %v891 = vpop.f32.mrf.mxu0
        %892 = vmatprep.mubr.f32.mxu0 0.0
        %893 = vmatmul.mubr.f32.gmra.mxu0 %v788
        %v894 = vpop.f32.mrf.mxu0
        %v895 = vadd.f32 0.0, %v894
        %v896 = vpop.f32.mrf.mxu0
        %897 = vmatprep.mubr.f32.mxu0 0.0
        %898 = vmatmul.mubr.f32.gmra.mxu0 %v791
        %v899 = vpop.f32.mrf.mxu0
        %v900 = vadd.f32 0.0, %v899
        %v901 = vpop.f32.mrf.mxu0
        %902 = vmatprep.mubr.f32.mxu0 0.0
        %903 = vmatmul.mubr.f32.gmra.mxu0 %v794
        %v904 = vpop.f32.mrf.mxu0
        %v905 = vadd.f32 0.0, %v904
        %v906 = vpop.f32.mrf.mxu0
        %907 = vmatprep.mubr.f32.mxu0 0.0
        %908 = vmatmul.mubr.f32.gmra.mxu0 %v797
        %v909 = vpop.f32.mrf.mxu0
        %v910 = vadd.f32 0.0, %v909
        %v911 = vpop.f32.mrf.mxu0
        %912 = vmatprep.mubr.f32.mxu0 0.0
        %913 = vmatmul.mubr.f32.gmra.mxu0 %v800
        %v914 = vpop.f32.mrf.mxu0
        %v915 = vadd.f32 0.0, %v914
        %v916 = vpop.f32.mrf.mxu0
        %917 = vmatprep.mubr.f32.mxu0 0.0
        %918 = vmatmul.mubr.f32.gmra.mxu0 %v803
        %v919 = vpop.f32.mrf.mxu0
        %v920 = vadd.f32 0.0, %v919
        %v921 = vpop.f32.mrf.mxu0
        %922 = vmatprep.mubr.f32.mxu0 0.0
        %923 = vmatmul.mubr.f32.gmra.mxu0 %v806
        %v924 = vpop.f32.mrf.mxu0
        %v925 = vadd.f32 0.0, %v924
        %v926 = vpop.f32.mrf.mxu0
        %927 = vmatprep.mubr.f32.mxu0 0.0
        %928 = vmatmul.mubr.f32.gmra.mxu0 %v809
        %v929 = vpop.f32.mrf.mxu0
        %v930 = vadd.f32 0.0, %v929
        %v931 = vpop.f32.mrf.mxu0
        %932 = vmatprep.mubr.f32.mxu0 0.0
        %933 = vmatmul.mubr.f32.gmra.mxu0 %v812
        %v934 = vpop.f32.mrf.mxu0
        %v935 = vadd.f32 0.0, %v934
        %v936 = vpop.f32.mrf.mxu0
        %937 = vdwg.mxu0
        %v938 = vld [vmem:[%s16] sm:$0x1]
        %v939 = vld [vmem:[%s4] sm:$0xff]
        %v940 = vld [vmem:[%s4 + $0x8] sm:$0x7f]
        %s941 = scalar_lea.vmem %s4, 16
        %v942 = vld [vmem:[%s941] sm:$0xff]
        %v943 = vld [vmem:[%s941 + $0x8] sm:$0x7f]
        %vm944 = vcmask 121856
        %v946 = vsel %vm944, %v885, 0
        %v949 = vsel %vm944, %v890, 0
        %v952 = vsel %vm944, %v895, 0
        %v955 = vsel %vm944, %v900, 0
        %v958 = vsel %vm944, %v905, 0
        %v961 = vsel %vm944, %v910, 0
        %v964 = vsel %vm944, %v915, 0
        %v967 = vsel %vm944, %v920, 0
        %v970 = vsel %vm944, %v925, 0
        %v973 = vsel %vm944, %v930, 0
        %v976 = vsel %vm944, %v935, 0
        %vm978 = vcmask 1046528
        %v980 = vsel %vm978, %v943, 0
        %982 = vmatprep.subr.mxu0 0.0
        %983 = vmatpush1.msra.mxu0 0.0
        %984 = vmatprep.subr.mxu0 0.0
        %985 = vmatpush1.msra.mxu0 0.0
        %986 = vmatprep.subr.mxu0 0.0
        %987 = vmatpush1.msra.mxu0 0.0
        %988 = vmatprep.subr.mxu0 0.0
        %989 = vmatpush1.msra.mxu0 0.0
        %990 = vmatprep.subr.mxu0 0.0
        %991 = vmatpush1.msra.mxu0 0.0
        %992 = vmatprep.subr.mxu0 0.0
        %993 = vmatpush1.msra.mxu0 0.0
        %994 = vmatprep.subr.mxu0 0.0
        %995 = vmatpush1.msra.mxu0 0.0
        %996 = vmatprep.subr.mxu0 0.0
        %997 = vmatpush1.msra.mxu0 0.0
        %998 = vmatprep.subr.mxu0 0.0
        %999 = vmatpush1.msra.mxu0 0.0
        %1000 = vmatprep.subr.mxu0 0.0
        %1001 = vmatpush1.msra.mxu0 0.0
        %1002 = vmatprep.subr.mxu0 0.0
        %1003 = vmatpush1.msra.mxu0 0.0
        %1004 = vmatprep.subr.mxu0 0.0
        %1005 = vmatpush1.msra.mxu0 0.0
        %1006 = vmatprep.subr.mxu0 0.0
        %1007 = vmatpush1.msra.mxu0 0.0
        %1008 = vmatprep.subr.mxu0 0.0
        %1009 = vmatpush1.msra.mxu0 0.0
        %1010 = vmatprep.subr.mxu0 0.0
        %1011 = vmatpush1.msra.mxu0 %v980
        %1012 = vmatprep.subr.mxu0 0.0
        %1013 = vmatpush1.msra.mxu0 %v942
        %1014 = vmatprep.subr.mxu0 0.0
        %1015 = vmatpush2.msra.mxu0 0.0
        %1016 = vmatprep.subr.mxu0 0.0
        %1017 = vmatpush2.msra.mxu0 0.0
        %1018 = vmatprep.subr.mxu0 0.0
        %1019 = vmatpush2.msra.mxu0 0.0
        %1020 = vmatprep.subr.mxu0 0.0
        %1021 = vmatpush2.msra.mxu0 0.0
        %1022 = vmatprep.subr.mxu0 0.0
        %1023 = vmatpush2.msra.mxu0 0.0
        %1024 = vmatprep.subr.mxu0 0.0
        %1025 = vmatpush2.msra.mxu0 0.0
        %1026 = vmatprep.subr.mxu0 0.0
        %1027 = vmatpush2.msra.mxu0 0.0
        %1028 = vmatprep.subr.mxu0 0.0
        %1029 = vmatpush2.msra.mxu0 0.0
        %1030 = vmatprep.subr.mxu0 0.0
        %1031 = vmatpush2.msra.mxu0 0.0
        %1032 = vmatprep.subr.mxu0 0.0
        %1033 = vmatpush2.msra.mxu0 0.0
        %1034 = vmatprep.subr.mxu0 0.0
        %1035 = vmatpush2.msra.mxu0 0.0
        %1036 = vmatprep.subr.mxu0 0.0
        %1037 = vmatpush2.msra.mxu0 0.0
        %1038 = vmatprep.subr.mxu0 0.0
        %1039 = vmatpush2.msra.mxu0 0.0
        %1040 = vmatprep.subr.mxu0 0.0
        %1041 = vmatpush2.msra.mxu0 0.0
        %1042 = vmatprep.subr.mxu0 0.0
        %1043 = vmatpush2.msra.mxu0 0.0
        %1044 = vmatprep.subr.mxu0 0.0
        %1045 = vmatpush2.msra.mxu0 0.0
        %1046 = vmatprep.mubr.f32.mxu0 0.0
        %1047 = vmatmul.mubr.f32.gmra.mxu0 %v946
        %v1048 = vpop.f32.mrf.mxu0
        %v1049 = vadd.f32 0.0, %v1048
        %v1050 = vpop.f32.mrf.mxu0
        %1051 = vmatprep.mubr.f32.mxu0 0.0
        %1052 = vmatmul.mubr.f32.gmra.mxu0 %v949
        %v1053 = vpop.f32.mrf.mxu0
        %v1054 = vadd.f32 0.0, %v1053
        %v1055 = vpop.f32.mrf.mxu0
        %1056 = vmatprep.mubr.f32.mxu0 0.0
        %1057 = vmatmul.mubr.f32.gmra.mxu0 %v952
        %v1058 = vpop.f32.mrf.mxu0
        %v1059 = vadd.f32 0.0, %v1058
        %v1060 = vpop.f32.mrf.mxu0
        %1061 = vmatprep.mubr.f32.mxu0 0.0
        %1062 = vmatmul.mubr.f32.gmra.mxu0 %v955
        %v1063 = vpop.f32.mrf.mxu0
        %v1064 = vadd.f32 0.0, %v1063
        %v1065 = vpop.f32.mrf.mxu0
        %1066 = vmatprep.mubr.f32.mxu0 0.0
        %1067 = vmatmul.mubr.f32.gmra.mxu0 %v958
        %v1068 = vpop.f32.mrf.mxu0
        %v1069 = vadd.f32 0.0, %v1068
        %v1070 = vpop.f32.mrf.mxu0
        %1071 = vmatprep.mubr.f32.mxu0 0.0
        %1072 = vmatmul.mubr.f32.gmra.mxu0 %v961
        %v1073 = vpop.f32.mrf.mxu0
        %v1074 = vadd.f32 0.0, %v1073
        %v1075 = vpop.f32.mrf.mxu0
        %1076 = vmatprep.mubr.f32.mxu0 0.0
        %1077 = vmatmul.mubr.f32.gmra.mxu0 %v964
        %v1078 = vpop.f32.mrf.mxu0
        %v1079 = vadd.f32 0.0, %v1078
        %v1080 = vpop.f32.mrf.mxu0
        %1081 = vmatprep.mubr.f32.mxu0 0.0
        %1082 = vmatmul.mubr.f32.gmra.mxu0 %v967
        %v1083 = vpop.f32.mrf.mxu0
        %v1084 = vadd.f32 0.0, %v1083
        %v1085 = vpop.f32.mrf.mxu0
        %1086 = vmatprep.mubr.f32.mxu0 0.0
        %1087 = vmatmul.mubr.f32.gmra.mxu0 %v970
        %v1088 = vpop.f32.mrf.mxu0
        %v1089 = vadd.f32 0.0, %v1088
        %v1090 = vpop.f32.mrf.mxu0
        %1091 = vmatprep.mubr.f32.mxu0 0.0
        %1092 = vmatmul.mubr.f32.gmra.mxu0 %v973
        %v1093 = vpop.f32.mrf.mxu0
        %v1094 = vadd.f32 0.0, %v1093
        %v1095 = vpop.f32.mrf.mxu0
        %1096 = vmatprep.mubr.f32.mxu0 0.0
        %1097 = vmatmul.mubr.f32.gmra.mxu0 %v976
        %v1098 = vpop.f32.mrf.mxu0
        %v1099 = vadd.f32 0.0, %v1098
        %v1100 = vpop.f32.mrf.mxu0
        %1101 = vdwg.mxu0
        %v1103 = vsel %vm944, 0.0, 0
        %v1106 = vsel %vm978, %v940, 0
        %1108 = vmatprep.subr.mxu0 0.0
        %1109 = vmatpush1.msra.mxu0 0.0
        %1110 = vmatprep.subr.mxu0 0.0
        %1111 = vmatpush1.msra.mxu0 0.0
        %1112 = vmatprep.subr.mxu0 0.0
        %1113 = vmatpush1.msra.mxu0 0.0
        %1114 = vmatprep.subr.mxu0 0.0
        %1115 = vmatpush1.msra.mxu0 0.0
        %1116 = vmatprep.subr.mxu0 0.0
        %1117 = vmatpush1.msra.mxu0 0.0
        %1118 = vmatprep.subr.mxu0 0.0
        %1119 = vmatpush1.msra.mxu0 0.0
        %1120 = vmatprep.subr.mxu0 0.0
        %1121 = vmatpush1.msra.mxu0 0.0
        %1122 = vmatprep.subr.mxu0 0.0
        %1123 = vmatpush1.msra.mxu0 0.0
        %1124 = vmatprep.subr.mxu0 0.0
        %1125 = vmatpush1.msra.mxu0 0.0
        %1126 = vmatprep.subr.mxu0 0.0
        %1127 = vmatpush1.msra.mxu0 0.0
        %1128 = vmatprep.subr.mxu0 0.0
        %1129 = vmatpush1.msra.mxu0 0.0
        %1130 = vmatprep.subr.mxu0 0.0
        %1131 = vmatpush1.msra.mxu0 0.0
        %1132 = vmatprep.subr.mxu0 0.0
        %1133 = vmatpush1.msra.mxu0 0.0
        %1134 = vmatprep.subr.mxu0 0.0
        %1135 = vmatpush1.msra.mxu0 0.0
        %1136 = vmatprep.subr.mxu0 0.0
        %1137 = vmatpush1.msra.mxu0 %v1106
        %1138 = vmatprep.subr.mxu0 0.0
        %1139 = vmatpush1.msra.mxu0 %v939
        %1140 = vmatprep.subr.mxu0 0.0
        %1141 = vmatpush2.msra.mxu0 0.0
        %1142 = vmatprep.subr.mxu0 0.0
        %1143 = vmatpush2.msra.mxu0 0.0
        %1144 = vmatprep.subr.mxu0 0.0
        %1145 = vmatpush2.msra.mxu0 0.0
        %1146 = vmatprep.subr.mxu0 0.0
        %1147 = vmatpush2.msra.mxu0 0.0
        %1148 = vmatprep.subr.mxu0 0.0
        %1149 = vmatpush2.msra.mxu0 0.0
        %1150 = vmatprep.subr.mxu0 0.0
        %1151 = vmatpush2.msra.mxu0 0.0
        %1152 = vmatprep.subr.mxu0 0.0
        %1153 = vmatpush2.msra.mxu0 0.0
        %1154 = vmatprep.subr.mxu0 0.0
        %1155 = vmatpush2.msra.mxu0 0.0
        %1156 = vmatprep.subr.mxu0 0.0
        %1157 = vmatpush2.msra.mxu0 0.0
        %1158 = vmatprep.subr.mxu0 0.0
        %1159 = vmatpush2.msra.mxu0 0.0
        %1160 = vmatprep.subr.mxu0 0.0
        %1161 = vmatpush2.msra.mxu0 0.0
        %1162 = vmatprep.subr.mxu0 0.0
        %1163 = vmatpush2.msra.mxu0 0.0
        %1164 = vmatprep.subr.mxu0 0.0
        %1165 = vmatpush2.msra.mxu0 0.0
        %1166 = vmatprep.subr.mxu0 0.0
        %1167 = vmatpush2.msra.mxu0 0.0
        %1168 = vmatprep.subr.mxu0 0.0
        %1169 = vmatpush2.msra.mxu0 0.0
        %1170 = vmatprep.subr.mxu0 0.0
        %1171 = vmatpush2.msra.mxu0 0.0
        %1172 = vmatprep.mubr.f32.mxu0 0.0
        %1173 = vmatmul.mubr.f32.gmra.mxu0 %v1103
        %v1174 = vpop.f32.mrf.mxu0
        %v1175 = vadd.f32 %v1049, %v1174
        %v1176 = vpop.f32.mrf.mxu0
        %1177 = vmatprep.mubr.f32.mxu0 0.0
        %1178 = vmatmul.mubr.f32.gmra.mxu0 %v946
        %v1179 = vpop.f32.mrf.mxu0
        %v1180 = vadd.f32 %v1054, %v1179
        %v1181 = vpop.f32.mrf.mxu0
        %1182 = vmatprep.mubr.f32.mxu0 0.0
        %1183 = vmatmul.mubr.f32.gmra.mxu0 %v949
        %v1184 = vpop.f32.mrf.mxu0
        %v1185 = vadd.f32 %v1059, %v1184
        %v1186 = vpop.f32.mrf.mxu0
        %1187 = vmatprep.mubr.f32.mxu0 0.0
        %1188 = vmatmul.mubr.f32.gmra.mxu0 %v952
        %v1189 = vpop.f32.mrf.mxu0
        %v1190 = vadd.f32 %v1064, %v1189
        %v1191 = vpop.f32.mrf.mxu0
        %1192 = vmatprep.mubr.f32.mxu0 0.0
        %1193 = vmatmul.mubr.f32.gmra.mxu0 %v955
        %v1194 = vpop.f32.mrf.mxu0
        %v1195 = vadd.f32 %v1069, %v1194
        %v1196 = vpop.f32.mrf.mxu0
        %1197 = vmatprep.mubr.f32.mxu0 0.0
        %1198 = vmatmul.mubr.f32.gmra.mxu0 %v958
        %v1199 = vpop.f32.mrf.mxu0
        %v1200 = vadd.f32 %v1074, %v1199
        %v1201 = vpop.f32.mrf.mxu0
        %1202 = vmatprep.mubr.f32.mxu0 0.0
        %1203 = vmatmul.mubr.f32.gmra.mxu0 %v961
        %v1204 = vpop.f32.mrf.mxu0
        %v1205 = vadd.f32 %v1079, %v1204
        %v1206 = vpop.f32.mrf.mxu0
        %1207 = vmatprep.mubr.f32.mxu0 0.0
        %1208 = vmatmul.mubr.f32.gmra.mxu0 %v964
        %v1209 = vpop.f32.mrf.mxu0
        %v1210 = vadd.f32 %v1084, %v1209
        %v1211 = vpop.f32.mrf.mxu0
        %1212 = vmatprep.mubr.f32.mxu0 0.0
        %1213 = vmatmul.mubr.f32.gmra.mxu0 %v967
        %v1214 = vpop.f32.mrf.mxu0
        %v1215 = vadd.f32 %v1089, %v1214
        %v1216 = vpop.f32.mrf.mxu0
        %1217 = vmatprep.mubr.f32.mxu0 0.0
        %1218 = vmatmul.mubr.f32.gmra.mxu0 %v970
        %v1219 = vpop.f32.mrf.mxu0
        %v1220 = vadd.f32 %v1094, %v1219
        %v1221 = vpop.f32.mrf.mxu0
        %1222 = vmatprep.mubr.f32.mxu0 0.0
        %1223 = vmatmul.mubr.f32.gmra.mxu0 %v973
        %v1224 = vpop.f32.mrf.mxu0
        %v1225 = vadd.f32 %v1099, %v1224
        %v1226 = vpop.f32.mrf.mxu0
        %1227 = vdwg.mxu0
        %s1228 = scalar_lea.vmem %s4, 32
        %v1229 = vld [vmem:[%s1228] sm:$0xff]
        %v1230 = vld [vmem:[%s1228 + $0x8] sm:$0x7f]
        %v1232 = vsel %vm978, %v1230, 0
        %1234 = vmatprep.subr.mxu0 0.0
        %1235 = vmatpush1.msra.mxu0 0.0
        %1236 = vmatprep.subr.mxu0 0.0
        %1237 = vmatpush1.msra.mxu0 0.0
        %1238 = vmatprep.subr.mxu0 0.0
        %1239 = vmatpush1.msra.mxu0 0.0
        %1240 = vmatprep.subr.mxu0 0.0
        %1241 = vmatpush1.msra.mxu0 0.0
        %1242 = vmatprep.subr.mxu0 0.0
        %1243 = vmatpush1.msra.mxu0 0.0
        %1244 = vmatprep.subr.mxu0 0.0
        %1245 = vmatpush1.msra.mxu0 0.0
        %1246 = vmatprep.subr.mxu0 0.0
        %1247 = vmatpush1.msra.mxu0 0.0
        %1248 = vmatprep.subr.mxu0 0.0
        %1249 = vmatpush1.msra.mxu0 0.0
        %1250 = vmatprep.subr.mxu0 0.0
        %1251 = vmatpush1.msra.mxu0 0.0
        %1252 = vmatprep.subr.mxu0 0.0
        %1253 = vmatpush1.msra.mxu0 0.0
        %1254 = vmatprep.subr.mxu0 0.0
        %1255 = vmatpush1.msra.mxu0 0.0
        %1256 = vmatprep.subr.mxu0 0.0
        %1257 = vmatpush1.msra.mxu0 0.0
        %1258 = vmatprep.subr.mxu0 0.0
        %1259 = vmatpush1.msra.mxu0 0.0
        %1260 = vmatprep.subr.mxu0 0.0
        %1261 = vmatpush1.msra.mxu0 0.0
        %1262 = vmatprep.subr.mxu0 0.0
        %1263 = vmatpush1.msra.mxu0 %v1232
        %1264 = vmatprep.subr.mxu0 0.0
        %1265 = vmatpush1.msra.mxu0 %v1229
        %1266 = vmatprep.subr.mxu0 0.0
        %1267 = vmatpush2.msra.mxu0 0.0
        %1268 = vmatprep.subr.mxu0 0.0
        %1269 = vmatpush2.msra.mxu0 0.0
        %1270 = vmatprep.subr.mxu0 0.0
        %1271 = vmatpush2.msra.mxu0 0.0
        %1272 = vmatprep.subr.mxu0 0.0
        %1273 = vmatpush2.msra.mxu0 0.0
        %1274 = vmatprep.subr.mxu0 0.0
        %1275 = vmatpush2.msra.mxu0 0.0
        %1276 = vmatprep.subr.mxu0 0.0
        %1277 = vmatpush2.msra.mxu0 0.0
        %1278 = vmatprep.subr.mxu0 0.0
        %1279 = vmatpush2.msra.mxu0 0.0
        %1280 = vmatprep.subr.mxu0 0.0
        %1281 = vmatpush2.msra.mxu0 0.0
        %1282 = vmatprep.subr.mxu0 0.0
        %1283 = vmatpush2.msra.mxu0 0.0
        %1284 = vmatprep.subr.mxu0 0.0
        %1285 = vmatpush2.msra.mxu0 0.0
        %1286 = vmatprep.subr.mxu0 0.0
        %1287 = vmatpush2.msra.mxu0 0.0
        %1288 = vmatprep.subr.mxu0 0.0
        %1289 = vmatpush2.msra.mxu0 0.0
        %1290 = vmatprep.subr.mxu0 0.0
        %1291 = vmatpush2.msra.mxu0 0.0
        %1292 = vmatprep.subr.mxu0 0.0
        %1293 = vmatpush2.msra.mxu0 0.0
        %1294 = vmatprep.subr.mxu0 0.0
        %1295 = vmatpush2.msra.mxu0 0.0
        %1296 = vmatprep.subr.mxu0 0.0
        %1297 = vmatpush2.msra.mxu0 0.0
        %1298 = vmatprep.mubr.f32.mxu0 0.0
        %1299 = vmatmul.mubr.f32.gmra.mxu0 %v949
        %v1300 = vpop.f32.mrf.mxu0
        %v1301 = vadd.f32 0.0, %v1300
        %v1302 = vpop.f32.mrf.mxu0
        %1303 = vmatprep.mubr.f32.mxu0 0.0
        %1304 = vmatmul.mubr.f32.gmra.mxu0 %v952
        %v1305 = vpop.f32.mrf.mxu0
        %v1306 = vadd.f32 0.0, %v1305
        %v1307 = vpop.f32.mrf.mxu0
        %1308 = vmatprep.mubr.f32.mxu0 0.0
        %1309 = vmatmul.mubr.f32.gmra.mxu0 %v955
        %v1310 = vpop.f32.mrf.mxu0
        %v1311 = vadd.f32 0.0, %v1310
        %v1312 = vpop.f32.mrf.mxu0
        %1313 = vmatprep.mubr.f32.mxu0 0.0
        %1314 = vmatmul.mubr.f32.gmra.mxu0 %v958
        %v1315 = vpop.f32.mrf.mxu0
        %v1316 = vadd.f32 0.0, %v1315
        %v1317 = vpop.f32.mrf.mxu0
        %1318 = vmatprep.mubr.f32.mxu0 0.0
        %1319 = vmatmul.mubr.f32.gmra.mxu0 %v961
        %v1320 = vpop.f32.mrf.mxu0
        %v1321 = vadd.f32 0.0, %v1320
        %v1322 = vpop.f32.mrf.mxu0
        %1323 = vmatprep.mubr.f32.mxu0 0.0
        %1324 = vmatmul.mubr.f32.gmra.mxu0 %v964
        %v1325 = vpop.f32.mrf.mxu0
        %v1326 = vadd.f32 0.0, %v1325
        %v1327 = vpop.f32.mrf.mxu0
        %1328 = vmatprep.mubr.f32.mxu0 0.0
        %1329 = vmatmul.mubr.f32.gmra.mxu0 %v967
        %v1330 = vpop.f32.mrf.mxu0
        %v1331 = vadd.f32 0.0, %v1330
        %v1332 = vpop.f32.mrf.mxu0
        %1333 = vmatprep.mubr.f32.mxu0 0.0
        %1334 = vmatmul.mubr.f32.gmra.mxu0 %v970
        %v1335 = vpop.f32.mrf.mxu0
        %v1336 = vadd.f32 0.0, %v1335
        %v1337 = vpop.f32.mrf.mxu0
        %1338 = vmatprep.mubr.f32.mxu0 0.0
        %1339 = vmatmul.mubr.f32.gmra.mxu0 %v973
        %v1340 = vpop.f32.mrf.mxu0
        %v1341 = vadd.f32 0.0, %v1340
        %v1342 = vpop.f32.mrf.mxu0
        %1343 = vmatprep.mubr.f32.mxu0 0.0
        %1344 = vmatmul.mubr.f32.gmra.mxu0 %v976
        %v1345 = vpop.f32.mrf.mxu0
        %v1346 = vadd.f32 0.0, %v1345
        %v1347 = vpop.f32.mrf.mxu0
        %1348 = vmatprep.mubr.f32.mxu0 0.0
        %1349 = vmatmul.mubr.f32.gmra.mxu0 %v1103
        %v1350 = vpop.f32.mrf.mxu0
        %v1351 = vadd.f32 0.0, %v1350
        %v1352 = vpop.f32.mrf.mxu0
        %1353 = vdwg.mxu0
        %v1354 = vadd.f32 %v1175, %v1301
        %v1355 = vadd.f32 %v1180, %v1306
        %v1356 = vadd.f32 %v1185, %v1311
        %v1357 = vadd.f32 %v1190, %v1316
        %v1358 = vadd.f32 %v1195, %v1321
        %v1359 = vadd.f32 %v1200, %v1326
        %v1360 = vadd.f32 %v1205, %v1331
        %v1361 = vadd.f32 %v1210, %v1336
        %v1362 = vadd.f32 %v1215, %v1341
        %v1363 = vadd.f32 %v1220, %v1346
        %v1364 = vadd.f32 %v1225, %v1351
        %v1366 = vlaneseq
        %v1367 = vshrl.u32 %v1366, 7
        %v1368 = vsub.s32 0, %v1367
        %v1369 = vrot.slane %v938, %v1368
        %v1371 = vadd.f32 %v1354, %v1369
        %v1372 = vadd.f32 %v1355, %v1369
        %v1373 = vadd.f32 %v1356, %v1369
        %v1374 = vadd.f32 %v1357, %v1369
        %v1375 = vadd.f32 %v1358, %v1369
        %v1376 = vadd.f32 %v1359, %v1369
        %v1377 = vadd.f32 %v1360, %v1369
        %v1378 = vadd.f32 %v1361, %v1369
        %v1379 = vadd.f32 %v1362, %v1369
        %v1380 = vadd.f32 %v1363, %v1369
        %v1381 = vadd.f32 %v1364, %v1369
        %vm1382 = vcmp.gt.f32.partialorder %v1371, 0.0
        %vm1383 = vcmp.gt.f32.partialorder %v1372, 0.0
        %vm1384 = vcmp.gt.f32.partialorder %v1373, 0.0
        %vm1385 = vcmp.gt.f32.partialorder %v1374, 0.0
        %vm1386 = vcmp.gt.f32.partialorder %v1375, 0.0
        %vm1387 = vcmp.gt.f32.partialorder %v1376, 0.0
        %vm1388 = vcmp.gt.f32.partialorder %v1377, 0.0
        %vm1389 = vcmp.gt.f32.partialorder %v1378, 0.0
        %vm1390 = vcmp.gt.f32.partialorder %v1379, 0.0
        %vm1391 = vcmp.gt.f32.partialorder %v1380, 0.0
        %vm1392 = vcmp.gt.f32.partialorder %v1381, 0.0
        %v1393 = vmul.f32 %v1371, 0.1
        %v1394 = vmul.f32 %v1372, 0.1
        %v1395 = vmul.f32 %v1373, 0.1
        %v1396 = vmul.f32 %v1374, 0.1
        %v1397 = vmul.f32 %v1375, 0.1
        %v1398 = vmul.f32 %v1376, 0.1
        %v1399 = vmul.f32 %v1377, 0.1
        %v1400 = vmul.f32 %v1378, 0.1
        %v1401 = vmul.f32 %v1379, 0.1
        %v1402 = vmul.f32 %v1380, 0.1
        %v1403 = vmul.f32 %v1381, 0.1
        %v1404 = vsel %vm1382, %v1371, %v1393
        %v1405 = vsel %vm1383, %v1372, %v1394
        %v1406 = vsel %vm1384, %v1373, %v1395
        %v1407 = vsel %vm1385, %v1374, %v1396
        %v1408 = vsel %vm1386, %v1375, %v1397
        %v1409 = vsel %vm1387, %v1376, %v1398
        %v1410 = vsel %vm1388, %v1377, %v1399
        %v1411 = vsel %vm1389, %v1378, %v1400
        %v1412 = vsel %vm1390, %v1379, %v1401
        %v1413 = vsel %vm1391, %v1380, %v1402
        %v1414 = vsel %vm1392, %v1381, %v1403
        %v1415 = vld [vmem:[%s15] sm:$0x1]
        %v1416 = vld [vmem:[%s5] sm:$0xff]
        %v1417 = vld [vmem:[%s5 + $0x8] sm:$0xff]
        %v1418 = vld [vmem:[%s5 + $0x10] sm:$0xff]
        %v1419 = vld [vmem:[%s5 + $0x18] sm:$0xff]
        %v1420 = vld [vmem:[%s5 + $0x20] sm:$0xff]
        %v1421 = vld [vmem:[%s5 + $0x28] sm:$0xff]
        %v1422 = vld [vmem:[%s5 + $0x30] sm:$0xff]
        %v1423 = vld [vmem:[%s5 + $0x38] sm:$0xff]
        %s1424 = scalar_lea.vmem %s5, 64
        %v1425 = vld [vmem:[%s1424] sm:$0xff]
        %v1426 = vld [vmem:[%s1424 + $0x8] sm:$0xff]
        %v1427 = vld [vmem:[%s1424 + $0x10] sm:$0xff]
        %v1428 = vld [vmem:[%s1424 + $0x18] sm:$0xff]
        %v1429 = vld [vmem:[%s1424 + $0x20] sm:$0xff]
        %v1430 = vld [vmem:[%s1424 + $0x28] sm:$0xff]
        %v1431 = vld [vmem:[%s1424 + $0x30] sm:$0xff]
        %v1432 = vld [vmem:[%s1424 + $0x38] sm:$0xff]
        %vm1433 = vcmask 523264
        %v1435 = vsel %vm1433, %v1404, 0
        %v1438 = vsel %vm1433, %v1405, 0
        %v1441 = vsel %vm1433, %v1406, 0
        %v1444 = vsel %vm1433, %v1407, 0
        %v1447 = vsel %vm1433, %v1408, 0
        %v1450 = vsel %vm1433, %v1409, 0
        %v1453 = vsel %vm1433, %v1410, 0
        %v1456 = vsel %vm1433, %v1411, 0
        %v1459 = vsel %vm1433, %v1412, 0
        %v1462 = vsel %vm1433, %v1413, 0
        %v1465 = vsel %vm1433, %v1414, 0
        %1467 = vmatprep.subr.mxu0 0.0
        %1468 = vmatpush1.msra.mxu0 0.0
        %1469 = vmatprep.subr.mxu0 0.0
        %1470 = vmatpush1.msra.mxu0 0.0
        %1471 = vmatprep.subr.mxu0 0.0
        %1472 = vmatpush1.msra.mxu0 0.0
        %1473 = vmatprep.subr.mxu0 0.0
        %1474 = vmatpush1.msra.mxu0 0.0
        %1475 = vmatprep.subr.mxu0 0.0
        %1476 = vmatpush1.msra.mxu0 0.0
        %1477 = vmatprep.subr.mxu0 0.0
        %1478 = vmatpush1.msra.mxu0 0.0
        %1479 = vmatprep.subr.mxu0 0.0
        %1480 = vmatpush1.msra.mxu0 0.0
        %1481 = vmatprep.subr.mxu0 0.0
        %1482 = vmatpush1.msra.mxu0 0.0
        %1483 = vmatprep.subr.mxu0 0.0
        %1484 = vmatpush1.msra.mxu0 %v1432
        %1485 = vmatprep.subr.mxu0 0.0
        %1486 = vmatpush1.msra.mxu0 %v1431
        %1487 = vmatprep.subr.mxu0 0.0
        %1488 = vmatpush1.msra.mxu0 %v1430
        %1489 = vmatprep.subr.mxu0 0.0
        %1490 = vmatpush1.msra.mxu0 %v1429
        %1491 = vmatprep.subr.mxu0 0.0
        %1492 = vmatpush1.msra.mxu0 %v1428
        %1493 = vmatprep.subr.mxu0 0.0
        %1494 = vmatpush1.msra.mxu0 %v1427
        %1495 = vmatprep.subr.mxu0 0.0
        %1496 = vmatpush1.msra.mxu0 %v1426
        %1497 = vmatprep.subr.mxu0 0.0
        %1498 = vmatpush1.msra.mxu0 %v1425
        %1499 = vmatprep.subr.mxu0 0.0
        %1500 = vmatpush2.msra.mxu0 0.0
        %1501 = vmatprep.subr.mxu0 0.0
        %1502 = vmatpush2.msra.mxu0 0.0
        %1503 = vmatprep.subr.mxu0 0.0
        %1504 = vmatpush2.msra.mxu0 0.0
        %1505 = vmatprep.subr.mxu0 0.0
        %1506 = vmatpush2.msra.mxu0 0.0
        %1507 = vmatprep.subr.mxu0 0.0
        %1508 = vmatpush2.msra.mxu0 0.0
        %1509 = vmatprep.subr.mxu0 0.0
        %1510 = vmatpush2.msra.mxu0 0.0
        %1511 = vmatprep.subr.mxu0 0.0
        %1512 = vmatpush2.msra.mxu0 0.0
        %1513 = vmatprep.subr.mxu0 0.0
        %1514 = vmatpush2.msra.mxu0 0.0
        %1515 = vmatprep.subr.mxu0 0.0
        %1516 = vmatpush2.msra.mxu0 0.0
        %1517 = vmatprep.subr.mxu0 0.0
        %1518 = vmatpush2.msra.mxu0 0.0
        %1519 = vmatprep.subr.mxu0 0.0
        %1520 = vmatpush2.msra.mxu0 0.0
        %1521 = vmatprep.subr.mxu0 0.0
        %1522 = vmatpush2.msra.mxu0 0.0
        %1523 = vmatprep.subr.mxu0 0.0
        %1524 = vmatpush2.msra.mxu0 0.0
        %1525 = vmatprep.subr.mxu0 0.0
        %1526 = vmatpush2.msra.mxu0 0.0
        %1527 = vmatprep.subr.mxu0 0.0
        %1528 = vmatpush2.msra.mxu0 0.0
        %1529 = vmatprep.subr.mxu0 0.0
        %1530 = vmatpush2.msra.mxu0 0.0
        %1531 = vmatprep.mubr.f32.mxu0 0.0
        %1532 = vmatmul.mubr.f32.gmra.mxu0 %v1435
        %v1533 = vpop.f32.mrf.mxu0
        %v1534 = vadd.f32 0.0, %v1533
        %v1535 = vpop.f32.mrf.mxu0
        %1536 = vmatprep.mubr.f32.mxu0 0.0
        %1537 = vmatmul.mubr.f32.gmra.mxu0 %v1438
        %v1538 = vpop.f32.mrf.mxu0
        %v1539 = vadd.f32 0.0, %v1538
        %v1540 = vpop.f32.mrf.mxu0
        %1541 = vmatprep.mubr.f32.mxu0 0.0
        %1542 = vmatmul.mubr.f32.gmra.mxu0 %v1441
        %v1543 = vpop.f32.mrf.mxu0
        %v1544 = vadd.f32 0.0, %v1543
        %v1545 = vpop.f32.mrf.mxu0
        %1546 = vmatprep.mubr.f32.mxu0 0.0
        %1547 = vmatmul.mubr.f32.gmra.mxu0 %v1444
        %v1548 = vpop.f32.mrf.mxu0
        %v1549 = vadd.f32 0.0, %v1548
        %v1550 = vpop.f32.mrf.mxu0
        %1551 = vmatprep.mubr.f32.mxu0 0.0
        %1552 = vmatmul.mubr.f32.gmra.mxu0 %v1447
        %v1553 = vpop.f32.mrf.mxu0
        %v1554 = vadd.f32 0.0, %v1553
        %v1555 = vpop.f32.mrf.mxu0
        %1556 = vmatprep.mubr.f32.mxu0 0.0
        %1557 = vmatmul.mubr.f32.gmra.mxu0 %v1450
        %v1558 = vpop.f32.mrf.mxu0
        %v1559 = vadd.f32 0.0, %v1558
        %v1560 = vpop.f32.mrf.mxu0
        %1561 = vmatprep.mubr.f32.mxu0 0.0
        %1562 = vmatmul.mubr.f32.gmra.mxu0 %v1453
        %v1563 = vpop.f32.mrf.mxu0
        %v1564 = vadd.f32 0.0, %v1563
        %v1565 = vpop.f32.mrf.mxu0
        %1566 = vmatprep.mubr.f32.mxu0 0.0
        %1567 = vmatmul.mubr.f32.gmra.mxu0 %v1456
        %v1568 = vpop.f32.mrf.mxu0
        %v1569 = vadd.f32 0.0, %v1568
        %v1570 = vpop.f32.mrf.mxu0
        %1571 = vmatprep.mubr.f32.mxu0 0.0
        %1572 = vmatmul.mubr.f32.gmra.mxu0 %v1459
        %v1573 = vpop.f32.mrf.mxu0
        %v1574 = vadd.f32 0.0, %v1573
        %v1575 = vpop.f32.mrf.mxu0
        %1576 = vmatprep.mubr.f32.mxu0 0.0
        %1577 = vmatmul.mubr.f32.gmra.mxu0 %v1462
        %v1578 = vpop.f32.mrf.mxu0
        %v1579 = vadd.f32 0.0, %v1578
        %v1580 = vpop.f32.mrf.mxu0
        %1581 = vmatprep.mubr.f32.mxu0 0.0
        %1582 = vmatmul.mubr.f32.gmra.mxu0 %v1465
        %v1583 = vpop.f32.mrf.mxu0
        %v1584 = vadd.f32 0.0, %v1583
        %v1585 = vpop.f32.mrf.mxu0
        %1586 = vdwg.mxu0
        %v1587 = vsel %vm1433, 0.0, 0
        %1589 = vmatprep.subr.mxu0 0.0
        %1590 = vmatpush1.msra.mxu0 0.0
        %1591 = vmatprep.subr.mxu0 0.0
        %1592 = vmatpush1.msra.mxu0 0.0
        %1593 = vmatprep.subr.mxu0 0.0
        %1594 = vmatpush1.msra.mxu0 0.0
        %1595 = vmatprep.subr.mxu0 0.0
        %1596 = vmatpush1.msra.mxu0 0.0
        %1597 = vmatprep.subr.mxu0 0.0
        %1598 = vmatpush1.msra.mxu0 0.0
        %1599 = vmatprep.subr.mxu0 0.0
        %1600 = vmatpush1.msra.mxu0 0.0
        %1601 = vmatprep.subr.mxu0 0.0
        %1602 = vmatpush1.msra.mxu0 0.0
        %1603 = vmatprep.subr.mxu0 0.0
        %1604 = vmatpush1.msra.mxu0 0.0
        %1605 = vmatprep.subr.mxu0 0.0
        %1606 = vmatpush1.msra.mxu0 %v1423
        %1607 = vmatprep.subr.mxu0 0.0
        %1608 = vmatpush1.msra.mxu0 %v1422
        %1609 = vmatprep.subr.mxu0 0.0
        %1610 = vmatpush1.msra.mxu0 %v1421
        %1611 = vmatprep.subr.mxu0 0.0
        %1612 = vmatpush1.msra.mxu0 %v1420
        %1613 = vmatprep.subr.mxu0 0.0
        %1614 = vmatpush1.msra.mxu0 %v1419
        %1615 = vmatprep.subr.mxu0 0.0
        %1616 = vmatpush1.msra.mxu0 %v1418
        %1617 = vmatprep.subr.mxu0 0.0
        %1618 = vmatpush1.msra.mxu0 %v1417
        %1619 = vmatprep.subr.mxu0 0.0
        %1620 = vmatpush1.msra.mxu0 %v1416
        %1621 = vmatprep.subr.mxu0 0.0
        %1622 = vmatpush2.msra.mxu0 0.0
        %1623 = vmatprep.subr.mxu0 0.0
        %1624 = vmatpush2.msra.mxu0 0.0
        %1625 = vmatprep.subr.mxu0 0.0
        %1626 = vmatpush2.msra.mxu0 0.0
        %1627 = vmatprep.subr.mxu0 0.0
        %1628 = vmatpush2.msra.mxu0 0.0
        %1629 = vmatprep.subr.mxu0 0.0
        %1630 = vmatpush2.msra.mxu0 0.0
        %1631 = vmatprep.subr.mxu0 0.0
        %1632 = vmatpush2.msra.mxu0 0.0
        %1633 = vmatprep.subr.mxu0 0.0
        %1634 = vmatpush2.msra.mxu0 0.0
        %1635 = vmatprep.subr.mxu0 0.0
        %1636 = vmatpush2.msra.mxu0 0.0
        %1637 = vmatprep.subr.mxu0 0.0
        %1638 = vmatpush2.msra.mxu0 0.0
        %1639 = vmatprep.subr.mxu0 0.0
        %1640 = vmatpush2.msra.mxu0 0.0
        %1641 = vmatprep.subr.mxu0 0.0
        %1642 = vmatpush2.msra.mxu0 0.0
        %1643 = vmatprep.subr.mxu0 0.0
        %1644 = vmatpush2.msra.mxu0 0.0
        %1645 = vmatprep.subr.mxu0 0.0
        %1646 = vmatpush2.msra.mxu0 0.0
        %1647 = vmatprep.subr.mxu0 0.0
        %1648 = vmatpush2.msra.mxu0 0.0
        %1649 = vmatprep.subr.mxu0 0.0
        %1650 = vmatpush2.msra.mxu0 0.0
        %1651 = vmatprep.subr.mxu0 0.0
        %1652 = vmatpush2.msra.mxu0 0.0
        %1653 = vmatprep.mubr.f32.mxu0 0.0
        %1654 = vmatmul.mubr.f32.gmra.mxu0 %v1587
        %v1655 = vpop.f32.mrf.mxu0
        %v1656 = vadd.f32 %v1534, %v1655
        %v1657 = vpop.f32.mrf.mxu0
        %1658 = vmatprep.mubr.f32.mxu0 0.0
        %1659 = vmatmul.mubr.f32.gmra.mxu0 %v1435
        %v1660 = vpop.f32.mrf.mxu0
        %v1661 = vadd.f32 %v1539, %v1660
        %v1662 = vpop.f32.mrf.mxu0
        %1663 = vmatprep.mubr.f32.mxu0 0.0
        %1664 = vmatmul.mubr.f32.gmra.mxu0 %v1438
        %v1665 = vpop.f32.mrf.mxu0
        %v1666 = vadd.f32 %v1544, %v1665
        %v1667 = vpop.f32.mrf.mxu0
        %1668 = vmatprep.mubr.f32.mxu0 0.0
        %1669 = vmatmul.mubr.f32.gmra.mxu0 %v1441
        %v1670 = vpop.f32.mrf.mxu0
        %v1671 = vadd.f32 %v1549, %v1670
        %v1672 = vpop.f32.mrf.mxu0
        %1673 = vmatprep.mubr.f32.mxu0 0.0
        %1674 = vmatmul.mubr.f32.gmra.mxu0 %v1444
        %v1675 = vpop.f32.mrf.mxu0
        %v1676 = vadd.f32 %v1554, %v1675
        %v1677 = vpop.f32.mrf.mxu0
        %1678 = vmatprep.mubr.f32.mxu0 0.0
        %1679 = vmatmul.mubr.f32.gmra.mxu0 %v1447
        %v1680 = vpop.f32.mrf.mxu0
        %v1681 = vadd.f32 %v1559, %v1680
        %v1682 = vpop.f32.mrf.mxu0
        %1683 = vmatprep.mubr.f32.mxu0 0.0
        %1684 = vmatmul.mubr.f32.gmra.mxu0 %v1450
        %v1685 = vpop.f32.mrf.mxu0
        %v1686 = vadd.f32 %v1564, %v1685
        %v1687 = vpop.f32.mrf.mxu0
        %1688 = vmatprep.mubr.f32.mxu0 0.0
        %1689 = vmatmul.mubr.f32.gmra.mxu0 %v1453
        %v1690 = vpop.f32.mrf.mxu0
        %v1691 = vadd.f32 %v1569, %v1690
        %v1692 = vpop.f32.mrf.mxu0
        %1693 = vmatprep.mubr.f32.mxu0 0.0
        %1694 = vmatmul.mubr.f32.gmra.mxu0 %v1456
        %v1695 = vpop.f32.mrf.mxu0
        %v1696 = vadd.f32 %v1574, %v1695
        %v1697 = vpop.f32.mrf.mxu0
        %1698 = vmatprep.mubr.f32.mxu0 0.0
        %1699 = vmatmul.mubr.f32.gmra.mxu0 %v1459
        %v1700 = vpop.f32.mrf.mxu0
        %v1701 = vadd.f32 %v1579, %v1700
        %v1702 = vpop.f32.mrf.mxu0
        %1703 = vmatprep.mubr.f32.mxu0 0.0
        %1704 = vmatmul.mubr.f32.gmra.mxu0 %v1462
        %v1705 = vpop.f32.mrf.mxu0
        %v1706 = vadd.f32 %v1584, %v1705
        %v1707 = vpop.f32.mrf.mxu0
        %1708 = vdwg.mxu0
        %s1709 = scalar_lea.vmem %s5, 128
        %v1710 = vld [vmem:[%s1709] sm:$0xff]
        %v1711 = vld [vmem:[%s1709 + $0x8] sm:$0xff]
        %v1712 = vld [vmem:[%s1709 + $0x10] sm:$0xff]
        %v1713 = vld [vmem:[%s1709 + $0x18] sm:$0xff]
        %v1714 = vld [vmem:[%s1709 + $0x20] sm:$0xff]
        %v1715 = vld [vmem:[%s1709 + $0x28] sm:$0xff]
        %v1716 = vld [vmem:[%s1709 + $0x30] sm:$0xff]
        %v1717 = vld [vmem:[%s1709 + $0x38] sm:$0xff]
        %1718 = vmatprep.subr.mxu0 0.0
        %1719 = vmatpush1.msra.mxu0 0.0
        %1720 = vmatprep.subr.mxu0 0.0
        %1721 = vmatpush1.msra.mxu0 0.0
        %1722 = vmatprep.subr.mxu0 0.0
        %1723 = vmatpush1.msra.mxu0 0.0
        %1724 = vmatprep.subr.mxu0 0.0
        %1725 = vmatpush1.msra.mxu0 0.0
        %1726 = vmatprep.subr.mxu0 0.0
        %1727 = vmatpush1.msra.mxu0 0.0
        %1728 = vmatprep.subr.mxu0 0.0
        %1729 = vmatpush1.msra.mxu0 0.0
        %1730 = vmatprep.subr.mxu0 0.0
        %1731 = vmatpush1.msra.mxu0 0.0
        %1732 = vmatprep.subr.mxu0 0.0
        %1733 = vmatpush1.msra.mxu0 0.0
        %1734 = vmatprep.subr.mxu0 0.0
        %1735 = vmatpush1.msra.mxu0 %v1717
        %1736 = vmatprep.subr.mxu0 0.0
        %1737 = vmatpush1.msra.mxu0 %v1716
        %1738 = vmatprep.subr.mxu0 0.0
        %1739 = vmatpush1.msra.mxu0 %v1715
        %1740 = vmatprep.subr.mxu0 0.0
        %1741 = vmatpush1.msra.mxu0 %v1714
        %1742 = vmatprep.subr.mxu0 0.0
        %1743 = vmatpush1.msra.mxu0 %v1713
        %1744 = vmatprep.subr.mxu0 0.0
        %1745 = vmatpush1.msra.mxu0 %v1712
        %1746 = vmatprep.subr.mxu0 0.0
        %1747 = vmatpush1.msra.mxu0 %v1711
        %1748 = vmatprep.subr.mxu0 0.0
        %1749 = vmatpush1.msra.mxu0 %v1710
        %1750 = vmatprep.subr.mxu0 0.0
        %1751 = vmatpush2.msra.mxu0 0.0
        %1752 = vmatprep.subr.mxu0 0.0
        %1753 = vmatpush2.msra.mxu0 0.0
        %1754 = vmatprep.subr.mxu0 0.0
        %1755 = vmatpush2.msra.mxu0 0.0
        %1756 = vmatprep.subr.mxu0 0.0
        %1757 = vmatpush2.msra.mxu0 0.0
        %1758 = vmatprep.subr.mxu0 0.0
        %1759 = vmatpush2.msra.mxu0 0.0
        %1760 = vmatprep.subr.mxu0 0.0
        %1761 = vmatpush2.msra.mxu0 0.0
        %1762 = vmatprep.subr.mxu0 0.0
        %1763 = vmatpush2.msra.mxu0 0.0
        %1764 = vmatprep.subr.mxu0 0.0
        %1765 = vmatpush2.msra.mxu0 0.0
        %1766 = vmatprep.subr.mxu0 0.0
        %1767 = vmatpush2.msra.mxu0 0.0
        %1768 = vmatprep.subr.mxu0 0.0
        %1769 = vmatpush2.msra.mxu0 0.0
        %1770 = vmatprep.subr.mxu0 0.0
        %1771 = vmatpush2.msra.mxu0 0.0
        %1772 = vmatprep.subr.mxu0 0.0
        %1773 = vmatpush2.msra.mxu0 0.0
        %1774 = vmatprep.subr.mxu0 0.0
        %1775 = vmatpush2.msra.mxu0 0.0
        %1776 = vmatprep.subr.mxu0 0.0
        %1777 = vmatpush2.msra.mxu0 0.0
        %1778 = vmatprep.subr.mxu0 0.0
        %1779 = vmatpush2.msra.mxu0 0.0
        %1780 = vmatprep.subr.mxu0 0.0
        %1781 = vmatpush2.msra.mxu0 0.0
        %1782 = vmatprep.mubr.f32.mxu0 0.0
        %1783 = vmatmul.mubr.f32.gmra.mxu0 %v1438
        %v1784 = vpop.f32.mrf.mxu0
        %v1785 = vadd.f32 0.0, %v1784
        %v1786 = vpop.f32.mrf.mxu0
        %1787 = vmatprep.mubr.f32.mxu0 0.0
        %1788 = vmatmul.mubr.f32.gmra.mxu0 %v1441
        %v1789 = vpop.f32.mrf.mxu0
        %v1790 = vadd.f32 0.0, %v1789
        %v1791 = vpop.f32.mrf.mxu0
        %1792 = vmatprep.mubr.f32.mxu0 0.0
        %1793 = vmatmul.mubr.f32.gmra.mxu0 %v1444
        %v1794 = vpop.f32.mrf.mxu0
        %v1795 = vadd.f32 0.0, %v1794
        %v1796 = vpop.f32.mrf.mxu0
        %1797 = vmatprep.mubr.f32.mxu0 0.0
        %1798 = vmatmul.mubr.f32.gmra.mxu0 %v1447
        %v1799 = vpop.f32.mrf.mxu0
        %v1800 = vadd.f32 0.0, %v1799
        %v1801 = vpop.f32.mrf.mxu0
        %1802 = vmatprep.mubr.f32.mxu0 0.0
        %1803 = vmatmul.mubr.f32.gmra.mxu0 %v1450
        %v1804 = vpop.f32.mrf.mxu0
        %v1805 = vadd.f32 0.0, %v1804
        %v1806 = vpop.f32.mrf.mxu0
        %1807 = vmatprep.mubr.f32.mxu0 0.0
        %1808 = vmatmul.mubr.f32.gmra.mxu0 %v1453
        %v1809 = vpop.f32.mrf.mxu0
        %v1810 = vadd.f32 0.0, %v1809
        %v1811 = vpop.f32.mrf.mxu0
        %1812 = vmatprep.mubr.f32.mxu0 0.0
        %1813 = vmatmul.mubr.f32.gmra.mxu0 %v1456
        %v1814 = vpop.f32.mrf.mxu0
        %v1815 = vadd.f32 0.0, %v1814
        %v1816 = vpop.f32.mrf.mxu0
        %1817 = vmatprep.mubr.f32.mxu0 0.0
        %1818 = vmatmul.mubr.f32.gmra.mxu0 %v1459
        %v1819 = vpop.f32.mrf.mxu0
        %v1820 = vadd.f32 0.0, %v1819
        %v1821 = vpop.f32.mrf.mxu0
        %1822 = vmatprep.mubr.f32.mxu0 0.0
        %1823 = vmatmul.mubr.f32.gmra.mxu0 %v1462
        %v1824 = vpop.f32.mrf.mxu0
        %v1825 = vadd.f32 0.0, %v1824
        %v1826 = vpop.f32.mrf.mxu0
        %1827 = vmatprep.mubr.f32.mxu0 0.0
        %1828 = vmatmul.mubr.f32.gmra.mxu0 %v1465
        %v1829 = vpop.f32.mrf.mxu0
        %v1830 = vadd.f32 0.0, %v1829
        %v1831 = vpop.f32.mrf.mxu0
        %1832 = vmatprep.mubr.f32.mxu0 0.0
        %1833 = vmatmul.mubr.f32.gmra.mxu0 %v1587
        %v1834 = vpop.f32.mrf.mxu0
        %v1835 = vadd.f32 0.0, %v1834
        %v1836 = vpop.f32.mrf.mxu0
        %1837 = vdwg.mxu0
        %v1838 = vadd.f32 %v1656, %v1785
        %v1839 = vadd.f32 %v1661, %v1790
        %v1840 = vadd.f32 %v1666, %v1795
        %v1841 = vadd.f32 %v1671, %v1800
        %v1842 = vadd.f32 %v1676, %v1805
        %v1843 = vadd.f32 %v1681, %v1810
        %v1844 = vadd.f32 %v1686, %v1815
        %v1845 = vadd.f32 %v1691, %v1820
        %v1846 = vadd.f32 %v1696, %v1825
        %v1847 = vadd.f32 %v1701, %v1830
        %v1848 = vadd.f32 %v1706, %v1835
        %v1849 = vlaneseq
        %v1850 = vshrl.u32 %v1849, 7
        %v1851 = vsub.s32 0, %v1850
        %v1852 = vrot.slane %v1415, %v1851
        %v1853 = vadd.f32 %v1838, %v1852
        %v1854 = vadd.f32 %v1839, %v1852
        %v1855 = vadd.f32 %v1840, %v1852
        %v1856 = vadd.f32 %v1841, %v1852
        %v1857 = vadd.f32 %v1842, %v1852
        %v1858 = vadd.f32 %v1843, %v1852
        %v1859 = vadd.f32 %v1844, %v1852
        %v1860 = vadd.f32 %v1845, %v1852
        %v1861 = vadd.f32 %v1846, %v1852
        %v1862 = vadd.f32 %v1847, %v1852
        %v1863 = vadd.f32 %v1848, %v1852
        %vm1864 = vcmp.gt.f32.partialorder %v1853, 0.0
        %vm1865 = vcmp.gt.f32.partialorder %v1854, 0.0
        %vm1866 = vcmp.gt.f32.partialorder %v1855, 0.0
        %vm1867 = vcmp.gt.f32.partialorder %v1856, 0.0
        %vm1868 = vcmp.gt.f32.partialorder %v1857, 0.0
        %vm1869 = vcmp.gt.f32.partialorder %v1858, 0.0
        %vm1870 = vcmp.gt.f32.partialorder %v1859, 0.0
        %vm1871 = vcmp.gt.f32.partialorder %v1860, 0.0
        %vm1872 = vcmp.gt.f32.partialorder %v1861, 0.0
        %vm1873 = vcmp.gt.f32.partialorder %v1862, 0.0
        %vm1874 = vcmp.gt.f32.partialorder %v1863, 0.0
        %v1875 = vmul.f32 %v1853, 0.1
        %v1876 = vmul.f32 %v1854, 0.1
        %v1877 = vmul.f32 %v1855, 0.1
        %v1878 = vmul.f32 %v1856, 0.1
        %v1879 = vmul.f32 %v1857, 0.1
        %v1880 = vmul.f32 %v1858, 0.1
        %v1881 = vmul.f32 %v1859, 0.1
        %v1882 = vmul.f32 %v1860, 0.1
        %v1883 = vmul.f32 %v1861, 0.1
        %v1884 = vmul.f32 %v1862, 0.1
        %v1885 = vmul.f32 %v1863, 0.1
        %v1886 = vsel %vm1864, %v1853, %v1875
        %v1887 = vsel %vm1865, %v1854, %v1876
        %v1888 = vsel %vm1866, %v1855, %v1877
        %v1889 = vsel %vm1867, %v1856, %v1878
        %v1890 = vsel %vm1868, %v1857, %v1879
        %v1891 = vsel %vm1869, %v1858, %v1880
        %v1892 = vsel %vm1870, %v1859, %v1881
        %v1893 = vsel %vm1871, %v1860, %v1882
        %v1894 = vsel %vm1872, %v1861, %v1883
        %v1895 = vsel %vm1873, %v1862, %v1884
        %v1896 = vsel %vm1874, %v1863, %v1885
        %v1897 = vld [vmem:[%s14] ss:$4 sm:$0x3]
        %v1898 = vld [vmem:[%s6] sm:$0xff]
        %v1899 = vld [vmem:[%s6 + $0x8] sm:$0xff]
        %v1900 = vld [vmem:[%s6 + $0x10] sm:$0xff]
        %v1901 = vld [vmem:[%s6 + $0x18] sm:$0xff]
        %v1902 = vld [vmem:[%s6 + $0x20] sm:$0xff]
        %v1903 = vld [vmem:[%s6 + $0x28] sm:$0xff]
        %v1904 = vld [vmem:[%s6 + $0x30] sm:$0xff]
        %v1905 = vld [vmem:[%s6 + $0x38] sm:$0xff]
        %v1906 = vld [vmem:[%s6 + $0x40] sm:$0xff]
        %v1907 = vld [vmem:[%s6 + $0x48] sm:$0xff]
        %v1908 = vld [vmem:[%s6 + $0x50] sm:$0xff]
        %v1909 = vld [vmem:[%s6 + $0x58] sm:$0xff]
        %v1910 = vld [vmem:[%s6 + $0x60] sm:$0xff]
        %v1911 = vld [vmem:[%s6 + $0x68] sm:$0xff]
        %v1912 = vld [vmem:[%s6 + $0x70] sm:$0xff]
        %v1913 = vld [vmem:[%s6 + $0x78] sm:$0xff]
        %v1914 = vld [vmem:[%s6 + $0x80] sm:$0xff]
        %v1915 = vld [vmem:[%s6 + $0x88] sm:$0xff]
        %v1916 = vld [vmem:[%s6 + $0x90] sm:$0xff]
        %v1917 = vld [vmem:[%s6 + $0x98] sm:$0xff]
        %v1918 = vld [vmem:[%s6 + $0xa0] sm:$0xff]
        %v1919 = vld [vmem:[%s6 + $0xa8] sm:$0xff]
        %v1920 = vld [vmem:[%s6 + $0xb0] sm:$0xff]
        %v1921 = vld [vmem:[%s6 + $0xb8] sm:$0xff]
        %v1922 = vld [vmem:[%s6 + $0xc0] sm:$0xff]
        %v1923 = vld [vmem:[%s6 + $0xc8] sm:$0xff]
        %v1924 = vld [vmem:[%s6 + $0xd0] sm:$0xff]
        %v1925 = vld [vmem:[%s6 + $0xd8] sm:$0xff]
        %v1926 = vld [vmem:[%s6 + $0xe0] sm:$0xff]
        %v1927 = vld [vmem:[%s6 + $0xe8] sm:$0xff]
        %v1928 = vld [vmem:[%s6 + $0xf0] sm:$0xff]
        %v1929 = vld [vmem:[%s6 + $0xf8] sm:$0xff]
        %s1930 = scalar_lea.vmem %s6, 256
        %v1931 = vld [vmem:[%s1930] sm:$0xff]
        %v1932 = vld [vmem:[%s1930 + $0x8] sm:$0xff]
        %v1933 = vld [vmem:[%s1930 + $0x10] sm:$0xff]
        %v1934 = vld [vmem:[%s1930 + $0x18] sm:$0xff]
        %v1935 = vld [vmem:[%s1930 + $0x20] sm:$0xff]
        %v1936 = vld [vmem:[%s1930 + $0x28] sm:$0xff]
        %v1937 = vld [vmem:[%s1930 + $0x30] sm:$0xff]
        %v1938 = vld [vmem:[%s1930 + $0x38] sm:$0xff]
        %v1939 = vld [vmem:[%s1930 + $0x40] sm:$0xff]
        %v1940 = vld [vmem:[%s1930 + $0x48] sm:$0xff]
        %v1941 = vld [vmem:[%s1930 + $0x50] sm:$0xff]
        %v1942 = vld [vmem:[%s1930 + $0x58] sm:$0xff]
        %v1943 = vld [vmem:[%s1930 + $0x60] sm:$0xff]
        %v1944 = vld [vmem:[%s1930 + $0x68] sm:$0xff]
        %v1945 = vld [vmem:[%s1930 + $0x70] sm:$0xff]
        %v1946 = vld [vmem:[%s1930 + $0x78] sm:$0xff]
        %v1947 = vld [vmem:[%s1930 + $0x80] sm:$0xff]
        %v1948 = vld [vmem:[%s1930 + $0x88] sm:$0xff]
        %v1949 = vld [vmem:[%s1930 + $0x90] sm:$0xff]
        %v1950 = vld [vmem:[%s1930 + $0x98] sm:$0xff]
        %v1951 = vld [vmem:[%s1930 + $0xa0] sm:$0xff]
        %v1952 = vld [vmem:[%s1930 + $0xa8] sm:$0xff]
        %v1953 = vld [vmem:[%s1930 + $0xb0] sm:$0xff]
        %v1954 = vld [vmem:[%s1930 + $0xb8] sm:$0xff]
        %v1955 = vld [vmem:[%s1930 + $0xc0] sm:$0xff]
        %v1956 = vld [vmem:[%s1930 + $0xc8] sm:$0xff]
        %v1957 = vld [vmem:[%s1930 + $0xd0] sm:$0xff]
        %v1958 = vld [vmem:[%s1930 + $0xd8] sm:$0xff]
        %v1959 = vld [vmem:[%s1930 + $0xe0] sm:$0xff]
        %v1960 = vld [vmem:[%s1930 + $0xe8] sm:$0xff]
        %v1961 = vld [vmem:[%s1930 + $0xf0] sm:$0xff]
        %v1962 = vld [vmem:[%s1930 + $0xf8] sm:$0xff]
        %1963 = vmatprep.subr.mxu0 %v1962
        %1964 = vmatpush1.msra.mxu0 %v1961
        %1965 = vmatprep.subr.mxu0 %v1960
        %1966 = vmatpush1.msra.mxu0 %v1959
        %1967 = vmatprep.subr.mxu0 %v1958
        %1968 = vmatpush1.msra.mxu0 %v1957
        %1969 = vmatprep.subr.mxu0 %v1956
        %1970 = vmatpush1.msra.mxu0 %v1955
        %1971 = vmatprep.subr.mxu0 %v1954
        %1972 = vmatpush1.msra.mxu0 %v1953
        %1973 = vmatprep.subr.mxu0 %v1952
        %1974 = vmatpush1.msra.mxu0 %v1951
        %1975 = vmatprep.subr.mxu0 %v1950
        %1976 = vmatpush1.msra.mxu0 %v1949
        %1977 = vmatprep.subr.mxu0 %v1948
        %1978 = vmatpush1.msra.mxu0 %v1947
        %1979 = vmatprep.subr.mxu0 %v1946
        %1980 = vmatpush1.msra.mxu0 %v1945
        %1981 = vmatprep.subr.mxu0 %v1944
        %1982 = vmatpush1.msra.mxu0 %v1943
        %1983 = vmatprep.subr.mxu0 %v1942
        %1984 = vmatpush1.msra.mxu0 %v1941
        %1985 = vmatprep.subr.mxu0 %v1940
        %1986 = vmatpush1.msra.mxu0 %v1939
        %1987 = vmatprep.subr.mxu0 %v1938
        %1988 = vmatpush1.msra.mxu0 %v1937
        %1989 = vmatprep.subr.mxu0 %v1936
        %1990 = vmatpush1.msra.mxu0 %v1935
        %1991 = vmatprep.subr.mxu0 %v1934
        %1992 = vmatpush1.msra.mxu0 %v1933
        %1993 = vmatprep.subr.mxu0 %v1932
        %1994 = vmatpush1.msra.mxu0 %v1931
        %1995 = vmatprep.subr.mxu0 0.0
        %1996 = vmatpush2.msra.mxu0 0.0
        %1997 = vmatprep.subr.mxu0 0.0
        %1998 = vmatpush2.msra.mxu0 0.0
        %1999 = vmatprep.subr.mxu0 0.0
        %2000 = vmatpush2.msra.mxu0 0.0
        %2001 = vmatprep.subr.mxu0 0.0
        %2002 = vmatpush2.msra.mxu0 0.0
        %2003 = vmatprep.subr.mxu0 0.0
        %2004 = vmatpush2.msra.mxu0 0.0
        %2005 = vmatprep.subr.mxu0 0.0
        %2006 = vmatpush2.msra.mxu0 0.0
        %2007 = vmatprep.subr.mxu0 0.0
        %2008 = vmatpush2.msra.mxu0 0.0
        %2009 = vmatprep.subr.mxu0 0.0
        %2010 = vmatpush2.msra.mxu0 0.0
        %2011 = vmatprep.subr.mxu0 0.0
        %2012 = vmatpush2.msra.mxu0 0.0
        %2013 = vmatprep.subr.mxu0 0.0
        %2014 = vmatpush2.msra.mxu0 0.0
        %2015 = vmatprep.subr.mxu0 0.0
        %2016 = vmatpush2.msra.mxu0 0.0
        %2017 = vmatprep.subr.mxu0 0.0
        %2018 = vmatpush2.msra.mxu0 0.0
        %2019 = vmatprep.subr.mxu0 0.0
        %2020 = vmatpush2.msra.mxu0 0.0
        %2021 = vmatprep.subr.mxu0 0.0
        %2022 = vmatpush2.msra.mxu0 0.0
        %2023 = vmatprep.subr.mxu0 0.0
        %2024 = vmatpush2.msra.mxu0 0.0
        %2025 = vmatprep.subr.mxu0 0.0
        %2026 = vmatpush2.msra.mxu0 0.0
        %2027 = vmatprep.mubr.f32.mxu0 0.0
        %2028 = vmatmul.mubr.f32.gmra.mxu0 %v1886
        %v2029 = vpop.f32.mrf.mxu0
        %v2030 = vadd.f32 0.0, %v2029
        %v2031 = vpop.f32.mrf.mxu0
        %v2032 = vadd.f32 0.0, %v2031
        %2033 = vmatprep.mubr.f32.mxu0 0.0
        %2034 = vmatmul.mubr.f32.gmra.mxu0 %v1887
        %v2035 = vpop.f32.mrf.mxu0
        %v2036 = vadd.f32 0.0, %v2035
        %v2037 = vpop.f32.mrf.mxu0
        %v2038 = vadd.f32 0.0, %v2037
        %2039 = vmatprep.mubr.f32.mxu0 0.0
        %2040 = vmatmul.mubr.f32.gmra.mxu0 %v1888
        %v2041 = vpop.f32.mrf.mxu0
        %v2042 = vadd.f32 0.0, %v2041
        %v2043 = vpop.f32.mrf.mxu0
        %v2044 = vadd.f32 0.0, %v2043
        %2045 = vmatprep.mubr.f32.mxu0 0.0
        %2046 = vmatmul.mubr.f32.gmra.mxu0 %v1889
        %v2047 = vpop.f32.mrf.mxu0
        %v2048 = vadd.f32 0.0, %v2047
        %v2049 = vpop.f32.mrf.mxu0
        %v2050 = vadd.f32 0.0, %v2049
        %2051 = vmatprep.mubr.f32.mxu0 0.0
        %2052 = vmatmul.mubr.f32.gmra.mxu0 %v1890
        %v2053 = vpop.f32.mrf.mxu0
        %v2054 = vadd.f32 0.0, %v2053
        %v2055 = vpop.f32.mrf.mxu0
        %v2056 = vadd.f32 0.0, %v2055
        %2057 = vmatprep.mubr.f32.mxu0 0.0
        %2058 = vmatmul.mubr.f32.gmra.mxu0 %v1891
        %v2059 = vpop.f32.mrf.mxu0
        %v2060 = vadd.f32 0.0, %v2059
        %v2061 = vpop.f32.mrf.mxu0
        %v2062 = vadd.f32 0.0, %v2061
        %2063 = vmatprep.mubr.f32.mxu0 0.0
        %2064 = vmatmul.mubr.f32.gmra.mxu0 %v1892
        %v2065 = vpop.f32.mrf.mxu0
        %v2066 = vadd.f32 0.0, %v2065
        %v2067 = vpop.f32.mrf.mxu0
        %v2068 = vadd.f32 0.0, %v2067
        %2069 = vmatprep.mubr.f32.mxu0 0.0
        %2070 = vmatmul.mubr.f32.gmra.mxu0 %v1893
        %v2071 = vpop.f32.mrf.mxu0
        %v2072 = vadd.f32 0.0, %v2071
        %v2073 = vpop.f32.mrf.mxu0
        %v2074 = vadd.f32 0.0, %v2073
        %2075 = vmatprep.mubr.f32.mxu0 0.0
        %2076 = vmatmul.mubr.f32.gmra.mxu0 %v1894
        %v2077 = vpop.f32.mrf.mxu0
        %v2078 = vadd.f32 0.0, %v2077
        %v2079 = vpop.f32.mrf.mxu0
        %v2080 = vadd.f32 0.0, %v2079
        %2081 = vmatprep.mubr.f32.mxu0 0.0
        %2082 = vmatmul.mubr.f32.gmra.mxu0 %v1895
        %v2083 = vpop.f32.mrf.mxu0
        %v2084 = vadd.f32 0.0, %v2083
        %v2085 = vpop.f32.mrf.mxu0
        %v2086 = vadd.f32 0.0, %v2085
        %2087 = vmatprep.mubr.f32.mxu0 0.0
        %2088 = vmatmul.mubr.f32.gmra.mxu0 %v1896
        %v2089 = vpop.f32.mrf.mxu0
        %v2090 = vadd.f32 0.0, %v2089
        %v2091 = vpop.f32.mrf.mxu0
        %v2092 = vadd.f32 0.0, %v2091
        %2093 = vdwg.mxu0
        %2094 = vmatprep.subr.mxu0 %v1929
        %2095 = vmatpush1.msra.mxu0 %v1928
        %2096 = vmatprep.subr.mxu0 %v1927
        %2097 = vmatpush1.msra.mxu0 %v1926
        %2098 = vmatprep.subr.mxu0 %v1925
        %2099 = vmatpush1.msra.mxu0 %v1924
        %2100 = vmatprep.subr.mxu0 %v1923
        %2101 = vmatpush1.msra.mxu0 %v1922
        %2102 = vmatprep.subr.mxu0 %v1921
        %2103 = vmatpush1.msra.mxu0 %v1920
        %2104 = vmatprep.subr.mxu0 %v1919
        %2105 = vmatpush1.msra.mxu0 %v1918
        %2106 = vmatprep.subr.mxu0 %v1917
        %2107 = vmatpush1.msra.mxu0 %v1916
        %2108 = vmatprep.subr.mxu0 %v1915
        %2109 = vmatpush1.msra.mxu0 %v1914
        %2110 = vmatprep.subr.mxu0 %v1913
        %2111 = vmatpush1.msra.mxu0 %v1912
        %2112 = vmatprep.subr.mxu0 %v1911
        %2113 = vmatpush1.msra.mxu0 %v1910
        %2114 = vmatprep.subr.mxu0 %v1909
        %2115 = vmatpush1.msra.mxu0 %v1908
        %2116 = vmatprep.subr.mxu0 %v1907
        %2117 = vmatpush1.msra.mxu0 %v1906
        %2118 = vmatprep.subr.mxu0 %v1905
        %2119 = vmatpush1.msra.mxu0 %v1904
        %2120 = vmatprep.subr.mxu0 %v1903
        %2121 = vmatpush1.msra.mxu0 %v1902
        %2122 = vmatprep.subr.mxu0 %v1901
        %2123 = vmatpush1.msra.mxu0 %v1900
        %2124 = vmatprep.subr.mxu0 %v1899
        %2125 = vmatpush1.msra.mxu0 %v1898
        %2126 = vmatprep.subr.mxu0 0.0
        %2127 = vmatpush2.msra.mxu0 0.0
        %2128 = vmatprep.subr.mxu0 0.0
        %2129 = vmatpush2.msra.mxu0 0.0
        %2130 = vmatprep.subr.mxu0 0.0
        %2131 = vmatpush2.msra.mxu0 0.0
        %2132 = vmatprep.subr.mxu0 0.0
        %2133 = vmatpush2.msra.mxu0 0.0
        %2134 = vmatprep.subr.mxu0 0.0
        %2135 = vmatpush2.msra.mxu0 0.0
        %2136 = vmatprep.subr.mxu0 0.0
        %2137 = vmatpush2.msra.mxu0 0.0
        %2138 = vmatprep.subr.mxu0 0.0
        %2139 = vmatpush2.msra.mxu0 0.0
        %2140 = vmatprep.subr.mxu0 0.0
        %2141 = vmatpush2.msra.mxu0 0.0
        %2142 = vmatprep.subr.mxu0 0.0
        %2143 = vmatpush2.msra.mxu0 0.0
        %2144 = vmatprep.subr.mxu0 0.0
        %2145 = vmatpush2.msra.mxu0 0.0
        %2146 = vmatprep.subr.mxu0 0.0
        %2147 = vmatpush2.msra.mxu0 0.0
        %2148 = vmatprep.subr.mxu0 0.0
        %2149 = vmatpush2.msra.mxu0 0.0
        %2150 = vmatprep.subr.mxu0 0.0
        %2151 = vmatpush2.msra.mxu0 0.0
        %2152 = vmatprep.subr.mxu0 0.0
        %2153 = vmatpush2.msra.mxu0 0.0
        %2154 = vmatprep.subr.mxu0 0.0
        %2155 = vmatpush2.msra.mxu0 0.0
        %2156 = vmatprep.subr.mxu0 0.0
        %2157 = vmatpush2.msra.mxu0 0.0
        %2158 = vmatprep.mubr.f32.mxu0 0.0
        %2159 = vmatmul.mubr.f32.gmra.mxu0 0.0
        %v2160 = vpop.f32.mrf.mxu0
        %v2161 = vadd.f32 %v2030, %v2160
        %v2162 = vpop.f32.mrf.mxu0
        %v2163 = vadd.f32 %v2032, %v2162
        %2164 = vmatprep.mubr.f32.mxu0 0.0
        %2165 = vmatmul.mubr.f32.gmra.mxu0 %v1886
        %v2166 = vpop.f32.mrf.mxu0
        %v2167 = vadd.f32 %v2036, %v2166
        %v2168 = vpop.f32.mrf.mxu0
        %v2169 = vadd.f32 %v2038, %v2168
        %2170 = vmatprep.mubr.f32.mxu0 0.0
        %2171 = vmatmul.mubr.f32.gmra.mxu0 %v1887
        %v2172 = vpop.f32.mrf.mxu0
        %v2173 = vadd.f32 %v2042, %v2172
        %v2174 = vpop.f32.mrf.mxu0
        %v2175 = vadd.f32 %v2044, %v2174
        %2176 = vmatprep.mubr.f32.mxu0 0.0
        %2177 = vmatmul.mubr.f32.gmra.mxu0 %v1888
        %v2178 = vpop.f32.mrf.mxu0
        %v2179 = vadd.f32 %v2048, %v2178
        %v2180 = vpop.f32.mrf.mxu0
        %v2181 = vadd.f32 %v2050, %v2180
        %2182 = vmatprep.mubr.f32.mxu0 0.0
        %2183 = vmatmul.mubr.f32.gmra.mxu0 %v1889
        %v2184 = vpop.f32.mrf.mxu0
        %v2185 = vadd.f32 %v2054, %v2184
        %v2186 = vpop.f32.mrf.mxu0
        %v2187 = vadd.f32 %v2056, %v2186
        %2188 = vmatprep.mubr.f32.mxu0 0.0
        %2189 = vmatmul.mubr.f32.gmra.mxu0 %v1890
        %v2190 = vpop.f32.mrf.mxu0
        %v2191 = vadd.f32 %v2060, %v2190
        %v2192 = vpop.f32.mrf.mxu0
        %v2193 = vadd.f32 %v2062, %v2192
        %2194 = vmatprep.mubr.f32.mxu0 0.0
        %2195 = vmatmul.mubr.f32.gmra.mxu0 %v1891
        %v2196 = vpop.f32.mrf.mxu0
        %v2197 = vadd.f32 %v2066, %v2196
        %v2198 = vpop.f32.mrf.mxu0
        %v2199 = vadd.f32 %v2068, %v2198
        %2200 = vmatprep.mubr.f32.mxu0 0.0
        %2201 = vmatmul.mubr.f32.gmra.mxu0 %v1892
        %v2202 = vpop.f32.mrf.mxu0
        %v2203 = vadd.f32 %v2072, %v2202
        %v2204 = vpop.f32.mrf.mxu0
        %v2205 = vadd.f32 %v2074, %v2204
        %2206 = vmatprep.mubr.f32.mxu0 0.0
        %2207 = vmatmul.mubr.f32.gmra.mxu0 %v1893
        %v2208 = vpop.f32.mrf.mxu0
        %v2209 = vadd.f32 %v2078, %v2208
        %v2210 = vpop.f32.mrf.mxu0
        %v2211 = vadd.f32 %v2080, %v2210
        %2212 = vmatprep.mubr.f32.mxu0 0.0
        %2213 = vmatmul.mubr.f32.gmra.mxu0 %v1894
        %v2214 = vpop.f32.mrf.mxu0
        %v2215 = vadd.f32 %v2084, %v2214
        %v2216 = vpop.f32.mrf.mxu0
        %v2217 = vadd.f32 %v2086, %v2216
        %2218 = vmatprep.mubr.f32.mxu0 0.0
        %2219 = vmatmul.mubr.f32.gmra.mxu0 %v1895
        %v2220 = vpop.f32.mrf.mxu0
        %v2221 = vadd.f32 %v2090, %v2220
        %v2222 = vpop.f32.mrf.mxu0
        %v2223 = vadd.f32 %v2092, %v2222
        %2224 = vdwg.mxu0
        %s2225 = scalar_lea.vmem %s6, 512
        %v2226 = vld [vmem:[%s2225] sm:$0xff]
        %v2227 = vld [vmem:[%s2225 + $0x8] sm:$0xff]
        %v2228 = vld [vmem:[%s2225 + $0x10] sm:$0xff]
        %v2229 = vld [vmem:[%s2225 + $0x18] sm:$0xff]
        %v2230 = vld [vmem:[%s2225 + $0x20] sm:$0xff]
        %v2231 = vld [vmem:[%s2225 + $0x28] sm:$0xff]
        %v2232 = vld [vmem:[%s2225 + $0x30] sm:$0xff]
        %v2233 = vld [vmem:[%s2225 + $0x38] sm:$0xff]
        %v2234 = vld [vmem:[%s2225 + $0x40] sm:$0xff]
        %v2235 = vld [vmem:[%s2225 + $0x48] sm:$0xff]
        %v2236 = vld [vmem:[%s2225 + $0x50] sm:$0xff]
        %v2237 = vld [vmem:[%s2225 + $0x58] sm:$0xff]
        %v2238 = vld [vmem:[%s2225 + $0x60] sm:$0xff]
        %v2239 = vld [vmem:[%s2225 + $0x68] sm:$0xff]
        %v2240 = vld [vmem:[%s2225 + $0x70] sm:$0xff]
        %v2241 = vld [vmem:[%s2225 + $0x78] sm:$0xff]
        %v2242 = vld [vmem:[%s2225 + $0x80] sm:$0xff]
        %v2243 = vld [vmem:[%s2225 + $0x88] sm:$0xff]
        %v2244 = vld [vmem:[%s2225 + $0x90] sm:$0xff]
        %v2245 = vld [vmem:[%s2225 + $0x98] sm:$0xff]
        %v2246 = vld [vmem:[%s2225 + $0xa0] sm:$0xff]
        %v2247 = vld [vmem:[%s2225 + $0xa8] sm:$0xff]
        %v2248 = vld [vmem:[%s2225 + $0xb0] sm:$0xff]
        %v2249 = vld [vmem:[%s2225 + $0xb8] sm:$0xff]
        %v2250 = vld [vmem:[%s2225 + $0xc0] sm:$0xff]
        %v2251 = vld [vmem:[%s2225 + $0xc8] sm:$0xff]
        %v2252 = vld [vmem:[%s2225 + $0xd0] sm:$0xff]
        %v2253 = vld [vmem:[%s2225 + $0xd8] sm:$0xff]
        %v2254 = vld [vmem:[%s2225 + $0xe0] sm:$0xff]
        %v2255 = vld [vmem:[%s2225 + $0xe8] sm:$0xff]
        %v2256 = vld [vmem:[%s2225 + $0xf0] sm:$0xff]
        %v2257 = vld [vmem:[%s2225 + $0xf8] sm:$0xff]
        %2258 = vmatprep.subr.mxu0 %v2257
        %2259 = vmatpush1.msra.mxu0 %v2256
        %2260 = vmatprep.subr.mxu0 %v2255
        %2261 = vmatpush1.msra.mxu0 %v2254
        %2262 = vmatprep.subr.mxu0 %v2253
        %2263 = vmatpush1.msra.mxu0 %v2252
        %2264 = vmatprep.subr.mxu0 %v2251
        %2265 = vmatpush1.msra.mxu0 %v2250
        %2266 = vmatprep.subr.mxu0 %v2249
        %2267 = vmatpush1.msra.mxu0 %v2248
        %2268 = vmatprep.subr.mxu0 %v2247
        %2269 = vmatpush1.msra.mxu0 %v2246
        %2270 = vmatprep.subr.mxu0 %v2245
        %2271 = vmatpush1.msra.mxu0 %v2244
        %2272 = vmatprep.subr.mxu0 %v2243
        %2273 = vmatpush1.msra.mxu0 %v2242
        %2274 = vmatprep.subr.mxu0 %v2241
        %2275 = vmatpush1.msra.mxu0 %v2240
        %2276 = vmatprep.subr.mxu0 %v2239
        %2277 = vmatpush1.msra.mxu0 %v2238
        %2278 = vmatprep.subr.mxu0 %v2237
        %2279 = vmatpush1.msra.mxu0 %v2236
        %2280 = vmatprep.subr.mxu0 %v2235
        %2281 = vmatpush1.msra.mxu0 %v2234
        %2282 = vmatprep.subr.mxu0 %v2233
        %2283 = vmatpush1.msra.mxu0 %v2232
        %2284 = vmatprep.subr.mxu0 %v2231
        %2285 = vmatpush1.msra.mxu0 %v2230
        %2286 = vmatprep.subr.mxu0 %v2229
        %2287 = vmatpush1.msra.mxu0 %v2228
        %2288 = vmatprep.subr.mxu0 %v2227
        %2289 = vmatpush1.msra.mxu0 %v2226
        %2290 = vmatprep.subr.mxu0 0.0
        %2291 = vmatpush2.msra.mxu0 0.0
        %2292 = vmatprep.subr.mxu0 0.0
        %2293 = vmatpush2.msra.mxu0 0.0
        %2294 = vmatprep.subr.mxu0 0.0
        %2295 = vmatpush2.msra.mxu0 0.0
        %2296 = vmatprep.subr.mxu0 0.0
        %2297 = vmatpush2.msra.mxu0 0.0
        %2298 = vmatprep.subr.mxu0 0.0
        %2299 = vmatpush2.msra.mxu0 0.0
        %2300 = vmatprep.subr.mxu0 0.0
        %2301 = vmatpush2.msra.mxu0 0.0
        %2302 = vmatprep.subr.mxu0 0.0
        %2303 = vmatpush2.msra.mxu0 0.0
        %2304 = vmatprep.subr.mxu0 0.0
        %2305 = vmatpush2.msra.mxu0 0.0
        %2306 = vmatprep.subr.mxu0 0.0
        %2307 = vmatpush2.msra.mxu0 0.0
        %2308 = vmatprep.subr.mxu0 0.0
        %2309 = vmatpush2.msra.mxu0 0.0
        %2310 = vmatprep.subr.mxu0 0.0
        %2311 = vmatpush2.msra.mxu0 0.0
        %2312 = vmatprep.subr.mxu0 0.0
        %2313 = vmatpush2.msra.mxu0 0.0
        %2314 = vmatprep.subr.mxu0 0.0
        %2315 = vmatpush2.msra.mxu0 0.0
        %2316 = vmatprep.subr.mxu0 0.0
        %2317 = vmatpush2.msra.mxu0 0.0
        %2318 = vmatprep.subr.mxu0 0.0
        %2319 = vmatpush2.msra.mxu0 0.0
        %2320 = vmatprep.subr.mxu0 0.0
        %2321 = vmatpush2.msra.mxu0 0.0
        %2322 = vmatprep.mubr.f32.mxu0 0.0
        %2323 = vmatmul.mubr.f32.gmra.mxu0 %v1887
        %v2324 = vpop.f32.mrf.mxu0
        %v2325 = vadd.f32 0.0, %v2324
        %v2326 = vpop.f32.mrf.mxu0
        %v2327 = vadd.f32 0.0, %v2326
        %2328 = vmatprep.mubr.f32.mxu0 0.0
        %2329 = vmatmul.mubr.f32.gmra.mxu0 %v1888
        %v2330 = vpop.f32.mrf.mxu0
        %v2331 = vadd.f32 0.0, %v2330
        %v2332 = vpop.f32.mrf.mxu0
        %v2333 = vadd.f32 0.0, %v2332
        %2334 = vmatprep.mubr.f32.mxu0 0.0
        %2335 = vmatmul.mubr.f32.gmra.mxu0 %v1889
        %v2336 = vpop.f32.mrf.mxu0
        %v2337 = vadd.f32 0.0, %v2336
        %v2338 = vpop.f32.mrf.mxu0
        %v2339 = vadd.f32 0.0, %v2338
        %2340 = vmatprep.mubr.f32.mxu0 0.0
        %2341 = vmatmul.mubr.f32.gmra.mxu0 %v1890
        %v2342 = vpop.f32.mrf.mxu0
        %v2343 = vadd.f32 0.0, %v2342
        %v2344 = vpop.f32.mrf.mxu0
        %v2345 = vadd.f32 0.0, %v2344
        %2346 = vmatprep.mubr.f32.mxu0 0.0
        %2347 = vmatmul.mubr.f32.gmra.mxu0 %v1891
        %v2348 = vpop.f32.mrf.mxu0
        %v2349 = vadd.f32 0.0, %v2348
        %v2350 = vpop.f32.mrf.mxu0
        %v2351 = vadd.f32 0.0, %v2350
        %2352 = vmatprep.mubr.f32.mxu0 0.0
        %2353 = vmatmul.mubr.f32.gmra.mxu0 %v1892
        %v2354 = vpop.f32.mrf.mxu0
        %v2355 = vadd.f32 0.0, %v2354
        %v2356 = vpop.f32.mrf.mxu0
        %v2357 = vadd.f32 0.0, %v2356
        %2358 = vmatprep.mubr.f32.mxu0 0.0
        %2359 = vmatmul.mubr.f32.gmra.mxu0 %v1893
        %v2360 = vpop.f32.mrf.mxu0
        %v2361 = vadd.f32 0.0, %v2360
        %v2362 = vpop.f32.mrf.mxu0
        %v2363 = vadd.f32 0.0, %v2362
        %2364 = vmatprep.mubr.f32.mxu0 0.0
        %2365 = vmatmul.mubr.f32.gmra.mxu0 %v1894
        %v2366 = vpop.f32.mrf.mxu0
        %v2367 = vadd.f32 0.0, %v2366
        %v2368 = vpop.f32.mrf.mxu0
        %v2369 = vadd.f32 0.0, %v2368
        %2370 = vmatprep.mubr.f32.mxu0 0.0
        %2371 = vmatmul.mubr.f32.gmra.mxu0 %v1895
        %v2372 = vpop.f32.mrf.mxu0
        %v2373 = vadd.f32 0.0, %v2372
        %v2374 = vpop.f32.mrf.mxu0
        %v2375 = vadd.f32 0.0, %v2374
        %2376 = vmatprep.mubr.f32.mxu0 0.0
        %2377 = vmatmul.mubr.f32.gmra.mxu0 %v1896
        %v2378 = vpop.f32.mrf.mxu0
        %v2379 = vadd.f32 0.0, %v2378
        %v2380 = vpop.f32.mrf.mxu0
        %v2381 = vadd.f32 0.0, %v2380
        %2382 = vmatprep.mubr.f32.mxu0 0.0
        %2383 = vmatmul.mubr.f32.gmra.mxu0 0.0
        %v2384 = vpop.f32.mrf.mxu0
        %v2385 = vadd.f32 0.0, %v2384
        %v2386 = vpop.f32.mrf.mxu0
        %v2387 = vadd.f32 0.0, %v2386
        %2388 = vdwg.mxu0
        %v2389 = vadd.f32 %v2161, %v2325
        %v2390 = vadd.f32 %v2163, %v2327
        %v2391 = vadd.f32 %v2167, %v2331
        %v2392 = vadd.f32 %v2169, %v2333
        %v2393 = vadd.f32 %v2173, %v2337
        %v2394 = vadd.f32 %v2175, %v2339
        %v2395 = vadd.f32 %v2179, %v2343
        %v2396 = vadd.f32 %v2181, %v2345
        %v2397 = vadd.f32 %v2185, %v2349
        %v2398 = vadd.f32 %v2187, %v2351
        %v2399 = vadd.f32 %v2191, %v2355
        %v2400 = vadd.f32 %v2193, %v2357
        %v2401 = vadd.f32 %v2197, %v2361
        %v2402 = vadd.f32 %v2199, %v2363
        %v2403 = vadd.f32 %v2203, %v2367
        %v2404 = vadd.f32 %v2205, %v2369
        %v2405 = vadd.f32 %v2209, %v2373
        %v2406 = vadd.f32 %v2211, %v2375
        %v2407 = vadd.f32 %v2215, %v2379
        %v2408 = vadd.f32 %v2217, %v2381
        %v2409 = vadd.f32 %v2221, %v2385
        %v2410 = vadd.f32 %v2223, %v2387
        %v2412 = vlaneseq
        %v2413 = vshrl.u32 %v2412, 7
        %v2414 = vsub.s32 0, %v2413
        %v2415 = vrot.slane %v1897, %v2414
        %v2416 = vlaneseq
        %v2417 = vshrl.u32 %v2416, 7
        %v2418 = vsub.s32 1, %v2417
        %v2419 = vrot.slane %v1897, %v2418
        %v2422 = vadd.f32 %v2389, %v2415
        %v2423 = vadd.f32 %v2390, %v2419
        %v2424 = vadd.f32 %v2391, %v2415
        %v2425 = vadd.f32 %v2392, %v2419
        %v2426 = vadd.f32 %v2393, %v2415
        %v2427 = vadd.f32 %v2394, %v2419
        %v2428 = vadd.f32 %v2395, %v2415
        %v2429 = vadd.f32 %v2396, %v2419
        %v2430 = vadd.f32 %v2397, %v2415
        %v2431 = vadd.f32 %v2398, %v2419
        %v2432 = vadd.f32 %v2399, %v2415
        %v2433 = vadd.f32 %v2400, %v2419
        %v2434 = vadd.f32 %v2401, %v2415
        %v2435 = vadd.f32 %v2402, %v2419
        %v2436 = vadd.f32 %v2403, %v2415
        %v2437 = vadd.f32 %v2404, %v2419
        %v2438 = vadd.f32 %v2405, %v2415
        %v2439 = vadd.f32 %v2406, %v2419
        %v2440 = vadd.f32 %v2407, %v2415
        %v2441 = vadd.f32 %v2408, %v2419
        %v2442 = vadd.f32 %v2409, %v2415
        %v2443 = vadd.f32 %v2410, %v2419
        %vm2444 = vcmp.gt.f32.partialorder %v2422, 0.0
        %vm2445 = vcmp.gt.f32.partialorder %v2423, 0.0
        %vm2446 = vcmp.gt.f32.partialorder %v2424, 0.0
        %vm2447 = vcmp.gt.f32.partialorder %v2425, 0.0
        %vm2448 = vcmp.gt.f32.partialorder %v2426, 0.0
        %vm2449 = vcmp.gt.f32.partialorder %v2427, 0.0
        %vm2450 = vcmp.gt.f32.partialorder %v2428, 0.0
        %vm2451 = vcmp.gt.f32.partialorder %v2429, 0.0
        %vm2452 = vcmp.gt.f32.partialorder %v2430, 0.0
        %vm2453 = vcmp.gt.f32.partialorder %v2431, 0.0
        %vm2454 = vcmp.gt.f32.partialorder %v2432, 0.0
        %vm2455 = vcmp.gt.f32.partialorder %v2433, 0.0
        %vm2456 = vcmp.gt.f32.partialorder %v2434, 0.0
        %vm2457 = vcmp.gt.f32.partialorder %v2435, 0.0
        %vm2458 = vcmp.gt.f32.partialorder %v2436, 0.0
        %vm2459 = vcmp.gt.f32.partialorder %v2437, 0.0
        %vm2460 = vcmp.gt.f32.partialorder %v2438, 0.0
        %vm2461 = vcmp.gt.f32.partialorder %v2439, 0.0
        %vm2462 = vcmp.gt.f32.partialorder %v2440, 0.0
        %vm2463 = vcmp.gt.f32.partialorder %v2441, 0.0
        %vm2464 = vcmp.gt.f32.partialorder %v2442, 0.0
        %vm2465 = vcmp.gt.f32.partialorder %v2443, 0.0
        %v2466 = vmul.f32 %v2422, 0.1
        %v2467 = vmul.f32 %v2423, 0.1
        %v2468 = vmul.f32 %v2424, 0.1
        %v2469 = vmul.f32 %v2425, 0.1
        %v2470 = vmul.f32 %v2426, 0.1
        %v2471 = vmul.f32 %v2427, 0.1
        %v2472 = vmul.f32 %v2428, 0.1
        %v2473 = vmul.f32 %v2429, 0.1
        %v2474 = vmul.f32 %v2430, 0.1
        %v2475 = vmul.f32 %v2431, 0.1
        %v2476 = vmul.f32 %v2432, 0.1
        %v2477 = vmul.f32 %v2433, 0.1
        %v2478 = vmul.f32 %v2434, 0.1
        %v2479 = vmul.f32 %v2435, 0.1
        %v2480 = vmul.f32 %v2436, 0.1
        %v2481 = vmul.f32 %v2437, 0.1
        %v2482 = vmul.f32 %v2438, 0.1
        %v2483 = vmul.f32 %v2439, 0.1
        %v2484 = vmul.f32 %v2440, 0.1
        %v2485 = vmul.f32 %v2441, 0.1
        %v2486 = vmul.f32 %v2442, 0.1
        %v2487 = vmul.f32 %v2443, 0.1
        %v2488 = vsel %vm2444, %v2422, %v2466
        %v2489 = vsel %vm2445, %v2423, %v2467
        %v2490 = vsel %vm2446, %v2424, %v2468
        %v2491 = vsel %vm2447, %v2425, %v2469
        %v2492 = vsel %vm2448, %v2426, %v2470
        %v2493 = vsel %vm2449, %v2427, %v2471
        %v2494 = vsel %vm2450, %v2428, %v2472
        %v2495 = vsel %vm2451, %v2429, %v2473
        %v2496 = vsel %vm2452, %v2430, %v2474
        %v2497 = vsel %vm2453, %v2431, %v2475
        %v2498 = vsel %vm2454, %v2432, %v2476
        %v2499 = vsel %vm2455, %v2433, %v2477
        %v2500 = vsel %vm2456, %v2434, %v2478
        %v2501 = vsel %vm2457, %v2435, %v2479
        %v2502 = vsel %vm2458, %v2436, %v2480
        %v2503 = vsel %vm2459, %v2437, %v2481
        %v2504 = vsel %vm2460, %v2438, %v2482
        %v2505 = vsel %vm2461, %v2439, %v2483
        %v2506 = vsel %vm2462, %v2440, %v2484
        %v2507 = vsel %vm2463, %v2441, %v2485
        %v2508 = vsel %vm2464, %v2442, %v2486
        %v2509 = vsel %vm2465, %v2443, %v2487
        %v2510 = vld [vmem:[%s7] sm:$0xff]
        %v2511 = vld [vmem:[%s7 + $0x8] sm:$0xff]
        %v2512 = vld [vmem:[%s7 + $0x10] sm:$0xff]
        %v2513 = vld [vmem:[%s7 + $0x18] sm:$0xff]
        %v2514 = vld [vmem:[%s7 + $0x20] sm:$0xff]
        %v2515 = vld [vmem:[%s7 + $0x28] sm:$0xff]
        %v2516 = vld [vmem:[%s7 + $0x30] sm:$0xff]
        %v2517 = vld [vmem:[%s7 + $0x38] sm:$0xff]
        %v2518 = vld [vmem:[%s7 + $0x40] sm:$0xff]
        %v2519 = vld [vmem:[%s7 + $0x48] sm:$0xff]
        %v2520 = vld [vmem:[%s7 + $0x50] sm:$0xff]
        %v2521 = vld [vmem:[%s7 + $0x58] sm:$0xff]
        %v2522 = vld [vmem:[%s7 + $0x60] sm:$0xff]
        %v2523 = vld [vmem:[%s7 + $0x68] sm:$0xff]
        %v2524 = vld [vmem:[%s7 + $0x70] sm:$0xff]
        %v2525 = vld [vmem:[%s7 + $0x78] sm:$0xff]
        %v2526 = vld [vmem:[%s7 + $0x80] sm:$0xff]
        %v2527 = vld [vmem:[%s7 + $0x88] sm:$0xff]
        %v2528 = vld [vmem:[%s7 + $0x90] sm:$0xff]
        %v2529 = vld [vmem:[%s7 + $0x98] sm:$0xff]
        %v2530 = vld [vmem:[%s7 + $0xa0] sm:$0xff]
        %v2531 = vld [vmem:[%s7 + $0xa8] sm:$0xff]
        %v2532 = vld [vmem:[%s7 + $0xb0] sm:$0xff]
        %v2533 = vld [vmem:[%s7 + $0xb8] sm:$0xff]
        %v2534 = vld [vmem:[%s7 + $0xc0] sm:$0xff]
        %v2535 = vld [vmem:[%s7 + $0xc8] sm:$0xff]
        %v2536 = vld [vmem:[%s7 + $0xd0] sm:$0xff]
        %v2537 = vld [vmem:[%s7 + $0xd8] sm:$0xff]
        %v2538 = vld [vmem:[%s7 + $0xe0] sm:$0xff]
        %v2539 = vld [vmem:[%s7 + $0xe8] sm:$0xff]
        %v2540 = vld [vmem:[%s7 + $0xf0] sm:$0xff]
        %v2541 = vld [vmem:[%s7 + $0xf8] sm:$0xff]
        %s2542 = scalar_lea.vmem %s7, 256
        %v2543 = vld [vmem:[%s2542] sm:$0xff]
        %v2544 = vld [vmem:[%s2542 + $0x8] sm:$0xff]
        %v2545 = vld [vmem:[%s2542 + $0x10] sm:$0xff]
        %v2546 = vld [vmem:[%s2542 + $0x18] sm:$0xff]
        %v2547 = vld [vmem:[%s2542 + $0x20] sm:$0xff]
        %v2548 = vld [vmem:[%s2542 + $0x28] sm:$0xff]
        %v2549 = vld [vmem:[%s2542 + $0x30] sm:$0xff]
        %v2550 = vld [vmem:[%s2542 + $0x38] sm:$0xff]
        %v2551 = vld [vmem:[%s2542 + $0x40] sm:$0xff]
        %v2552 = vld [vmem:[%s2542 + $0x48] sm:$0xff]
        %v2553 = vld [vmem:[%s2542 + $0x50] sm:$0xff]
        %v2554 = vld [vmem:[%s2542 + $0x58] sm:$0xff]
        %v2555 = vld [vmem:[%s2542 + $0x60] sm:$0xff]
        %v2556 = vld [vmem:[%s2542 + $0x68] sm:$0xff]
        %v2557 = vld [vmem:[%s2542 + $0x70] sm:$0xff]
        %v2558 = vld [vmem:[%s2542 + $0x78] sm:$0xff]
        %v2559 = vld [vmem:[%s2542 + $0x80] sm:$0xff]
        %v2560 = vld [vmem:[%s2542 + $0x88] sm:$0xff]
        %v2561 = vld [vmem:[%s2542 + $0x90] sm:$0xff]
        %v2562 = vld [vmem:[%s2542 + $0x98] sm:$0xff]
        %v2563 = vld [vmem:[%s2542 + $0xa0] sm:$0xff]
        %v2564 = vld [vmem:[%s2542 + $0xa8] sm:$0xff]
        %v2565 = vld [vmem:[%s2542 + $0xb0] sm:$0xff]
        %v2566 = vld [vmem:[%s2542 + $0xb8] sm:$0xff]
        %v2567 = vld [vmem:[%s2542 + $0xc0] sm:$0xff]
        %v2568 = vld [vmem:[%s2542 + $0xc8] sm:$0xff]
        %v2569 = vld [vmem:[%s2542 + $0xd0] sm:$0xff]
        %v2570 = vld [vmem:[%s2542 + $0xd8] sm:$0xff]
        %v2571 = vld [vmem:[%s2542 + $0xe0] sm:$0xff]
        %v2572 = vld [vmem:[%s2542 + $0xe8] sm:$0xff]
        %v2573 = vld [vmem:[%s2542 + $0xf0] sm:$0xff]
        %v2574 = vld [vmem:[%s2542 + $0xf8] sm:$0xff]
        %2575 = vmatprep.subr.mxu0 0.0
        %2576 = vmatpush1.msra.mxu0 %v2558
        %2577 = vmatprep.subr.mxu0 0.0
        %2578 = vmatpush1.msra.mxu0 %v2557
        %2579 = vmatprep.subr.mxu0 0.0
        %2580 = vmatpush1.msra.mxu0 %v2556
        %2581 = vmatprep.subr.mxu0 0.0
        %2582 = vmatpush1.msra.mxu0 %v2555
        %2583 = vmatprep.subr.mxu0 0.0
        %2584 = vmatpush1.msra.mxu0 %v2554
        %2585 = vmatprep.subr.mxu0 0.0
        %2586 = vmatpush1.msra.mxu0 %v2553
        %2587 = vmatprep.subr.mxu0 0.0
        %2588 = vmatpush1.msra.mxu0 %v2552
        %2589 = vmatprep.subr.mxu0 0.0
        %2590 = vmatpush1.msra.mxu0 %v2551
        %2591 = vmatprep.subr.mxu0 0.0
        %2592 = vmatpush1.msra.mxu0 %v2550
        %2593 = vmatprep.subr.mxu0 0.0
        %2594 = vmatpush1.msra.mxu0 %v2549
        %2595 = vmatprep.subr.mxu0 0.0
        %2596 = vmatpush1.msra.mxu0 %v2548
        %2597 = vmatprep.subr.mxu0 0.0
        %2598 = vmatpush1.msra.mxu0 %v2547
        %2599 = vmatprep.subr.mxu0 0.0
        %2600 = vmatpush1.msra.mxu0 %v2546
        %2601 = vmatprep.subr.mxu0 0.0
        %2602 = vmatpush1.msra.mxu0 %v2545
        %2603 = vmatprep.subr.mxu0 0.0
        %2604 = vmatpush1.msra.mxu0 %v2544
        %2605 = vmatprep.subr.mxu0 0.0
        %2606 = vmatpush1.msra.mxu0 %v2543
        %2607 = vmatprep.subr.mxu0 0.0
        %2608 = vmatpush2.msra.mxu0 %v2574
        %2609 = vmatprep.subr.mxu0 0.0
        %2610 = vmatpush2.msra.mxu0 %v2573
        %2611 = vmatprep.subr.mxu0 0.0
        %2612 = vmatpush2.msra.mxu0 %v2572
        %2613 = vmatprep.subr.mxu0 0.0
        %2614 = vmatpush2.msra.mxu0 %v2571
        %2615 = vmatprep.subr.mxu0 0.0
        %2616 = vmatpush2.msra.mxu0 %v2570
        %2617 = vmatprep.subr.mxu0 0.0
        %2618 = vmatpush2.msra.mxu0 %v2569
        %2619 = vmatprep.subr.mxu0 0.0
        %2620 = vmatpush2.msra.mxu0 %v2568
        %2621 = vmatprep.subr.mxu0 0.0
        %2622 = vmatpush2.msra.mxu0 %v2567
        %2623 = vmatprep.subr.mxu0 0.0
        %2624 = vmatpush2.msra.mxu0 %v2566
        %2625 = vmatprep.subr.mxu0 0.0
        %2626 = vmatpush2.msra.mxu0 %v2565
        %2627 = vmatprep.subr.mxu0 0.0
        %2628 = vmatpush2.msra.mxu0 %v2564
        %2629 = vmatprep.subr.mxu0 0.0
        %2630 = vmatpush2.msra.mxu0 %v2563
        %2631 = vmatprep.subr.mxu0 0.0
        %2632 = vmatpush2.msra.mxu0 %v2562
        %2633 = vmatprep.subr.mxu0 0.0
        %2634 = vmatpush2.msra.mxu0 %v2561
        %2635 = vmatprep.subr.mxu0 0.0
        %2636 = vmatpush2.msra.mxu0 %v2560
        %2637 = vmatprep.subr.mxu0 0.0
        %2638 = vmatpush2.msra.mxu0 %v2559
        %2639 = vmatprep.mubr.f32.mxu0 %v2491
        %2640 = vmatmul.mubr.f32.gmra.mxu0 %v2490
        %v2641 = vpop.f32.mrf.mxu0
        %v2642 = vadd.f32 0.0, %v2641
        %v2643 = vpop.f32.mrf.mxu0
        %2644 = vdwg.mxu0
        %2645 = vmatprep.subr.mxu0 0.0
        %2646 = vmatpush1.msra.mxu0 %v2525
        %2647 = vmatprep.subr.mxu0 0.0
        %2648 = vmatpush1.msra.mxu0 %v2524
        %2649 = vmatprep.subr.mxu0 0.0
        %2650 = vmatpush1.msra.mxu0 %v2523
        %2651 = vmatprep.subr.mxu0 0.0
        %2652 = vmatpush1.msra.mxu0 %v2522
        %2653 = vmatprep.subr.mxu0 0.0
        %2654 = vmatpush1.msra.mxu0 %v2521
        %2655 = vmatprep.subr.mxu0 0.0
        %2656 = vmatpush1.msra.mxu0 %v2520
        %2657 = vmatprep.subr.mxu0 0.0
        %2658 = vmatpush1.msra.mxu0 %v2519
        %2659 = vmatprep.subr.mxu0 0.0
        %2660 = vmatpush1.msra.mxu0 %v2518
        %2661 = vmatprep.subr.mxu0 0.0
        %2662 = vmatpush1.msra.mxu0 %v2517
        %2663 = vmatprep.subr.mxu0 0.0
        %2664 = vmatpush1.msra.mxu0 %v2516
        %2665 = vmatprep.subr.mxu0 0.0
        %2666 = vmatpush1.msra.mxu0 %v2515
        %2667 = vmatprep.subr.mxu0 0.0
        %2668 = vmatpush1.msra.mxu0 %v2514
        %2669 = vmatprep.subr.mxu0 0.0
        %2670 = vmatpush1.msra.mxu0 %v2513
        %2671 = vmatprep.subr.mxu0 0.0
        %2672 = vmatpush1.msra.mxu0 %v2512
        %2673 = vmatprep.subr.mxu0 0.0
        %2674 = vmatpush1.msra.mxu0 %v2511
        %2675 = vmatprep.subr.mxu0 0.0
        %2676 = vmatpush1.msra.mxu0 %v2510
        %2677 = vmatprep.subr.mxu0 0.0
        %2678 = vmatpush2.msra.mxu0 %v2541
        %2679 = vmatprep.subr.mxu0 0.0
        %2680 = vmatpush2.msra.mxu0 %v2540
        %2681 = vmatprep.subr.mxu0 0.0
        %2682 = vmatpush2.msra.mxu0 %v2539
        %2683 = vmatprep.subr.mxu0 0.0
        %2684 = vmatpush2.msra.mxu0 %v2538
        %2685 = vmatprep.subr.mxu0 0.0
        %2686 = vmatpush2.msra.mxu0 %v2537
        %2687 = vmatprep.subr.mxu0 0.0
        %2688 = vmatpush2.msra.mxu0 %v2536
        %2689 = vmatprep.subr.mxu0 0.0
        %2690 = vmatpush2.msra.mxu0 %v2535
        %2691 = vmatprep.subr.mxu0 0.0
        %2692 = vmatpush2.msra.mxu0 %v2534
        %2693 = vmatprep.subr.mxu0 0.0
        %2694 = vmatpush2.msra.mxu0 %v2533
        %2695 = vmatprep.subr.mxu0 0.0
        %2696 = vmatpush2.msra.mxu0 %v2532
        %2697 = vmatprep.subr.mxu0 0.0
        %2698 = vmatpush2.msra.mxu0 %v2531
        %2699 = vmatprep.subr.mxu0 0.0
        %2700 = vmatpush2.msra.mxu0 %v2530
        %2701 = vmatprep.subr.mxu0 0.0
        %2702 = vmatpush2.msra.mxu0 %v2529
        %2703 = vmatprep.subr.mxu0 0.0
        %2704 = vmatpush2.msra.mxu0 %v2528
        %2705 = vmatprep.subr.mxu0 0.0
        %2706 = vmatpush2.msra.mxu0 %v2527
        %2707 = vmatprep.subr.mxu0 0.0
        %2708 = vmatpush2.msra.mxu0 %v2526
        %2709 = vmatprep.mubr.f32.mxu0 %v2489
        %2710 = vmatmul.mubr.f32.gmra.mxu0 %v2488
        %v2711 = vpop.f32.mrf.mxu0
        %v2712 = vadd.f32 %v2642, %v2711
        %v2713 = vpop.f32.mrf.mxu0
        %2714 = vdwg.mxu0
        %s2715 = scalar_lea.vmem %s7, 512
        %v2716 = vld [vmem:[%s2715] sm:$0xff]
        %v2717 = vld [vmem:[%s2715 + $0x8] sm:$0xff]
        %v2718 = vld [vmem:[%s2715 + $0x10] sm:$0xff]
        %v2719 = vld [vmem:[%s2715 + $0x18] sm:$0xff]
        %v2720 = vld [vmem:[%s2715 + $0x20] sm:$0xff]
        %v2721 = vld [vmem:[%s2715 + $0x28] sm:$0xff]
        %v2722 = vld [vmem:[%s2715 + $0x30] sm:$0xff]
        %v2723 = vld [vmem:[%s2715 + $0x38] sm:$0xff]
        %v2724 = vld [vmem:[%s2715 + $0x40] sm:$0xff]
        %v2725 = vld [vmem:[%s2715 + $0x48] sm:$0xff]
        %v2726 = vld [vmem:[%s2715 + $0x50] sm:$0xff]
        %v2727 = vld [vmem:[%s2715 + $0x58] sm:$0xff]
        %v2728 = vld [vmem:[%s2715 + $0x60] sm:$0xff]
        %v2729 = vld [vmem:[%s2715 + $0x68] sm:$0xff]
        %v2730 = vld [vmem:[%s2715 + $0x70] sm:$0xff]
        %v2731 = vld [vmem:[%s2715 + $0x78] sm:$0xff]
        %v2732 = vld [vmem:[%s2715 + $0x80] sm:$0xff]
        %v2733 = vld [vmem:[%s2715 + $0x88] sm:$0xff]
        %v2734 = vld [vmem:[%s2715 + $0x90] sm:$0xff]
        %v2735 = vld [vmem:[%s2715 + $0x98] sm:$0xff]
        %v2736 = vld [vmem:[%s2715 + $0xa0] sm:$0xff]
        %v2737 = vld [vmem:[%s2715 + $0xa8] sm:$0xff]
        %v2738 = vld [vmem:[%s2715 + $0xb0] sm:$0xff]
        %v2739 = vld [vmem:[%s2715 + $0xb8] sm:$0xff]
        %v2740 = vld [vmem:[%s2715 + $0xc0] sm:$0xff]
        %v2741 = vld [vmem:[%s2715 + $0xc8] sm:$0xff]
        %v2742 = vld [vmem:[%s2715 + $0xd0] sm:$0xff]
        %v2743 = vld [vmem:[%s2715 + $0xd8] sm:$0xff]
        %v2744 = vld [vmem:[%s2715 + $0xe0] sm:$0xff]
        %v2745 = vld [vmem:[%s2715 + $0xe8] sm:$0xff]
        %v2746 = vld [vmem:[%s2715 + $0xf0] sm:$0xff]
        %v2747 = vld [vmem:[%s2715 + $0xf8] sm:$0xff]
        %2748 = vmatprep.subr.mxu0 0.0
        %2749 = vmatpush1.msra.mxu0 %v2731
        %2750 = vmatprep.subr.mxu0 0.0
        %2751 = vmatpush1.msra.mxu0 %v2730
        %2752 = vmatprep.subr.mxu0 0.0
        %2753 = vmatpush1.msra.mxu0 %v2729
        %2754 = vmatprep.subr.mxu0 0.0
        %2755 = vmatpush1.msra.mxu0 %v2728
        %2756 = vmatprep.subr.mxu0 0.0
        %2757 = vmatpush1.msra.mxu0 %v2727
        %2758 = vmatprep.subr.mxu0 0.0
        %2759 = vmatpush1.msra.mxu0 %v2726
        %2760 = vmatprep.subr.mxu0 0.0
        %2761 = vmatpush1.msra.mxu0 %v2725
        %2762 = vmatprep.subr.mxu0 0.0
        %2763 = vmatpush1.msra.mxu0 %v2724
        %2764 = vmatprep.subr.mxu0 0.0
        %2765 = vmatpush1.msra.mxu0 %v2723
        %2766 = vmatprep.subr.mxu0 0.0
        %2767 = vmatpush1.msra.mxu0 %v2722
        %2768 = vmatprep.subr.mxu0 0.0
        %2769 = vmatpush1.msra.mxu0 %v2721
        %2770 = vmatprep.subr.mxu0 0.0
        %2771 = vmatpush1.msra.mxu0 %v2720
        %2772 = vmatprep.subr.mxu0 0.0
        %2773 = vmatpush1.msra.mxu0 %v2719
        %2774 = vmatprep.subr.mxu0 0.0
        %2775 = vmatpush1.msra.mxu0 %v2718
        %2776 = vmatprep.subr.mxu0 0.0
        %2777 = vmatpush1.msra.mxu0 %v2717
        %2778 = vmatprep.subr.mxu0 0.0
        %2779 = vmatpush1.msra.mxu0 %v2716
        %2780 = vmatprep.subr.mxu0 0.0
        %2781 = vmatpush2.msra.mxu0 %v2747
        %2782 = vmatprep.subr.mxu0 0.0
        %2783 = vmatpush2.msra.mxu0 %v2746
        %2784 = vmatprep.subr.mxu0 0.0
        %2785 = vmatpush2.msra.mxu0 %v2745
        %2786 = vmatprep.subr.mxu0 0.0
        %2787 = vmatpush2.msra.mxu0 %v2744
        %2788 = vmatprep.subr.mxu0 0.0
        %2789 = vmatpush2.msra.mxu0 %v2743
        %2790 = vmatprep.subr.mxu0 0.0
        %2791 = vmatpush2.msra.mxu0 %v2742
        %2792 = vmatprep.subr.mxu0 0.0
        %2793 = vmatpush2.msra.mxu0 %v2741
        %2794 = vmatprep.subr.mxu0 0.0
        %2795 = vmatpush2.msra.mxu0 %v2740
        %2796 = vmatprep.subr.mxu0 0.0
        %2797 = vmatpush2.msra.mxu0 %v2739
        %2798 = vmatprep.subr.mxu0 0.0
        %2799 = vmatpush2.msra.mxu0 %v2738
        %2800 = vmatprep.subr.mxu0 0.0
        %2801 = vmatpush2.msra.mxu0 %v2737
        %2802 = vmatprep.subr.mxu0 0.0
        %2803 = vmatpush2.msra.mxu0 %v2736
        %2804 = vmatprep.subr.mxu0 0.0
        %2805 = vmatpush2.msra.mxu0 %v2735
        %2806 = vmatprep.subr.mxu0 0.0
        %2807 = vmatpush2.msra.mxu0 %v2734
        %2808 = vmatprep.subr.mxu0 0.0
        %2809 = vmatpush2.msra.mxu0 %v2733
        %2810 = vmatprep.subr.mxu0 0.0
        %2811 = vmatpush2.msra.mxu0 %v2732
        %2812 = vmatprep.mubr.f32.mxu0 %v2493
        %2813 = vmatmul.mubr.f32.gmra.mxu0 %v2492
        %v2814 = vpop.f32.mrf.mxu0
        %v2815 = vadd.f32 0.0, %v2814
        %v2816 = vpop.f32.mrf.mxu0
        %2817 = vdwg.mxu0
        %v2818 = vadd.f32 %v2712, %v2815
        %s2819 = scalar_lea.vmem %s7, 768
        %v2820 = vld [vmem:[%s2819] sm:$0xff]
        %v2821 = vld [vmem:[%s2819 + $0x8] sm:$0xff]
        %v2822 = vld [vmem:[%s2819 + $0x10] sm:$0xff]
        %v2823 = vld [vmem:[%s2819 + $0x18] sm:$0xff]
        %v2824 = vld [vmem:[%s2819 + $0x20] sm:$0xff]
        %v2825 = vld [vmem:[%s2819 + $0x28] sm:$0xff]
        %v2826 = vld [vmem:[%s2819 + $0x30] sm:$0xff]
        %v2827 = vld [vmem:[%s2819 + $0x38] sm:$0xff]
        %v2828 = vld [vmem:[%s2819 + $0x40] sm:$0xff]
        %v2829 = vld [vmem:[%s2819 + $0x48] sm:$0xff]
        %v2830 = vld [vmem:[%s2819 + $0x50] sm:$0xff]
        %v2831 = vld [vmem:[%s2819 + $0x58] sm:$0xff]
        %v2832 = vld [vmem:[%s2819 + $0x60] sm:$0xff]
        %v2833 = vld [vmem:[%s2819 + $0x68] sm:$0xff]
        %v2834 = vld [vmem:[%s2819 + $0x70] sm:$0xff]
        %v2835 = vld [vmem:[%s2819 + $0x78] sm:$0xff]
        %v2836 = vld [vmem:[%s2819 + $0x80] sm:$0xff]
        %v2837 = vld [vmem:[%s2819 + $0x88] sm:$0xff]
        %v2838 = vld [vmem:[%s2819 + $0x90] sm:$0xff]
        %v2839 = vld [vmem:[%s2819 + $0x98] sm:$0xff]
        %v2840 = vld [vmem:[%s2819 + $0xa0] sm:$0xff]
        %v2841 = vld [vmem:[%s2819 + $0xa8] sm:$0xff]
        %v2842 = vld [vmem:[%s2819 + $0xb0] sm:$0xff]
        %v2843 = vld [vmem:[%s2819 + $0xb8] sm:$0xff]
        %v2844 = vld [vmem:[%s2819 + $0xc0] sm:$0xff]
        %v2845 = vld [vmem:[%s2819 + $0xc8] sm:$0xff]
        %v2846 = vld [vmem:[%s2819 + $0xd0] sm:$0xff]
        %v2847 = vld [vmem:[%s2819 + $0xd8] sm:$0xff]
        %v2848 = vld [vmem:[%s2819 + $0xe0] sm:$0xff]
        %v2849 = vld [vmem:[%s2819 + $0xe8] sm:$0xff]
        %v2850 = vld [vmem:[%s2819 + $0xf0] sm:$0xff]
        %v2851 = vld [vmem:[%s2819 + $0xf8] sm:$0xff]
        %2852 = vmatprep.subr.mxu0 0.0
        %2853 = vmatpush1.msra.mxu0 %v2835
        %2854 = vmatprep.subr.mxu0 0.0
        %2855 = vmatpush1.msra.mxu0 %v2834
        %2856 = vmatprep.subr.mxu0 0.0
        %2857 = vmatpush1.msra.mxu0 %v2833
        %2858 = vmatprep.subr.mxu0 0.0
        %2859 = vmatpush1.msra.mxu0 %v2832
        %2860 = vmatprep.subr.mxu0 0.0
        %2861 = vmatpush1.msra.mxu0 %v2831
        %2862 = vmatprep.subr.mxu0 0.0
        %2863 = vmatpush1.msra.mxu0 %v2830
        %2864 = vmatprep.subr.mxu0 0.0
        %2865 = vmatpush1.msra.mxu0 %v2829
        %2866 = vmatprep.subr.mxu0 0.0
        %2867 = vmatpush1.msra.mxu0 %v2828
        %2868 = vmatprep.subr.mxu0 0.0
        %2869 = vmatpush1.msra.mxu0 %v2827
        %2870 = vmatprep.subr.mxu0 0.0
        %2871 = vmatpush1.msra.mxu0 %v2826
        %2872 = vmatprep.subr.mxu0 0.0
        %2873 = vmatpush1.msra.mxu0 %v2825
        %2874 = vmatprep.subr.mxu0 0.0
        %2875 = vmatpush1.msra.mxu0 %v2824
        %2876 = vmatprep.subr.mxu0 0.0
        %2877 = vmatpush1.msra.mxu0 %v2823
        %2878 = vmatprep.subr.mxu0 0.0
        %2879 = vmatpush1.msra.mxu0 %v2822
        %2880 = vmatprep.subr.mxu0 0.0
        %2881 = vmatpush1.msra.mxu0 %v2821
        %2882 = vmatprep.subr.mxu0 0.0
        %2883 = vmatpush1.msra.mxu0 %v2820
        %2884 = vmatprep.subr.mxu0 0.0
        %2885 = vmatpush2.msra.mxu0 %v2851
        %2886 = vmatprep.subr.mxu0 0.0
        %2887 = vmatpush2.msra.mxu0 %v2850
        %2888 = vmatprep.subr.mxu0 0.0
        %2889 = vmatpush2.msra.mxu0 %v2849
        %2890 = vmatprep.subr.mxu0 0.0
        %2891 = vmatpush2.msra.mxu0 %v2848
        %2892 = vmatprep.subr.mxu0 0.0
        %2893 = vmatpush2.msra.mxu0 %v2847
        %2894 = vmatprep.subr.mxu0 0.0
        %2895 = vmatpush2.msra.mxu0 %v2846
        %2896 = vmatprep.subr.mxu0 0.0
        %2897 = vmatpush2.msra.mxu0 %v2845
        %2898 = vmatprep.subr.mxu0 0.0
        %2899 = vmatpush2.msra.mxu0 %v2844
        %2900 = vmatprep.subr.mxu0 0.0
        %2901 = vmatpush2.msra.mxu0 %v2843
        %2902 = vmatprep.subr.mxu0 0.0
        %2903 = vmatpush2.msra.mxu0 %v2842
        %2904 = vmatprep.subr.mxu0 0.0
        %2905 = vmatpush2.msra.mxu0 %v2841
        %2906 = vmatprep.subr.mxu0 0.0
        %2907 = vmatpush2.msra.mxu0 %v2840
        %2908 = vmatprep.subr.mxu0 0.0
        %2909 = vmatpush2.msra.mxu0 %v2839
        %2910 = vmatprep.subr.mxu0 0.0
        %2911 = vmatpush2.msra.mxu0 %v2838
        %2912 = vmatprep.subr.mxu0 0.0
        %2913 = vmatpush2.msra.mxu0 %v2837
        %2914 = vmatprep.subr.mxu0 0.0
        %2915 = vmatpush2.msra.mxu0 %v2836
        %2916 = vmatprep.mubr.f32.mxu0 %v2495
        %2917 = vmatmul.mubr.f32.gmra.mxu0 %v2494
        %v2918 = vpop.f32.mrf.mxu0
        %v2919 = vadd.f32 0.0, %v2918
        %v2920 = vpop.f32.mrf.mxu0
        %2921 = vdwg.mxu0
        %v2922 = vadd.f32 %v2818, %v2919
        %s2923 = scalar_lea.vmem %s7, 1024
        %v2924 = vld [vmem:[%s2923] sm:$0xff]
        %v2925 = vld [vmem:[%s2923 + $0x8] sm:$0xff]
        %v2926 = vld [vmem:[%s2923 + $0x10] sm:$0xff]
        %v2927 = vld [vmem:[%s2923 + $0x18] sm:$0xff]
        %v2928 = vld [vmem:[%s2923 + $0x20] sm:$0xff]
        %v2929 = vld [vmem:[%s2923 + $0x28] sm:$0xff]
        %v2930 = vld [vmem:[%s2923 + $0x30] sm:$0xff]
        %v2931 = vld [vmem:[%s2923 + $0x38] sm:$0xff]
        %v2932 = vld [vmem:[%s2923 + $0x40] sm:$0xff]
        %v2933 = vld [vmem:[%s2923 + $0x48] sm:$0xff]
        %v2934 = vld [vmem:[%s2923 + $0x50] sm:$0xff]
        %v2935 = vld [vmem:[%s2923 + $0x58] sm:$0xff]
        %v2936 = vld [vmem:[%s2923 + $0x60] sm:$0xff]
        %v2937 = vld [vmem:[%s2923 + $0x68] sm:$0xff]
        %v2938 = vld [vmem:[%s2923 + $0x70] sm:$0xff]
        %v2939 = vld [vmem:[%s2923 + $0x78] sm:$0xff]
        %v2940 = vld [vmem:[%s2923 + $0x80] sm:$0xff]
        %v2941 = vld [vmem:[%s2923 + $0x88] sm:$0xff]
        %v2942 = vld [vmem:[%s2923 + $0x90] sm:$0xff]
        %v2943 = vld [vmem:[%s2923 + $0x98] sm:$0xff]
        %v2944 = vld [vmem:[%s2923 + $0xa0] sm:$0xff]
        %v2945 = vld [vmem:[%s2923 + $0xa8] sm:$0xff]
        %v2946 = vld [vmem:[%s2923 + $0xb0] sm:$0xff]
        %v2947 = vld [vmem:[%s2923 + $0xb8] sm:$0xff]
        %v2948 = vld [vmem:[%s2923 + $0xc0] sm:$0xff]
        %v2949 = vld [vmem:[%s2923 + $0xc8] sm:$0xff]
        %v2950 = vld [vmem:[%s2923 + $0xd0] sm:$0xff]
        %v2951 = vld [vmem:[%s2923 + $0xd8] sm:$0xff]
        %v2952 = vld [vmem:[%s2923 + $0xe0] sm:$0xff]
        %v2953 = vld [vmem:[%s2923 + $0xe8] sm:$0xff]
        %v2954 = vld [vmem:[%s2923 + $0xf0] sm:$0xff]
        %v2955 = vld [vmem:[%s2923 + $0xf8] sm:$0xff]
        %2956 = vmatprep.subr.mxu0 0.0
        %2957 = vmatpush1.msra.mxu0 %v2939
        %2958 = vmatprep.subr.mxu0 0.0
        %2959 = vmatpush1.msra.mxu0 %v2938
        %2960 = vmatprep.subr.mxu0 0.0
        %2961 = vmatpush1.msra.mxu0 %v2937
        %2962 = vmatprep.subr.mxu0 0.0
        %2963 = vmatpush1.msra.mxu0 %v2936
        %2964 = vmatprep.subr.mxu0 0.0
        %2965 = vmatpush1.msra.mxu0 %v2935
        %2966 = vmatprep.subr.mxu0 0.0
        %2967 = vmatpush1.msra.mxu0 %v2934
        %2968 = vmatprep.subr.mxu0 0.0
        %2969 = vmatpush1.msra.mxu0 %v2933
        %2970 = vmatprep.subr.mxu0 0.0
        %2971 = vmatpush1.msra.mxu0 %v2932
        %2972 = vmatprep.subr.mxu0 0.0
        %2973 = vmatpush1.msra.mxu0 %v2931
        %2974 = vmatprep.subr.mxu0 0.0
        %2975 = vmatpush1.msra.mxu0 %v2930
        %2976 = vmatprep.subr.mxu0 0.0
        %2977 = vmatpush1.msra.mxu0 %v2929
        %2978 = vmatprep.subr.mxu0 0.0
        %2979 = vmatpush1.msra.mxu0 %v2928
        %2980 = vmatprep.subr.mxu0 0.0
        %2981 = vmatpush1.msra.mxu0 %v2927
        %2982 = vmatprep.subr.mxu0 0.0
        %2983 = vmatpush1.msra.mxu0 %v2926
        %2984 = vmatprep.subr.mxu0 0.0
        %2985 = vmatpush1.msra.mxu0 %v2925
        %2986 = vmatprep.subr.mxu0 0.0
        %2987 = vmatpush1.msra.mxu0 %v2924
        %2988 = vmatprep.subr.mxu0 0.0
        %2989 = vmatpush2.msra.mxu0 %v2955
        %2990 = vmatprep.subr.mxu0 0.0
        %2991 = vmatpush2.msra.mxu0 %v2954
        %2992 = vmatprep.subr.mxu0 0.0
        %2993 = vmatpush2.msra.mxu0 %v2953
        %2994 = vmatprep.subr.mxu0 0.0
        %2995 = vmatpush2.msra.mxu0 %v2952
        %2996 = vmatprep.subr.mxu0 0.0
        %2997 = vmatpush2.msra.mxu0 %v2951
        %2998 = vmatprep.subr.mxu0 0.0
        %2999 = vmatpush2.msra.mxu0 %v2950
        %3000 = vmatprep.subr.mxu0 0.0
        %3001 = vmatpush2.msra.mxu0 %v2949
        %3002 = vmatprep.subr.mxu0 0.0
        %3003 = vmatpush2.msra.mxu0 %v2948
        %3004 = vmatprep.subr.mxu0 0.0
        %3005 = vmatpush2.msra.mxu0 %v2947
        %3006 = vmatprep.subr.mxu0 0.0
        %3007 = vmatpush2.msra.mxu0 %v2946
        %3008 = vmatprep.subr.mxu0 0.0
        %3009 = vmatpush2.msra.mxu0 %v2945
        %3010 = vmatprep.subr.mxu0 0.0
        %3011 = vmatpush2.msra.mxu0 %v2944
        %3012 = vmatprep.subr.mxu0 0.0
        %3013 = vmatpush2.msra.mxu0 %v2943
        %3014 = vmatprep.subr.mxu0 0.0
        %3015 = vmatpush2.msra.mxu0 %v2942
        %3016 = vmatprep.subr.mxu0 0.0
        %3017 = vmatpush2.msra.mxu0 %v2941
        %3018 = vmatprep.subr.mxu0 0.0
        %3019 = vmatpush2.msra.mxu0 %v2940
        %3020 = vmatprep.mubr.f32.mxu0 %v2497
        %3021 = vmatmul.mubr.f32.gmra.mxu0 %v2496
        %v3022 = vpop.f32.mrf.mxu0
        %v3023 = vadd.f32 0.0, %v3022
        %v3024 = vpop.f32.mrf.mxu0
        %3025 = vdwg.mxu0
        %v3026 = vadd.f32 %v2922, %v3023
        %s3027 = scalar_lea.vmem %s7, 1280
        %v3028 = vld [vmem:[%s3027] sm:$0xff]
        %v3029 = vld [vmem:[%s3027 + $0x8] sm:$0xff]
        %v3030 = vld [vmem:[%s3027 + $0x10] sm:$0xff]
        %v3031 = vld [vmem:[%s3027 + $0x18] sm:$0xff]
        %v3032 = vld [vmem:[%s3027 + $0x20] sm:$0xff]
        %v3033 = vld [vmem:[%s3027 + $0x28] sm:$0xff]
        %v3034 = vld [vmem:[%s3027 + $0x30] sm:$0xff]
        %v3035 = vld [vmem:[%s3027 + $0x38] sm:$0xff]
        %v3036 = vld [vmem:[%s3027 + $0x40] sm:$0xff]
        %v3037 = vld [vmem:[%s3027 + $0x48] sm:$0xff]
        %v3038 = vld [vmem:[%s3027 + $0x50] sm:$0xff]
        %v3039 = vld [vmem:[%s3027 + $0x58] sm:$0xff]
        %v3040 = vld [vmem:[%s3027 + $0x60] sm:$0xff]
        %v3041 = vld [vmem:[%s3027 + $0x68] sm:$0xff]
        %v3042 = vld [vmem:[%s3027 + $0x70] sm:$0xff]
        %v3043 = vld [vmem:[%s3027 + $0x78] sm:$0xff]
        %v3044 = vld [vmem:[%s3027 + $0x80] sm:$0xff]
        %v3045 = vld [vmem:[%s3027 + $0x88] sm:$0xff]
        %v3046 = vld [vmem:[%s3027 + $0x90] sm:$0xff]
        %v3047 = vld [vmem:[%s3027 + $0x98] sm:$0xff]
        %v3048 = vld [vmem:[%s3027 + $0xa0] sm:$0xff]
        %v3049 = vld [vmem:[%s3027 + $0xa8] sm:$0xff]
        %v3050 = vld [vmem:[%s3027 + $0xb0] sm:$0xff]
        %v3051 = vld [vmem:[%s3027 + $0xb8] sm:$0xff]
        %v3052 = vld [vmem:[%s3027 + $0xc0] sm:$0xff]
        %v3053 = vld [vmem:[%s3027 + $0xc8] sm:$0xff]
        %v3054 = vld [vmem:[%s3027 + $0xd0] sm:$0xff]
        %v3055 = vld [vmem:[%s3027 + $0xd8] sm:$0xff]
        %v3056 = vld [vmem:[%s3027 + $0xe0] sm:$0xff]
        %v3057 = vld [vmem:[%s3027 + $0xe8] sm:$0xff]
        %v3058 = vld [vmem:[%s3027 + $0xf0] sm:$0xff]
        %v3059 = vld [vmem:[%s3027 + $0xf8] sm:$0xff]
        %3060 = vmatprep.subr.mxu0 0.0
        %3061 = vmatpush1.msra.mxu0 %v3043
        %3062 = vmatprep.subr.mxu0 0.0
        %3063 = vmatpush1.msra.mxu0 %v3042
        %3064 = vmatprep.subr.mxu0 0.0
        %3065 = vmatpush1.msra.mxu0 %v3041
        %3066 = vmatprep.subr.mxu0 0.0
        %3067 = vmatpush1.msra.mxu0 %v3040
        %3068 = vmatprep.subr.mxu0 0.0
        %3069 = vmatpush1.msra.mxu0 %v3039
        %3070 = vmatprep.subr.mxu0 0.0
        %3071 = vmatpush1.msra.mxu0 %v3038
        %3072 = vmatprep.subr.mxu0 0.0
        %3073 = vmatpush1.msra.mxu0 %v3037
        %3074 = vmatprep.subr.mxu0 0.0
        %3075 = vmatpush1.msra.mxu0 %v3036
        %3076 = vmatprep.subr.mxu0 0.0
        %3077 = vmatpush1.msra.mxu0 %v3035
        %3078 = vmatprep.subr.mxu0 0.0
        %3079 = vmatpush1.msra.mxu0 %v3034
        %3080 = vmatprep.subr.mxu0 0.0
        %3081 = vmatpush1.msra.mxu0 %v3033
        %3082 = vmatprep.subr.mxu0 0.0
        %3083 = vmatpush1.msra.mxu0 %v3032
        %3084 = vmatprep.subr.mxu0 0.0
        %3085 = vmatpush1.msra.mxu0 %v3031
        %3086 = vmatprep.subr.mxu0 0.0
        %3087 = vmatpush1.msra.mxu0 %v3030
        %3088 = vmatprep.subr.mxu0 0.0
        %3089 = vmatpush1.msra.mxu0 %v3029
        %3090 = vmatprep.subr.mxu0 0.0
        %3091 = vmatpush1.msra.mxu0 %v3028
        %3092 = vmatprep.subr.mxu0 0.0
        %3093 = vmatpush2.msra.mxu0 %v3059
        %3094 = vmatprep.subr.mxu0 0.0
        %3095 = vmatpush2.msra.mxu0 %v3058
        %3096 = vmatprep.subr.mxu0 0.0
        %3097 = vmatpush2.msra.mxu0 %v3057
        %3098 = vmatprep.subr.mxu0 0.0
        %3099 = vmatpush2.msra.mxu0 %v3056
        %3100 = vmatprep.subr.mxu0 0.0
        %3101 = vmatpush2.msra.mxu0 %v3055
        %3102 = vmatprep.subr.mxu0 0.0
        %3103 = vmatpush2.msra.mxu0 %v3054
        %3104 = vmatprep.subr.mxu0 0.0
        %3105 = vmatpush2.msra.mxu0 %v3053
        %3106 = vmatprep.subr.mxu0 0.0
        %3107 = vmatpush2.msra.mxu0 %v3052
        %3108 = vmatprep.subr.mxu0 0.0
        %3109 = vmatpush2.msra.mxu0 %v3051
        %3110 = vmatprep.subr.mxu0 0.0
        %3111 = vmatpush2.msra.mxu0 %v3050
        %3112 = vmatprep.subr.mxu0 0.0
        %3113 = vmatpush2.msra.mxu0 %v3049
        %3114 = vmatprep.subr.mxu0 0.0
        %3115 = vmatpush2.msra.mxu0 %v3048
        %3116 = vmatprep.subr.mxu0 0.0
        %3117 = vmatpush2.msra.mxu0 %v3047
        %3118 = vmatprep.subr.mxu0 0.0
        %3119 = vmatpush2.msra.mxu0 %v3046
        %3120 = vmatprep.subr.mxu0 0.0
        %3121 = vmatpush2.msra.mxu0 %v3045
        %3122 = vmatprep.subr.mxu0 0.0
        %3123 = vmatpush2.msra.mxu0 %v3044
        %3124 = vmatprep.mubr.f32.mxu0 %v2499
        %3125 = vmatmul.mubr.f32.gmra.mxu0 %v2498
        %v3126 = vpop.f32.mrf.mxu0
        %v3127 = vadd.f32 0.0, %v3126
        %v3128 = vpop.f32.mrf.mxu0
        %3129 = vdwg.mxu0
        %v3130 = vadd.f32 %v3026, %v3127
        %s3131 = scalar_lea.vmem %s7, 1536
        %v3132 = vld [vmem:[%s3131] sm:$0xff]
        %v3133 = vld [vmem:[%s3131 + $0x8] sm:$0xff]
        %v3134 = vld [vmem:[%s3131 + $0x10] sm:$0xff]
        %v3135 = vld [vmem:[%s3131 + $0x18] sm:$0xff]
        %v3136 = vld [vmem:[%s3131 + $0x20] sm:$0xff]
        %v3137 = vld [vmem:[%s3131 + $0x28] sm:$0xff]
        %v3138 = vld [vmem:[%s3131 + $0x30] sm:$0xff]
        %v3139 = vld [vmem:[%s3131 + $0x38] sm:$0xff]
        %v3140 = vld [vmem:[%s3131 + $0x40] sm:$0xff]
        %v3141 = vld [vmem:[%s3131 + $0x48] sm:$0xff]
        %v3142 = vld [vmem:[%s3131 + $0x50] sm:$0xff]
        %v3143 = vld [vmem:[%s3131 + $0x58] sm:$0xff]
        %v3144 = vld [vmem:[%s3131 + $0x60] sm:$0xff]
        %v3145 = vld [vmem:[%s3131 + $0x68] sm:$0xff]
        %v3146 = vld [vmem:[%s3131 + $0x70] sm:$0xff]
        %v3147 = vld [vmem:[%s3131 + $0x78] sm:$0xff]
        %v3148 = vld [vmem:[%s3131 + $0x80] sm:$0xff]
        %v3149 = vld [vmem:[%s3131 + $0x88] sm:$0xff]
        %v3150 = vld [vmem:[%s3131 + $0x90] sm:$0xff]
        %v3151 = vld [vmem:[%s3131 + $0x98] sm:$0xff]
        %v3152 = vld [vmem:[%s3131 + $0xa0] sm:$0xff]
        %v3153 = vld [vmem:[%s3131 + $0xa8] sm:$0xff]
        %v3154 = vld [vmem:[%s3131 + $0xb0] sm:$0xff]
        %v3155 = vld [vmem:[%s3131 + $0xb8] sm:$0xff]
        %v3156 = vld [vmem:[%s3131 + $0xc0] sm:$0xff]
        %v3157 = vld [vmem:[%s3131 + $0xc8] sm:$0xff]
        %v3158 = vld [vmem:[%s3131 + $0xd0] sm:$0xff]
        %v3159 = vld [vmem:[%s3131 + $0xd8] sm:$0xff]
        %v3160 = vld [vmem:[%s3131 + $0xe0] sm:$0xff]
        %v3161 = vld [vmem:[%s3131 + $0xe8] sm:$0xff]
        %v3162 = vld [vmem:[%s3131 + $0xf0] sm:$0xff]
        %v3163 = vld [vmem:[%s3131 + $0xf8] sm:$0xff]
        %3164 = vmatprep.subr.mxu0 0.0
        %3165 = vmatpush1.msra.mxu0 %v3147
        %3166 = vmatprep.subr.mxu0 0.0
        %3167 = vmatpush1.msra.mxu0 %v3146
        %3168 = vmatprep.subr.mxu0 0.0
        %3169 = vmatpush1.msra.mxu0 %v3145
        %3170 = vmatprep.subr.mxu0 0.0
        %3171 = vmatpush1.msra.mxu0 %v3144
        %3172 = vmatprep.subr.mxu0 0.0
        %3173 = vmatpush1.msra.mxu0 %v3143
        %3174 = vmatprep.subr.mxu0 0.0
        %3175 = vmatpush1.msra.mxu0 %v3142
        %3176 = vmatprep.subr.mxu0 0.0
        %3177 = vmatpush1.msra.mxu0 %v3141
        %3178 = vmatprep.subr.mxu0 0.0
        %3179 = vmatpush1.msra.mxu0 %v3140
        %3180 = vmatprep.subr.mxu0 0.0
        %3181 = vmatpush1.msra.mxu0 %v3139
        %3182 = vmatprep.subr.mxu0 0.0
        %3183 = vmatpush1.msra.mxu0 %v3138
        %3184 = vmatprep.subr.mxu0 0.0
        %3185 = vmatpush1.msra.mxu0 %v3137
        %3186 = vmatprep.subr.mxu0 0.0
        %3187 = vmatpush1.msra.mxu0 %v3136
        %3188 = vmatprep.subr.mxu0 0.0
        %3189 = vmatpush1.msra.mxu0 %v3135
        %3190 = vmatprep.subr.mxu0 0.0
        %3191 = vmatpush1.msra.mxu0 %v3134
        %3192 = vmatprep.subr.mxu0 0.0
        %3193 = vmatpush1.msra.mxu0 %v3133
        %3194 = vmatprep.subr.mxu0 0.0
        %3195 = vmatpush1.msra.mxu0 %v3132
        %3196 = vmatprep.subr.mxu0 0.0
        %3197 = vmatpush2.msra.mxu0 %v3163
        %3198 = vmatprep.subr.mxu0 0.0
        %3199 = vmatpush2.msra.mxu0 %v3162
        %3200 = vmatprep.subr.mxu0 0.0
        %3201 = vmatpush2.msra.mxu0 %v3161
        %3202 = vmatprep.subr.mxu0 0.0
        %3203 = vmatpush2.msra.mxu0 %v3160
        %3204 = vmatprep.subr.mxu0 0.0
        %3205 = vmatpush2.msra.mxu0 %v3159
        %3206 = vmatprep.subr.mxu0 0.0
        %3207 = vmatpush2.msra.mxu0 %v3158
        %3208 = vmatprep.subr.mxu0 0.0
        %3209 = vmatpush2.msra.mxu0 %v3157
        %3210 = vmatprep.subr.mxu0 0.0
        %3211 = vmatpush2.msra.mxu0 %v3156
        %3212 = vmatprep.subr.mxu0 0.0
        %3213 = vmatpush2.msra.mxu0 %v3155
        %3214 = vmatprep.subr.mxu0 0.0
        %3215 = vmatpush2.msra.mxu0 %v3154
        %3216 = vmatprep.subr.mxu0 0.0
        %3217 = vmatpush2.msra.mxu0 %v3153
        %3218 = vmatprep.subr.mxu0 0.0
        %3219 = vmatpush2.msra.mxu0 %v3152
        %3220 = vmatprep.subr.mxu0 0.0
        %3221 = vmatpush2.msra.mxu0 %v3151
        %3222 = vmatprep.subr.mxu0 0.0
        %3223 = vmatpush2.msra.mxu0 %v3150
        %3224 = vmatprep.subr.mxu0 0.0
        %3225 = vmatpush2.msra.mxu0 %v3149
        %3226 = vmatprep.subr.mxu0 0.0
        %3227 = vmatpush2.msra.mxu0 %v3148
        %3228 = vmatprep.mubr.f32.mxu0 %v2501
        %3229 = vmatmul.mubr.f32.gmra.mxu0 %v2500
        %v3230 = vpop.f32.mrf.mxu0
        %v3231 = vadd.f32 0.0, %v3230
        %v3232 = vpop.f32.mrf.mxu0
        %3233 = vdwg.mxu0
        %v3234 = vadd.f32 %v3130, %v3231
        %s3235 = scalar_lea.vmem %s7, 1792
        %v3236 = vld [vmem:[%s3235] sm:$0xff]
        %v3237 = vld [vmem:[%s3235 + $0x8] sm:$0xff]
        %v3238 = vld [vmem:[%s3235 + $0x10] sm:$0xff]
        %v3239 = vld [vmem:[%s3235 + $0x18] sm:$0xff]
        %v3240 = vld [vmem:[%s3235 + $0x20] sm:$0xff]
        %v3241 = vld [vmem:[%s3235 + $0x28] sm:$0xff]
        %v3242 = vld [vmem:[%s3235 + $0x30] sm:$0xff]
        %v3243 = vld [vmem:[%s3235 + $0x38] sm:$0xff]
        %v3244 = vld [vmem:[%s3235 + $0x40] sm:$0xff]
        %v3245 = vld [vmem:[%s3235 + $0x48] sm:$0xff]
        %v3246 = vld [vmem:[%s3235 + $0x50] sm:$0xff]
        %v3247 = vld [vmem:[%s3235 + $0x58] sm:$0xff]
        %v3248 = vld [vmem:[%s3235 + $0x60] sm:$0xff]
        %v3249 = vld [vmem:[%s3235 + $0x68] sm:$0xff]
        %v3250 = vld [vmem:[%s3235 + $0x70] sm:$0xff]
        %v3251 = vld [vmem:[%s3235 + $0x78] sm:$0xff]
        %v3252 = vld [vmem:[%s3235 + $0x80] sm:$0xff]
        %v3253 = vld [vmem:[%s3235 + $0x88] sm:$0xff]
        %v3254 = vld [vmem:[%s3235 + $0x90] sm:$0xff]
        %v3255 = vld [vmem:[%s3235 + $0x98] sm:$0xff]
        %v3256 = vld [vmem:[%s3235 + $0xa0] sm:$0xff]
        %v3257 = vld [vmem:[%s3235 + $0xa8] sm:$0xff]
        %v3258 = vld [vmem:[%s3235 + $0xb0] sm:$0xff]
        %v3259 = vld [vmem:[%s3235 + $0xb8] sm:$0xff]
        %v3260 = vld [vmem:[%s3235 + $0xc0] sm:$0xff]
        %v3261 = vld [vmem:[%s3235 + $0xc8] sm:$0xff]
        %v3262 = vld [vmem:[%s3235 + $0xd0] sm:$0xff]
        %v3263 = vld [vmem:[%s3235 + $0xd8] sm:$0xff]
        %v3264 = vld [vmem:[%s3235 + $0xe0] sm:$0xff]
        %v3265 = vld [vmem:[%s3235 + $0xe8] sm:$0xff]
        %v3266 = vld [vmem:[%s3235 + $0xf0] sm:$0xff]
        %v3267 = vld [vmem:[%s3235 + $0xf8] sm:$0xff]
        %3268 = vmatprep.subr.mxu0 0.0
        %3269 = vmatpush1.msra.mxu0 %v3251
        %3270 = vmatprep.subr.mxu0 0.0
        %3271 = vmatpush1.msra.mxu0 %v3250
        %3272 = vmatprep.subr.mxu0 0.0
        %3273 = vmatpush1.msra.mxu0 %v3249
        %3274 = vmatprep.subr.mxu0 0.0
        %3275 = vmatpush1.msra.mxu0 %v3248
        %3276 = vmatprep.subr.mxu0 0.0
        %3277 = vmatpush1.msra.mxu0 %v3247
        %3278 = vmatprep.subr.mxu0 0.0
        %3279 = vmatpush1.msra.mxu0 %v3246
        %3280 = vmatprep.subr.mxu0 0.0
        %3281 = vmatpush1.msra.mxu0 %v3245
        %3282 = vmatprep.subr.mxu0 0.0
        %3283 = vmatpush1.msra.mxu0 %v3244
        %3284 = vmatprep.subr.mxu0 0.0
        %3285 = vmatpush1.msra.mxu0 %v3243
        %3286 = vmatprep.subr.mxu0 0.0
        %3287 = vmatpush1.msra.mxu0 %v3242
        %3288 = vmatprep.subr.mxu0 0.0
        %3289 = vmatpush1.msra.mxu0 %v3241
        %3290 = vmatprep.subr.mxu0 0.0
        %3291 = vmatpush1.msra.mxu0 %v3240
        %3292 = vmatprep.subr.mxu0 0.0
        %3293 = vmatpush1.msra.mxu0 %v3239
        %3294 = vmatprep.subr.mxu0 0.0
        %3295 = vmatpush1.msra.mxu0 %v3238
        %3296 = vmatprep.subr.mxu0 0.0
        %3297 = vmatpush1.msra.mxu0 %v3237
        %3298 = vmatprep.subr.mxu0 0.0
        %3299 = vmatpush1.msra.mxu0 %v3236
        %3300 = vmatprep.subr.mxu0 0.0
        %3301 = vmatpush2.msra.mxu0 %v3267
        %3302 = vmatprep.subr.mxu0 0.0
        %3303 = vmatpush2.msra.mxu0 %v3266
        %3304 = vmatprep.subr.mxu0 0.0
        %3305 = vmatpush2.msra.mxu0 %v3265
        %3306 = vmatprep.subr.mxu0 0.0
        %3307 = vmatpush2.msra.mxu0 %v3264
        %3308 = vmatprep.subr.mxu0 0.0
        %3309 = vmatpush2.msra.mxu0 %v3263
        %3310 = vmatprep.subr.mxu0 0.0
        %3311 = vmatpush2.msra.mxu0 %v3262
        %3312 = vmatprep.subr.mxu0 0.0
        %3313 = vmatpush2.msra.mxu0 %v3261
        %3314 = vmatprep.subr.mxu0 0.0
        %3315 = vmatpush2.msra.mxu0 %v3260
        %3316 = vmatprep.subr.mxu0 0.0
        %3317 = vmatpush2.msra.mxu0 %v3259
        %3318 = vmatprep.subr.mxu0 0.0
        %3319 = vmatpush2.msra.mxu0 %v3258
        %3320 = vmatprep.subr.mxu0 0.0
        %3321 = vmatpush2.msra.mxu0 %v3257
        %3322 = vmatprep.subr.mxu0 0.0
        %3323 = vmatpush2.msra.mxu0 %v3256
        %3324 = vmatprep.subr.mxu0 0.0
        %3325 = vmatpush2.msra.mxu0 %v3255
        %3326 = vmatprep.subr.mxu0 0.0
        %3327 = vmatpush2.msra.mxu0 %v3254
        %3328 = vmatprep.subr.mxu0 0.0
        %3329 = vmatpush2.msra.mxu0 %v3253
        %3330 = vmatprep.subr.mxu0 0.0
        %3331 = vmatpush2.msra.mxu0 %v3252
        %3332 = vmatprep.mubr.f32.mxu0 %v2503
        %3333 = vmatmul.mubr.f32.gmra.mxu0 %v2502
        %v3334 = vpop.f32.mrf.mxu0
        %v3335 = vadd.f32 0.0, %v3334
        %v3336 = vpop.f32.mrf.mxu0
        %3337 = vdwg.mxu0
        %v3338 = vadd.f32 %v3234, %v3335
        %s3339 = scalar_lea.vmem %s7, 2048
        %v3340 = vld [vmem:[%s3339] sm:$0xff]
        %v3341 = vld [vmem:[%s3339 + $0x8] sm:$0xff]
        %v3342 = vld [vmem:[%s3339 + $0x10] sm:$0xff]
        %v3343 = vld [vmem:[%s3339 + $0x18] sm:$0xff]
        %v3344 = vld [vmem:[%s3339 + $0x20] sm:$0xff]
        %v3345 = vld [vmem:[%s3339 + $0x28] sm:$0xff]
        %v3346 = vld [vmem:[%s3339 + $0x30] sm:$0xff]
        %v3347 = vld [vmem:[%s3339 + $0x38] sm:$0xff]
        %v3348 = vld [vmem:[%s3339 + $0x40] sm:$0xff]
        %v3349 = vld [vmem:[%s3339 + $0x48] sm:$0xff]
        %v3350 = vld [vmem:[%s3339 + $0x50] sm:$0xff]
        %v3351 = vld [vmem:[%s3339 + $0x58] sm:$0xff]
        %v3352 = vld [vmem:[%s3339 + $0x60] sm:$0xff]
        %v3353 = vld [vmem:[%s3339 + $0x68] sm:$0xff]
        %v3354 = vld [vmem:[%s3339 + $0x70] sm:$0xff]
        %v3355 = vld [vmem:[%s3339 + $0x78] sm:$0xff]
        %v3356 = vld [vmem:[%s3339 + $0x80] sm:$0xff]
        %v3357 = vld [vmem:[%s3339 + $0x88] sm:$0xff]
        %v3358 = vld [vmem:[%s3339 + $0x90] sm:$0xff]
        %v3359 = vld [vmem:[%s3339 + $0x98] sm:$0xff]
        %v3360 = vld [vmem:[%s3339 + $0xa0] sm:$0xff]
        %v3361 = vld [vmem:[%s3339 + $0xa8] sm:$0xff]
        %v3362 = vld [vmem:[%s3339 + $0xb0] sm:$0xff]
        %v3363 = vld [vmem:[%s3339 + $0xb8] sm:$0xff]
        %v3364 = vld [vmem:[%s3339 + $0xc0] sm:$0xff]
        %v3365 = vld [vmem:[%s3339 + $0xc8] sm:$0xff]
        %v3366 = vld [vmem:[%s3339 + $0xd0] sm:$0xff]
        %v3367 = vld [vmem:[%s3339 + $0xd8] sm:$0xff]
        %v3368 = vld [vmem:[%s3339 + $0xe0] sm:$0xff]
        %v3369 = vld [vmem:[%s3339 + $0xe8] sm:$0xff]
        %v3370 = vld [vmem:[%s3339 + $0xf0] sm:$0xff]
        %v3371 = vld [vmem:[%s3339 + $0xf8] sm:$0xff]
        %3372 = vmatprep.subr.mxu0 0.0
        %3373 = vmatpush1.msra.mxu0 %v3355
        %3374 = vmatprep.subr.mxu0 0.0
        %3375 = vmatpush1.msra.mxu0 %v3354
        %3376 = vmatprep.subr.mxu0 0.0
        %3377 = vmatpush1.msra.mxu0 %v3353
        %3378 = vmatprep.subr.mxu0 0.0
        %3379 = vmatpush1.msra.mxu0 %v3352
        %3380 = vmatprep.subr.mxu0 0.0
        %3381 = vmatpush1.msra.mxu0 %v3351
        %3382 = vmatprep.subr.mxu0 0.0
        %3383 = vmatpush1.msra.mxu0 %v3350
        %3384 = vmatprep.subr.mxu0 0.0
        %3385 = vmatpush1.msra.mxu0 %v3349
        %3386 = vmatprep.subr.mxu0 0.0
        %3387 = vmatpush1.msra.mxu0 %v3348
        %3388 = vmatprep.subr.mxu0 0.0
        %3389 = vmatpush1.msra.mxu0 %v3347
        %3390 = vmatprep.subr.mxu0 0.0
        %3391 = vmatpush1.msra.mxu0 %v3346
        %3392 = vmatprep.subr.mxu0 0.0
        %3393 = vmatpush1.msra.mxu0 %v3345
        %3394 = vmatprep.subr.mxu0 0.0
        %3395 = vmatpush1.msra.mxu0 %v3344
        %3396 = vmatprep.subr.mxu0 0.0
        %3397 = vmatpush1.msra.mxu0 %v3343
        %3398 = vmatprep.subr.mxu0 0.0
        %3399 = vmatpush1.msra.mxu0 %v3342
        %3400 = vmatprep.subr.mxu0 0.0
        %3401 = vmatpush1.msra.mxu0 %v3341
        %3402 = vmatprep.subr.mxu0 0.0
        %3403 = vmatpush1.msra.mxu0 %v3340
        %3404 = vmatprep.subr.mxu0 0.0
        %3405 = vmatpush2.msra.mxu0 %v3371
        %3406 = vmatprep.subr.mxu0 0.0
        %3407 = vmatpush2.msra.mxu0 %v3370
        %3408 = vmatprep.subr.mxu0 0.0
        %3409 = vmatpush2.msra.mxu0 %v3369
        %3410 = vmatprep.subr.mxu0 0.0
        %3411 = vmatpush2.msra.mxu0 %v3368
        %3412 = vmatprep.subr.mxu0 0.0
        %3413 = vmatpush2.msra.mxu0 %v3367
        %3414 = vmatprep.subr.mxu0 0.0
        %3415 = vmatpush2.msra.mxu0 %v3366
        %3416 = vmatprep.subr.mxu0 0.0
        %3417 = vmatpush2.msra.mxu0 %v3365
        %3418 = vmatprep.subr.mxu0 0.0
        %3419 = vmatpush2.msra.mxu0 %v3364
        %3420 = vmatprep.subr.mxu0 0.0
        %3421 = vmatpush2.msra.mxu0 %v3363
        %3422 = vmatprep.subr.mxu0 0.0
        %3423 = vmatpush2.msra.mxu0 %v3362
        %3424 = vmatprep.subr.mxu0 0.0
        %3425 = vmatpush2.msra.mxu0 %v3361
        %3426 = vmatprep.subr.mxu0 0.0
        %3427 = vmatpush2.msra.mxu0 %v3360
        %3428 = vmatprep.subr.mxu0 0.0
        %3429 = vmatpush2.msra.mxu0 %v3359
        %3430 = vmatprep.subr.mxu0 0.0
        %3431 = vmatpush2.msra.mxu0 %v3358
        %3432 = vmatprep.subr.mxu0 0.0
        %3433 = vmatpush2.msra.mxu0 %v3357
        %3434 = vmatprep.subr.mxu0 0.0
        %3435 = vmatpush2.msra.mxu0 %v3356
        %3436 = vmatprep.mubr.f32.mxu0 %v2505
        %3437 = vmatmul.mubr.f32.gmra.mxu0 %v2504
        %v3438 = vpop.f32.mrf.mxu0
        %v3439 = vadd.f32 0.0, %v3438
        %v3440 = vpop.f32.mrf.mxu0
        %3441 = vdwg.mxu0
        %v3442 = vadd.f32 %v3338, %v3439
        %s3443 = scalar_lea.vmem %s7, 2304
        %v3444 = vld [vmem:[%s3443] sm:$0xff]
        %v3445 = vld [vmem:[%s3443 + $0x8] sm:$0xff]
        %v3446 = vld [vmem:[%s3443 + $0x10] sm:$0xff]
        %v3447 = vld [vmem:[%s3443 + $0x18] sm:$0xff]
        %v3448 = vld [vmem:[%s3443 + $0x20] sm:$0xff]
        %v3449 = vld [vmem:[%s3443 + $0x28] sm:$0xff]
        %v3450 = vld [vmem:[%s3443 + $0x30] sm:$0xff]
        %v3451 = vld [vmem:[%s3443 + $0x38] sm:$0xff]
        %v3452 = vld [vmem:[%s3443 + $0x40] sm:$0xff]
        %v3453 = vld [vmem:[%s3443 + $0x48] sm:$0xff]
        %v3454 = vld [vmem:[%s3443 + $0x50] sm:$0xff]
        %v3455 = vld [vmem:[%s3443 + $0x58] sm:$0xff]
        %v3456 = vld [vmem:[%s3443 + $0x60] sm:$0xff]
        %v3457 = vld [vmem:[%s3443 + $0x68] sm:$0xff]
        %v3458 = vld [vmem:[%s3443 + $0x70] sm:$0xff]
        %v3459 = vld [vmem:[%s3443 + $0x78] sm:$0xff]
        %v3460 = vld [vmem:[%s3443 + $0x80] sm:$0xff]
        %v3461 = vld [vmem:[%s3443 + $0x88] sm:$0xff]
        %v3462 = vld [vmem:[%s3443 + $0x90] sm:$0xff]
        %v3463 = vld [vmem:[%s3443 + $0x98] sm:$0xff]
        %v3464 = vld [vmem:[%s3443 + $0xa0] sm:$0xff]
        %v3465 = vld [vmem:[%s3443 + $0xa8] sm:$0xff]
        %v3466 = vld [vmem:[%s3443 + $0xb0] sm:$0xff]
        %v3467 = vld [vmem:[%s3443 + $0xb8] sm:$0xff]
        %v3468 = vld [vmem:[%s3443 + $0xc0] sm:$0xff]
        %v3469 = vld [vmem:[%s3443 + $0xc8] sm:$0xff]
        %v3470 = vld [vmem:[%s3443 + $0xd0] sm:$0xff]
        %v3471 = vld [vmem:[%s3443 + $0xd8] sm:$0xff]
        %v3472 = vld [vmem:[%s3443 + $0xe0] sm:$0xff]
        %v3473 = vld [vmem:[%s3443 + $0xe8] sm:$0xff]
        %v3474 = vld [vmem:[%s3443 + $0xf0] sm:$0xff]
        %v3475 = vld [vmem:[%s3443 + $0xf8] sm:$0xff]
        %3476 = vmatprep.subr.mxu0 0.0
        %3477 = vmatpush1.msra.mxu0 %v3459
        %3478 = vmatprep.subr.mxu0 0.0
        %3479 = vmatpush1.msra.mxu0 %v3458
        %3480 = vmatprep.subr.mxu0 0.0
        %3481 = vmatpush1.msra.mxu0 %v3457
        %3482 = vmatprep.subr.mxu0 0.0
        %3483 = vmatpush1.msra.mxu0 %v3456
        %3484 = vmatprep.subr.mxu0 0.0
        %3485 = vmatpush1.msra.mxu0 %v3455
        %3486 = vmatprep.subr.mxu0 0.0
        %3487 = vmatpush1.msra.mxu0 %v3454
        %3488 = vmatprep.subr.mxu0 0.0
        %3489 = vmatpush1.msra.mxu0 %v3453
        %3490 = vmatprep.subr.mxu0 0.0
        %3491 = vmatpush1.msra.mxu0 %v3452
        %3492 = vmatprep.subr.mxu0 0.0
        %3493 = vmatpush1.msra.mxu0 %v3451
        %3494 = vmatprep.subr.mxu0 0.0
        %3495 = vmatpush1.msra.mxu0 %v3450
        %3496 = vmatprep.subr.mxu0 0.0
        %3497 = vmatpush1.msra.mxu0 %v3449
        %3498 = vmatprep.subr.mxu0 0.0
        %3499 = vmatpush1.msra.mxu0 %v3448
        %3500 = vmatprep.subr.mxu0 0.0
        %3501 = vmatpush1.msra.mxu0 %v3447
        %3502 = vmatprep.subr.mxu0 0.0
        %3503 = vmatpush1.msra.mxu0 %v3446
        %3504 = vmatprep.subr.mxu0 0.0
        %3505 = vmatpush1.msra.mxu0 %v3445
        %3506 = vmatprep.subr.mxu0 0.0
        %3507 = vmatpush1.msra.mxu0 %v3444
        %3508 = vmatprep.subr.mxu0 0.0
        %3509 = vmatpush2.msra.mxu0 %v3475
        %3510 = vmatprep.subr.mxu0 0.0
        %3511 = vmatpush2.msra.mxu0 %v3474
        %3512 = vmatprep.subr.mxu0 0.0
        %3513 = vmatpush2.msra.mxu0 %v3473
        %3514 = vmatprep.subr.mxu0 0.0
        %3515 = vmatpush2.msra.mxu0 %v3472
        %3516 = vmatprep.subr.mxu0 0.0
        %3517 = vmatpush2.msra.mxu0 %v3471
        %3518 = vmatprep.subr.mxu0 0.0
        %3519 = vmatpush2.msra.mxu0 %v3470
        %3520 = vmatprep.subr.mxu0 0.0
        %3521 = vmatpush2.msra.mxu0 %v3469
        %3522 = vmatprep.subr.mxu0 0.0
        %3523 = vmatpush2.msra.mxu0 %v3468
        %3524 = vmatprep.subr.mxu0 0.0
        %3525 = vmatpush2.msra.mxu0 %v3467
        %3526 = vmatprep.subr.mxu0 0.0
        %3527 = vmatpush2.msra.mxu0 %v3466
        %3528 = vmatprep.subr.mxu0 0.0
        %3529 = vmatpush2.msra.mxu0 %v3465
        %3530 = vmatprep.subr.mxu0 0.0
        %3531 = vmatpush2.msra.mxu0 %v3464
        %3532 = vmatprep.subr.mxu0 0.0
        %3533 = vmatpush2.msra.mxu0 %v3463
        %3534 = vmatprep.subr.mxu0 0.0
        %3535 = vmatpush2.msra.mxu0 %v3462
        %3536 = vmatprep.subr.mxu0 0.0
        %3537 = vmatpush2.msra.mxu0 %v3461
        %3538 = vmatprep.subr.mxu0 0.0
        %3539 = vmatpush2.msra.mxu0 %v3460
        %3540 = vmatprep.mubr.f32.mxu0 %v2507
        %3541 = vmatmul.mubr.f32.gmra.mxu0 %v2506
        %v3542 = vpop.f32.mrf.mxu0
        %v3543 = vadd.f32 0.0, %v3542
        %v3544 = vpop.f32.mrf.mxu0
        %3545 = vdwg.mxu0
        %v3546 = vadd.f32 %v3442, %v3543
        %s3547 = scalar_lea.vmem %s7, 2560
        %v3548 = vld [vmem:[%s3547] sm:$0xff]
        %v3549 = vld [vmem:[%s3547 + $0x8] sm:$0xff]
        %v3550 = vld [vmem:[%s3547 + $0x10] sm:$0xff]
        %v3551 = vld [vmem:[%s3547 + $0x18] sm:$0xff]
        %v3552 = vld [vmem:[%s3547 + $0x20] sm:$0xff]
        %v3553 = vld [vmem:[%s3547 + $0x28] sm:$0xff]
        %v3554 = vld [vmem:[%s3547 + $0x30] sm:$0xff]
        %v3555 = vld [vmem:[%s3547 + $0x38] sm:$0xff]
        %v3556 = vld [vmem:[%s3547 + $0x40] sm:$0xff]
        %v3557 = vld [vmem:[%s3547 + $0x48] sm:$0xff]
        %v3558 = vld [vmem:[%s3547 + $0x50] sm:$0xff]
        %v3559 = vld [vmem:[%s3547 + $0x58] sm:$0xff]
        %v3560 = vld [vmem:[%s3547 + $0x60] sm:$0xff]
        %v3561 = vld [vmem:[%s3547 + $0x68] sm:$0xff]
        %v3562 = vld [vmem:[%s3547 + $0x70] sm:$0xff]
        %v3563 = vld [vmem:[%s3547 + $0x78] sm:$0xff]
        %v3564 = vld [vmem:[%s3547 + $0x80] sm:$0xff]
        %v3565 = vld [vmem:[%s3547 + $0x88] sm:$0xff]
        %v3566 = vld [vmem:[%s3547 + $0x90] sm:$0xff]
        %v3567 = vld [vmem:[%s3547 + $0x98] sm:$0xff]
        %v3568 = vld [vmem:[%s3547 + $0xa0] sm:$0xff]
        %v3569 = vld [vmem:[%s3547 + $0xa8] sm:$0xff]
        %v3570 = vld [vmem:[%s3547 + $0xb0] sm:$0xff]
        %v3571 = vld [vmem:[%s3547 + $0xb8] sm:$0xff]
        %v3572 = vld [vmem:[%s3547 + $0xc0] sm:$0xff]
        %v3573 = vld [vmem:[%s3547 + $0xc8] sm:$0xff]
        %v3574 = vld [vmem:[%s3547 + $0xd0] sm:$0xff]
        %v3575 = vld [vmem:[%s3547 + $0xd8] sm:$0xff]
        %v3576 = vld [vmem:[%s3547 + $0xe0] sm:$0xff]
        %v3577 = vld [vmem:[%s3547 + $0xe8] sm:$0xff]
        %v3578 = vld [vmem:[%s3547 + $0xf0] sm:$0xff]
        %v3579 = vld [vmem:[%s3547 + $0xf8] sm:$0xff]
        %3580 = vmatprep.subr.mxu0 0.0
        %3581 = vmatpush1.msra.mxu0 %v3563
        %3582 = vmatprep.subr.mxu0 0.0
        %3583 = vmatpush1.msra.mxu0 %v3562
        %3584 = vmatprep.subr.mxu0 0.0
        %3585 = vmatpush1.msra.mxu0 %v3561
        %3586 = vmatprep.subr.mxu0 0.0
        %3587 = vmatpush1.msra.mxu0 %v3560
        %3588 = vmatprep.subr.mxu0 0.0
        %3589 = vmatpush1.msra.mxu0 %v3559
        %3590 = vmatprep.subr.mxu0 0.0
        %3591 = vmatpush1.msra.mxu0 %v3558
        %3592 = vmatprep.subr.mxu0 0.0
        %3593 = vmatpush1.msra.mxu0 %v3557
        %3594 = vmatprep.subr.mxu0 0.0
        %3595 = vmatpush1.msra.mxu0 %v3556
        %3596 = vmatprep.subr.mxu0 0.0
        %3597 = vmatpush1.msra.mxu0 %v3555
        %3598 = vmatprep.subr.mxu0 0.0
        %3599 = vmatpush1.msra.mxu0 %v3554
        %3600 = vmatprep.subr.mxu0 0.0
        %3601 = vmatpush1.msra.mxu0 %v3553
        %3602 = vmatprep.subr.mxu0 0.0
        %3603 = vmatpush1.msra.mxu0 %v3552
        %3604 = vmatprep.subr.mxu0 0.0
        %3605 = vmatpush1.msra.mxu0 %v3551
        %3606 = vmatprep.subr.mxu0 0.0
        %3607 = vmatpush1.msra.mxu0 %v3550
        %3608 = vmatprep.subr.mxu0 0.0
        %3609 = vmatpush1.msra.mxu0 %v3549
        %3610 = vmatprep.subr.mxu0 0.0
        %3611 = vmatpush1.msra.mxu0 %v3548
        %3612 = vmatprep.subr.mxu0 0.0
        %3613 = vmatpush2.msra.mxu0 %v3579
        %3614 = vmatprep.subr.mxu0 0.0
        %3615 = vmatpush2.msra.mxu0 %v3578
        %3616 = vmatprep.subr.mxu0 0.0
        %3617 = vmatpush2.msra.mxu0 %v3577
        %3618 = vmatprep.subr.mxu0 0.0
        %3619 = vmatpush2.msra.mxu0 %v3576
        %3620 = vmatprep.subr.mxu0 0.0
        %3621 = vmatpush2.msra.mxu0 %v3575
        %3622 = vmatprep.subr.mxu0 0.0
        %3623 = vmatpush2.msra.mxu0 %v3574
        %3624 = vmatprep.subr.mxu0 0.0
        %3625 = vmatpush2.msra.mxu0 %v3573
        %3626 = vmatprep.subr.mxu0 0.0
        %3627 = vmatpush2.msra.mxu0 %v3572
        %3628 = vmatprep.subr.mxu0 0.0
        %3629 = vmatpush2.msra.mxu0 %v3571
        %3630 = vmatprep.subr.mxu0 0.0
        %3631 = vmatpush2.msra.mxu0 %v3570
        %3632 = vmatprep.subr.mxu0 0.0
        %3633 = vmatpush2.msra.mxu0 %v3569
        %3634 = vmatprep.subr.mxu0 0.0
        %3635 = vmatpush2.msra.mxu0 %v3568
        %3636 = vmatprep.subr.mxu0 0.0
        %3637 = vmatpush2.msra.mxu0 %v3567
        %3638 = vmatprep.subr.mxu0 0.0
        %3639 = vmatpush2.msra.mxu0 %v3566
        %3640 = vmatprep.subr.mxu0 0.0
        %3641 = vmatpush2.msra.mxu0 %v3565
        %3642 = vmatprep.subr.mxu0 0.0
        %3643 = vmatpush2.msra.mxu0 %v3564
        %3644 = vmatprep.mubr.f32.mxu0 %v2509
        %3645 = vmatmul.mubr.f32.gmra.mxu0 %v2508
        %v3646 = vpop.f32.mrf.mxu0
        %v3647 = vadd.f32 0.0, %v3646
        %v3648 = vpop.f32.mrf.mxu0
        %3649 = vdwg.mxu0
        %v3650 = vadd.f32 %v3546, %v3647
        %v3651 = vlaneseq
        %v3652 = vshrl.u32 %v3651, 7
        %v3653 = vsub.s32 1, %v3652
        %v3654 = vrot.slane %v666, %v3653
        %v3655 = vadd.f32 %v3650, %v3654
        %v3656 = vld [vmem:[%s9] sm:$0xff]
        %v3657 = vld [vmem:[%s9 + $0x8] sm:$0x1]
        %3658 = vxpose.xlu0.b32.start [1/16] %v755, 128
        %3659 = vxpose.xlu0.b32.cont [2/16] 0.0, 128
        %3660 = vxpose.xlu0.b32.cont [3/16] 0.0, 128
        %3661 = vxpose.xlu0.b32.cont [4/16] 0.0, 128
        %3662 = vxpose.xlu0.b32.cont [5/16] 0.0, 128
        %3663 = vxpose.xlu0.b32.cont [6/16] 0.0, 128
        %3664 = vxpose.xlu0.b32.cont [7/16] 0.0, 128
        %3665 = vxpose.xlu0.b32.cont [8/16] 0.0, 128
        %3666 = vxpose.xlu0.b32.cont [9/16] 0.0, 128
        %3667 = vxpose.xlu0.b32.cont [10/16] 0.0, 128
        %3668 = vxpose.xlu0.b32.cont [11/16] 0.0, 128
        %3669 = vxpose.xlu0.b32.cont [12/16] 0.0, 128
        %3670 = vxpose.xlu0.b32.cont [13/16] 0.0, 128
        %3671 = vxpose.xlu0.b32.cont [14/16] 0.0, 128
        %3672 = vxpose.xlu0.b32.cont [15/16] 0.0, 128
        %3673 = vxpose.xlu0.b32.end [16/16] 0.0, 128
        %v3674 = vpop.trf.xlu0
        %v3675 = vpop.trf.xlu0
        %v3676 = vpop.trf.xlu0
        %v3677 = vpop.trf.xlu0
        %v3678 = vpop.trf.xlu0
        %v3679 = vpop.trf.xlu0
        %v3680 = vpop.trf.xlu0
        %v3681 = vpop.trf.xlu0
        %v3682 = vpop.trf.xlu0
        %v3683 = vpop.trf.xlu0
        %v3684 = vpop.trf.xlu0
        %v3685 = vpop.trf.xlu0
        %v3686 = vpop.trf.xlu0
        %v3687 = vpop.trf.xlu0
        %v3688 = vpop.trf.xlu0
        %v3689 = vpop.trf.xlu0
        %3690 = vxpose.xlu0.b32.start [1/16] %v3655, 128
        %3691 = vxpose.xlu0.b32.cont [2/16] 0.0, 128
        %3692 = vxpose.xlu0.b32.cont [3/16] 0.0, 128
        %3693 = vxpose.xlu0.b32.cont [4/16] 0.0, 128
        %3694 = vxpose.xlu0.b32.cont [5/16] 0.0, 128
        %3695 = vxpose.xlu0.b32.cont [6/16] 0.0, 128
        %3696 = vxpose.xlu0.b32.cont [7/16] 0.0, 128
        %3697 = vxpose.xlu0.b32.cont [8/16] 0.0, 128
        %3698 = vxpose.xlu0.b32.cont [9/16] 0.0, 128
        %3699 = vxpose.xlu0.b32.cont [10/16] 0.0, 128
        %3700 = vxpose.xlu0.b32.cont [11/16] 0.0, 128
        %3701 = vxpose.xlu0.b32.cont [12/16] 0.0, 128
        %3702 = vxpose.xlu0.b32.cont [13/16] 0.0, 128
        %3703 = vxpose.xlu0.b32.cont [14/16] 0.0, 128
        %3704 = vxpose.xlu0.b32.cont [15/16] 0.0, 128
        %3705 = vxpose.xlu0.b32.end [16/16] 0.0, 128
        %v3706 = vpop.trf.xlu0
        %v3707 = vpop.trf.xlu0
        %v3708 = vpop.trf.xlu0
        %v3709 = vpop.trf.xlu0
        %v3710 = vpop.trf.xlu0
        %v3711 = vpop.trf.xlu0
        %v3712 = vpop.trf.xlu0
        %v3713 = vpop.trf.xlu0
        %v3714 = vpop.trf.xlu0
        %v3715 = vpop.trf.xlu0
        %v3716 = vpop.trf.xlu0
        %v3717 = vpop.trf.xlu0
        %v3718 = vpop.trf.xlu0
        %v3719 = vpop.trf.xlu0
        %v3720 = vpop.trf.xlu0
        %v3721 = vpop.trf.xlu0
        %v3722 = vld [vmem:[%s8] sm:$0xff]
        %v3723 = vlaneseq
        %v3724 = vshrl.u32 %v3723, 7
        %v3725 = vsub.s32 0, %v3724
        %v3726 = vrot.slane %v3656, %v3725
        %vm3727 = vcmask 64512
        %v3729 = vsel %vm3727, %v3674, 0
        %v3732 = vsel %vm3727, %v3675, 0
        %v3735 = vsel %vm3727, %v3676, 0
        %v3738 = vsel %vm3727, %v3677, 0
        %3740 = vmatprep.subr.mxu0 0.0
        %3741 = vmatpush1.msra.mxu0 0.0
        %3742 = vmatprep.subr.mxu0 0.0
        %3743 = vmatpush1.msra.mxu0 0.0
        %3744 = vmatprep.subr.mxu0 0.0
        %3745 = vmatpush1.msra.mxu0 0.0
        %3746 = vmatprep.subr.mxu0 0.0
        %3747 = vmatpush1.msra.mxu0 0.0
        %3748 = vmatprep.subr.mxu0 0.0
        %3749 = vmatpush1.msra.mxu0 0.0
        %3750 = vmatprep.subr.mxu0 0.0
        %3751 = vmatpush1.msra.mxu0 0.0
        %3752 = vmatprep.subr.mxu0 0.0
        %3753 = vmatpush1.msra.mxu0 0.0
        %3754 = vmatprep.subr.mxu0 0.0
        %3755 = vmatpush1.msra.mxu0 0.0
        %3756 = vmatprep.subr.mxu0 0.0
        %3757 = vmatpush1.msra.mxu0 0.0
        %3758 = vmatprep.subr.mxu0 0.0
        %3759 = vmatpush1.msra.mxu0 0.0
        %3760 = vmatprep.subr.mxu0 0.0
        %3761 = vmatpush1.msra.mxu0 0.0
        %3762 = vmatprep.subr.mxu0 0.0
        %3763 = vmatpush1.msra.mxu0 0.0
        %3764 = vmatprep.subr.mxu0 0.0
        %3765 = vmatpush1.msra.mxu0 0.0
        %3766 = vmatprep.subr.mxu0 0.0
        %3767 = vmatpush1.msra.mxu0 0.0
        %3768 = vmatprep.subr.mxu0 0.0
        %3769 = vmatpush1.msra.mxu0 0.0
        %3770 = vmatprep.subr.mxu0 0.0
        %3771 = vmatpush1.msra.mxu0 %v3722
        %3772 = vmatprep.subr.mxu0 0.0
        %3773 = vmatpush2.msra.mxu0 0.0
        %3774 = vmatprep.subr.mxu0 0.0
        %3775 = vmatpush2.msra.mxu0 0.0
        %3776 = vmatprep.subr.mxu0 0.0
        %3777 = vmatpush2.msra.mxu0 0.0
        %3778 = vmatprep.subr.mxu0 0.0
        %3779 = vmatpush2.msra.mxu0 0.0
        %3780 = vmatprep.subr.mxu0 0.0
        %3781 = vmatpush2.msra.mxu0 0.0
        %3782 = vmatprep.subr.mxu0 0.0
        %3783 = vmatpush2.msra.mxu0 0.0
        %3784 = vmatprep.subr.mxu0 0.0
        %3785 = vmatpush2.msra.mxu0 0.0
        %3786 = vmatprep.subr.mxu0 0.0
        %3787 = vmatpush2.msra.mxu0 0.0
        %3788 = vmatprep.subr.mxu0 0.0
        %3789 = vmatpush2.msra.mxu0 0.0
        %3790 = vmatprep.subr.mxu0 0.0
        %3791 = vmatpush2.msra.mxu0 0.0
        %3792 = vmatprep.subr.mxu0 0.0
        %3793 = vmatpush2.msra.mxu0 0.0
        %3794 = vmatprep.subr.mxu0 0.0
        %3795 = vmatpush2.msra.mxu0 0.0
        %3796 = vmatprep.subr.mxu0 0.0
        %3797 = vmatpush2.msra.mxu0 0.0
        %3798 = vmatprep.subr.mxu0 0.0
        %3799 = vmatpush2.msra.mxu0 0.0
        %3800 = vmatprep.subr.mxu0 0.0
        %3801 = vmatpush2.msra.mxu0 0.0
        %3802 = vmatprep.subr.mxu0 0.0
        %3803 = vmatpush2.msra.mxu0 0.0
        %3804 = vmatprep.mubr.f32.mxu0 0.0
        %3805 = vmatmul.mubr.f32.gmra.mxu0 %v3729
        %v3806 = vpop.f32.mrf.mxu0
        %v3807 = vadd.f32 %v3726, %v3806
        %v3808 = vpop.f32.mrf.mxu0
        %3809 = vmatprep.mubr.f32.mxu0 0.0
        %3810 = vmatmul.mubr.f32.gmra.mxu0 %v3732
        %v3811 = vpop.f32.mrf.mxu0
        %v3812 = vadd.f32 %v3726, %v3811
        %v3813 = vpop.f32.mrf.mxu0
        %3814 = vmatprep.mubr.f32.mxu0 0.0
        %3815 = vmatmul.mubr.f32.gmra.mxu0 %v3735
        %v3816 = vpop.f32.mrf.mxu0
        %v3817 = vadd.f32 %v3726, %v3816
        %v3818 = vpop.f32.mrf.mxu0
        %3819 = vmatprep.mubr.f32.mxu0 0.0
        %3820 = vmatmul.mubr.f32.gmra.mxu0 %v3738
        %v3821 = vpop.f32.mrf.mxu0
        %v3822 = vadd.f32 %v3726, %v3821
        %v3823 = vpop.f32.mrf.mxu0
        %3824 = vdwg.mxu0
        %s3825 = scalar_lea.vmem %s8, 8
        %v3826 = vld [vmem:[%s3825] sm:$0xff]
        %v3827 = vlaneseq
        %v3828 = vshrl.u32 %v3827, 7
        %v3829 = vsub.s32 1, %v3828
        %v3830 = vrot.slane %v3656, %v3829
        %v3832 = vsel %vm3727, %v3706, 0
        %v3835 = vsel %vm3727, %v3707, 0
        %v3838 = vsel %vm3727, %v3708, 0
        %v3841 = vsel %vm3727, %v3709, 0
        %3843 = vmatprep.subr.mxu0 0.0
        %3844 = vmatpush1.msra.mxu0 0.0
        %3845 = vmatprep.subr.mxu0 0.0
        %3846 = vmatpush1.msra.mxu0 0.0
        %3847 = vmatprep.subr.mxu0 0.0
        %3848 = vmatpush1.msra.mxu0 0.0
        %3849 = vmatprep.subr.mxu0 0.0
        %3850 = vmatpush1.msra.mxu0 0.0
        %3851 = vmatprep.subr.mxu0 0.0
        %3852 = vmatpush1.msra.mxu0 0.0
        %3853 = vmatprep.subr.mxu0 0.0
        %3854 = vmatpush1.msra.mxu0 0.0
        %3855 = vmatprep.subr.mxu0 0.0
        %3856 = vmatpush1.msra.mxu0 0.0
        %3857 = vmatprep.subr.mxu0 0.0
        %3858 = vmatpush1.msra.mxu0 0.0
        %3859 = vmatprep.subr.mxu0 0.0
        %3860 = vmatpush1.msra.mxu0 0.0
        %3861 = vmatprep.subr.mxu0 0.0
        %3862 = vmatpush1.msra.mxu0 0.0
        %3863 = vmatprep.subr.mxu0 0.0
        %3864 = vmatpush1.msra.mxu0 0.0
        %3865 = vmatprep.subr.mxu0 0.0
        %3866 = vmatpush1.msra.mxu0 0.0
        %3867 = vmatprep.subr.mxu0 0.0
        %3868 = vmatpush1.msra.mxu0 0.0
        %3869 = vmatprep.subr.mxu0 0.0
        %3870 = vmatpush1.msra.mxu0 0.0
        %3871 = vmatprep.subr.mxu0 0.0
        %3872 = vmatpush1.msra.mxu0 0.0
        %3873 = vmatprep.subr.mxu0 0.0
        %3874 = vmatpush1.msra.mxu0 %v3826
        %3875 = vmatprep.subr.mxu0 0.0
        %3876 = vmatpush2.msra.mxu0 0.0
        %3877 = vmatprep.subr.mxu0 0.0
        %3878 = vmatpush2.msra.mxu0 0.0
        %3879 = vmatprep.subr.mxu0 0.0
        %3880 = vmatpush2.msra.mxu0 0.0
        %3881 = vmatprep.subr.mxu0 0.0
        %3882 = vmatpush2.msra.mxu0 0.0
        %3883 = vmatprep.subr.mxu0 0.0
        %3884 = vmatpush2.msra.mxu0 0.0
        %3885 = vmatprep.subr.mxu0 0.0
        %3886 = vmatpush2.msra.mxu0 0.0
        %3887 = vmatprep.subr.mxu0 0.0
        %3888 = vmatpush2.msra.mxu0 0.0
        %3889 = vmatprep.subr.mxu0 0.0
        %3890 = vmatpush2.msra.mxu0 0.0
        %3891 = vmatprep.subr.mxu0 0.0
        %3892 = vmatpush2.msra.mxu0 0.0
        %3893 = vmatprep.subr.mxu0 0.0
        %3894 = vmatpush2.msra.mxu0 0.0
        %3895 = vmatprep.subr.mxu0 0.0
        %3896 = vmatpush2.msra.mxu0 0.0
        %3897 = vmatprep.subr.mxu0 0.0
        %3898 = vmatpush2.msra.mxu0 0.0
        %3899 = vmatprep.subr.mxu0 0.0
        %3900 = vmatpush2.msra.mxu0 0.0
        %3901 = vmatprep.subr.mxu0 0.0
        %3902 = vmatpush2.msra.mxu0 0.0
        %3903 = vmatprep.subr.mxu0 0.0
        %3904 = vmatpush2.msra.mxu0 0.0
        %3905 = vmatprep.subr.mxu0 0.0
        %3906 = vmatpush2.msra.mxu0 0.0
        %3907 = vmatprep.mubr.f32.mxu0 0.0
        %3908 = vmatmul.mubr.f32.gmra.mxu0 %v3832
        %v3909 = vpop.f32.mrf.mxu0
        %v3910 = vadd.f32 %v3830, %v3909
        %v3911 = vpop.f32.mrf.mxu0
        %3912 = vmatprep.mubr.f32.mxu0 0.0
        %3913 = vmatmul.mubr.f32.gmra.mxu0 %v3835
        %v3914 = vpop.f32.mrf.mxu0
        %v3915 = vadd.f32 %v3830, %v3914
        %v3916 = vpop.f32.mrf.mxu0
        %3917 = vmatprep.mubr.f32.mxu0 0.0
        %3918 = vmatmul.mubr.f32.gmra.mxu0 %v3838
        %v3919 = vpop.f32.mrf.mxu0
        %v3920 = vadd.f32 %v3830, %v3919
        %v3921 = vpop.f32.mrf.mxu0
        %3922 = vmatprep.mubr.f32.mxu0 0.0
        %3923 = vmatmul.mubr.f32.gmra.mxu0 %v3841
        %v3924 = vpop.f32.mrf.mxu0
        %v3925 = vadd.f32 %v3830, %v3924
        %v3926 = vpop.f32.mrf.mxu0
        %3927 = vdwg.mxu0
        %s3928 = scalar_lea.vmem %s8, 16
        %v3929 = vld [vmem:[%s3928] sm:$0xff]
        %v3930 = vlaneseq
        %v3931 = vshrl.u32 %v3930, 7
        %v3932 = vsub.s32 2, %v3931
        %v3933 = vrot.slane %v3656, %v3932
        %3934 = vmatprep.subr.mxu0 0.0
        %3935 = vmatpush1.msra.mxu0 0.0
        %3936 = vmatprep.subr.mxu0 0.0
        %3937 = vmatpush1.msra.mxu0 0.0
        %3938 = vmatprep.subr.mxu0 0.0
        %3939 = vmatpush1.msra.mxu0 0.0
        %3940 = vmatprep.subr.mxu0 0.0
        %3941 = vmatpush1.msra.mxu0 0.0
        %3942 = vmatprep.subr.mxu0 0.0
        %3943 = vmatpush1.msra.mxu0 0.0
        %3944 = vmatprep.subr.mxu0 0.0
        %3945 = vmatpush1.msra.mxu0 0.0
        %3946 = vmatprep.subr.mxu0 0.0
        %3947 = vmatpush1.msra.mxu0 0.0
        %3948 = vmatprep.subr.mxu0 0.0
        %3949 = vmatpush1.msra.mxu0 0.0
        %3950 = vmatprep.subr.mxu0 0.0
        %3951 = vmatpush1.msra.mxu0 0.0
        %3952 = vmatprep.subr.mxu0 0.0
        %3953 = vmatpush1.msra.mxu0 0.0
        %3954 = vmatprep.subr.mxu0 0.0
        %3955 = vmatpush1.msra.mxu0 0.0
        %3956 = vmatprep.subr.mxu0 0.0
        %3957 = vmatpush1.msra.mxu0 0.0
        %3958 = vmatprep.subr.mxu0 0.0
        %3959 = vmatpush1.msra.mxu0 0.0
        %3960 = vmatprep.subr.mxu0 0.0
        %3961 = vmatpush1.msra.mxu0 0.0
        %3962 = vmatprep.subr.mxu0 0.0
        %3963 = vmatpush1.msra.mxu0 0.0
        %3964 = vmatprep.subr.mxu0 0.0
        %3965 = vmatpush1.msra.mxu0 %v3929
        %3966 = vmatprep.subr.mxu0 0.0
        %3967 = vmatpush2.msra.mxu0 0.0
        %3968 = vmatprep.subr.mxu0 0.0
        %3969 = vmatpush2.msra.mxu0 0.0
        %3970 = vmatprep.subr.mxu0 0.0
        %3971 = vmatpush2.msra.mxu0 0.0
        %3972 = vmatprep.subr.mxu0 0.0
        %3973 = vmatpush2.msra.mxu0 0.0
        %3974 = vmatprep.subr.mxu0 0.0
        %3975 = vmatpush2.msra.mxu0 0.0
        %3976 = vmatprep.subr.mxu0 0.0
        %3977 = vmatpush2.msra.mxu0 0.0
        %3978 = vmatprep.subr.mxu0 0.0
        %3979 = vmatpush2.msra.mxu0 0.0
        %3980 = vmatprep.subr.mxu0 0.0
        %3981 = vmatpush2.msra.mxu0 0.0
        %3982 = vmatprep.subr.mxu0 0.0
        %3983 = vmatpush2.msra.mxu0 0.0
        %3984 = vmatprep.subr.mxu0 0.0
        %3985 = vmatpush2.msra.mxu0 0.0
        %3986 = vmatprep.subr.mxu0 0.0
        %3987 = vmatpush2.msra.mxu0 0.0
        %3988 = vmatprep.subr.mxu0 0.0
        %3989 = vmatpush2.msra.mxu0 0.0
        %3990 = vmatprep.subr.mxu0 0.0
        %3991 = vmatpush2.msra.mxu0 0.0
        %3992 = vmatprep.subr.mxu0 0.0
        %3993 = vmatpush2.msra.mxu0 0.0
        %3994 = vmatprep.subr.mxu0 0.0
        %3995 = vmatpush2.msra.mxu0 0.0
        %3996 = vmatprep.subr.mxu0 0.0
        %3997 = vmatpush2.msra.mxu0 0.0
        %3998 = vmatprep.mubr.f32.mxu0 0.0
        %3999 = vmatmul.mubr.f32.gmra.mxu0 %v3832
        %v4000 = vpop.f32.mrf.mxu0
        %v4001 = vadd.f32 %v3933, %v4000
        %v4002 = vpop.f32.mrf.mxu0
        %4003 = vmatprep.mubr.f32.mxu0 0.0
        %4004 = vmatmul.mubr.f32.gmra.mxu0 %v3835
        %v4005 = vpop.f32.mrf.mxu0
        %v4006 = vadd.f32 %v3933, %v4005
        %v4007 = vpop.f32.mrf.mxu0
        %4008 = vmatprep.mubr.f32.mxu0 0.0
        %4009 = vmatmul.mubr.f32.gmra.mxu0 %v3838
        %v4010 = vpop.f32.mrf.mxu0
        %v4011 = vadd.f32 %v3933, %v4010
        %v4012 = vpop.f32.mrf.mxu0
        %4013 = vmatprep.mubr.f32.mxu0 0.0
        %4014 = vmatmul.mubr.f32.gmra.mxu0 %v3841
        %v4015 = vpop.f32.mrf.mxu0
        %v4016 = vadd.f32 %v3933, %v4015
        %v4017 = vpop.f32.mrf.mxu0
        %4018 = vdwg.mxu0
        %v4020 = vsel %vm3727, %v3807, 0
        %v4023 = vsel %vm3727, %v3812, 0
        %v4026 = vsel %vm3727, %v3817, 0
        %v4029 = vsel %vm3727, %v3822, 0
        %v4032 = vsel %vm3727, %v3910, 0
        %v4035 = vsel %vm3727, %v3915, 0
        %v4038 = vsel %vm3727, %v3920, 0
        %v4041 = vsel %vm3727, %v3925, 0
        %4043 = vmatprep.subr.mxu0 0.0
        %4044 = vmatpush1.xpose.msra.mxu0 0.0
        %4045 = vmatprep.subr.mxu0 0.0
        %4046 = vmatpush1.xpose.msra.mxu0 0.0
        %4047 = vmatprep.subr.mxu0 0.0
        %4048 = vmatpush1.xpose.msra.mxu0 0.0
        %4049 = vmatprep.subr.mxu0 0.0
        %4050 = vmatpush1.xpose.msra.mxu0 0.0
        %4051 = vmatprep.subr.mxu0 0.0
        %4052 = vmatpush1.xpose.msra.mxu0 0.0
        %4053 = vmatprep.subr.mxu0 0.0
        %4054 = vmatpush1.xpose.msra.mxu0 0.0
        %4055 = vmatprep.subr.mxu0 0.0
        %4056 = vmatpush1.xpose.msra.mxu0 0.0
        %4057 = vmatprep.subr.mxu0 0.0
        %4058 = vmatpush1.xpose.msra.mxu0 0.0
        %4059 = vmatprep.subr.mxu0 0.0
        %4060 = vmatpush1.xpose.msra.mxu0 0.0
        %4061 = vmatprep.subr.mxu0 0.0
        %4062 = vmatpush1.xpose.msra.mxu0 0.0
        %4063 = vmatprep.subr.mxu0 0.0
        %4064 = vmatpush1.xpose.msra.mxu0 0.0
        %4065 = vmatprep.subr.mxu0 0.0
        %4066 = vmatpush1.xpose.msra.mxu0 0.0
        %4067 = vmatprep.subr.mxu0 0.0
        %4068 = vmatpush1.xpose.msra.mxu0 %v4041
        %4069 = vmatprep.subr.mxu0 0.0
        %4070 = vmatpush1.xpose.msra.mxu0 %v4038
        %4071 = vmatprep.subr.mxu0 0.0
        %4072 = vmatpush1.xpose.msra.mxu0 %v4035
        %4073 = vmatprep.subr.mxu0 0.0
        %4074 = vmatpush1.xpose.msra.mxu0 %v4032
        %4075 = vmatprep.subr.mxu0 0.0
        %4076 = vmatpush2.xpose.msra.mxu0 0.0
        %4077 = vmatprep.subr.mxu0 0.0
        %4078 = vmatpush2.xpose.msra.mxu0 0.0
        %4079 = vmatprep.subr.mxu0 0.0
        %4080 = vmatpush2.xpose.msra.mxu0 0.0
        %4081 = vmatprep.subr.mxu0 0.0
        %4082 = vmatpush2.xpose.msra.mxu0 0.0
        %4083 = vmatprep.subr.mxu0 0.0
        %4084 = vmatpush2.xpose.msra.mxu0 0.0
        %4085 = vmatprep.subr.mxu0 0.0
        %4086 = vmatpush2.xpose.msra.mxu0 0.0
        %4087 = vmatprep.subr.mxu0 0.0
        %4088 = vmatpush2.xpose.msra.mxu0 0.0
        %4089 = vmatprep.subr.mxu0 0.0
        %4090 = vmatpush2.xpose.msra.mxu0 0.0
        %4091 = vmatprep.subr.mxu0 0.0
        %4092 = vmatpush2.xpose.msra.mxu0 0.0
        %4093 = vmatprep.subr.mxu0 0.0
        %4094 = vmatpush2.xpose.msra.mxu0 0.0
        %4095 = vmatprep.subr.mxu0 0.0
        %4096 = vmatpush2.xpose.msra.mxu0 0.0
        %4097 = vmatprep.subr.mxu0 0.0
        %4098 = vmatpush2.xpose.msra.mxu0 0.0
        %4099 = vmatprep.subr.mxu0 0.0
        %4100 = vmatpush2.xpose.msra.mxu0 0.0
        %4101 = vmatprep.subr.mxu0 0.0
        %4102 = vmatpush2.xpose.msra.mxu0 0.0
        %4103 = vmatprep.subr.mxu0 0.0
        %4104 = vmatpush2.xpose.msra.mxu0 0.0
        %4105 = vmatprep.subr.mxu0 0.0
        %4106 = vmatpush2.xpose.msra.mxu0 0.0
        %4107 = vmatprep.mubr.f32.mxu0 0.0
        %4108 = vmatmul.mubr.f32.gmra.mxu0 %v4020
        %v4109 = vpop.f32.mrf.mxu0
        %v4110 = vadd.f32 0.0, %v4109
        %v4111 = vpop.f32.mrf.mxu0
        %4112 = vmatprep.mubr.f32.mxu0 0.0
        %4113 = vmatmul.mubr.f32.gmra.mxu0 %v4023
        %v4114 = vpop.f32.mrf.mxu0
        %v4115 = vadd.f32 0.0, %v4114
        %v4116 = vpop.f32.mrf.mxu0
        %4117 = vmatprep.mubr.f32.mxu0 0.0
        %4118 = vmatmul.mubr.f32.gmra.mxu0 %v4026
        %v4119 = vpop.f32.mrf.mxu0
        %v4120 = vadd.f32 0.0, %v4119
        %v4121 = vpop.f32.mrf.mxu0
        %4122 = vmatprep.mubr.f32.mxu0 0.0
        %4123 = vmatmul.mubr.f32.gmra.mxu0 %v4029
        %v4124 = vpop.f32.mrf.mxu0
        %v4125 = vadd.f32 0.0, %v4124
        %v4126 = vpop.f32.mrf.mxu0
        %4127 = vdwg.mxu0
        %v4128 = vmul.f32 %v4110, 0.35355338
        %v4129 = vmul.f32 %v4115, 0.35355338
        %v4130 = vmul.f32 %v4120, 0.35355338
        %v4131 = vmul.f32 %v4125, 0.35355338
        %vm4132 = vcmask 261120
        %v4133 = vsel %vm4132, %v4128, -inf
        %4134 = vmax.xlane.f32.xlu0 %v4133
        %v4135 = vpop.xlane.xlu0 %4134
        %v4136 = vsel %vm4132, %v4129, -inf
        %4137 = vmax.xlane.f32.xlu0 %v4136
        %v4138 = vpop.xlane.xlu0 %4137
        %v4139 = vsel %vm4132, %v4130, -inf
        %4140 = vmax.xlane.f32.xlu0 %v4139
        %v4141 = vpop.xlane.xlu0 %4140
        %v4142 = vsel %vm4132, %v4131, -inf
        %4143 = vmax.xlane.f32.xlu0 %v4142
        %v4144 = vpop.xlane.xlu0 %4143
        %v4145 = vsub.f32 %v4128, %v4135
        %v4146 = vsub.f32 %v4129, %v4138
        %v4147 = vsub.f32 %v4130, %v4141
        %v4148 = vsub.f32 %v4131, %v4144
        %v4149 = vmul.f32 %v4145, 1.442695
        %v4150 = vpow.pop %v4149
        %v4151 = vmul.f32 %v4146, 1.442695
        %v4152 = vpow.pop %v4151
        %v4153 = vmul.f32 %v4147, 1.442695
        %v4154 = vpow.pop %v4153
        %v4155 = vmul.f32 %v4148, 1.442695
        %v4156 = vpow.pop %v4155
        %v4157 = vsel %vm4132, %v4150, 0.0
        %4158 = vadd.xlane.f32.xlu0 %v4157
        %v4159 = vpop.xlane.xlu0 %4158
        %v4160 = vsel %vm4132, %v4152, 0.0
        %4161 = vadd.xlane.f32.xlu0 %v4160
        %v4162 = vpop.xlane.xlu0 %4161
        %v4163 = vsel %vm4132, %v4154, 0.0
        %4164 = vadd.xlane.f32.xlu0 %v4163
        %v4165 = vpop.xlane.xlu0 %4164
        %v4166 = vsel %vm4132, %v4156, 0.0
        %4167 = vadd.xlane.f32.xlu0 %v4166
        %v4168 = vpop.xlane.xlu0 %4167
        %v4169 = vrcp.pop %v4159
        %v4170 = vmul.f32 %v4150, %v4169
        %v4171 = vrcp.pop %v4162
        %v4172 = vmul.f32 %v4152, %v4171
        %v4173 = vrcp.pop %v4165
        %v4174 = vmul.f32 %v4154, %v4173
        %v4175 = vrcp.pop %v4168
        %v4176 = vmul.f32 %v4156, %v4175
        %v4178 = vsel %vm4132, %v4170, 0
        %v4181 = vsel %vm4132, %v4172, 0
        %v4184 = vsel %vm4132, %v4174, 0
        %v4187 = vsel %vm4132, %v4176, 0
        %4189 = vmatprep.subr.mxu0 0.0
        %4190 = vmatpush1.msra.mxu0 0.0
        %4191 = vmatprep.subr.mxu0 0.0
        %4192 = vmatpush1.msra.mxu0 0.0
        %4193 = vmatprep.subr.mxu0 0.0
        %4194 = vmatpush1.msra.mxu0 0.0
        %4195 = vmatprep.subr.mxu0 0.0
        %4196 = vmatpush1.msra.mxu0 0.0
        %4197 = vmatprep.subr.mxu0 0.0
        %4198 = vmatpush1.msra.mxu0 0.0
        %4199 = vmatprep.subr.mxu0 0.0
        %4200 = vmatpush1.msra.mxu0 0.0
        %4201 = vmatprep.subr.mxu0 0.0
        %4202 = vmatpush1.msra.mxu0 0.0
        %4203 = vmatprep.subr.mxu0 0.0
        %4204 = vmatpush1.msra.mxu0 0.0
        %4205 = vmatprep.subr.mxu0 0.0
        %4206 = vmatpush1.msra.mxu0 0.0
        %4207 = vmatprep.subr.mxu0 0.0
        %4208 = vmatpush1.msra.mxu0 0.0
        %4209 = vmatprep.subr.mxu0 0.0
        %4210 = vmatpush1.msra.mxu0 0.0
        %4211 = vmatprep.subr.mxu0 0.0
        %4212 = vmatpush1.msra.mxu0 0.0
        %4213 = vmatprep.subr.mxu0 0.0
        %4214 = vmatpush1.msra.mxu0 %v4016
        %4215 = vmatprep.subr.mxu0 0.0
        %4216 = vmatpush1.msra.mxu0 %v4011
        %4217 = vmatprep.subr.mxu0 0.0
        %4218 = vmatpush1.msra.mxu0 %v4006
        %4219 = vmatprep.subr.mxu0 0.0
        %4220 = vmatpush1.msra.mxu0 %v4001
        %4221 = vmatprep.subr.mxu0 0.0
        %4222 = vmatpush2.msra.mxu0 0.0
        %4223 = vmatprep.subr.mxu0 0.0
        %4224 = vmatpush2.msra.mxu0 0.0
        %4225 = vmatprep.subr.mxu0 0.0
        %4226 = vmatpush2.msra.mxu0 0.0
        %4227 = vmatprep.subr.mxu0 0.0
        %4228 = vmatpush2.msra.mxu0 0.0
        %4229 = vmatprep.subr.mxu0 0.0
        %4230 = vmatpush2.msra.mxu0 0.0
        %4231 = vmatprep.subr.mxu0 0.0
        %4232 = vmatpush2.msra.mxu0 0.0
        %4233 = vmatprep.subr.mxu0 0.0
        %4234 = vmatpush2.msra.mxu0 0.0
        %4235 = vmatprep.subr.mxu0 0.0
        %4236 = vmatpush2.msra.mxu0 0.0
        %4237 = vmatprep.subr.mxu0 0.0
        %4238 = vmatpush2.msra.mxu0 0.0
        %4239 = vmatprep.subr.mxu0 0.0
        %4240 = vmatpush2.msra.mxu0 0.0
        %4241 = vmatprep.subr.mxu0 0.0
        %4242 = vmatpush2.msra.mxu0 0.0
        %4243 = vmatprep.subr.mxu0 0.0
        %4244 = vmatpush2.msra.mxu0 0.0
        %4245 = vmatprep.subr.mxu0 0.0
        %4246 = vmatpush2.msra.mxu0 0.0
        %4247 = vmatprep.subr.mxu0 0.0
        %4248 = vmatpush2.msra.mxu0 0.0
        %4249 = vmatprep.subr.mxu0 0.0
        %4250 = vmatpush2.msra.mxu0 0.0
        %4251 = vmatprep.subr.mxu0 0.0
        %4252 = vmatpush2.msra.mxu0 0.0
        %4253 = vmatprep.mubr.f32.mxu0 0.0
        %4254 = vmatmul.mubr.f32.gmra.mxu0 %v4178
        %v4255 = vpop.f32.mrf.mxu0
        %v4256 = vadd.f32 0.0, %v4255
        %v4257 = vpop.f32.mrf.mxu0
        %4258 = vmatprep.mubr.f32.mxu0 0.0
        %4259 = vmatmul.mubr.f32.gmra.mxu0 %v4181
        %v4260 = vpop.f32.mrf.mxu0
        %v4261 = vadd.f32 0.0, %v4260
        %v4262 = vpop.f32.mrf.mxu0
        %4263 = vmatprep.mubr.f32.mxu0 0.0
        %4264 = vmatmul.mubr.f32.gmra.mxu0 %v4184
        %v4265 = vpop.f32.mrf.mxu0
        %v4266 = vadd.f32 0.0, %v4265
        %v4267 = vpop.f32.mrf.mxu0
        %4268 = vmatprep.mubr.f32.mxu0 0.0
        %4269 = vmatmul.mubr.f32.gmra.mxu0 %v4187
        %v4270 = vpop.f32.mrf.mxu0
        %v4271 = vadd.f32 0.0, %v4270
        %v4272 = vpop.f32.mrf.mxu0
        %4273 = vdwg.mxu0
        %s4274 = scalar_lea.vmem %s8, 24
        %v4275 = vld [vmem:[%s4274] sm:$0xff]
        %v4276 = vlaneseq
        %v4277 = vshrl.u32 %v4276, 7
        %v4278 = vsub.s32 3, %v4277
        %v4279 = vrot.slane %v3656, %v4278
        %v4281 = vsel %vm3727, %v4256, 0
        %v4284 = vsel %vm3727, %v4261, 0
        %v4287 = vsel %vm3727, %v4266, 0
        %v4290 = vsel %vm3727, %v4271, 0
        %4292 = vmatprep.subr.mxu0 0.0
        %4293 = vmatpush1.msra.mxu0 0.0
        %4294 = vmatprep.subr.mxu0 0.0
        %4295 = vmatpush1.msra.mxu0 0.0
        %4296 = vmatprep.subr.mxu0 0.0
        %4297 = vmatpush1.msra.mxu0 0.0
        %4298 = vmatprep.subr.mxu0 0.0
        %4299 = vmatpush1.msra.mxu0 0.0
        %4300 = vmatprep.subr.mxu0 0.0
        %4301 = vmatpush1.msra.mxu0 0.0
        %4302 = vmatprep.subr.mxu0 0.0
        %4303 = vmatpush1.msra.mxu0 0.0
        %4304 = vmatprep.subr.mxu0 0.0
        %4305 = vmatpush1.msra.mxu0 0.0
        %4306 = vmatprep.subr.mxu0 0.0
        %4307 = vmatpush1.msra.mxu0 0.0
        %4308 = vmatprep.subr.mxu0 0.0
        %4309 = vmatpush1.msra.mxu0 0.0
        %4310 = vmatprep.subr.mxu0 0.0
        %4311 = vmatpush1.msra.mxu0 0.0
        %4312 = vmatprep.subr.mxu0 0.0
        %4313 = vmatpush1.msra.mxu0 0.0
        %4314 = vmatprep.subr.mxu0 0.0
        %4315 = vmatpush1.msra.mxu0 0.0
        %4316 = vmatprep.subr.mxu0 0.0
        %4317 = vmatpush1.msra.mxu0 0.0
        %4318 = vmatprep.subr.mxu0 0.0
        %4319 = vmatpush1.msra.mxu0 0.0
        %4320 = vmatprep.subr.mxu0 0.0
        %4321 = vmatpush1.msra.mxu0 0.0
        %4322 = vmatprep.subr.mxu0 0.0
        %4323 = vmatpush1.msra.mxu0 %v4275
        %4324 = vmatprep.subr.mxu0 0.0
        %4325 = vmatpush2.msra.mxu0 0.0
        %4326 = vmatprep.subr.mxu0 0.0
        %4327 = vmatpush2.msra.mxu0 0.0
        %4328 = vmatprep.subr.mxu0 0.0
        %4329 = vmatpush2.msra.mxu0 0.0
        %4330 = vmatprep.subr.mxu0 0.0
        %4331 = vmatpush2.msra.mxu0 0.0
        %4332 = vmatprep.subr.mxu0 0.0
        %4333 = vmatpush2.msra.mxu0 0.0
        %4334 = vmatprep.subr.mxu0 0.0
        %4335 = vmatpush2.msra.mxu0 0.0
        %4336 = vmatprep.subr.mxu0 0.0
        %4337 = vmatpush2.msra.mxu0 0.0
        %4338 = vmatprep.subr.mxu0 0.0
        %4339 = vmatpush2.msra.mxu0 0.0
        %4340 = vmatprep.subr.mxu0 0.0
        %4341 = vmatpush2.msra.mxu0 0.0
        %4342 = vmatprep.subr.mxu0 0.0
        %4343 = vmatpush2.msra.mxu0 0.0
        %4344 = vmatprep.subr.mxu0 0.0
        %4345 = vmatpush2.msra.mxu0 0.0
        %4346 = vmatprep.subr.mxu0 0.0
        %4347 = vmatpush2.msra.mxu0 0.0
        %4348 = vmatprep.subr.mxu0 0.0
        %4349 = vmatpush2.msra.mxu0 0.0
        %4350 = vmatprep.subr.mxu0 0.0
        %4351 = vmatpush2.msra.mxu0 0.0
        %4352 = vmatprep.subr.mxu0 0.0
        %4353 = vmatpush2.msra.mxu0 0.0
        %4354 = vmatprep.subr.mxu0 0.0
        %4355 = vmatpush2.msra.mxu0 0.0
        %4356 = vmatprep.mubr.f32.mxu0 0.0
        %4357 = vmatmul.mubr.f32.gmra.mxu0 %v4281
        %v4358 = vpop.f32.mrf.mxu0
        %v4359 = vadd.f32 %v4279, %v4358
        %v4360 = vpop.f32.mrf.mxu0
        %4361 = vmatprep.mubr.f32.mxu0 0.0
        %4362 = vmatmul.mubr.f32.gmra.mxu0 %v4284
        %v4363 = vpop.f32.mrf.mxu0
        %v4364 = vadd.f32 %v4279, %v4363
        %v4365 = vpop.f32.mrf.mxu0
        %4366 = vmatprep.mubr.f32.mxu0 0.0
        %4367 = vmatmul.mubr.f32.gmra.mxu0 %v4287
        %v4368 = vpop.f32.mrf.mxu0
        %v4369 = vadd.f32 %v4279, %v4368
        %v4370 = vpop.f32.mrf.mxu0
        %4371 = vmatprep.mubr.f32.mxu0 0.0
        %4372 = vmatmul.mubr.f32.gmra.mxu0 %v4290
        %v4373 = vpop.f32.mrf.mxu0
        %v4374 = vadd.f32 %v4279, %v4373
        %v4375 = vpop.f32.mrf.mxu0
        %4376 = vdwg.mxu0
        %v4377 = vadd.f32 %v4359, %v3674
        %v4378 = vadd.f32 %v4364, %v3675
        %v4379 = vadd.f32 %v4369, %v3676
        %v4380 = vadd.f32 %v4374, %v3677
        %v4381 = vsel %vm3727, %v4377, 0.0
        %4382 = vadd.xlane.f32.xlu0 %v4381
        %v4383 = vpop.xlane.xlu0 %4382
        %v4384 = vsel %vm3727, %v4378, 0.0
        %4385 = vadd.xlane.f32.xlu0 %v4384
        %v4386 = vpop.xlane.xlu0 %4385
        %v4387 = vsel %vm3727, %v4379, 0.0
        %4388 = vadd.xlane.f32.xlu0 %v4387
        %v4389 = vpop.xlane.xlu0 %4388
        %v4390 = vsel %vm3727, %v4380, 0.0
        %4391 = vadd.xlane.f32.xlu0 %v4390
        %v4392 = vpop.xlane.xlu0 %4391
        %v4393 = vrcp.pop 8.0
        %v4394 = vmul.f32 %v4383, %v4393
        %v4395 = vmul.f32 %v4386, %v4393
        %v4396 = vmul.f32 %v4389, %v4393
        %v4397 = vmul.f32 %v4392, %v4393
        %v4398 = vsub.f32 %v4377, %v4394
        %v4399 = vsub.f32 %v4378, %v4395
        %v4400 = vsub.f32 %v4379, %v4396
        %v4401 = vsub.f32 %v4380, %v4397
        %v4402 = vmul.f32 %v4398, %v4398
        %v4403 = vmul.f32 %v4399, %v4399
        %v4404 = vmul.f32 %v4400, %v4400
        %v4405 = vmul.f32 %v4401, %v4401
        %v4406 = vsel %vm3727, %v4402, 0.0
        %4407 = vadd.xlane.f32.xlu0 %v4406
        %v4408 = vpop.xlane.xlu0 %4407
        %v4409 = vsel %vm3727, %v4403, 0.0
        %4410 = vadd.xlane.f32.xlu0 %v4409
        %v4411 = vpop.xlane.xlu0 %4410
        %v4412 = vsel %vm3727, %v4404, 0.0
        %4413 = vadd.xlane.f32.xlu0 %v4412
        %v4414 = vpop.xlane.xlu0 %4413
        %v4415 = vsel %vm3727, %v4405, 0.0
        %4416 = vadd.xlane.f32.xlu0 %v4415
        %v4417 = vpop.xlane.xlu0 %4416
        %v4418 = vmul.f32 %v4408, %v4393
        %v4419 = vmul.f32 %v4411, %v4393
        %v4420 = vmul.f32 %v4414, %v4393
        %v4421 = vmul.f32 %v4417, %v4393
        %v4422 = vadd.f32 %v4418, 1e-05
        %v4423 = vadd.f32 %v4419, 1e-05
        %v4424 = vadd.f32 %v4420, 1e-05
        %v4425 = vadd.f32 %v4421, 1e-05
        %v4426 = vrsqrt.pop %v4422
        %v4427 = vrsqrt.pop %v4423
        %v4428 = vrsqrt.pop %v4424
        %v4429 = vrsqrt.pop %v4425
        %v4430 = vmul.f32 %v4398, %v4426
        %v4431 = vmul.f32 %v4399, %v4427
        %v4432 = vmul.f32 %v4400, %v4428
        %v4433 = vmul.f32 %v4401, %v4429
        %v4434 = vlaneseq
        %v4435 = vshrl.u32 %v4434, 7
        %v4436 = vsub.s32 4, %v4435
        %v4437 = vrot.slane %v3656, %v4436
        %v4438 = vmul.f32 %v4430, %v4437
        %v4439 = vmul.f32 %v4431, %v4437
        %v4440 = vmul.f32 %v4432, %v4437
        %v4441 = vmul.f32 %v4433, %v4437
        %v4442 = vlaneseq
        %v4443 = vshrl.u32 %v4442, 7
        %v4444 = vsub.s32 5, %v4443
        %v4445 = vrot.slane %v3656, %v4444
        %v4446 = vadd.f32 %v4438, %v4445
        %v4447 = vadd.f32 %v4439, %v4445
        %v4448 = vadd.f32 %v4440, %v4445
        %v4449 = vadd.f32 %v4441, %v4445
        %v4450 = vld [vmem:[%s10] sm:$0xff]
        %v4451 = vlaneseq
        %v4452 = vshrl.u32 %v4451, 7
        %v4453 = vsub.s32 2, %v4452
        %v4454 = vrot.slane %v666, %v4453
        %v4456 = vsel %vm3727, %v4446, 0
        %v4459 = vsel %vm3727, %v4447, 0
        %v4462 = vsel %vm3727, %v4448, 0
        %v4465 = vsel %vm3727, %v4449, 0
        %4467 = vmatprep.subr.mxu0 0.0
        %4468 = vmatpush1.msra.mxu0 0.0
        %4469 = vmatprep.subr.mxu0 0.0
        %4470 = vmatpush1.msra.mxu0 0.0
        %4471 = vmatprep.subr.mxu0 0.0
        %4472 = vmatpush1.msra.mxu0 0.0
        %4473 = vmatprep.subr.mxu0 0.0
        %4474 = vmatpush1.msra.mxu0 0.0
        %4475 = vmatprep.subr.mxu0 0.0
        %4476 = vmatpush1.msra.mxu0 0.0
        %4477 = vmatprep.subr.mxu0 0.0
        %4478 = vmatpush1.msra.mxu0 0.0
        %4479 = vmatprep.subr.mxu0 0.0
        %4480 = vmatpush1.msra.mxu0 0.0
        %4481 = vmatprep.subr.mxu0 0.0
        %4482 = vmatpush1.msra.mxu0 0.0
        %4483 = vmatprep.subr.mxu0 0.0
        %4484 = vmatpush1.msra.mxu0 0.0
        %4485 = vmatprep.subr.mxu0 0.0
        %4486 = vmatpush1.msra.mxu0 0.0
        %4487 = vmatprep.subr.mxu0 0.0
        %4488 = vmatpush1.msra.mxu0 0.0
        %4489 = vmatprep.subr.mxu0 0.0
        %4490 = vmatpush1.msra.mxu0 0.0
        %4491 = vmatprep.subr.mxu0 0.0
        %4492 = vmatpush1.msra.mxu0 0.0
        %4493 = vmatprep.subr.mxu0 0.0
        %4494 = vmatpush1.msra.mxu0 0.0
        %4495 = vmatprep.subr.mxu0 0.0
        %4496 = vmatpush1.msra.mxu0 0.0
        %4497 = vmatprep.subr.mxu0 0.0
        %4498 = vmatpush1.msra.mxu0 %v4450
        %4499 = vmatprep.subr.mxu0 0.0
        %4500 = vmatpush2.msra.mxu0 0.0
        %4501 = vmatprep.subr.mxu0 0.0
        %4502 = vmatpush2.msra.mxu0 0.0
        %4503 = vmatprep.subr.mxu0 0.0
        %4504 = vmatpush2.msra.mxu0 0.0
        %4505 = vmatprep.subr.mxu0 0.0
        %4506 = vmatpush2.msra.mxu0 0.0
        %4507 = vmatprep.subr.mxu0 0.0
        %4508 = vmatpush2.msra.mxu0 0.0
        %4509 = vmatprep.subr.mxu0 0.0
        %4510 = vmatpush2.msra.mxu0 0.0
        %4511 = vmatprep.subr.mxu0 0.0
        %4512 = vmatpush2.msra.mxu0 0.0
        %4513 = vmatprep.subr.mxu0 0.0
        %4514 = vmatpush2.msra.mxu0 0.0
        %4515 = vmatprep.subr.mxu0 0.0
        %4516 = vmatpush2.msra.mxu0 0.0
        %4517 = vmatprep.subr.mxu0 0.0
        %4518 = vmatpush2.msra.mxu0 0.0
        %4519 = vmatprep.subr.mxu0 0.0
        %4520 = vmatpush2.msra.mxu0 0.0
        %4521 = vmatprep.subr.mxu0 0.0
        %4522 = vmatpush2.msra.mxu0 0.0
        %4523 = vmatprep.subr.mxu0 0.0
        %4524 = vmatpush2.msra.mxu0 0.0
        %4525 = vmatprep.subr.mxu0 0.0
        %4526 = vmatpush2.msra.mxu0 0.0
        %4527 = vmatprep.subr.mxu0 0.0
        %4528 = vmatpush2.msra.mxu0 0.0
        %4529 = vmatprep.subr.mxu0 0.0
        %4530 = vmatpush2.msra.mxu0 0.0
        %4531 = vmatprep.mubr.f32.mxu0 0.0
        %4532 = vmatmul.mubr.f32.gmra.mxu0 %v4456
        %v4533 = vpop.f32.mrf.mxu0
        %v4534 = vadd.f32 %v4454, %v4533
        %v4535 = vpop.f32.mrf.mxu0
        %4536 = vmatprep.mubr.f32.mxu0 0.0
        %4537 = vmatmul.mubr.f32.gmra.mxu0 %v4459
        %v4538 = vpop.f32.mrf.mxu0
        %v4539 = vadd.f32 %v4454, %v4538
        %v4540 = vpop.f32.mrf.mxu0
        %4541 = vmatprep.mubr.f32.mxu0 0.0
        %4542 = vmatmul.mubr.f32.gmra.mxu0 %v4462
        %v4543 = vpop.f32.mrf.mxu0
        %v4544 = vadd.f32 %v4454, %v4543
        %v4545 = vpop.f32.mrf.mxu0
        %4546 = vmatprep.mubr.f32.mxu0 0.0
        %4547 = vmatmul.mubr.f32.gmra.mxu0 %v4465
        %v4548 = vpop.f32.mrf.mxu0
        %v4549 = vadd.f32 %v4454, %v4548
        %v4550 = vpop.f32.mrf.mxu0
        %4551 = vdwg.mxu0
        %v4552 = vmul.f32 %v4534, 0.5
        %v4553 = vmul.f32 %v4539, 0.5
        %v4554 = vmul.f32 %v4544, 0.5
        %v4555 = vmul.f32 %v4549, 0.5
        %v4556 = vmul.f32 %v4534, 0.044715
        %v4557 = vmul.f32 %v4539, 0.044715
        %v4558 = vmul.f32 %v4544, 0.044715
        %v4559 = vmul.f32 %v4549, 0.044715
        %v4560 = vmul.f32 %v4556, %v4534
        %v4561 = vmul.f32 %v4557, %v4539
        %v4562 = vmul.f32 %v4558, %v4544
        %v4563 = vmul.f32 %v4559, %v4549
        %v4564 = vmul.f32 %v4560, %v4534
        %v4565 = vmul.f32 %v4561, %v4539
        %v4566 = vmul.f32 %v4562, %v4544
        %v4567 = vmul.f32 %v4563, %v4549
        %v4568 = vadd.f32 %v4534, %v4564
        %v4569 = vadd.f32 %v4539, %v4565
        %v4570 = vadd.f32 %v4544, %v4566
        %v4571 = vadd.f32 %v4549, %v4567
        %v4572 = vmul.f32 %v4568, 0.7978846
        %v4573 = vmul.f32 %v4569, 0.7978846
        %v4574 = vmul.f32 %v4570, 0.7978846
        %v4575 = vmul.f32 %v4571, 0.7978846
        %v4576 = vtanh.pop %v4572
        %v4577 = vtanh.pop %v4573
        %v4578 = vtanh.pop %v4574
        %v4579 = vtanh.pop %v4575
        %v4580 = vadd.f32 %v4576, 1.0
        %v4581 = vadd.f32 %v4577, 1.0
        %v4582 = vadd.f32 %v4578, 1.0
        %v4583 = vadd.f32 %v4579, 1.0
        %v4584 = vmul.f32 %v4552, %v4580
        %v4585 = vmul.f32 %v4553, %v4581
        %v4586 = vmul.f32 %v4554, %v4582
        %v4587 = vmul.f32 %v4555, %v4583
        %v4588 = vld [vmem:[%s11] sm:$0xff]
        %v4589 = vld [vmem:[%s11 + $0x8] sm:$0xff]
        %v4590 = vld [vmem:[%s11 + $0x10] sm:$0xff]
        %v4591 = vld [vmem:[%s11 + $0x18] sm:$0xff]
        %v4592 = vlaneseq
        %v4593 = vshrl.u32 %v4592, 7
        %v4594 = vsub.s32 0, %v4593
        %v4595 = vrot.slane %v3657, %v4594
        %v4597 = vsel %vm4132, %v4584, 0
        %v4600 = vsel %vm4132, %v4585, 0
        %v4603 = vsel %vm4132, %v4586, 0
        %v4606 = vsel %vm4132, %v4587, 0
        %4608 = vmatprep.subr.mxu0 0.0
        %4609 = vmatpush1.msra.mxu0 0.0
        %4610 = vmatprep.subr.mxu0 0.0
        %4611 = vmatpush1.msra.mxu0 0.0
        %4612 = vmatprep.subr.mxu0 0.0
        %4613 = vmatpush1.msra.mxu0 0.0
        %4614 = vmatprep.subr.mxu0 0.0
        %4615 = vmatpush1.msra.mxu0 0.0
        %4616 = vmatprep.subr.mxu0 0.0
        %4617 = vmatpush1.msra.mxu0 0.0
        %4618 = vmatprep.subr.mxu0 0.0
        %4619 = vmatpush1.msra.mxu0 0.0
        %4620 = vmatprep.subr.mxu0 0.0
        %4621 = vmatpush1.msra.mxu0 0.0
        %4622 = vmatprep.subr.mxu0 0.0
        %4623 = vmatpush1.msra.mxu0 0.0
        %4624 = vmatprep.subr.mxu0 0.0
        %4625 = vmatpush1.msra.mxu0 0.0
        %4626 = vmatprep.subr.mxu0 0.0
        %4627 = vmatpush1.msra.mxu0 0.0
        %4628 = vmatprep.subr.mxu0 0.0
        %4629 = vmatpush1.msra.mxu0 0.0
        %4630 = vmatprep.subr.mxu0 0.0
        %4631 = vmatpush1.msra.mxu0 0.0
        %4632 = vmatprep.subr.mxu0 0.0
        %4633 = vmatpush1.msra.mxu0 %v4591
        %4634 = vmatprep.subr.mxu0 0.0
        %4635 = vmatpush1.msra.mxu0 %v4590
        %4636 = vmatprep.subr.mxu0 0.0
        %4637 = vmatpush1.msra.mxu0 %v4589
        %4638 = vmatprep.subr.mxu0 0.0
        %4639 = vmatpush1.msra.mxu0 %v4588
        %4640 = vmatprep.subr.mxu0 0.0
        %4641 = vmatpush2.msra.mxu0 0.0
        %4642 = vmatprep.subr.mxu0 0.0
        %4643 = vmatpush2.msra.mxu0 0.0
        %4644 = vmatprep.subr.mxu0 0.0
        %4645 = vmatpush2.msra.mxu0 0.0
        %4646 = vmatprep.subr.mxu0 0.0
        %4647 = vmatpush2.msra.mxu0 0.0
        %4648 = vmatprep.subr.mxu0 0.0
        %4649 = vmatpush2.msra.mxu0 0.0
        %4650 = vmatprep.subr.mxu0 0.0
        %4651 = vmatpush2.msra.mxu0 0.0
        %4652 = vmatprep.subr.mxu0 0.0
        %4653 = vmatpush2.msra.mxu0 0.0
        %4654 = vmatprep.subr.mxu0 0.0
        %4655 = vmatpush2.msra.mxu0 0.0
        %4656 = vmatprep.subr.mxu0 0.0
        %4657 = vmatpush2.msra.mxu0 0.0
        %4658 = vmatprep.subr.mxu0 0.0
        %4659 = vmatpush2.msra.mxu0 0.0
        %4660 = vmatprep.subr.mxu0 0.0
        %4661 = vmatpush2.msra.mxu0 0.0
        %4662 = vmatprep.subr.mxu0 0.0
        %4663 = vmatpush2.msra.mxu0 0.0
        %4664 = vmatprep.subr.mxu0 0.0
        %4665 = vmatpush2.msra.mxu0 0.0
        %4666 = vmatprep.subr.mxu0 0.0
        %4667 = vmatpush2.msra.mxu0 0.0
        %4668 = vmatprep.subr.mxu0 0.0
        %4669 = vmatpush2.msra.mxu0 0.0
        %4670 = vmatprep.subr.mxu0 0.0
        %4671 = vmatpush2.msra.mxu0 0.0
        %4672 = vmatprep.mubr.f32.mxu0 0.0
        %4673 = vmatmul.mubr.f32.gmra.mxu0 %v4597
        %v4674 = vpop.f32.mrf.mxu0
        %v4675 = vadd.f32 %v4595, %v4674
        %v4676 = vpop.f32.mrf.mxu0
        %4677 = vmatprep.mubr.f32.mxu0 0.0
        %4678 = vmatmul.mubr.f32.gmra.mxu0 %v4600
        %v4679 = vpop.f32.mrf.mxu0
        %v4680 = vadd.f32 %v4595, %v4679
        %v4681 = vpop.f32.mrf.mxu0
        %4682 = vmatprep.mubr.f32.mxu0 0.0
        %4683 = vmatmul.mubr.f32.gmra.mxu0 %v4603
        %v4684 = vpop.f32.mrf.mxu0
        %v4685 = vadd.f32 %v4595, %v4684
        %v4686 = vpop.f32.mrf.mxu0
        %4687 = vmatprep.mubr.f32.mxu0 0.0
        %4688 = vmatmul.mubr.f32.gmra.mxu0 %v4606
        %v4689 = vpop.f32.mrf.mxu0
        %v4690 = vadd.f32 %v4595, %v4689
        %v4691 = vpop.f32.mrf.mxu0
        %4692 = vdwg.mxu0
        %v4693 = vadd.f32 %v4675, %v4446
        %v4694 = vadd.f32 %v4680, %v4447
        %v4695 = vadd.f32 %v4685, %v4448
        %v4696 = vadd.f32 %v4690, %v4449
        %v4697 = vsel %vm3727, %v4693, 0.0
        %4698 = vadd.xlane.f32.xlu0 %v4697
        %v4699 = vpop.xlane.xlu0 %4698
        %v4700 = vsel %vm3727, %v4694, 0.0
        %4701 = vadd.xlane.f32.xlu0 %v4700
        %v4702 = vpop.xlane.xlu0 %4701
        %v4703 = vsel %vm3727, %v4695, 0.0
        %4704 = vadd.xlane.f32.xlu0 %v4703
        %v4705 = vpop.xlane.xlu0 %4704
        %v4706 = vsel %vm3727, %v4696, 0.0
        %4707 = vadd.xlane.f32.xlu0 %v4706
        %v4708 = vpop.xlane.xlu0 %4707
        %v4709 = vmul.f32 %v4699, %v4393
        %v4710 = vmul.f32 %v4702, %v4393
        %v4711 = vmul.f32 %v4705, %v4393
        %v4712 = vmul.f32 %v4708, %v4393
        %v4713 = vsub.f32 %v4693, %v4709
        %v4714 = vsub.f32 %v4694, %v4710
        %v4715 = vsub.f32 %v4695, %v4711
        %v4716 = vsub.f32 %v4696, %v4712
        %v4717 = vmul.f32 %v4713, %v4713
        %v4718 = vmul.f32 %v4714, %v4714
        %v4719 = vmul.f32 %v4715, %v4715
        %v4720 = vmul.f32 %v4716, %v4716
        %v4721 = vsel %vm3727, %v4717, 0.0
        %4722 = vadd.xlane.f32.xlu0 %v4721
        %v4723 = vpop.xlane.xlu0 %4722
        %v4724 = vsel %vm3727, %v4718, 0.0
        %4725 = vadd.xlane.f32.xlu0 %v4724
        %v4726 = vpop.xlane.xlu0 %4725
        %v4727 = vsel %vm3727, %v4719, 0.0
        %4728 = vadd.xlane.f32.xlu0 %v4727
        %v4729 = vpop.xlane.xlu0 %4728
        %v4730 = vsel %vm3727, %v4720, 0.0
        %4731 = vadd.xlane.f32.xlu0 %v4730
        %v4732 = vpop.xlane.xlu0 %4731
        %v4733 = vmul.f32 %v4723, %v4393
        %v4734 = vmul.f32 %v4726, %v4393
        %v4735 = vmul.f32 %v4729, %v4393
        %v4736 = vmul.f32 %v4732, %v4393
        %v4737 = vadd.f32 %v4733, 1e-05
        %v4738 = vadd.f32 %v4734, 1e-05
        %v4739 = vadd.f32 %v4735, 1e-05
        %v4740 = vadd.f32 %v4736, 1e-05
        %v4741 = vrsqrt.pop %v4737
        %v4742 = vrsqrt.pop %v4738
        %v4743 = vrsqrt.pop %v4739
        %v4744 = vrsqrt.pop %v4740
        %v4745 = vmul.f32 %v4713, %v4741
        %v4746 = vmul.f32 %v4714, %v4742
        %v4747 = vmul.f32 %v4715, %v4743
        %v4748 = vmul.f32 %v4716, %v4744
        %v4749 = vlaneseq
        %v4750 = vshrl.u32 %v4749, 7
        %v4751 = vsub.s32 6, %v4750
        %v4752 = vrot.slane %v3656, %v4751
        %v4753 = vmul.f32 %v4745, %v4752
        %v4754 = vmul.f32 %v4746, %v4752
        %v4755 = vmul.f32 %v4747, %v4752
        %v4756 = vmul.f32 %v4748, %v4752
        %v4757 = vlaneseq
        %v4758 = vshrl.u32 %v4757, 7
        %v4759 = vsub.s32 7, %v4758
        %v4760 = vrot.slane %v3656, %v4759
        %v4761 = vadd.f32 %v4753, %v4760
        %v4762 = vadd.f32 %v4754, %v4760
        %v4763 = vadd.f32 %v4755, %v4760
        %v4764 = vadd.f32 %v4756, %v4760
        %4765 = vxpose.xlu0.b32.start [1/16] %v4761, 128
        %4766 = vxpose.xlu0.b32.cont [2/16] %v4762, 128
        %4767 = vxpose.xlu0.b32.cont [3/16] %v4763, 128
        %4768 = vxpose.xlu0.b32.cont [4/16] %v4764, 128
        %4769 = vxpose.xlu0.b32.cont [5/16] 0.0, 128
        %4770 = vxpose.xlu0.b32.cont [6/16] 0.0, 128
        %4771 = vxpose.xlu0.b32.cont [7/16] 0.0, 128
        %4772 = vxpose.xlu0.b32.cont [8/16] 0.0, 128
        %4773 = vxpose.xlu0.b32.cont [9/16] 0.0, 128
        %4774 = vxpose.xlu0.b32.cont [10/16] 0.0, 128
        %4775 = vxpose.xlu0.b32.cont [11/16] 0.0, 128
        %4776 = vxpose.xlu0.b32.cont [12/16] 0.0, 128
        %4777 = vxpose.xlu0.b32.cont [13/16] 0.0, 128
        %4778 = vxpose.xlu0.b32.cont [14/16] 0.0, 128
        %4779 = vxpose.xlu0.b32.cont [15/16] 0.0, 128
        %4780 = vxpose.xlu0.b32.end [16/16] 0.0, 128
        %v4781 = vpop.trf.xlu0
        %v4782 = vpop.trf.xlu0
        %v4783 = vpop.trf.xlu0
        %v4784 = vpop.trf.xlu0
        %v4785 = vpop.trf.xlu0
        %v4786 = vpop.trf.xlu0
        %v4787 = vpop.trf.xlu0
        %v4788 = vpop.trf.xlu0
        %v4789 = vpop.trf.xlu0
        %v4790 = vpop.trf.xlu0
        %v4791 = vpop.trf.xlu0
        %v4792 = vpop.trf.xlu0
        %v4793 = vpop.trf.xlu0
        %v4794 = vpop.trf.xlu0
        %v4795 = vpop.trf.xlu0
        %v4796 = vpop.trf.xlu0
        %v4797 = vld [vmem:[%s13] sm:$0xff]
        %v4798 = vld [vmem:[%s13 + $0x8] sm:$0xff]
        %v4799 = vld [vmem:[%s13 + $0x10] sm:$0xff]
        %v4800 = vld [vmem:[%s13 + $0x18] sm:$0xff]
        %v4801 = vld [vmem:[%s13 + $0x20] sm:$0xff]
        %v4802 = vld [vmem:[%s13 + $0x28] sm:$0xff]
        %v4803 = vld [vmem:[%s13 + $0x30] sm:$0xff]
        %v4804 = vld [vmem:[%s13 + $0x38] sm:$0xff]
        %v4805 = vld [vmem:[%s13 + $0x40] sm:$0xff]
        %v4806 = vld [vmem:[%s13 + $0x48] sm:$0xff]
        %v4807 = vld [vmem:[%s13 + $0x50] sm:$0xff]
        %v4808 = vld [vmem:[%s13 + $0x58] sm:$0xff]
        %v4809 = vld [vmem:[%s13 + $0x60] sm:$0xff]
        %v4810 = vld [vmem:[%s13 + $0x68] sm:$0xff]
        %v4811 = vld [vmem:[%s13 + $0x70] sm:$0xff]
        %v4812 = vld [vmem:[%s13 + $0x78] sm:$0xff]
        %v4813 = vld [vmem:[%s13 + $0x80] sm:$0xff]
        %v4814 = vld [vmem:[%s13 + $0x88] sm:$0xff]
        %v4815 = vld [vmem:[%s13 + $0x90] sm:$0xff]
        %v4816 = vld [vmem:[%s13 + $0x98] sm:$0xff]
        %v4817 = vld [vmem:[%s13 + $0xa0] sm:$0xff]
        %v4818 = vld [vmem:[%s13 + $0xa8] sm:$0xff]
        %v4819 = vld [vmem:[%s13 + $0xb0] sm:$0xff]
        %v4820 = vld [vmem:[%s13 + $0xb8] sm:$0xff]
        %v4821 = vld [vmem:[%s13 + $0xc0] sm:$0xff]
        %v4822 = vld [vmem:[%s13 + $0xc8] sm:$0xff]
        %v4823 = vld [vmem:[%s13 + $0xd0] sm:$0xff]
        %v4824 = vld [vmem:[%s13 + $0xd8] sm:$0xff]
        %v4825 = vld [vmem:[%s13 + $0xe0] sm:$0xff]
        %v4826 = vld [vmem:[%s13 + $0xe8] sm:$0xff]
        %v4827 = vld [vmem:[%s13 + $0xf0] sm:$0xff]
        %v4828 = vld [vmem:[%s13 + $0xf8] sm:$0xff]
        %v4829 = vld [vmem:[%s13 + $0x100] sm:$0xff]
        %v4830 = vld [vmem:[%s13 + $0x108] sm:$0xff]
        %v4831 = vld [vmem:[%s13 + $0x110] sm:$0xff]
        %v4832 = vld [vmem:[%s13 + $0x118] sm:$0xff]
        %v4833 = vld [vmem:[%s13 + $0x120] sm:$0xff]
        %v4834 = vld [vmem:[%s13 + $0x128] sm:$0xff]
        %v4835 = vld [vmem:[%s13 + $0x130] sm:$0xff]
        %v4836 = vld [vmem:[%s13 + $0x138] sm:$0xff]
        %v4837 = vld [vmem:[%s13 + $0x140] sm:$0xff]
        %v4838 = vld [vmem:[%s13 + $0x148] sm:$0xff]
        %v4839 = vld [vmem:[%s13 + $0x150] sm:$0xff]
        %v4840 = vld [vmem:[%s13 + $0x158] sm:$0xff]
        %v4841 = vld [vmem:[%s13 + $0x160] sm:$0xff]
        %v4842 = vld [vmem:[%s13 + $0x168] sm:$0xff]
        %v4843 = vld [vmem:[%s13 + $0x170] sm:$0xff]
        %v4844 = vld [vmem:[%s13 + $0x178] sm:$0xff]
        %v4845 = vld [vmem:[%s13 + $0x180] sm:$0xff]
        %v4846 = vld [vmem:[%s13 + $0x188] sm:$0xff]
        %v4847 = vld [vmem:[%s13 + $0x190] sm:$0xff]
        %v4848 = vld [vmem:[%s13 + $0x198] sm:$0xff]
        %v4849 = vld [vmem:[%s13 + $0x1a0] sm:$0xff]
        %v4850 = vld [vmem:[%s13 + $0x1a8] sm:$0xff]
        %v4851 = vld [vmem:[%s13 + $0x1b0] sm:$0xff]
        %v4852 = vld [vmem:[%s13 + $0x1b8] sm:$0xff]
        %v4853 = vld [vmem:[%s13 + $0x1c0] sm:$0xff]
        %v4854 = vld [vmem:[%s13 + $0x1c8] sm:$0xff]
        %v4855 = vld [vmem:[%s13 + $0x1d0] sm:$0xff]
        %v4856 = vld [vmem:[%s13 + $0x1d8] sm:$0xff]
        %v4857 = vld [vmem:[%s13 + $0x1e0] sm:$0xff]
        %v4858 = vld [vmem:[%s13 + $0x1e8] sm:$0xff]
        %v4859 = vld [vmem:[%s13 + $0x1f0] sm:$0xff]
        %v4860 = vld [vmem:[%s13 + $0x1f8] sm:$0xff]
        %v4861 = vld [vmem:[%s13 + $0x200] sm:$0xff]
        %v4862 = vld [vmem:[%s13 + $0x208] sm:$0xff]
        %v4863 = vld [vmem:[%s13 + $0x210] sm:$0xff]
        %v4864 = vld [vmem:[%s13 + $0x218] sm:$0xff]
        %v4865 = vld [vmem:[%s13 + $0x220] sm:$0xff]
        %v4866 = vld [vmem:[%s13 + $0x228] sm:$0xff]
        %v4867 = vld [vmem:[%s13 + $0x230] sm:$0xff]
        %v4868 = vld [vmem:[%s13 + $0x238] sm:$0xff]
        %v4869 = vld [vmem:[%s14] sm:$0xff]
        %v4870 = vld [vmem:[%s15 + $0x1] sm:$0x1]
        %4871 = vmatprep.subr.mxu0 0.0
        %4872 = vmatpush1.msra.mxu0 0.0
        %4873 = vmatprep.subr.mxu0 0.0
        %4874 = vmatpush1.msra.mxu0 0.0
        %4875 = vmatprep.subr.mxu0 0.0
        %4876 = vmatpush1.msra.mxu0 0.0
        %4877 = vmatprep.subr.mxu0 0.0
        %4878 = vmatpush1.msra.mxu0 0.0
        %4879 = vmatprep.subr.mxu0 0.0
        %4880 = vmatpush1.msra.mxu0 0.0
        %4881 = vmatprep.subr.mxu0 0.0
        %4882 = vmatpush1.msra.mxu0 0.0
        %4883 = vmatprep.subr.mxu0 0.0
        %4884 = vmatpush1.msra.mxu0 0.0
        %4885 = vmatprep.subr.mxu0 0.0
        %4886 = vmatpush1.msra.mxu0 0.0
        %4887 = vmatprep.subr.mxu0 %v4820
        %4888 = vmatpush1.msra.mxu0 %v4819
        %4889 = vmatprep.subr.mxu0 %v4818
        %4890 = vmatpush1.msra.mxu0 %v4817
        %4891 = vmatprep.subr.mxu0 %v4816
        %4892 = vmatpush1.msra.mxu0 %v4815
        %4893 = vmatprep.subr.mxu0 %v4814
        %4894 = vmatpush1.msra.mxu0 %v4813
        %4895 = vmatprep.subr.mxu0 %v4812
        %4896 = vmatpush1.msra.mxu0 %v4811
        %4897 = vmatprep.subr.mxu0 %v4810
        %4898 = vmatpush1.msra.mxu0 %v4809
        %4899 = vmatprep.subr.mxu0 %v4808
        %4900 = vmatpush1.msra.mxu0 %v4807
        %4901 = vmatprep.subr.mxu0 %v4806
        %4902 = vmatpush1.msra.mxu0 %v4805
        %4903 = vmatprep.subr.mxu0 0.0
        %4904 = vmatpush2.msra.mxu0 0.0
        %4905 = vmatprep.subr.mxu0 0.0
        %4906 = vmatpush2.msra.mxu0 0.0
        %4907 = vmatprep.subr.mxu0 0.0
        %4908 = vmatpush2.msra.mxu0 0.0
        %4909 = vmatprep.subr.mxu0 0.0
        %4910 = vmatpush2.msra.mxu0 0.0
        %4911 = vmatprep.subr.mxu0 0.0
        %4912 = vmatpush2.msra.mxu0 0.0
        %4913 = vmatprep.subr.mxu0 0.0
        %4914 = vmatpush2.msra.mxu0 0.0
        %4915 = vmatprep.subr.mxu0 0.0
        %4916 = vmatpush2.msra.mxu0 0.0
        %4917 = vmatprep.subr.mxu0 0.0
        %4918 = vmatpush2.msra.mxu0 0.0
        %4919 = vmatprep.subr.mxu0 0.0
        %4920 = vmatpush2.msra.mxu0 0.0
        %4921 = vmatprep.subr.mxu0 0.0
        %4922 = vmatpush2.msra.mxu0 0.0
        %4923 = vmatprep.subr.mxu0 0.0
        %4924 = vmatpush2.msra.mxu0 0.0
        %4925 = vmatprep.subr.mxu0 0.0
        %4926 = vmatpush2.msra.mxu0 0.0
        %4927 = vmatprep.subr.mxu0 0.0
        %4928 = vmatpush2.msra.mxu0 0.0
        %4929 = vmatprep.subr.mxu0 0.0
        %4930 = vmatpush2.msra.mxu0 0.0
        %4931 = vmatprep.subr.mxu0 0.0
        %4932 = vmatpush2.msra.mxu0 0.0
        %4933 = vmatprep.subr.mxu0 0.0
        %4934 = vmatpush2.msra.mxu0 0.0
        %4935 = vmatprep.mubr.f32.mxu0 0.0
        %4936 = vmatmul.mubr.f32.gmra.mxu0 %v1587
        %v4937 = vpop.f32.mrf.mxu0
        %v4938 = vadd.f32 0.0, %v4937
        %v4939 = vpop.f32.mrf.mxu0
        %v4940 = vadd.f32 0.0, %v4939
        %4941 = vdwg.mxu0
        %v4943 = vsel %vm4132, %v4781, 0
        %4945 = vmatprep.subr.mxu0 0.0
        %4946 = vmatpush1.msra.mxu0 0.0
        %4947 = vmatprep.subr.mxu0 0.0
        %4948 = vmatpush1.msra.mxu0 0.0
        %4949 = vmatprep.subr.mxu0 0.0
        %4950 = vmatpush1.msra.mxu0 0.0
        %4951 = vmatprep.subr.mxu0 0.0
        %4952 = vmatpush1.msra.mxu0 0.0
        %4953 = vmatprep.subr.mxu0 0.0
        %4954 = vmatpush1.msra.mxu0 0.0
        %4955 = vmatprep.subr.mxu0 0.0
        %4956 = vmatpush1.msra.mxu0 0.0
        %4957 = vmatprep.subr.mxu0 0.0
        %4958 = vmatpush1.msra.mxu0 0.0
        %4959 = vmatprep.subr.mxu0 0.0
        %4960 = vmatpush1.msra.mxu0 0.0
        %4961 = vmatprep.subr.mxu0 0.0
        %4962 = vmatpush1.msra.mxu0 0.0
        %4963 = vmatprep.subr.mxu0 0.0
        %4964 = vmatpush1.msra.mxu0 0.0
        %4965 = vmatprep.subr.mxu0 0.0
        %4966 = vmatpush1.msra.mxu0 0.0
        %4967 = vmatprep.subr.mxu0 0.0
        %4968 = vmatpush1.msra.mxu0 0.0
        %4969 = vmatprep.subr.mxu0 %v4804
        %4970 = vmatpush1.msra.mxu0 %v4803
        %4971 = vmatprep.subr.mxu0 %v4802
        %4972 = vmatpush1.msra.mxu0 %v4801
        %4973 = vmatprep.subr.mxu0 %v4800
        %4974 = vmatpush1.msra.mxu0 %v4799
        %4975 = vmatprep.subr.mxu0 %v4798
        %4976 = vmatpush1.msra.mxu0 %v4797
        %4977 = vmatprep.subr.mxu0 0.0
        %4978 = vmatpush2.msra.mxu0 0.0
        %4979 = vmatprep.subr.mxu0 0.0
        %4980 = vmatpush2.msra.mxu0 0.0
        %4981 = vmatprep.subr.mxu0 0.0
        %4982 = vmatpush2.msra.mxu0 0.0
        %4983 = vmatprep.subr.mxu0 0.0
        %4984 = vmatpush2.msra.mxu0 0.0
        %4985 = vmatprep.subr.mxu0 0.0
        %4986 = vmatpush2.msra.mxu0 0.0
        %4987 = vmatprep.subr.mxu0 0.0
        %4988 = vmatpush2.msra.mxu0 0.0
        %4989 = vmatprep.subr.mxu0 0.0
        %4990 = vmatpush2.msra.mxu0 0.0
        %4991 = vmatprep.subr.mxu0 0.0
        %4992 = vmatpush2.msra.mxu0 0.0
        %4993 = vmatprep.subr.mxu0 0.0
        %4994 = vmatpush2.msra.mxu0 0.0
        %4995 = vmatprep.subr.mxu0 0.0
        %4996 = vmatpush2.msra.mxu0 0.0
        %4997 = vmatprep.subr.mxu0 0.0
        %4998 = vmatpush2.msra.mxu0 0.0
        %4999 = vmatprep.subr.mxu0 0.0
        %5000 = vmatpush2.msra.mxu0 0.0
        %5001 = vmatprep.subr.mxu0 0.0
        %5002 = vmatpush2.msra.mxu0 0.0
        %5003 = vmatprep.subr.mxu0 0.0
        %5004 = vmatpush2.msra.mxu0 0.0
        %5005 = vmatprep.subr.mxu0 0.0
        %5006 = vmatpush2.msra.mxu0 0.0
        %5007 = vmatprep.subr.mxu0 0.0
        %5008 = vmatpush2.msra.mxu0 0.0
        %5009 = vmatprep.mubr.f32.mxu0 0.0
        %5010 = vmatmul.mubr.f32.gmra.mxu0 %v4943
        %v5011 = vpop.f32.mrf.mxu0
        %v5012 = vadd.f32 %v4938, %v5011
        %v5013 = vpop.f32.mrf.mxu0
        %v5014 = vadd.f32 %v4940, %v5013
        %5015 = vdwg.mxu0
        %v5017 = vlaneseq
        %v5018 = vshrl.u32 %v5017, 7
        %v5019 = vsub.s32 1, %v5018
        %v5020 = vrot.slane %v4869, %v5019
        %v5021 = vlaneseq
        %v5022 = vshrl.u32 %v5021, 7
        %v5023 = vsub.s32 5, %v5022
        %v5024 = vrot.slane %v4869, %v5023
        %v5027 = vadd.f32 %v5012, %v5020
        %v5028 = vadd.f32 %v5014, %v5024
        %v5029 = vxor.u32 %v5027, 2147483648
        %v5030 = vmul.f32 %v5029, 1.442695
        %v5031 = vpow.pop %v5030
        %v5032 = vadd.f32 %v5031, 1.0
        %v5033 = vrcp.pop %v5032
        %v5034 = vmul.f32 1.0, %v5033
        %v5035 = vtanh.pop %v5028
        %v5036 = vxor.u32 %v5028, 2147483648
        %v5037 = vmul.f32 %v5036, 1.442695
        %v5038 = vpow.pop %v5037
        %v5039 = vadd.f32 %v5038, 1.0
        %v5040 = vrcp.pop %v5039
        %v5041 = vmul.f32 1.0, %v5040
        %v5042 = vmul.f32 %v5034, 0.0
        %v5043 = vmul.f32 %v5034, %v5035
        %5045 = vrot.lane.b32.xlu0 %v5043, 64
        %v5046 = vpop.permute.xlu0 %5045
        %v5048 = vadd.f32 %v5042, %v5046
        %v5049 = vtanh.pop %v5048
        %v5050 = vmul.f32 %v5041, %v5049
        %5051 = vmatprep.subr.mxu0 0.0
        %5052 = vmatpush1.msra.mxu0 0.0
        %5053 = vmatprep.subr.mxu0 0.0
        %5054 = vmatpush1.msra.mxu0 0.0
        %5055 = vmatprep.subr.mxu0 0.0
        %5056 = vmatpush1.msra.mxu0 0.0
        %5057 = vmatprep.subr.mxu0 0.0
        %5058 = vmatpush1.msra.mxu0 0.0
        %5059 = vmatprep.subr.mxu0 0.0
        %5060 = vmatpush1.msra.mxu0 0.0
        %5061 = vmatprep.subr.mxu0 0.0
        %5062 = vmatpush1.msra.mxu0 0.0
        %5063 = vmatprep.subr.mxu0 0.0
        %5064 = vmatpush1.msra.mxu0 0.0
        %5065 = vmatprep.subr.mxu0 0.0
        %5066 = vmatpush1.msra.mxu0 0.0
        %5067 = vmatprep.subr.mxu0 %v4852
        %5068 = vmatpush1.msra.mxu0 %v4851
        %5069 = vmatprep.subr.mxu0 %v4850
        %5070 = vmatpush1.msra.mxu0 %v4849
        %5071 = vmatprep.subr.mxu0 %v4848
        %5072 = vmatpush1.msra.mxu0 %v4847
        %5073 = vmatprep.subr.mxu0 %v4846
        %5074 = vmatpush1.msra.mxu0 %v4845
        %5075 = vmatprep.subr.mxu0 %v4844
        %5076 = vmatpush1.msra.mxu0 %v4843
        %5077 = vmatprep.subr.mxu0 %v4842
        %5078 = vmatpush1.msra.mxu0 %v4841
        %5079 = vmatprep.subr.mxu0 %v4840
        %5080 = vmatpush1.msra.mxu0 %v4839
        %5081 = vmatprep.subr.mxu0 %v4838
        %5082 = vmatpush1.msra.mxu0 %v4837
        %5083 = vmatprep.subr.mxu0 0.0
        %5084 = vmatpush2.msra.mxu0 0.0
        %5085 = vmatprep.subr.mxu0 0.0
        %5086 = vmatpush2.msra.mxu0 0.0
        %5087 = vmatprep.subr.mxu0 0.0
        %5088 = vmatpush2.msra.mxu0 0.0
        %5089 = vmatprep.subr.mxu0 0.0
        %5090 = vmatpush2.msra.mxu0 0.0
        %5091 = vmatprep.subr.mxu0 0.0
        %5092 = vmatpush2.msra.mxu0 0.0
        %5093 = vmatprep.subr.mxu0 0.0
        %5094 = vmatpush2.msra.mxu0 0.0
        %5095 = vmatprep.subr.mxu0 0.0
        %5096 = vmatpush2.msra.mxu0 0.0
        %5097 = vmatprep.subr.mxu0 0.0
        %5098 = vmatpush2.msra.mxu0 0.0
        %5099 = vmatprep.subr.mxu0 0.0
        %5100 = vmatpush2.msra.mxu0 0.0
        %5101 = vmatprep.subr.mxu0 0.0
        %5102 = vmatpush2.msra.mxu0 0.0
        %5103 = vmatprep.subr.mxu0 0.0
        %5104 = vmatpush2.msra.mxu0 0.0
        %5105 = vmatprep.subr.mxu0 0.0
        %5106 = vmatpush2.msra.mxu0 0.0
        %5107 = vmatprep.subr.mxu0 0.0
        %5108 = vmatpush2.msra.mxu0 0.0
        %5109 = vmatprep.subr.mxu0 0.0
        %5110 = vmatpush2.msra.mxu0 0.0
        %5111 = vmatprep.subr.mxu0 0.0
        %5112 = vmatpush2.msra.mxu0 0.0
        %5113 = vmatprep.subr.mxu0 0.0
        %5114 = vmatpush2.msra.mxu0 0.0
        %5115 = vmatprep.mubr.f32.mxu0 0.0
        %5116 = vmatmul.mubr.f32.gmra.mxu0 %v1587
        %v5117 = vpop.f32.mrf.mxu0
        %v5118 = vadd.f32 0.0, %v5117
        %v5119 = vpop.f32.mrf.mxu0
        %v5120 = vadd.f32 0.0, %v5119
        %5121 = vdwg.mxu0
        %5123 = vrot.lane.b32.xlu0 %v5050, 64
        %v5124 = vpop.permute.xlu0 %5123
        %v5125 = vsel %vm1433, %v5124, 0
        %5127 = vmatprep.subr.mxu0 0.0
        %5128 = vmatpush1.msra.mxu0 0.0
        %5129 = vmatprep.subr.mxu0 0.0
        %5130 = vmatpush1.msra.mxu0 0.0
        %5131 = vmatprep.subr.mxu0 0.0
        %5132 = vmatpush1.msra.mxu0 0.0
        %5133 = vmatprep.subr.mxu0 0.0
        %5134 = vmatpush1.msra.mxu0 0.0
        %5135 = vmatprep.subr.mxu0 0.0
        %5136 = vmatpush1.msra.mxu0 0.0
        %5137 = vmatprep.subr.mxu0 0.0
        %5138 = vmatpush1.msra.mxu0 0.0
        %5139 = vmatprep.subr.mxu0 0.0
        %5140 = vmatpush1.msra.mxu0 0.0
        %5141 = vmatprep.subr.mxu0 0.0
        %5142 = vmatpush1.msra.mxu0 0.0
        %5143 = vmatprep.subr.mxu0 %v4836
        %5144 = vmatpush1.msra.mxu0 %v4835
        %5145 = vmatprep.subr.mxu0 %v4834
        %5146 = vmatpush1.msra.mxu0 %v4833
        %5147 = vmatprep.subr.mxu0 %v4832
        %5148 = vmatpush1.msra.mxu0 %v4831
        %5149 = vmatprep.subr.mxu0 %v4830
        %5150 = vmatpush1.msra.mxu0 %v4829
        %5151 = vmatprep.subr.mxu0 %v4828
        %5152 = vmatpush1.msra.mxu0 %v4827
        %5153 = vmatprep.subr.mxu0 %v4826
        %5154 = vmatpush1.msra.mxu0 %v4825
        %5155 = vmatprep.subr.mxu0 %v4824
        %5156 = vmatpush1.msra.mxu0 %v4823
        %5157 = vmatprep.subr.mxu0 %v4822
        %5158 = vmatpush1.msra.mxu0 %v4821
        %5159 = vmatprep.subr.mxu0 0.0
        %5160 = vmatpush2.msra.mxu0 0.0
        %5161 = vmatprep.subr.mxu0 0.0
        %5162 = vmatpush2.msra.mxu0 0.0
        %5163 = vmatprep.subr.mxu0 0.0
        %5164 = vmatpush2.msra.mxu0 0.0
        %5165 = vmatprep.subr.mxu0 0.0
        %5166 = vmatpush2.msra.mxu0 0.0
        %5167 = vmatprep.subr.mxu0 0.0
        %5168 = vmatpush2.msra.mxu0 0.0
        %5169 = vmatprep.subr.mxu0 0.0
        %5170 = vmatpush2.msra.mxu0 0.0
        %5171 = vmatprep.subr.mxu0 0.0
        %5172 = vmatpush2.msra.mxu0 0.0
        %5173 = vmatprep.subr.mxu0 0.0
        %5174 = vmatpush2.msra.mxu0 0.0
        %5175 = vmatprep.subr.mxu0 0.0
        %5176 = vmatpush2.msra.mxu0 0.0
        %5177 = vmatprep.subr.mxu0 0.0
        %5178 = vmatpush2.msra.mxu0 0.0
        %5179 = vmatprep.subr.mxu0 0.0
        %5180 = vmatpush2.msra.mxu0 0.0
        %5181 = vmatprep.subr.mxu0 0.0
        %5182 = vmatpush2.msra.mxu0 0.0
        %5183 = vmatprep.subr.mxu0 0.0
        %5184 = vmatpush2.msra.mxu0 0.0
        %5185 = vmatprep.subr.mxu0 0.0
        %5186 = vmatpush2.msra.mxu0 0.0
        %5187 = vmatprep.subr.mxu0 0.0
        %5188 = vmatpush2.msra.mxu0 0.0
        %5189 = vmatprep.subr.mxu0 0.0
        %5190 = vmatpush2.msra.mxu0 0.0
        %5191 = vmatprep.mubr.f32.mxu0 0.0
        %5192 = vmatmul.mubr.f32.gmra.mxu0 %v5125
        %v5193 = vpop.f32.mrf.mxu0
        %v5194 = vadd.f32 %v5118, %v5193
        %v5195 = vpop.f32.mrf.mxu0
        %v5196 = vadd.f32 %v5120, %v5195
        %5197 = vdwg.mxu0
        %v5198 = vlaneseq
        %v5199 = vshrl.u32 %v5198, 7
        %v5200 = vsub.s32 2, %v5199
        %v5201 = vrot.slane %v4869, %v5200
        %v5202 = vlaneseq
        %v5203 = vshrl.u32 %v5202, 7
        %v5204 = vsub.s32 6, %v5203
        %v5205 = vrot.slane %v4869, %v5204
        %v5208 = vadd.f32 %v5194, %v5201
        %v5209 = vadd.f32 %v5196, %v5205
        %v5210 = vxor.u32 %v5208, 2147483648
        %v5211 = vmul.f32 %v5210, 1.442695
        %v5212 = vpow.pop %v5211
        %v5213 = vadd.f32 %v5212, 1.0
        %v5214 = vrcp.pop %v5213
        %v5215 = vmul.f32 1.0, %v5214
        %v5216 = vtanh.pop %v5209
        %v5217 = vxor.u32 %v5209, 2147483648
        %v5218 = vmul.f32 %v5217, 1.442695
        %v5219 = vpow.pop %v5218
        %v5220 = vadd.f32 %v5219, 1.0
        %v5221 = vrcp.pop %v5220
        %v5222 = vmul.f32 1.0, %v5221
        %v5223 = vmul.f32 %v5215, 0.0
        %v5224 = vmul.f32 %v5215, %v5216
        %5226 = vrot.lane.b32.xlu0 %v5224, 64
        %v5227 = vpop.permute.xlu0 %5226
        %v5229 = vadd.f32 %v5223, %v5227
        %v5230 = vtanh.pop %v5229
        %v5231 = vmul.f32 %v5222, %v5230
        %5232 = vmatprep.subr.mxu0 0.0
        %5233 = vmatpush1.msra.mxu0 0.0
        %5234 = vmatprep.subr.mxu0 0.0
        %5235 = vmatpush1.msra.mxu0 0.0
        %5236 = vmatprep.subr.mxu0 0.0
        %5237 = vmatpush1.msra.mxu0 0.0
        %5238 = vmatprep.subr.mxu0 0.0
        %5239 = vmatpush1.msra.mxu0 0.0
        %5240 = vmatprep.subr.mxu0 0.0
        %5241 = vmatpush1.msra.mxu0 0.0
        %5242 = vmatprep.subr.mxu0 0.0
        %5243 = vmatpush1.msra.mxu0 0.0
        %5244 = vmatprep.subr.mxu0 0.0
        %5245 = vmatpush1.msra.mxu0 0.0
        %5246 = vmatprep.subr.mxu0 0.0
        %5247 = vmatpush1.msra.mxu0 0.0
        %5248 = vmatprep.subr.mxu0 %v4820
        %5249 = vmatpush1.msra.mxu0 %v4819
        %5250 = vmatprep.subr.mxu0 %v4818
        %5251 = vmatpush1.msra.mxu0 %v4817
        %5252 = vmatprep.subr.mxu0 %v4816
        %5253 = vmatpush1.msra.mxu0 %v4815
        %5254 = vmatprep.subr.mxu0 %v4814
        %5255 = vmatpush1.msra.mxu0 %v4813
        %5256 = vmatprep.subr.mxu0 %v4812
        %5257 = vmatpush1.msra.mxu0 %v4811
        %5258 = vmatprep.subr.mxu0 %v4810
        %5259 = vmatpush1.msra.mxu0 %v4809
        %5260 = vmatprep.subr.mxu0 %v4808
        %5261 = vmatpush1.msra.mxu0 %v4807
        %5262 = vmatprep.subr.mxu0 %v4806
        %5263 = vmatpush1.msra.mxu0 %v4805
        %5264 = vmatprep.subr.mxu0 0.0
        %5265 = vmatpush2.msra.mxu0 0.0
        %5266 = vmatprep.subr.mxu0 0.0
        %5267 = vmatpush2.msra.mxu0 0.0
        %5268 = vmatprep.subr.mxu0 0.0
        %5269 = vmatpush2.msra.mxu0 0.0
        %5270 = vmatprep.subr.mxu0 0.0
        %5271 = vmatpush2.msra.mxu0 0.0
        %5272 = vmatprep.subr.mxu0 0.0
        %5273 = vmatpush2.msra.mxu0 0.0
        %5274 = vmatprep.subr.mxu0 0.0
        %5275 = vmatpush2.msra.mxu0 0.0
        %5276 = vmatprep.subr.mxu0 0.0
        %5277 = vmatpush2.msra.mxu0 0.0
        %5278 = vmatprep.subr.mxu0 0.0
        %5279 = vmatpush2.msra.mxu0 0.0
        %5280 = vmatprep.subr.mxu0 0.0
        %5281 = vmatpush2.msra.mxu0 0.0
        %5282 = vmatprep.subr.mxu0 0.0
        %5283 = vmatpush2.msra.mxu0 0.0
        %5284 = vmatprep.subr.mxu0 0.0
        %5285 = vmatpush2.msra.mxu0 0.0
        %5286 = vmatprep.subr.mxu0 0.0
        %5287 = vmatpush2.msra.mxu0 0.0
        %5288 = vmatprep.subr.mxu0 0.0
        %5289 = vmatpush2.msra.mxu0 0.0
        %5290 = vmatprep.subr.mxu0 0.0
        %5291 = vmatpush2.msra.mxu0 0.0
        %5292 = vmatprep.subr.mxu0 0.0
        %5293 = vmatpush2.msra.mxu0 0.0
        %5294 = vmatprep.subr.mxu0 0.0
        %5295 = vmatpush2.msra.mxu0 0.0
        %5296 = vmatprep.mubr.f32.mxu0 0.0
        %5297 = vmatmul.mubr.f32.gmra.mxu0 %v5125
        %v5298 = vpop.f32.mrf.mxu0
        %v5299 = vadd.f32 0.0, %v5298
        %v5300 = vpop.f32.mrf.mxu0
        %v5301 = vadd.f32 0.0, %v5300
        %5302 = vdwg.mxu0
        %v5303 = vrot.slane %v4781, 1
        %v5304 = vsel %vm4132, %v5303, 0
        %5306 = vmatprep.subr.mxu0 0.0
        %5307 = vmatpush1.msra.mxu0 0.0
        %5308 = vmatprep.subr.mxu0 0.0
        %5309 = vmatpush1.msra.mxu0 0.0
        %5310 = vmatprep.subr.mxu0 0.0
        %5311 = vmatpush1.msra.mxu0 0.0
        %5312 = vmatprep.subr.mxu0 0.0
        %5313 = vmatpush1.msra.mxu0 0.0
        %5314 = vmatprep.subr.mxu0 0.0
        %5315 = vmatpush1.msra.mxu0 0.0
        %5316 = vmatprep.subr.mxu0 0.0
        %5317 = vmatpush1.msra.mxu0 0.0
        %5318 = vmatprep.subr.mxu0 0.0
        %5319 = vmatpush1.msra.mxu0 0.0
        %5320 = vmatprep.subr.mxu0 0.0
        %5321 = vmatpush1.msra.mxu0 0.0
        %5322 = vmatprep.subr.mxu0 0.0
        %5323 = vmatpush1.msra.mxu0 0.0
        %5324 = vmatprep.subr.mxu0 0.0
        %5325 = vmatpush1.msra.mxu0 0.0
        %5326 = vmatprep.subr.mxu0 0.0
        %5327 = vmatpush1.msra.mxu0 0.0
        %5328 = vmatprep.subr.mxu0 0.0
        %5329 = vmatpush1.msra.mxu0 0.0
        %5330 = vmatprep.subr.mxu0 %v4804
        %5331 = vmatpush1.msra.mxu0 %v4803
        %5332 = vmatprep.subr.mxu0 %v4802
        %5333 = vmatpush1.msra.mxu0 %v4801
        %5334 = vmatprep.subr.mxu0 %v4800
        %5335 = vmatpush1.msra.mxu0 %v4799
        %5336 = vmatprep.subr.mxu0 %v4798
        %5337 = vmatpush1.msra.mxu0 %v4797
        %5338 = vmatprep.subr.mxu0 0.0
        %5339 = vmatpush2.msra.mxu0 0.0
        %5340 = vmatprep.subr.mxu0 0.0
        %5341 = vmatpush2.msra.mxu0 0.0
        %5342 = vmatprep.subr.mxu0 0.0
        %5343 = vmatpush2.msra.mxu0 0.0
        %5344 = vmatprep.subr.mxu0 0.0
        %5345 = vmatpush2.msra.mxu0 0.0
        %5346 = vmatprep.subr.mxu0 0.0
        %5347 = vmatpush2.msra.mxu0 0.0
        %5348 = vmatprep.subr.mxu0 0.0
        %5349 = vmatpush2.msra.mxu0 0.0
        %5350 = vmatprep.subr.mxu0 0.0
        %5351 = vmatpush2.msra.mxu0 0.0
        %5352 = vmatprep.subr.mxu0 0.0
        %5353 = vmatpush2.msra.mxu0 0.0
        %5354 = vmatprep.subr.mxu0 0.0
        %5355 = vmatpush2.msra.mxu0 0.0
        %5356 = vmatprep.subr.mxu0 0.0
        %5357 = vmatpush2.msra.mxu0 0.0
        %5358 = vmatprep.subr.mxu0 0.0
        %5359 = vmatpush2.msra.mxu0 0.0
        %5360 = vmatprep.subr.mxu0 0.0
        %5361 = vmatpush2.msra.mxu0 0.0
        %5362 = vmatprep.subr.mxu0 0.0
        %5363 = vmatpush2.msra.mxu0 0.0
        %5364 = vmatprep.subr.mxu0 0.0
        %5365 = vmatpush2.msra.mxu0 0.0
        %5366 = vmatprep.subr.mxu0 0.0
        %5367 = vmatpush2.msra.mxu0 0.0
        %5368 = vmatprep.subr.mxu0 0.0
        %5369 = vmatpush2.msra.mxu0 0.0
        %5370 = vmatprep.mubr.f32.mxu0 0.0
        %5371 = vmatmul.mubr.f32.gmra.mxu0 %v5304
        %v5372 = vpop.f32.mrf.mxu0
        %v5373 = vadd.f32 %v5299, %v5372
        %v5374 = vpop.f32.mrf.mxu0
        %v5375 = vadd.f32 %v5301, %v5374
        %5376 = vdwg.mxu0
        %v5377 = vadd.f32 %v5373, %v5020
        %v5378 = vadd.f32 %v5375, %v5024
        %v5379 = vxor.u32 %v5377, 2147483648
        %v5380 = vmul.f32 %v5379, 1.442695
        %v5381 = vpow.pop %v5380
        %v5382 = vadd.f32 %v5381, 1.0
        %v5383 = vrcp.pop %v5382
        %v5384 = vmul.f32 1.0, %v5383
        %v5385 = vtanh.pop %v5378
        %v5386 = vxor.u32 %v5378, 2147483648
        %v5387 = vmul.f32 %v5386, 1.442695
        %v5388 = vpow.pop %v5387
        %v5389 = vadd.f32 %v5388, 1.0
        %v5390 = vrcp.pop %v5389
        %v5391 = vmul.f32 1.0, %v5390
        %v5392 = vmul.f32 %v5384, %v5048
        %v5393 = vmul.f32 %v5384, %v5385
        %5395 = vrot.lane.b32.xlu0 %v5393, 64
        %v5396 = vpop.permute.xlu0 %5395
        %v5398 = vadd.f32 %v5392, %v5396
        %v5399 = vtanh.pop %v5398
        %v5400 = vmul.f32 %v5391, %v5399
        %5402 = vrot.lane.b32.xlu0 %v5231, 64
        %v5403 = vpop.permute.xlu0 %5402
        %v5404 = vsel %vm1433, %v5403, 0
        %5406 = vmatprep.subr.mxu0 0.0
        %5407 = vmatpush1.msra.mxu0 0.0
        %5408 = vmatprep.subr.mxu0 0.0
        %5409 = vmatpush1.msra.mxu0 0.0
        %5410 = vmatprep.subr.mxu0 0.0
        %5411 = vmatpush1.msra.mxu0 0.0
        %5412 = vmatprep.subr.mxu0 0.0
        %5413 = vmatpush1.msra.mxu0 0.0
        %5414 = vmatprep.subr.mxu0 0.0
        %5415 = vmatpush1.msra.mxu0 0.0
        %5416 = vmatprep.subr.mxu0 0.0
        %5417 = vmatpush1.msra.mxu0 0.0
        %5418 = vmatprep.subr.mxu0 0.0
        %5419 = vmatpush1.msra.mxu0 0.0
        %5420 = vmatprep.subr.mxu0 0.0
        %5421 = vmatpush1.msra.mxu0 0.0
        %5422 = vmatprep.subr.mxu0 %v4852
        %5423 = vmatpush1.msra.mxu0 %v4851
        %5424 = vmatprep.subr.mxu0 %v4850
        %5425 = vmatpush1.msra.mxu0 %v4849
        %5426 = vmatprep.subr.mxu0 %v4848
        %5427 = vmatpush1.msra.mxu0 %v4847
        %5428 = vmatprep.subr.mxu0 %v4846
        %5429 = vmatpush1.msra.mxu0 %v4845
        %5430 = vmatprep.subr.mxu0 %v4844
        %5431 = vmatpush1.msra.mxu0 %v4843
        %5432 = vmatprep.subr.mxu0 %v4842
        %5433 = vmatpush1.msra.mxu0 %v4841
        %5434 = vmatprep.subr.mxu0 %v4840
        %5435 = vmatpush1.msra.mxu0 %v4839
        %5436 = vmatprep.subr.mxu0 %v4838
        %5437 = vmatpush1.msra.mxu0 %v4837
        %5438 = vmatprep.subr.mxu0 0.0
        %5439 = vmatpush2.msra.mxu0 0.0
        %5440 = vmatprep.subr.mxu0 0.0
        %5441 = vmatpush2.msra.mxu0 0.0
        %5442 = vmatprep.subr.mxu0 0.0
        %5443 = vmatpush2.msra.mxu0 0.0
        %5444 = vmatprep.subr.mxu0 0.0
        %5445 = vmatpush2.msra.mxu0 0.0
        %5446 = vmatprep.subr.mxu0 0.0
        %5447 = vmatpush2.msra.mxu0 0.0
        %5448 = vmatprep.subr.mxu0 0.0
        %5449 = vmatpush2.msra.mxu0 0.0
        %5450 = vmatprep.subr.mxu0 0.0
        %5451 = vmatpush2.msra.mxu0 0.0
        %5452 = vmatprep.subr.mxu0 0.0
        %5453 = vmatpush2.msra.mxu0 0.0
        %5454 = vmatprep.subr.mxu0 0.0
        %5455 = vmatpush2.msra.mxu0 0.0
        %5456 = vmatprep.subr.mxu0 0.0
        %5457 = vmatpush2.msra.mxu0 0.0
        %5458 = vmatprep.subr.mxu0 0.0
        %5459 = vmatpush2.msra.mxu0 0.0
        %5460 = vmatprep.subr.mxu0 0.0
        %5461 = vmatpush2.msra.mxu0 0.0
        %5462 = vmatprep.subr.mxu0 0.0
        %5463 = vmatpush2.msra.mxu0 0.0
        %5464 = vmatprep.subr.mxu0 0.0
        %5465 = vmatpush2.msra.mxu0 0.0
        %5466 = vmatprep.subr.mxu0 0.0
        %5467 = vmatpush2.msra.mxu0 0.0
        %5468 = vmatprep.subr.mxu0 0.0
        %5469 = vmatpush2.msra.mxu0 0.0
        %5470 = vmatprep.mubr.f32.mxu0 0.0
        %5471 = vmatmul.mubr.f32.gmra.mxu0 %v5404
        %v5472 = vpop.f32.mrf.mxu0
        %v5473 = vadd.f32 0.0, %v5472
        %v5474 = vpop.f32.mrf.mxu0
        %v5475 = vadd.f32 0.0, %v5474
        %5476 = vdwg.mxu0
        %5478 = vrot.lane.b32.xlu0 %v5400, 64
        %v5479 = vpop.permute.xlu0 %5478
        %v5480 = vsel %vm1433, %v5479, 0
        %5482 = vmatprep.subr.mxu0 0.0
        %5483 = vmatpush1.msra.mxu0 0.0
        %5484 = vmatprep.subr.mxu0 0.0
        %5485 = vmatpush1.msra.mxu0 0.0
        %5486 = vmatprep.subr.mxu0 0.0
        %5487 = vmatpush1.msra.mxu0 0.0
        %5488 = vmatprep.subr.mxu0 0.0
        %5489 = vmatpush1.msra.mxu0 0.0
        %5490 = vmatprep.subr.mxu0 0.0
        %5491 = vmatpush1.msra.mxu0 0.0
        %5492 = vmatprep.subr.mxu0 0.0
        %5493 = vmatpush1.msra.mxu0 0.0
        %5494 = vmatprep.subr.mxu0 0.0
        %5495 = vmatpush1.msra.mxu0 0.0
        %5496 = vmatprep.subr.mxu0 0.0
        %5497 = vmatpush1.msra.mxu0 0.0
        %5498 = vmatprep.subr.mxu0 %v4836
        %5499 = vmatpush1.msra.mxu0 %v4835
        %5500 = vmatprep.subr.mxu0 %v4834
        %5501 = vmatpush1.msra.mxu0 %v4833
        %5502 = vmatprep.subr.mxu0 %v4832
        %5503 = vmatpush1.msra.mxu0 %v4831
        %5504 = vmatprep.subr.mxu0 %v4830
        %5505 = vmatpush1.msra.mxu0 %v4829
        %5506 = vmatprep.subr.mxu0 %v4828
        %5507 = vmatpush1.msra.mxu0 %v4827
        %5508 = vmatprep.subr.mxu0 %v4826
        %5509 = vmatpush1.msra.mxu0 %v4825
        %5510 = vmatprep.subr.mxu0 %v4824
        %5511 = vmatpush1.msra.mxu0 %v4823
        %5512 = vmatprep.subr.mxu0 %v4822
        %5513 = vmatpush1.msra.mxu0 %v4821
        %5514 = vmatprep.subr.mxu0 0.0
        %5515 = vmatpush2.msra.mxu0 0.0
        %5516 = vmatprep.subr.mxu0 0.0
        %5517 = vmatpush2.msra.mxu0 0.0
        %5518 = vmatprep.subr.mxu0 0.0
        %5519 = vmatpush2.msra.mxu0 0.0
        %5520 = vmatprep.subr.mxu0 0.0
        %5521 = vmatpush2.msra.mxu0 0.0
        %5522 = vmatprep.subr.mxu0 0.0
        %5523 = vmatpush2.msra.mxu0 0.0
        %5524 = vmatprep.subr.mxu0 0.0
        %5525 = vmatpush2.msra.mxu0 0.0
        %5526 = vmatprep.subr.mxu0 0.0
        %5527 = vmatpush2.msra.mxu0 0.0
        %5528 = vmatprep.subr.mxu0 0.0
        %5529 = vmatpush2.msra.mxu0 0.0
        %5530 = vmatprep.subr.mxu0 0.0
        %5531 = vmatpush2.msra.mxu0 0.0
        %5532 = vmatprep.subr.mxu0 0.0
        %5533 = vmatpush2.msra.mxu0 0.0
        %5534 = vmatprep.subr.mxu0 0.0
        %5535 = vmatpush2.msra.mxu0 0.0
        %5536 = vmatprep.subr.mxu0 0.0
        %5537 = vmatpush2.msra.mxu0 0.0
        %5538 = vmatprep.subr.mxu0 0.0
        %5539 = vmatpush2.msra.mxu0 0.0
        %5540 = vmatprep.subr.mxu0 0.0
        %5541 = vmatpush2.msra.mxu0 0.0
        %5542 = vmatprep.subr.mxu0 0.0
        %5543 = vmatpush2.msra.mxu0 0.0
        %5544 = vmatprep.subr.mxu0 0.0
        %5545 = vmatpush2.msra.mxu0 0.0
        %5546 = vmatprep.mubr.f32.mxu0 0.0
        %5547 = vmatmul.mubr.f32.gmra.mxu0 %v5480
        %v5548 = vpop.f32.mrf.mxu0
        %v5549 = vadd.f32 %v5473, %v5548
        %v5550 = vpop.f32.mrf.mxu0
        %v5551 = vadd.f32 %v5475, %v5550
        %5552 = vdwg.mxu0
        %v5553 = vadd.f32 %v5549, %v5201
        %v5554 = vadd.f32 %v5551, %v5205
        %v5555 = vxor.u32 %v5553, 2147483648
        %v5556 = vmul.f32 %v5555, 1.442695
        %v5557 = vpow.pop %v5556
        %v5558 = vadd.f32 %v5557, 1.0
        %v5559 = vrcp.pop %v5558
        %v5560 = vmul.f32 1.0, %v5559
        %v5561 = vtanh.pop %v5554
        %v5562 = vxor.u32 %v5554, 2147483648
        %v5563 = vmul.f32 %v5562, 1.442695
        %v5564 = vpow.pop %v5563
        %v5565 = vadd.f32 %v5564, 1.0
        %v5566 = vrcp.pop %v5565
        %v5567 = vmul.f32 1.0, %v5566
        %v5568 = vmul.f32 %v5560, %v5229
        %v5569 = vmul.f32 %v5560, %v5561
        %5571 = vrot.lane.b32.xlu0 %v5569, 64
        %v5572 = vpop.permute.xlu0 %5571
        %v5574 = vadd.f32 %v5568, %v5572
        %v5575 = vtanh.pop %v5574
        %v5576 = vmul.f32 %v5567, %v5575
        %5577 = vmatprep.subr.mxu0 0.0
        %5578 = vmatpush1.msra.mxu0 0.0
        %5579 = vmatprep.subr.mxu0 0.0
        %5580 = vmatpush1.msra.mxu0 0.0
        %5581 = vmatprep.subr.mxu0 0.0
        %5582 = vmatpush1.msra.mxu0 0.0
        %5583 = vmatprep.subr.mxu0 0.0
        %5584 = vmatpush1.msra.mxu0 0.0
        %5585 = vmatprep.subr.mxu0 0.0
        %5586 = vmatpush1.msra.mxu0 0.0
        %5587 = vmatprep.subr.mxu0 0.0
        %5588 = vmatpush1.msra.mxu0 0.0
        %5589 = vmatprep.subr.mxu0 0.0
        %5590 = vmatpush1.msra.mxu0 0.0
        %5591 = vmatprep.subr.mxu0 0.0
        %5592 = vmatpush1.msra.mxu0 0.0
        %5593 = vmatprep.subr.mxu0 %v4820
        %5594 = vmatpush1.msra.mxu0 %v4819
        %5595 = vmatprep.subr.mxu0 %v4818
        %5596 = vmatpush1.msra.mxu0 %v4817
        %5597 = vmatprep.subr.mxu0 %v4816
        %5598 = vmatpush1.msra.mxu0 %v4815
        %5599 = vmatprep.subr.mxu0 %v4814
        %5600 = vmatpush1.msra.mxu0 %v4813
        %5601 = vmatprep.subr.mxu0 %v4812
        %5602 = vmatpush1.msra.mxu0 %v4811
        %5603 = vmatprep.subr.mxu0 %v4810
        %5604 = vmatpush1.msra.mxu0 %v4809
        %5605 = vmatprep.subr.mxu0 %v4808
        %5606 = vmatpush1.msra.mxu0 %v4807
        %5607 = vmatprep.subr.mxu0 %v4806
        %5608 = vmatpush1.msra.mxu0 %v4805
        %5609 = vmatprep.subr.mxu0 0.0
        %5610 = vmatpush2.msra.mxu0 0.0
        %5611 = vmatprep.subr.mxu0 0.0
        %5612 = vmatpush2.msra.mxu0 0.0
        %5613 = vmatprep.subr.mxu0 0.0
        %5614 = vmatpush2.msra.mxu0 0.0
        %5615 = vmatprep.subr.mxu0 0.0
        %5616 = vmatpush2.msra.mxu0 0.0
        %5617 = vmatprep.subr.mxu0 0.0
        %5618 = vmatpush2.msra.mxu0 0.0
        %5619 = vmatprep.subr.mxu0 0.0
        %5620 = vmatpush2.msra.mxu0 0.0
        %5621 = vmatprep.subr.mxu0 0.0
        %5622 = vmatpush2.msra.mxu0 0.0
        %5623 = vmatprep.subr.mxu0 0.0
        %5624 = vmatpush2.msra.mxu0 0.0
        %5625 = vmatprep.subr.mxu0 0.0
        %5626 = vmatpush2.msra.mxu0 0.0
        %5627 = vmatprep.subr.mxu0 0.0
        %5628 = vmatpush2.msra.mxu0 0.0
        %5629 = vmatprep.subr.mxu0 0.0
        %5630 = vmatpush2.msra.mxu0 0.0
        %5631 = vmatprep.subr.mxu0 0.0
        %5632 = vmatpush2.msra.mxu0 0.0
        %5633 = vmatprep.subr.mxu0 0.0
        %5634 = vmatpush2.msra.mxu0 0.0
        %5635 = vmatprep.subr.mxu0 0.0
        %5636 = vmatpush2.msra.mxu0 0.0
        %5637 = vmatprep.subr.mxu0 0.0
        %5638 = vmatpush2.msra.mxu0 0.0
        %5639 = vmatprep.subr.mxu0 0.0
        %5640 = vmatpush2.msra.mxu0 0.0
        %5641 = vmatprep.mubr.f32.mxu0 0.0
        %5642 = vmatmul.mubr.f32.gmra.mxu0 %v5480
        %v5643 = vpop.f32.mrf.mxu0
        %v5644 = vadd.f32 0.0, %v5643
        %v5645 = vpop.f32.mrf.mxu0
        %v5646 = vadd.f32 0.0, %v5645
        %5647 = vdwg.mxu0
        %v5648 = vrot.slane %v4781, 2
        %v5649 = vsel %vm4132, %v5648, 0
        %5651 = vmatprep.subr.mxu0 0.0
        %5652 = vmatpush1.msra.mxu0 0.0
        %5653 = vmatprep.subr.mxu0 0.0
        %5654 = vmatpush1.msra.mxu0 0.0
        %5655 = vmatprep.subr.mxu0 0.0
        %5656 = vmatpush1.msra.mxu0 0.0
        %5657 = vmatprep.subr.mxu0 0.0
        %5658 = vmatpush1.msra.mxu0 0.0
        %5659 = vmatprep.subr.mxu0 0.0
        %5660 = vmatpush1.msra.mxu0 0.0
        %5661 = vmatprep.subr.mxu0 0.0
        %5662 = vmatpush1.msra.mxu0 0.0
        %5663 = vmatprep.subr.mxu0 0.0
        %5664 = vmatpush1.msra.mxu0 0.0
        %5665 = vmatprep.subr.mxu0 0.0
        %5666 = vmatpush1.msra.mxu0 0.0
        %5667 = vmatprep.subr.mxu0 0.0
        %5668 = vmatpush1.msra.mxu0 0.0
        %5669 = vmatprep.subr.mxu0 0.0
        %5670 = vmatpush1.msra.mxu0 0.0
        %5671 = vmatprep.subr.mxu0 0.0
        %5672 = vmatpush1.msra.mxu0 0.0
        %5673 = vmatprep.subr.mxu0 0.0
        %5674 = vmatpush1.msra.mxu0 0.0
        %5675 = vmatprep.subr.mxu0 %v4804
        %5676 = vmatpush1.msra.mxu0 %v4803
        %5677 = vmatprep.subr.mxu0 %v4802
        %5678 = vmatpush1.msra.mxu0 %v4801
        %5679 = vmatprep.subr.mxu0 %v4800
        %5680 = vmatpush1.msra.mxu0 %v4799
        %5681 = vmatprep.subr.mxu0 %v4798
        %5682 = vmatpush1.msra.mxu0 %v4797
        %5683 = vmatprep.subr.mxu0 0.0
        %5684 = vmatpush2.msra.mxu0 0.0
        %5685 = vmatprep.subr.mxu0 0.0
        %5686 = vmatpush2.msra.mxu0 0.0
        %5687 = vmatprep.subr.mxu0 0.0
        %5688 = vmatpush2.msra.mxu0 0.0
        %5689 = vmatprep.subr.mxu0 0.0
        %5690 = vmatpush2.msra.mxu0 0.0
        %5691 = vmatprep.subr.mxu0 0.0
        %5692 = vmatpush2.msra.mxu0 0.0
        %5693 = vmatprep.subr.mxu0 0.0
        %5694 = vmatpush2.msra.mxu0 0.0
        %5695 = vmatprep.subr.mxu0 0.0
        %5696 = vmatpush2.msra.mxu0 0.0
        %5697 = vmatprep.subr.mxu0 0.0
        %5698 = vmatpush2.msra.mxu0 0.0
        %5699 = vmatprep.subr.mxu0 0.0
        %5700 = vmatpush2.msra.mxu0 0.0
        %5701 = vmatprep.subr.mxu0 0.0
        %5702 = vmatpush2.msra.mxu0 0.0
        %5703 = vmatprep.subr.mxu0 0.0
        %5704 = vmatpush2.msra.mxu0 0.0
        %5705 = vmatprep.subr.mxu0 0.0
        %5706 = vmatpush2.msra.mxu0 0.0
        %5707 = vmatprep.subr.mxu0 0.0
        %5708 = vmatpush2.msra.mxu0 0.0
        %5709 = vmatprep.subr.mxu0 0.0
        %5710 = vmatpush2.msra.mxu0 0.0
        %5711 = vmatprep.subr.mxu0 0.0
        %5712 = vmatpush2.msra.mxu0 0.0
        %5713 = vmatprep.subr.mxu0 0.0
        %5714 = vmatpush2.msra.mxu0 0.0
        %5715 = vmatprep.mubr.f32.mxu0 0.0
        %5716 = vmatmul.mubr.f32.gmra.mxu0 %v5649
        %v5717 = vpop.f32.mrf.mxu0
        %v5718 = vadd.f32 %v5644, %v5717
        %v5719 = vpop.f32.mrf.mxu0
        %v5720 = vadd.f32 %v5646, %v5719
        %5721 = vdwg.mxu0
        %v5722 = vadd.f32 %v5718, %v5020
        %v5723 = vadd.f32 %v5720, %v5024
        %v5724 = vxor.u32 %v5722, 2147483648
        %v5725 = vmul.f32 %v5724, 1.442695
        %v5726 = vpow.pop %v5725
        %v5727 = vadd.f32 %v5726, 1.0
        %v5728 = vrcp.pop %v5727
        %v5729 = vmul.f32 1.0, %v5728
        %v5730 = vtanh.pop %v5723
        %v5731 = vxor.u32 %v5723, 2147483648
        %v5732 = vmul.f32 %v5731, 1.442695
        %v5733 = vpow.pop %v5732
        %v5734 = vadd.f32 %v5733, 1.0
        %v5735 = vrcp.pop %v5734
        %v5736 = vmul.f32 1.0, %v5735
        %v5737 = vmul.f32 %v5729, %v5398
        %v5738 = vmul.f32 %v5729, %v5730
        %5740 = vrot.lane.b32.xlu0 %v5738, 64
        %v5741 = vpop.permute.xlu0 %5740
        %v5743 = vadd.f32 %v5737, %v5741
        %v5744 = vtanh.pop %v5743
        %v5745 = vmul.f32 %v5736, %v5744
        %5747 = vrot.lane.b32.xlu0 %v5576, 64
        %v5748 = vpop.permute.xlu0 %5747
        %v5749 = vsel %vm1433, %v5748, 0
        %5751 = vmatprep.subr.mxu0 0.0
        %5752 = vmatpush1.msra.mxu0 0.0
        %5753 = vmatprep.subr.mxu0 0.0
        %5754 = vmatpush1.msra.mxu0 0.0
        %5755 = vmatprep.subr.mxu0 0.0
        %5756 = vmatpush1.msra.mxu0 0.0
        %5757 = vmatprep.subr.mxu0 0.0
        %5758 = vmatpush1.msra.mxu0 0.0
        %5759 = vmatprep.subr.mxu0 0.0
        %5760 = vmatpush1.msra.mxu0 0.0
        %5761 = vmatprep.subr.mxu0 0.0
        %5762 = vmatpush1.msra.mxu0 0.0
        %5763 = vmatprep.subr.mxu0 0.0
        %5764 = vmatpush1.msra.mxu0 0.0
        %5765 = vmatprep.subr.mxu0 0.0
        %5766 = vmatpush1.msra.mxu0 0.0
        %5767 = vmatprep.subr.mxu0 %v4852
        %5768 = vmatpush1.msra.mxu0 %v4851
        %5769 = vmatprep.subr.mxu0 %v4850
        %5770 = vmatpush1.msra.mxu0 %v4849
        %5771 = vmatprep.subr.mxu0 %v4848
        %5772 = vmatpush1.msra.mxu0 %v4847
        %5773 = vmatprep.subr.mxu0 %v4846
        %5774 = vmatpush1.msra.mxu0 %v4845
        %5775 = vmatprep.subr.mxu0 %v4844
        %5776 = vmatpush1.msra.mxu0 %v4843
        %5777 = vmatprep.subr.mxu0 %v4842
        %5778 = vmatpush1.msra.mxu0 %v4841
        %5779 = vmatprep.subr.mxu0 %v4840
        %5780 = vmatpush1.msra.mxu0 %v4839
        %5781 = vmatprep.subr.mxu0 %v4838
        %5782 = vmatpush1.msra.mxu0 %v4837
        %5783 = vmatprep.subr.mxu0 0.0
        %5784 = vmatpush2.msra.mxu0 0.0
        %5785 = vmatprep.subr.mxu0 0.0
        %5786 = vmatpush2.msra.mxu0 0.0
        %5787 = vmatprep.subr.mxu0 0.0
        %5788 = vmatpush2.msra.mxu0 0.0
        %5789 = vmatprep.subr.mxu0 0.0
        %5790 = vmatpush2.msra.mxu0 0.0
        %5791 = vmatprep.subr.mxu0 0.0
        %5792 = vmatpush2.msra.mxu0 0.0
        %5793 = vmatprep.subr.mxu0 0.0
        %5794 = vmatpush2.msra.mxu0 0.0
        %5795 = vmatprep.subr.mxu0 0.0
        %5796 = vmatpush2.msra.mxu0 0.0
        %5797 = vmatprep.subr.mxu0 0.0
        %5798 = vmatpush2.msra.mxu0 0.0
        %5799 = vmatprep.subr.mxu0 0.0
        %5800 = vmatpush2.msra.mxu0 0.0
        %5801 = vmatprep.subr.mxu0 0.0
        %5802 = vmatpush2.msra.mxu0 0.0
        %5803 = vmatprep.subr.mxu0 0.0
        %5804 = vmatpush2.msra.mxu0 0.0
        %5805 = vmatprep.subr.mxu0 0.0
        %5806 = vmatpush2.msra.mxu0 0.0
        %5807 = vmatprep.subr.mxu0 0.0
        %5808 = vmatpush2.msra.mxu0 0.0
        %5809 = vmatprep.subr.mxu0 0.0
        %5810 = vmatpush2.msra.mxu0 0.0
        %5811 = vmatprep.subr.mxu0 0.0
        %5812 = vmatpush2.msra.mxu0 0.0
        %5813 = vmatprep.subr.mxu0 0.0
        %5814 = vmatpush2.msra.mxu0 0.0
        %5815 = vmatprep.mubr.f32.mxu0 0.0
        %5816 = vmatmul.mubr.f32.gmra.mxu0 %v5749
        %v5817 = vpop.f32.mrf.mxu0
        %v5818 = vadd.f32 0.0, %v5817
        %v5819 = vpop.f32.mrf.mxu0
        %v5820 = vadd.f32 0.0, %v5819
        %5821 = vdwg.mxu0
        %5823 = vrot.lane.b32.xlu0 %v5745, 64
        %v5824 = vpop.permute.xlu0 %5823
        %v5825 = vsel %vm1433, %v5824, 0
        %5827 = vmatprep.subr.mxu0 0.0
        %5828 = vmatpush1.msra.mxu0 0.0
        %5829 = vmatprep.subr.mxu0 0.0
        %5830 = vmatpush1.msra.mxu0 0.0
        %5831 = vmatprep.subr.mxu0 0.0
        %5832 = vmatpush1.msra.mxu0 0.0
        %5833 = vmatprep.subr.mxu0 0.0
        %5834 = vmatpush1.msra.mxu0 0.0
        %5835 = vmatprep.subr.mxu0 0.0
        %5836 = vmatpush1.msra.mxu0 0.0
        %5837 = vmatprep.subr.mxu0 0.0
        %5838 = vmatpush1.msra.mxu0 0.0
        %5839 = vmatprep.subr.mxu0 0.0
        %5840 = vmatpush1.msra.mxu0 0.0
        %5841 = vmatprep.subr.mxu0 0.0
        %5842 = vmatpush1.msra.mxu0 0.0
        %5843 = vmatprep.subr.mxu0 %v4836
        %5844 = vmatpush1.msra.mxu0 %v4835
        %5845 = vmatprep.subr.mxu0 %v4834
        %5846 = vmatpush1.msra.mxu0 %v4833
        %5847 = vmatprep.subr.mxu0 %v4832
        %5848 = vmatpush1.msra.mxu0 %v4831
        %5849 = vmatprep.subr.mxu0 %v4830
        %5850 = vmatpush1.msra.mxu0 %v4829
        %5851 = vmatprep.subr.mxu0 %v4828
        %5852 = vmatpush1.msra.mxu0 %v4827
        %5853 = vmatprep.subr.mxu0 %v4826
        %5854 = vmatpush1.msra.mxu0 %v4825
        %5855 = vmatprep.subr.mxu0 %v4824
        %5856 = vmatpush1.msra.mxu0 %v4823
        %5857 = vmatprep.subr.mxu0 %v4822
        %5858 = vmatpush1.msra.mxu0 %v4821
        %5859 = vmatprep.subr.mxu0 0.0
        %5860 = vmatpush2.msra.mxu0 0.0
        %5861 = vmatprep.subr.mxu0 0.0
        %5862 = vmatpush2.msra.mxu0 0.0
        %5863 = vmatprep.subr.mxu0 0.0
        %5864 = vmatpush2.msra.mxu0 0.0
        %5865 = vmatprep.subr.mxu0 0.0
        %5866 = vmatpush2.msra.mxu0 0.0
        %5867 = vmatprep.subr.mxu0 0.0
        %5868 = vmatpush2.msra.mxu0 0.0
        %5869 = vmatprep.subr.mxu0 0.0
        %5870 = vmatpush2.msra.mxu0 0.0
        %5871 = vmatprep.subr.mxu0 0.0
        %5872 = vmatpush2.msra.mxu0 0.0
        %5873 = vmatprep.subr.mxu0 0.0
        %5874 = vmatpush2.msra.mxu0 0.0
        %5875 = vmatprep.subr.mxu0 0.0
        %5876 = vmatpush2.msra.mxu0 0.0
        %5877 = vmatprep.subr.mxu0 0.0
        %5878 = vmatpush2.msra.mxu0 0.0
        %5879 = vmatprep.subr.mxu0 0.0
        %5880 = vmatpush2.msra.mxu0 0.0
        %5881 = vmatprep.subr.mxu0 0.0
        %5882 = vmatpush2.msra.mxu0 0.0
        %5883 = vmatprep.subr.mxu0 0.0
        %5884 = vmatpush2.msra.mxu0 0.0
        %5885 = vmatprep.subr.mxu0 0.0
        %5886 = vmatpush2.msra.mxu0 0.0
        %5887 = vmatprep.subr.mxu0 0.0
        %5888 = vmatpush2.msra.mxu0 0.0
        %5889 = vmatprep.subr.mxu0 0.0
        %5890 = vmatpush2.msra.mxu0 0.0
        %5891 = vmatprep.mubr.f32.mxu0 0.0
        %5892 = vmatmul.mubr.f32.gmra.mxu0 %v5825
        %v5893 = vpop.f32.mrf.mxu0
        %v5894 = vadd.f32 %v5818, %v5893
        %v5895 = vpop.f32.mrf.mxu0
        %v5896 = vadd.f32 %v5820, %v5895
        %5897 = vdwg.mxu0
        %v5898 = vadd.f32 %v5894, %v5201
        %v5899 = vadd.f32 %v5896, %v5205
        %v5900 = vxor.u32 %v5898, 2147483648
        %v5901 = vmul.f32 %v5900, 1.442695
        %v5902 = vpow.pop %v5901
        %v5903 = vadd.f32 %v5902, 1.0
        %v5904 = vrcp.pop %v5903
        %v5905 = vmul.f32 1.0, %v5904
        %v5906 = vtanh.pop %v5899
        %v5907 = vxor.u32 %v5899, 2147483648
        %v5908 = vmul.f32 %v5907, 1.442695
        %v5909 = vpow.pop %v5908
        %v5910 = vadd.f32 %v5909, 1.0
        %v5911 = vrcp.pop %v5910
        %v5912 = vmul.f32 1.0, %v5911
        %v5913 = vmul.f32 %v5905, %v5574
        %v5914 = vmul.f32 %v5905, %v5906
        %5916 = vrot.lane.b32.xlu0 %v5914, 64
        %v5917 = vpop.permute.xlu0 %5916
        %v5919 = vadd.f32 %v5913, %v5917
        %v5920 = vtanh.pop %v5919
        %v5921 = vmul.f32 %v5912, %v5920
        %5922 = vmatprep.subr.mxu0 0.0
        %5923 = vmatpush1.msra.mxu0 0.0
        %5924 = vmatprep.subr.mxu0 0.0
        %5925 = vmatpush1.msra.mxu0 0.0
        %5926 = vmatprep.subr.mxu0 0.0
        %5927 = vmatpush1.msra.mxu0 0.0
        %5928 = vmatprep.subr.mxu0 0.0
        %5929 = vmatpush1.msra.mxu0 0.0
        %5930 = vmatprep.subr.mxu0 0.0
        %5931 = vmatpush1.msra.mxu0 0.0
        %5932 = vmatprep.subr.mxu0 0.0
        %5933 = vmatpush1.msra.mxu0 0.0
        %5934 = vmatprep.subr.mxu0 0.0
        %5935 = vmatpush1.msra.mxu0 0.0
        %5936 = vmatprep.subr.mxu0 0.0
        %5937 = vmatpush1.msra.mxu0 0.0
        %5938 = vmatprep.subr.mxu0 %v4820
        %5939 = vmatpush1.msra.mxu0 %v4819
        %5940 = vmatprep.subr.mxu0 %v4818
        %5941 = vmatpush1.msra.mxu0 %v4817
        %5942 = vmatprep.subr.mxu0 %v4816
        %5943 = vmatpush1.msra.mxu0 %v4815
        %5944 = vmatprep.subr.mxu0 %v4814
        %5945 = vmatpush1.msra.mxu0 %v4813
        %5946 = vmatprep.subr.mxu0 %v4812
        %5947 = vmatpush1.msra.mxu0 %v4811
        %5948 = vmatprep.subr.mxu0 %v4810
        %5949 = vmatpush1.msra.mxu0 %v4809
        %5950 = vmatprep.subr.mxu0 %v4808
        %5951 = vmatpush1.msra.mxu0 %v4807
        %5952 = vmatprep.subr.mxu0 %v4806
        %5953 = vmatpush1.msra.mxu0 %v4805
        %5954 = vmatprep.subr.mxu0 0.0
        %5955 = vmatpush2.msra.mxu0 0.0
        %5956 = vmatprep.subr.mxu0 0.0
        %5957 = vmatpush2.msra.mxu0 0.0
        %5958 = vmatprep.subr.mxu0 0.0
        %5959 = vmatpush2.msra.mxu0 0.0
        %5960 = vmatprep.subr.mxu0 0.0
        %5961 = vmatpush2.msra.mxu0 0.0
        %5962 = vmatprep.subr.mxu0 0.0
        %5963 = vmatpush2.msra.mxu0 0.0
        %5964 = vmatprep.subr.mxu0 0.0
        %5965 = vmatpush2.msra.mxu0 0.0
        %5966 = vmatprep.subr.mxu0 0.0
        %5967 = vmatpush2.msra.mxu0 0.0
        %5968 = vmatprep.subr.mxu0 0.0
        %5969 = vmatpush2.msra.mxu0 0.0
        %5970 = vmatprep.subr.mxu0 0.0
        %5971 = vmatpush2.msra.mxu0 0.0
        %5972 = vmatprep.subr.mxu0 0.0
        %5973 = vmatpush2.msra.mxu0 0.0
        %5974 = vmatprep.subr.mxu0 0.0
        %5975 = vmatpush2.msra.mxu0 0.0
        %5976 = vmatprep.subr.mxu0 0.0
        %5977 = vmatpush2.msra.mxu0 0.0
        %5978 = vmatprep.subr.mxu0 0.0
        %5979 = vmatpush2.msra.mxu0 0.0
        %5980 = vmatprep.subr.mxu0 0.0
        %5981 = vmatpush2.msra.mxu0 0.0
        %5982 = vmatprep.subr.mxu0 0.0
        %5983 = vmatpush2.msra.mxu0 0.0
        %5984 = vmatprep.subr.mxu0 0.0
        %5985 = vmatpush2.msra.mxu0 0.0
        %5986 = vmatprep.mubr.f32.mxu0 0.0
        %5987 = vmatmul.mubr.f32.gmra.mxu0 %v5825
        %v5988 = vpop.f32.mrf.mxu0
        %v5989 = vadd.f32 0.0, %v5988
        %v5990 = vpop.f32.mrf.mxu0
        %v5991 = vadd.f32 0.0, %v5990
        %5992 = vdwg.mxu0
        %v5993 = vrot.slane %v4781, 3
        %v5994 = vsel %vm4132, %v5993, 0
        %5996 = vmatprep.subr.mxu0 0.0
        %5997 = vmatpush1.msra.mxu0 0.0
        %5998 = vmatprep.subr.mxu0 0.0
        %5999 = vmatpush1.msra.mxu0 0.0
        %6000 = vmatprep.subr.mxu0 0.0
        %6001 = vmatpush1.msra.mxu0 0.0
        %6002 = vmatprep.subr.mxu0 0.0
        %6003 = vmatpush1.msra.mxu0 0.0
        %6004 = vmatprep.subr.mxu0 0.0
        %6005 = vmatpush1.msra.mxu0 0.0
        %6006 = vmatprep.subr.mxu0 0.0
        %6007 = vmatpush1.msra.mxu0 0.0
        %6008 = vmatprep.subr.mxu0 0.0
        %6009 = vmatpush1.msra.mxu0 0.0
        %6010 = vmatprep.subr.mxu0 0.0
        %6011 = vmatpush1.msra.mxu0 0.0
        %6012 = vmatprep.subr.mxu0 0.0
        %6013 = vmatpush1.msra.mxu0 0.0
        %6014 = vmatprep.subr.mxu0 0.0
        %6015 = vmatpush1.msra.mxu0 0.0
        %6016 = vmatprep.subr.mxu0 0.0
        %6017 = vmatpush1.msra.mxu0 0.0
        %6018 = vmatprep.subr.mxu0 0.0
        %6019 = vmatpush1.msra.mxu0 0.0
        %6020 = vmatprep.subr.mxu0 %v4804
        %6021 = vmatpush1.msra.mxu0 %v4803
        %6022 = vmatprep.subr.mxu0 %v4802
        %6023 = vmatpush1.msra.mxu0 %v4801
        %6024 = vmatprep.subr.mxu0 %v4800
        %6025 = vmatpush1.msra.mxu0 %v4799
        %6026 = vmatprep.subr.mxu0 %v4798
        %6027 = vmatpush1.msra.mxu0 %v4797
        %6028 = vmatprep.subr.mxu0 0.0
        %6029 = vmatpush2.msra.mxu0 0.0
        %6030 = vmatprep.subr.mxu0 0.0
        %6031 = vmatpush2.msra.mxu0 0.0
        %6032 = vmatprep.subr.mxu0 0.0
        %6033 = vmatpush2.msra.mxu0 0.0
        %6034 = vmatprep.subr.mxu0 0.0
        %6035 = vmatpush2.msra.mxu0 0.0
        %6036 = vmatprep.subr.mxu0 0.0
        %6037 = vmatpush2.msra.mxu0 0.0
        %6038 = vmatprep.subr.mxu0 0.0
        %6039 = vmatpush2.msra.mxu0 0.0
        %6040 = vmatprep.subr.mxu0 0.0
        %6041 = vmatpush2.msra.mxu0 0.0
        %6042 = vmatprep.subr.mxu0 0.0
        %6043 = vmatpush2.msra.mxu0 0.0
        %6044 = vmatprep.subr.mxu0 0.0
        %6045 = vmatpush2.msra.mxu0 0.0
        %6046 = vmatprep.subr.mxu0 0.0
        %6047 = vmatpush2.msra.mxu0 0.0
        %6048 = vmatprep.subr.mxu0 0.0
        %6049 = vmatpush2.msra.mxu0 0.0
        %6050 = vmatprep.subr.mxu0 0.0
        %6051 = vmatpush2.msra.mxu0 0.0
        %6052 = vmatprep.subr.mxu0 0.0
        %6053 = vmatpush2.msra.mxu0 0.0
        %6054 = vmatprep.subr.mxu0 0.0
        %6055 = vmatpush2.msra.mxu0 0.0
        %6056 = vmatprep.subr.mxu0 0.0
        %6057 = vmatpush2.msra.mxu0 0.0
        %6058 = vmatprep.subr.mxu0 0.0
        %6059 = vmatpush2.msra.mxu0 0.0
        %6060 = vmatprep.mubr.f32.mxu0 0.0
        %6061 = vmatmul.mubr.f32.gmra.mxu0 %v5994
        %v6062 = vpop.f32.mrf.mxu0
        %v6063 = vadd.f32 %v5989, %v6062
        %v6064 = vpop.f32.mrf.mxu0
        %v6065 = vadd.f32 %v5991, %v6064
        %6066 = vdwg.mxu0
        %v6067 = vadd.f32 %v6063, %v5020
        %v6068 = vadd.f32 %v6065, %v5024
        %v6069 = vxor.u32 %v6067, 2147483648
        %v6070 = vmul.f32 %v6069, 1.442695
        %v6071 = vpow.pop %v6070
        %v6072 = vadd.f32 %v6071, 1.0
        %v6073 = vrcp.pop %v6072
        %v6074 = vmul.f32 1.0, %v6073
        %v6075 = vtanh.pop %v6068
        %v6076 = vxor.u32 %v6068, 2147483648
        %v6077 = vmul.f32 %v6076, 1.442695
        %v6078 = vpow.pop %v6077
        %v6079 = vadd.f32 %v6078, 1.0
        %v6080 = vrcp.pop %v6079
        %v6081 = vmul.f32 1.0, %v6080
        %v6082 = vmul.f32 %v6074, %v5743
        %v6083 = vmul.f32 %v6074, %v6075
        %6085 = vrot.lane.b32.xlu0 %v6083, 64
        %v6086 = vpop.permute.xlu0 %6085
        %v6088 = vadd.f32 %v6082, %v6086
        %v6089 = vtanh.pop %v6088
        %v6090 = vmul.f32 %v6081, %v6089
        %6092 = vrot.lane.b32.xlu0 %v5921, 64
        %v6093 = vpop.permute.xlu0 %6092
        %v6094 = vsel %vm1433, %v6093, 0
        %6096 = vmatprep.subr.mxu0 0.0
        %6097 = vmatpush1.msra.mxu0 0.0
        %6098 = vmatprep.subr.mxu0 0.0
        %6099 = vmatpush1.msra.mxu0 0.0
        %6100 = vmatprep.subr.mxu0 0.0
        %6101 = vmatpush1.msra.mxu0 0.0
        %6102 = vmatprep.subr.mxu0 0.0
        %6103 = vmatpush1.msra.mxu0 0.0
        %6104 = vmatprep.subr.mxu0 0.0
        %6105 = vmatpush1.msra.mxu0 0.0
        %6106 = vmatprep.subr.mxu0 0.0
        %6107 = vmatpush1.msra.mxu0 0.0
        %6108 = vmatprep.subr.mxu0 0.0
        %6109 = vmatpush1.msra.mxu0 0.0
        %6110 = vmatprep.subr.mxu0 0.0
        %6111 = vmatpush1.msra.mxu0 0.0
        %6112 = vmatprep.subr.mxu0 %v4852
        %6113 = vmatpush1.msra.mxu0 %v4851
        %6114 = vmatprep.subr.mxu0 %v4850
        %6115 = vmatpush1.msra.mxu0 %v4849
        %6116 = vmatprep.subr.mxu0 %v4848
        %6117 = vmatpush1.msra.mxu0 %v4847
        %6118 = vmatprep.subr.mxu0 %v4846
        %6119 = vmatpush1.msra.mxu0 %v4845
        %6120 = vmatprep.subr.mxu0 %v4844
        %6121 = vmatpush1.msra.mxu0 %v4843
        %6122 = vmatprep.subr.mxu0 %v4842
        %6123 = vmatpush1.msra.mxu0 %v4841
        %6124 = vmatprep.subr.mxu0 %v4840
        %6125 = vmatpush1.msra.mxu0 %v4839
        %6126 = vmatprep.subr.mxu0 %v4838
        %6127 = vmatpush1.msra.mxu0 %v4837
        %6128 = vmatprep.subr.mxu0 0.0
        %6129 = vmatpush2.msra.mxu0 0.0
        %6130 = vmatprep.subr.mxu0 0.0
        %6131 = vmatpush2.msra.mxu0 0.0
        %6132 = vmatprep.subr.mxu0 0.0
        %6133 = vmatpush2.msra.mxu0 0.0
        %6134 = vmatprep.subr.mxu0 0.0
        %6135 = vmatpush2.msra.mxu0 0.0
        %6136 = vmatprep.subr.mxu0 0.0
        %6137 = vmatpush2.msra.mxu0 0.0
        %6138 = vmatprep.subr.mxu0 0.0
        %6139 = vmatpush2.msra.mxu0 0.0
        %6140 = vmatprep.subr.mxu0 0.0
        %6141 = vmatpush2.msra.mxu0 0.0
        %6142 = vmatprep.subr.mxu0 0.0
        %6143 = vmatpush2.msra.mxu0 0.0
        %6144 = vmatprep.subr.mxu0 0.0
        %6145 = vmatpush2.msra.mxu0 0.0
        %6146 = vmatprep.subr.mxu0 0.0
        %6147 = vmatpush2.msra.mxu0 0.0
        %6148 = vmatprep.subr.mxu0 0.0
        %6149 = vmatpush2.msra.mxu0 0.0
        %6150 = vmatprep.subr.mxu0 0.0
        %6151 = vmatpush2.msra.mxu0 0.0
        %6152 = vmatprep.subr.mxu0 0.0
        %6153 = vmatpush2.msra.mxu0 0.0
        %6154 = vmatprep.subr.mxu0 0.0
        %6155 = vmatpush2.msra.mxu0 0.0
        %6156 = vmatprep.subr.mxu0 0.0
        %6157 = vmatpush2.msra.mxu0 0.0
        %6158 = vmatprep.subr.mxu0 0.0
        %6159 = vmatpush2.msra.mxu0 0.0
        %6160 = vmatprep.mubr.f32.mxu0 0.0
        %6161 = vmatmul.mubr.f32.gmra.mxu0 %v6094
        %v6162 = vpop.f32.mrf.mxu0
        %v6163 = vadd.f32 0.0, %v6162
        %v6164 = vpop.f32.mrf.mxu0
        %v6165 = vadd.f32 0.0, %v6164
        %6166 = vdwg.mxu0
        %6168 = vrot.lane.b32.xlu0 %v6090, 64
        %v6169 = vpop.permute.xlu0 %6168
        %v6170 = vsel %vm1433, %v6169, 0
        %6172 = vmatprep.subr.mxu0 0.0
        %6173 = vmatpush1.msra.mxu0 0.0
        %6174 = vmatprep.subr.mxu0 0.0
        %6175 = vmatpush1.msra.mxu0 0.0
        %6176 = vmatprep.subr.mxu0 0.0
        %6177 = vmatpush1.msra.mxu0 0.0
        %6178 = vmatprep.subr.mxu0 0.0
        %6179 = vmatpush1.msra.mxu0 0.0
        %6180 = vmatprep.subr.mxu0 0.0
        %6181 = vmatpush1.msra.mxu0 0.0
        %6182 = vmatprep.subr.mxu0 0.0
        %6183 = vmatpush1.msra.mxu0 0.0
        %6184 = vmatprep.subr.mxu0 0.0
        %6185 = vmatpush1.msra.mxu0 0.0
        %6186 = vmatprep.subr.mxu0 0.0
        %6187 = vmatpush1.msra.mxu0 0.0
        %6188 = vmatprep.subr.mxu0 %v4836
        %6189 = vmatpush1.msra.mxu0 %v4835
        %6190 = vmatprep.subr.mxu0 %v4834
        %6191 = vmatpush1.msra.mxu0 %v4833
        %6192 = vmatprep.subr.mxu0 %v4832
        %6193 = vmatpush1.msra.mxu0 %v4831
        %6194 = vmatprep.subr.mxu0 %v4830
        %6195 = vmatpush1.msra.mxu0 %v4829
        %6196 = vmatprep.subr.mxu0 %v4828
        %6197 = vmatpush1.msra.mxu0 %v4827
        %6198 = vmatprep.subr.mxu0 %v4826
        %6199 = vmatpush1.msra.mxu0 %v4825
        %6200 = vmatprep.subr.mxu0 %v4824
        %6201 = vmatpush1.msra.mxu0 %v4823
        %6202 = vmatprep.subr.mxu0 %v4822
        %6203 = vmatpush1.msra.mxu0 %v4821
        %6204 = vmatprep.subr.mxu0 0.0
        %6205 = vmatpush2.msra.mxu0 0.0
        %6206 = vmatprep.subr.mxu0 0.0
        %6207 = vmatpush2.msra.mxu0 0.0
        %6208 = vmatprep.subr.mxu0 0.0
        %6209 = vmatpush2.msra.mxu0 0.0
        %6210 = vmatprep.subr.mxu0 0.0
        %6211 = vmatpush2.msra.mxu0 0.0
        %6212 = vmatprep.subr.mxu0 0.0
        %6213 = vmatpush2.msra.mxu0 0.0
        %6214 = vmatprep.subr.mxu0 0.0
        %6215 = vmatpush2.msra.mxu0 0.0
        %6216 = vmatprep.subr.mxu0 0.0
        %6217 = vmatpush2.msra.mxu0 0.0
        %6218 = vmatprep.subr.mxu0 0.0
        %6219 = vmatpush2.msra.mxu0 0.0
        %6220 = vmatprep.subr.mxu0 0.0
        %6221 = vmatpush2.msra.mxu0 0.0
        %6222 = vmatprep.subr.mxu0 0.0
        %6223 = vmatpush2.msra.mxu0 0.0
        %6224 = vmatprep.subr.mxu0 0.0
        %6225 = vmatpush2.msra.mxu0 0.0
        %6226 = vmatprep.subr.mxu0 0.0
        %6227 = vmatpush2.msra.mxu0 0.0
        %6228 = vmatprep.subr.mxu0 0.0
        %6229 = vmatpush2.msra.mxu0 0.0
        %6230 = vmatprep.subr.mxu0 0.0
        %6231 = vmatpush2.msra.mxu0 0.0
        %6232 = vmatprep.subr.mxu0 0.0
        %6233 = vmatpush2.msra.mxu0 0.0
        %6234 = vmatprep.subr.mxu0 0.0
        %6235 = vmatpush2.msra.mxu0 0.0
        %6236 = vmatprep.mubr.f32.mxu0 0.0
        %6237 = vmatmul.mubr.f32.gmra.mxu0 %v6170
        %v6238 = vpop.f32.mrf.mxu0
        %v6239 = vadd.f32 %v6163, %v6238
        %v6240 = vpop.f32.mrf.mxu0
        %v6241 = vadd.f32 %v6165, %v6240
        %6242 = vdwg.mxu0
        %v6243 = vadd.f32 %v6239, %v5201
        %v6244 = vadd.f32 %v6241, %v5205
        %v6245 = vxor.u32 %v6243, 2147483648
        %v6246 = vmul.f32 %v6245, 1.442695
        %v6247 = vpow.pop %v6246
        %v6248 = vadd.f32 %v6247, 1.0
        %v6249 = vrcp.pop %v6248
        %v6250 = vmul.f32 1.0, %v6249
        %v6251 = vtanh.pop %v6244
        %v6252 = vxor.u32 %v6244, 2147483648
        %v6253 = vmul.f32 %v6252, 1.442695
        %v6254 = vpow.pop %v6253
        %v6255 = vadd.f32 %v6254, 1.0
        %v6256 = vrcp.pop %v6255
        %v6257 = vmul.f32 1.0, %v6256
        %v6258 = vmul.f32 %v6250, %v5919
        %v6259 = vmul.f32 %v6250, %v6251
        %6261 = vrot.lane.b32.xlu0 %v6259, 64
        %v6262 = vpop.permute.xlu0 %6261
        %v6264 = vadd.f32 %v6258, %v6262
        %v6265 = vtanh.pop %v6264
        %v6266 = vmul.f32 %v6257, %v6265
        %6267 = vmatprep.subr.mxu0 0.0
        %6268 = vmatpush1.msra.mxu0 0.0
        %6269 = vmatprep.subr.mxu0 0.0
        %6270 = vmatpush1.msra.mxu0 0.0
        %6271 = vmatprep.subr.mxu0 0.0
        %6272 = vmatpush1.msra.mxu0 0.0
        %6273 = vmatprep.subr.mxu0 0.0
        %6274 = vmatpush1.msra.mxu0 0.0
        %6275 = vmatprep.subr.mxu0 0.0
        %6276 = vmatpush1.msra.mxu0 0.0
        %6277 = vmatprep.subr.mxu0 0.0
        %6278 = vmatpush1.msra.mxu0 0.0
        %6279 = vmatprep.subr.mxu0 0.0
        %6280 = vmatpush1.msra.mxu0 0.0
        %6281 = vmatprep.subr.mxu0 0.0
        %6282 = vmatpush1.msra.mxu0 0.0
        %6283 = vmatprep.subr.mxu0 %v4820
        %6284 = vmatpush1.msra.mxu0 %v4819
        %6285 = vmatprep.subr.mxu0 %v4818
        %6286 = vmatpush1.msra.mxu0 %v4817
        %6287 = vmatprep.subr.mxu0 %v4816
        %6288 = vmatpush1.msra.mxu0 %v4815
        %6289 = vmatprep.subr.mxu0 %v4814
        %6290 = vmatpush1.msra.mxu0 %v4813
        %6291 = vmatprep.subr.mxu0 %v4812
        %6292 = vmatpush1.msra.mxu0 %v4811
        %6293 = vmatprep.subr.mxu0 %v4810
        %6294 = vmatpush1.msra.mxu0 %v4809
        %6295 = vmatprep.subr.mxu0 %v4808
        %6296 = vmatpush1.msra.mxu0 %v4807
        %6297 = vmatprep.subr.mxu0 %v4806
        %6298 = vmatpush1.msra.mxu0 %v4805
        %6299 = vmatprep.subr.mxu0 0.0
        %6300 = vmatpush2.msra.mxu0 0.0
        %6301 = vmatprep.subr.mxu0 0.0
        %6302 = vmatpush2.msra.mxu0 0.0
        %6303 = vmatprep.subr.mxu0 0.0
        %6304 = vmatpush2.msra.mxu0 0.0
        %6305 = vmatprep.subr.mxu0 0.0
        %6306 = vmatpush2.msra.mxu0 0.0
        %6307 = vmatprep.subr.mxu0 0.0
        %6308 = vmatpush2.msra.mxu0 0.0
        %6309 = vmatprep.subr.mxu0 0.0
        %6310 = vmatpush2.msra.mxu0 0.0
        %6311 = vmatprep.subr.mxu0 0.0
        %6312 = vmatpush2.msra.mxu0 0.0
        %6313 = vmatprep.subr.mxu0 0.0
        %6314 = vmatpush2.msra.mxu0 0.0
        %6315 = vmatprep.subr.mxu0 0.0
        %6316 = vmatpush2.msra.mxu0 0.0
        %6317 = vmatprep.subr.mxu0 0.0
        %6318 = vmatpush2.msra.mxu0 0.0
        %6319 = vmatprep.subr.mxu0 0.0
        %6320 = vmatpush2.msra.mxu0 0.0
        %6321 = vmatprep.subr.mxu0 0.0
        %6322 = vmatpush2.msra.mxu0 0.0
        %6323 = vmatprep.subr.mxu0 0.0
        %6324 = vmatpush2.msra.mxu0 0.0
        %6325 = vmatprep.subr.mxu0 0.0
        %6326 = vmatpush2.msra.mxu0 0.0
        %6327 = vmatprep.subr.mxu0 0.0
        %6328 = vmatpush2.msra.mxu0 0.0
        %6329 = vmatprep.subr.mxu0 0.0
        %6330 = vmatpush2.msra.mxu0 0.0
        %6331 = vmatprep.mubr.f32.mxu0 0.0
        %6332 = vmatmul.mubr.f32.gmra.mxu0 %v6170
        %v6333 = vpop.f32.mrf.mxu0
        %v6334 = vadd.f32 0.0, %v6333
        %v6335 = vpop.f32.mrf.mxu0
        %v6336 = vadd.f32 0.0, %v6335
        %6337 = vdwg.mxu0
        %v6338 = vrot.slane %v4781, 4
        %v6339 = vsel %vm4132, %v6338, 0
        %6341 = vmatprep.subr.mxu0 0.0
        %6342 = vmatpush1.msra.mxu0 0.0
        %6343 = vmatprep.subr.mxu0 0.0
        %6344 = vmatpush1.msra.mxu0 0.0
        %6345 = vmatprep.subr.mxu0 0.0
        %6346 = vmatpush1.msra.mxu0 0.0
        %6347 = vmatprep.subr.mxu0 0.0
        %6348 = vmatpush1.msra.mxu0 0.0
        %6349 = vmatprep.subr.mxu0 0.0
        %6350 = vmatpush1.msra.mxu0 0.0
        %6351 = vmatprep.subr.mxu0 0.0
        %6352 = vmatpush1.msra.mxu0 0.0
        %6353 = vmatprep.subr.mxu0 0.0
        %6354 = vmatpush1.msra.mxu0 0.0
        %6355 = vmatprep.subr.mxu0 0.0
        %6356 = vmatpush1.msra.mxu0 0.0
        %6357 = vmatprep.subr.mxu0 0.0
        %6358 = vmatpush1.msra.mxu0 0.0
        %6359 = vmatprep.subr.mxu0 0.0
        %6360 = vmatpush1.msra.mxu0 0.0
        %6361 = vmatprep.subr.mxu0 0.0
        %6362 = vmatpush1.msra.mxu0 0.0
        %6363 = vmatprep.subr.mxu0 0.0
        %6364 = vmatpush1.msra.mxu0 0.0
        %6365 = vmatprep.subr.mxu0 %v4804
        %6366 = vmatpush1.msra.mxu0 %v4803
        %6367 = vmatprep.subr.mxu0 %v4802
        %6368 = vmatpush1.msra.mxu0 %v4801
        %6369 = vmatprep.subr.mxu0 %v4800
        %6370 = vmatpush1.msra.mxu0 %v4799
        %6371 = vmatprep.subr.mxu0 %v4798
        %6372 = vmatpush1.msra.mxu0 %v4797
        %6373 = vmatprep.subr.mxu0 0.0
        %6374 = vmatpush2.msra.mxu0 0.0
        %6375 = vmatprep.subr.mxu0 0.0
        %6376 = vmatpush2.msra.mxu0 0.0
        %6377 = vmatprep.subr.mxu0 0.0
        %6378 = vmatpush2.msra.mxu0 0.0
        %6379 = vmatprep.subr.mxu0 0.0
        %6380 = vmatpush2.msra.mxu0 0.0
        %6381 = vmatprep.subr.mxu0 0.0
        %6382 = vmatpush2.msra.mxu0 0.0
        %6383 = vmatprep.subr.mxu0 0.0
        %6384 = vmatpush2.msra.mxu0 0.0
        %6385 = vmatprep.subr.mxu0 0.0
        %6386 = vmatpush2.msra.mxu0 0.0
        %6387 = vmatprep.subr.mxu0 0.0
        %6388 = vmatpush2.msra.mxu0 0.0
        %6389 = vmatprep.subr.mxu0 0.0
        %6390 = vmatpush2.msra.mxu0 0.0
        %6391 = vmatprep.subr.mxu0 0.0
        %6392 = vmatpush2.msra.mxu0 0.0
        %6393 = vmatprep.subr.mxu0 0.0
        %6394 = vmatpush2.msra.mxu0 0.0
        %6395 = vmatprep.subr.mxu0 0.0
        %6396 = vmatpush2.msra.mxu0 0.0
        %6397 = vmatprep.subr.mxu0 0.0
        %6398 = vmatpush2.msra.mxu0 0.0
        %6399 = vmatprep.subr.mxu0 0.0
        %6400 = vmatpush2.msra.mxu0 0.0
        %6401 = vmatprep.subr.mxu0 0.0
        %6402 = vmatpush2.msra.mxu0 0.0
        %6403 = vmatprep.subr.mxu0 0.0
        %6404 = vmatpush2.msra.mxu0 0.0
        %6405 = vmatprep.mubr.f32.mxu0 0.0
        %6406 = vmatmul.mubr.f32.gmra.mxu0 %v6339
        %v6407 = vpop.f32.mrf.mxu0
        %v6408 = vadd.f32 %v6334, %v6407
        %v6409 = vpop.f32.mrf.mxu0
        %v6410 = vadd.f32 %v6336, %v6409
        %6411 = vdwg.mxu0
        %v6412 = vadd.f32 %v6408, %v5020
        %v6413 = vadd.f32 %v6410, %v5024
        %v6414 = vxor.u32 %v6412, 2147483648
        %v6415 = vmul.f32 %v6414, 1.442695
        %v6416 = vpow.pop %v6415
        %v6417 = vadd.f32 %v6416, 1.0
        %v6418 = vrcp.pop %v6417
        %v6419 = vmul.f32 1.0, %v6418
        %v6420 = vtanh.pop %v6413
        %v6421 = vxor.u32 %v6413, 2147483648
        %v6422 = vmul.f32 %v6421, 1.442695
        %v6423 = vpow.pop %v6422
        %v6424 = vadd.f32 %v6423, 1.0
        %v6425 = vrcp.pop %v6424
        %v6426 = vmul.f32 1.0, %v6425
        %v6427 = vmul.f32 %v6419, %v6088
        %v6428 = vmul.f32 %v6419, %v6420
        %6430 = vrot.lane.b32.xlu0 %v6428, 64
        %v6431 = vpop.permute.xlu0 %6430
        %v6433 = vadd.f32 %v6427, %v6431
        %v6434 = vtanh.pop %v6433
        %v6435 = vmul.f32 %v6426, %v6434
        %6437 = vrot.lane.b32.xlu0 %v6266, 64
        %v6438 = vpop.permute.xlu0 %6437
        %v6439 = vsel %vm1433, %v6438, 0
        %6441 = vmatprep.subr.mxu0 0.0
        %6442 = vmatpush1.msra.mxu0 0.0
        %6443 = vmatprep.subr.mxu0 0.0
        %6444 = vmatpush1.msra.mxu0 0.0
        %6445 = vmatprep.subr.mxu0 0.0
        %6446 = vmatpush1.msra.mxu0 0.0
        %6447 = vmatprep.subr.mxu0 0.0
        %6448 = vmatpush1.msra.mxu0 0.0
        %6449 = vmatprep.subr.mxu0 0.0
        %6450 = vmatpush1.msra.mxu0 0.0
        %6451 = vmatprep.subr.mxu0 0.0
        %6452 = vmatpush1.msra.mxu0 0.0
        %6453 = vmatprep.subr.mxu0 0.0
        %6454 = vmatpush1.msra.mxu0 0.0
        %6455 = vmatprep.subr.mxu0 0.0
        %6456 = vmatpush1.msra.mxu0 0.0
        %6457 = vmatprep.subr.mxu0 %v4852
        %6458 = vmatpush1.msra.mxu0 %v4851
        %6459 = vmatprep.subr.mxu0 %v4850
        %6460 = vmatpush1.msra.mxu0 %v4849
        %6461 = vmatprep.subr.mxu0 %v4848
        %6462 = vmatpush1.msra.mxu0 %v4847
        %6463 = vmatprep.subr.mxu0 %v4846
        %6464 = vmatpush1.msra.mxu0 %v4845
        %6465 = vmatprep.subr.mxu0 %v4844
        %6466 = vmatpush1.msra.mxu0 %v4843
        %6467 = vmatprep.subr.mxu0 %v4842
        %6468 = vmatpush1.msra.mxu0 %v4841
        %6469 = vmatprep.subr.mxu0 %v4840
        %6470 = vmatpush1.msra.mxu0 %v4839
        %6471 = vmatprep.subr.mxu0 %v4838
        %6472 = vmatpush1.msra.mxu0 %v4837
        %6473 = vmatprep.subr.mxu0 0.0
        %6474 = vmatpush2.msra.mxu0 0.0
        %6475 = vmatprep.subr.mxu0 0.0
        %6476 = vmatpush2.msra.mxu0 0.0
        %6477 = vmatprep.subr.mxu0 0.0
        %6478 = vmatpush2.msra.mxu0 0.0
        %6479 = vmatprep.subr.mxu0 0.0
        %6480 = vmatpush2.msra.mxu0 0.0
        %6481 = vmatprep.subr.mxu0 0.0
        %6482 = vmatpush2.msra.mxu0 0.0
        %6483 = vmatprep.subr.mxu0 0.0
        %6484 = vmatpush2.msra.mxu0 0.0
        %6485 = vmatprep.subr.mxu0 0.0
        %6486 = vmatpush2.msra.mxu0 0.0
        %6487 = vmatprep.subr.mxu0 0.0
        %6488 = vmatpush2.msra.mxu0 0.0
        %6489 = vmatprep.subr.mxu0 0.0
        %6490 = vmatpush2.msra.mxu0 0.0
        %6491 = vmatprep.subr.mxu0 0.0
        %6492 = vmatpush2.msra.mxu0 0.0
        %6493 = vmatprep.subr.mxu0 0.0
        %6494 = vmatpush2.msra.mxu0 0.0
        %6495 = vmatprep.subr.mxu0 0.0
        %6496 = vmatpush2.msra.mxu0 0.0
        %6497 = vmatprep.subr.mxu0 0.0
        %6498 = vmatpush2.msra.mxu0 0.0
        %6499 = vmatprep.subr.mxu0 0.0
        %6500 = vmatpush2.msra.mxu0 0.0
        %6501 = vmatprep.subr.mxu0 0.0
        %6502 = vmatpush2.msra.mxu0 0.0
        %6503 = vmatprep.subr.mxu0 0.0
        %6504 = vmatpush2.msra.mxu0 0.0
        %6505 = vmatprep.mubr.f32.mxu0 0.0
        %6506 = vmatmul.mubr.f32.gmra.mxu0 %v6439
        %v6507 = vpop.f32.mrf.mxu0
        %v6508 = vadd.f32 0.0, %v6507
        %v6509 = vpop.f32.mrf.mxu0
        %v6510 = vadd.f32 0.0, %v6509
        %6511 = vdwg.mxu0
        %6513 = vrot.lane.b32.xlu0 %v6435, 64
        %v6514 = vpop.permute.xlu0 %6513
        %v6515 = vsel %vm1433, %v6514, 0
        %6517 = vmatprep.subr.mxu0 0.0
        %6518 = vmatpush1.msra.mxu0 0.0
        %6519 = vmatprep.subr.mxu0 0.0
        %6520 = vmatpush1.msra.mxu0 0.0
        %6521 = vmatprep.subr.mxu0 0.0
        %6522 = vmatpush1.msra.mxu0 0.0
        %6523 = vmatprep.subr.mxu0 0.0
        %6524 = vmatpush1.msra.mxu0 0.0
        %6525 = vmatprep.subr.mxu0 0.0
        %6526 = vmatpush1.msra.mxu0 0.0
        %6527 = vmatprep.subr.mxu0 0.0
        %6528 = vmatpush1.msra.mxu0 0.0
        %6529 = vmatprep.subr.mxu0 0.0
        %6530 = vmatpush1.msra.mxu0 0.0
        %6531 = vmatprep.subr.mxu0 0.0
        %6532 = vmatpush1.msra.mxu0 0.0
        %6533 = vmatprep.subr.mxu0 %v4836
        %6534 = vmatpush1.msra.mxu0 %v4835
        %6535 = vmatprep.subr.mxu0 %v4834
        %6536 = vmatpush1.msra.mxu0 %v4833
        %6537 = vmatprep.subr.mxu0 %v4832
        %6538 = vmatpush1.msra.mxu0 %v4831
        %6539 = vmatprep.subr.mxu0 %v4830
        %6540 = vmatpush1.msra.mxu0 %v4829
        %6541 = vmatprep.subr.mxu0 %v4828
        %6542 = vmatpush1.msra.mxu0 %v4827
        %6543 = vmatprep.subr.mxu0 %v4826
        %6544 = vmatpush1.msra.mxu0 %v4825
        %6545 = vmatprep.subr.mxu0 %v4824
        %6546 = vmatpush1.msra.mxu0 %v4823
        %6547 = vmatprep.subr.mxu0 %v4822
        %6548 = vmatpush1.msra.mxu0 %v4821
        %6549 = vmatprep.subr.mxu0 0.0
        %6550 = vmatpush2.msra.mxu0 0.0
        %6551 = vmatprep.subr.mxu0 0.0
        %6552 = vmatpush2.msra.mxu0 0.0
        %6553 = vmatprep.subr.mxu0 0.0
        %6554 = vmatpush2.msra.mxu0 0.0
        %6555 = vmatprep.subr.mxu0 0.0
        %6556 = vmatpush2.msra.mxu0 0.0
        %6557 = vmatprep.subr.mxu0 0.0
        %6558 = vmatpush2.msra.mxu0 0.0
        %6559 = vmatprep.subr.mxu0 0.0
        %6560 = vmatpush2.msra.mxu0 0.0
        %6561 = vmatprep.subr.mxu0 0.0
        %6562 = vmatpush2.msra.mxu0 0.0
        %6563 = vmatprep.subr.mxu0 0.0
        %6564 = vmatpush2.msra.mxu0 0.0
        %6565 = vmatprep.subr.mxu0 0.0
        %6566 = vmatpush2.msra.mxu0 0.0
        %6567 = vmatprep.subr.mxu0 0.0
        %6568 = vmatpush2.msra.mxu0 0.0
        %6569 = vmatprep.subr.mxu0 0.0
        %6570 = vmatpush2.msra.mxu0 0.0
        %6571 = vmatprep.subr.mxu0 0.0
        %6572 = vmatpush2.msra.mxu0 0.0
        %6573 = vmatprep.subr.mxu0 0.0
        %6574 = vmatpush2.msra.mxu0 0.0
        %6575 = vmatprep.subr.mxu0 0.0
        %6576 = vmatpush2.msra.mxu0 0.0
        %6577 = vmatprep.subr.mxu0 0.0
        %6578 = vmatpush2.msra.mxu0 0.0
        %6579 = vmatprep.subr.mxu0 0.0
        %6580 = vmatpush2.msra.mxu0 0.0
        %6581 = vmatprep.mubr.f32.mxu0 0.0
        %6582 = vmatmul.mubr.f32.gmra.mxu0 %v6515
        %v6583 = vpop.f32.mrf.mxu0
        %v6584 = vadd.f32 %v6508, %v6583
        %v6585 = vpop.f32.mrf.mxu0
        %v6586 = vadd.f32 %v6510, %v6585
        %6587 = vdwg.mxu0
        %v6588 = vadd.f32 %v6584, %v5201
        %v6589 = vadd.f32 %v6586, %v5205
        %v6590 = vxor.u32 %v6588, 2147483648
        %v6591 = vmul.f32 %v6590, 1.442695
        %v6592 = vpow.pop %v6591
        %v6593 = vadd.f32 %v6592, 1.0
        %v6594 = vrcp.pop %v6593
        %v6595 = vmul.f32 1.0, %v6594
        %v6596 = vtanh.pop %v6589
        %v6597 = vxor.u32 %v6589, 2147483648
        %v6598 = vmul.f32 %v6597, 1.442695
        %v6599 = vpow.pop %v6598
        %v6600 = vadd.f32 %v6599, 1.0
        %v6601 = vrcp.pop %v6600
        %v6602 = vmul.f32 1.0, %v6601
        %v6603 = vmul.f32 %v6595, %v6264
        %v6604 = vmul.f32 %v6595, %v6596
        %6606 = vrot.lane.b32.xlu0 %v6604, 64
        %v6607 = vpop.permute.xlu0 %6606
        %v6609 = vadd.f32 %v6603, %v6607
        %v6610 = vtanh.pop %v6609
        %v6611 = vmul.f32 %v6602, %v6610
        %6612 = vmatprep.subr.mxu0 0.0
        %6613 = vmatpush1.msra.mxu0 0.0
        %6614 = vmatprep.subr.mxu0 0.0
        %6615 = vmatpush1.msra.mxu0 0.0
        %6616 = vmatprep.subr.mxu0 0.0
        %6617 = vmatpush1.msra.mxu0 0.0
        %6618 = vmatprep.subr.mxu0 0.0
        %6619 = vmatpush1.msra.mxu0 0.0
        %6620 = vmatprep.subr.mxu0 0.0
        %6621 = vmatpush1.msra.mxu0 0.0
        %6622 = vmatprep.subr.mxu0 0.0
        %6623 = vmatpush1.msra.mxu0 0.0
        %6624 = vmatprep.subr.mxu0 0.0
        %6625 = vmatpush1.msra.mxu0 0.0
        %6626 = vmatprep.subr.mxu0 0.0
        %6627 = vmatpush1.msra.mxu0 0.0
        %6628 = vmatprep.subr.mxu0 %v4820
        %6629 = vmatpush1.msra.mxu0 %v4819
        %6630 = vmatprep.subr.mxu0 %v4818
        %6631 = vmatpush1.msra.mxu0 %v4817
        %6632 = vmatprep.subr.mxu0 %v4816
        %6633 = vmatpush1.msra.mxu0 %v4815
        %6634 = vmatprep.subr.mxu0 %v4814
        %6635 = vmatpush1.msra.mxu0 %v4813
        %6636 = vmatprep.subr.mxu0 %v4812
        %6637 = vmatpush1.msra.mxu0 %v4811
        %6638 = vmatprep.subr.mxu0 %v4810
        %6639 = vmatpush1.msra.mxu0 %v4809
        %6640 = vmatprep.subr.mxu0 %v4808
        %6641 = vmatpush1.msra.mxu0 %v4807
        %6642 = vmatprep.subr.mxu0 %v4806
        %6643 = vmatpush1.msra.mxu0 %v4805
        %6644 = vmatprep.subr.mxu0 0.0
        %6645 = vmatpush2.msra.mxu0 0.0
        %6646 = vmatprep.subr.mxu0 0.0
        %6647 = vmatpush2.msra.mxu0 0.0
        %6648 = vmatprep.subr.mxu0 0.0
        %6649 = vmatpush2.msra.mxu0 0.0
        %6650 = vmatprep.subr.mxu0 0.0
        %6651 = vmatpush2.msra.mxu0 0.0
        %6652 = vmatprep.subr.mxu0 0.0
        %6653 = vmatpush2.msra.mxu0 0.0
        %6654 = vmatprep.subr.mxu0 0.0
        %6655 = vmatpush2.msra.mxu0 0.0
        %6656 = vmatprep.subr.mxu0 0.0
        %6657 = vmatpush2.msra.mxu0 0.0
        %6658 = vmatprep.subr.mxu0 0.0
        %6659 = vmatpush2.msra.mxu0 0.0
        %6660 = vmatprep.subr.mxu0 0.0
        %6661 = vmatpush2.msra.mxu0 0.0
        %6662 = vmatprep.subr.mxu0 0.0
        %6663 = vmatpush2.msra.mxu0 0.0
        %6664 = vmatprep.subr.mxu0 0.0
        %6665 = vmatpush2.msra.mxu0 0.0
        %6666 = vmatprep.subr.mxu0 0.0
        %6667 = vmatpush2.msra.mxu0 0.0
        %6668 = vmatprep.subr.mxu0 0.0
        %6669 = vmatpush2.msra.mxu0 0.0
        %6670 = vmatprep.subr.mxu0 0.0
        %6671 = vmatpush2.msra.mxu0 0.0
        %6672 = vmatprep.subr.mxu0 0.0
        %6673 = vmatpush2.msra.mxu0 0.0
        %6674 = vmatprep.subr.mxu0 0.0
        %6675 = vmatpush2.msra.mxu0 0.0
        %6676 = vmatprep.mubr.f32.mxu0 0.0
        %6677 = vmatmul.mubr.f32.gmra.mxu0 %v6515
        %v6678 = vpop.f32.mrf.mxu0
        %v6679 = vadd.f32 0.0, %v6678
        %v6680 = vpop.f32.mrf.mxu0
        %v6681 = vadd.f32 0.0, %v6680
        %6682 = vdwg.mxu0
        %v6683 = vrot.slane %v4781, 5
        %v6684 = vsel %vm4132, %v6683, 0
        %6686 = vmatprep.subr.mxu0 0.0
        %6687 = vmatpush1.msra.mxu0 0.0
        %6688 = vmatprep.subr.mxu0 0.0
        %6689 = vmatpush1.msra.mxu0 0.0
        %6690 = vmatprep.subr.mxu0 0.0
        %6691 = vmatpush1.msra.mxu0 0.0
        %6692 = vmatprep.subr.mxu0 0.0
        %6693 = vmatpush1.msra.mxu0 0.0
        %6694 = vmatprep.subr.mxu0 0.0
        %6695 = vmatpush1.msra.mxu0 0.0
        %6696 = vmatprep.subr.mxu0 0.0
        %6697 = vmatpush1.msra.mxu0 0.0
        %6698 = vmatprep.subr.mxu0 0.0
        %6699 = vmatpush1.msra.mxu0 0.0
        %6700 = vmatprep.subr.mxu0 0.0
        %6701 = vmatpush1.msra.mxu0 0.0
        %6702 = vmatprep.subr.mxu0 0.0
        %6703 = vmatpush1.msra.mxu0 0.0
        %6704 = vmatprep.subr.mxu0 0.0
        %6705 = vmatpush1.msra.mxu0 0.0
        %6706 = vmatprep.subr.mxu0 0.0
        %6707 = vmatpush1.msra.mxu0 0.0
        %6708 = vmatprep.subr.mxu0 0.0
        %6709 = vmatpush1.msra.mxu0 0.0
        %6710 = vmatprep.subr.mxu0 %v4804
        %6711 = vmatpush1.msra.mxu0 %v4803
        %6712 = vmatprep.subr.mxu0 %v4802
        %6713 = vmatpush1.msra.mxu0 %v4801
        %6714 = vmatprep.subr.mxu0 %v4800
        %6715 = vmatpush1.msra.mxu0 %v4799
        %6716 = vmatprep.subr.mxu0 %v4798
        %6717 = vmatpush1.msra.mxu0 %v4797
        %6718 = vmatprep.subr.mxu0 0.0
        %6719 = vmatpush2.msra.mxu0 0.0
        %6720 = vmatprep.subr.mxu0 0.0
        %6721 = vmatpush2.msra.mxu0 0.0
        %6722 = vmatprep.subr.mxu0 0.0
        %6723 = vmatpush2.msra.mxu0 0.0
        %6724 = vmatprep.subr.mxu0 0.0
        %6725 = vmatpush2.msra.mxu0 0.0
        %6726 = vmatprep.subr.mxu0 0.0
        %6727 = vmatpush2.msra.mxu0 0.0
        %6728 = vmatprep.subr.mxu0 0.0
        %6729 = vmatpush2.msra.mxu0 0.0
        %6730 = vmatprep.subr.mxu0 0.0
        %6731 = vmatpush2.msra.mxu0 0.0
        %6732 = vmatprep.subr.mxu0 0.0
        %6733 = vmatpush2.msra.mxu0 0.0
        %6734 = vmatprep.subr.mxu0 0.0
        %6735 = vmatpush2.msra.mxu0 0.0
        %6736 = vmatprep.subr.mxu0 0.0
        %6737 = vmatpush2.msra.mxu0 0.0
        %6738 = vmatprep.subr.mxu0 0.0
        %6739 = vmatpush2.msra.mxu0 0.0
        %6740 = vmatprep.subr.mxu0 0.0
        %6741 = vmatpush2.msra.mxu0 0.0
        %6742 = vmatprep.subr.mxu0 0.0
        %6743 = vmatpush2.msra.mxu0 0.0
        %6744 = vmatprep.subr.mxu0 0.0
        %6745 = vmatpush2.msra.mxu0 0.0
        %6746 = vmatprep.subr.mxu0 0.0
        %6747 = vmatpush2.msra.mxu0 0.0
        %6748 = vmatprep.subr.mxu0 0.0
        %6749 = vmatpush2.msra.mxu0 0.0
        %6750 = vmatprep.mubr.f32.mxu0 0.0
        %6751 = vmatmul.mubr.f32.gmra.mxu0 %v6684
        %v6752 = vpop.f32.mrf.mxu0
        %v6753 = vadd.f32 %v6679, %v6752
        %v6754 = vpop.f32.mrf.mxu0
        %v6755 = vadd.f32 %v6681, %v6754
        %6756 = vdwg.mxu0
        %v6757 = vadd.f32 %v6753, %v5020
        %v6758 = vadd.f32 %v6755, %v5024
        %v6759 = vxor.u32 %v6757, 2147483648
        %v6760 = vmul.f32 %v6759, 1.442695
        %v6761 = vpow.pop %v6760
        %v6762 = vadd.f32 %v6761, 1.0
        %v6763 = vrcp.pop %v6762
        %v6764 = vmul.f32 1.0, %v6763
        %v6765 = vtanh.pop %v6758
        %v6766 = vxor.u32 %v6758, 2147483648
        %v6767 = vmul.f32 %v6766, 1.442695
        %v6768 = vpow.pop %v6767
        %v6769 = vadd.f32 %v6768, 1.0
        %v6770 = vrcp.pop %v6769
        %v6771 = vmul.f32 1.0, %v6770
        %v6772 = vmul.f32 %v6764, %v6433
        %v6773 = vmul.f32 %v6764, %v6765
        %6775 = vrot.lane.b32.xlu0 %v6773, 64
        %v6776 = vpop.permute.xlu0 %6775
        %v6778 = vadd.f32 %v6772, %v6776
        %v6779 = vtanh.pop %v6778
        %v6780 = vmul.f32 %v6771, %v6779
        %6782 = vrot.lane.b32.xlu0 %v6611, 64
        %v6783 = vpop.permute.xlu0 %6782
        %v6784 = vsel %vm1433, %v6783, 0
        %6786 = vmatprep.subr.mxu0 0.0
        %6787 = vmatpush1.msra.mxu0 0.0
        %6788 = vmatprep.subr.mxu0 0.0
        %6789 = vmatpush1.msra.mxu0 0.0
        %6790 = vmatprep.subr.mxu0 0.0
        %6791 = vmatpush1.msra.mxu0 0.0
        %6792 = vmatprep.subr.mxu0 0.0
        %6793 = vmatpush1.msra.mxu0 0.0
        %6794 = vmatprep.subr.mxu0 0.0
        %6795 = vmatpush1.msra.mxu0 0.0
        %6796 = vmatprep.subr.mxu0 0.0
        %6797 = vmatpush1.msra.mxu0 0.0
        %6798 = vmatprep.subr.mxu0 0.0
        %6799 = vmatpush1.msra.mxu0 0.0
        %6800 = vmatprep.subr.mxu0 0.0
        %6801 = vmatpush1.msra.mxu0 0.0
        %6802 = vmatprep.subr.mxu0 %v4852
        %6803 = vmatpush1.msra.mxu0 %v4851
        %6804 = vmatprep.subr.mxu0 %v4850
        %6805 = vmatpush1.msra.mxu0 %v4849
        %6806 = vmatprep.subr.mxu0 %v4848
        %6807 = vmatpush1.msra.mxu0 %v4847
        %6808 = vmatprep.subr.mxu0 %v4846
        %6809 = vmatpush1.msra.mxu0 %v4845
        %6810 = vmatprep.subr.mxu0 %v4844
        %6811 = vmatpush1.msra.mxu0 %v4843
        %6812 = vmatprep.subr.mxu0 %v4842
        %6813 = vmatpush1.msra.mxu0 %v4841
        %6814 = vmatprep.subr.mxu0 %v4840
        %6815 = vmatpush1.msra.mxu0 %v4839
        %6816 = vmatprep.subr.mxu0 %v4838
        %6817 = vmatpush1.msra.mxu0 %v4837
        %6818 = vmatprep.subr.mxu0 0.0
        %6819 = vmatpush2.msra.mxu0 0.0
        %6820 = vmatprep.subr.mxu0 0.0
        %6821 = vmatpush2.msra.mxu0 0.0
        %6822 = vmatprep.subr.mxu0 0.0
        %6823 = vmatpush2.msra.mxu0 0.0
        %6824 = vmatprep.subr.mxu0 0.0
        %6825 = vmatpush2.msra.mxu0 0.0
        %6826 = vmatprep.subr.mxu0 0.0
        %6827 = vmatpush2.msra.mxu0 0.0
        %6828 = vmatprep.subr.mxu0 0.0
        %6829 = vmatpush2.msra.mxu0 0.0
        %6830 = vmatprep.subr.mxu0 0.0
        %6831 = vmatpush2.msra.mxu0 0.0
        %6832 = vmatprep.subr.mxu0 0.0
        %6833 = vmatpush2.msra.mxu0 0.0
        %6834 = vmatprep.subr.mxu0 0.0
        %6835 = vmatpush2.msra.mxu0 0.0
        %6836 = vmatprep.subr.mxu0 0.0
        %6837 = vmatpush2.msra.mxu0 0.0
        %6838 = vmatprep.subr.mxu0 0.0
        %6839 = vmatpush2.msra.mxu0 0.0
        %6840 = vmatprep.subr.mxu0 0.0
        %6841 = vmatpush2.msra.mxu0 0.0
        %6842 = vmatprep.subr.mxu0 0.0
        %6843 = vmatpush2.msra.mxu0 0.0
        %6844 = vmatprep.subr.mxu0 0.0
        %6845 = vmatpush2.msra.mxu0 0.0
        %6846 = vmatprep.subr.mxu0 0.0
        %6847 = vmatpush2.msra.mxu0 0.0
        %6848 = vmatprep.subr.mxu0 0.0
        %6849 = vmatpush2.msra.mxu0 0.0
        %6850 = vmatprep.mubr.f32.mxu0 0.0
        %6851 = vmatmul.mubr.f32.gmra.mxu0 %v6784
        %v6852 = vpop.f32.mrf.mxu0
        %v6853 = vadd.f32 0.0, %v6852
        %v6854 = vpop.f32.mrf.mxu0
        %v6855 = vadd.f32 0.0, %v6854
        %6856 = vdwg.mxu0
        %6858 = vrot.lane.b32.xlu0 %v6780, 64
        %v6859 = vpop.permute.xlu0 %6858
        %v6860 = vsel %vm1433, %v6859, 0
        %6862 = vmatprep.subr.mxu0 0.0
        %6863 = vmatpush1.msra.mxu0 0.0
        %6864 = vmatprep.subr.mxu0 0.0
        %6865 = vmatpush1.msra.mxu0 0.0
        %6866 = vmatprep.subr.mxu0 0.0
        %6867 = vmatpush1.msra.mxu0 0.0
        %6868 = vmatprep.subr.mxu0 0.0
        %6869 = vmatpush1.msra.mxu0 0.0
        %6870 = vmatprep.subr.mxu0 0.0
        %6871 = vmatpush1.msra.mxu0 0.0
        %6872 = vmatprep.subr.mxu0 0.0
        %6873 = vmatpush1.msra.mxu0 0.0
        %6874 = vmatprep.subr.mxu0 0.0
        %6875 = vmatpush1.msra.mxu0 0.0
        %6876 = vmatprep.subr.mxu0 0.0
        %6877 = vmatpush1.msra.mxu0 0.0
        %6878 = vmatprep.subr.mxu0 %v4836
        %6879 = vmatpush1.msra.mxu0 %v4835
        %6880 = vmatprep.subr.mxu0 %v4834
        %6881 = vmatpush1.msra.mxu0 %v4833
        %6882 = vmatprep.subr.mxu0 %v4832
        %6883 = vmatpush1.msra.mxu0 %v4831
        %6884 = vmatprep.subr.mxu0 %v4830
        %6885 = vmatpush1.msra.mxu0 %v4829
        %6886 = vmatprep.subr.mxu0 %v4828
        %6887 = vmatpush1.msra.mxu0 %v4827
        %6888 = vmatprep.subr.mxu0 %v4826
        %6889 = vmatpush1.msra.mxu0 %v4825
        %6890 = vmatprep.subr.mxu0 %v4824
        %6891 = vmatpush1.msra.mxu0 %v4823
        %6892 = vmatprep.subr.mxu0 %v4822
        %6893 = vmatpush1.msra.mxu0 %v4821
        %6894 = vmatprep.subr.mxu0 0.0
        %6895 = vmatpush2.msra.mxu0 0.0
        %6896 = vmatprep.subr.mxu0 0.0
        %6897 = vmatpush2.msra.mxu0 0.0
        %6898 = vmatprep.subr.mxu0 0.0
        %6899 = vmatpush2.msra.mxu0 0.0
        %6900 = vmatprep.subr.mxu0 0.0
        %6901 = vmatpush2.msra.mxu0 0.0
        %6902 = vmatprep.subr.mxu0 0.0
        %6903 = vmatpush2.msra.mxu0 0.0
        %6904 = vmatprep.subr.mxu0 0.0
        %6905 = vmatpush2.msra.mxu0 0.0
        %6906 = vmatprep.subr.mxu0 0.0
        %6907 = vmatpush2.msra.mxu0 0.0
        %6908 = vmatprep.subr.mxu0 0.0
        %6909 = vmatpush2.msra.mxu0 0.0
        %6910 = vmatprep.subr.mxu0 0.0
        %6911 = vmatpush2.msra.mxu0 0.0
        %6912 = vmatprep.subr.mxu0 0.0
        %6913 = vmatpush2.msra.mxu0 0.0
        %6914 = vmatprep.subr.mxu0 0.0
        %6915 = vmatpush2.msra.mxu0 0.0
        %6916 = vmatprep.subr.mxu0 0.0
        %6917 = vmatpush2.msra.mxu0 0.0
        %6918 = vmatprep.subr.mxu0 0.0
        %6919 = vmatpush2.msra.mxu0 0.0
        %6920 = vmatprep.subr.mxu0 0.0
        %6921 = vmatpush2.msra.mxu0 0.0
        %6922 = vmatprep.subr.mxu0 0.0
        %6923 = vmatpush2.msra.mxu0 0.0
        %6924 = vmatprep.subr.mxu0 0.0
        %6925 = vmatpush2.msra.mxu0 0.0
        %6926 = vmatprep.mubr.f32.mxu0 0.0
        %6927 = vmatmul.mubr.f32.gmra.mxu0 %v6860
        %v6928 = vpop.f32.mrf.mxu0
        %v6929 = vadd.f32 %v6853, %v6928
        %v6930 = vpop.f32.mrf.mxu0
        %v6931 = vadd.f32 %v6855, %v6930
        %6932 = vdwg.mxu0
        %v6933 = vadd.f32 %v6929, %v5201
        %v6934 = vadd.f32 %v6931, %v5205
        %v6935 = vxor.u32 %v6933, 2147483648
        %v6936 = vmul.f32 %v6935, 1.442695
        %v6937 = vpow.pop %v6936
        %v6938 = vadd.f32 %v6937, 1.0
        %v6939 = vrcp.pop %v6938
        %v6940 = vmul.f32 1.0, %v6939
        %v6941 = vtanh.pop %v6934
        %v6942 = vxor.u32 %v6934, 2147483648
        %v6943 = vmul.f32 %v6942, 1.442695
        %v6944 = vpow.pop %v6943
        %v6945 = vadd.f32 %v6944, 1.0
        %v6946 = vrcp.pop %v6945
        %v6947 = vmul.f32 1.0, %v6946
        %v6948 = vmul.f32 %v6940, %v6609
        %v6949 = vmul.f32 %v6940, %v6941
        %6951 = vrot.lane.b32.xlu0 %v6949, 64
        %v6952 = vpop.permute.xlu0 %6951
        %v6954 = vadd.f32 %v6948, %v6952
        %v6955 = vtanh.pop %v6954
        %v6956 = vmul.f32 %v6947, %v6955
        %6957 = vmatprep.subr.mxu0 0.0
        %6958 = vmatpush1.msra.mxu0 0.0
        %6959 = vmatprep.subr.mxu0 0.0
        %6960 = vmatpush1.msra.mxu0 0.0
        %6961 = vmatprep.subr.mxu0 0.0
        %6962 = vmatpush1.msra.mxu0 0.0
        %6963 = vmatprep.subr.mxu0 0.0
        %6964 = vmatpush1.msra.mxu0 0.0
        %6965 = vmatprep.subr.mxu0 0.0
        %6966 = vmatpush1.msra.mxu0 0.0
        %6967 = vmatprep.subr.mxu0 0.0
        %6968 = vmatpush1.msra.mxu0 0.0
        %6969 = vmatprep.subr.mxu0 0.0
        %6970 = vmatpush1.msra.mxu0 0.0
        %6971 = vmatprep.subr.mxu0 0.0
        %6972 = vmatpush1.msra.mxu0 0.0
        %6973 = vmatprep.subr.mxu0 %v4820
        %6974 = vmatpush1.msra.mxu0 %v4819
        %6975 = vmatprep.subr.mxu0 %v4818
        %6976 = vmatpush1.msra.mxu0 %v4817
        %6977 = vmatprep.subr.mxu0 %v4816
        %6978 = vmatpush1.msra.mxu0 %v4815
        %6979 = vmatprep.subr.mxu0 %v4814
        %6980 = vmatpush1.msra.mxu0 %v4813
        %6981 = vmatprep.subr.mxu0 %v4812
        %6982 = vmatpush1.msra.mxu0 %v4811
        %6983 = vmatprep.subr.mxu0 %v4810
        %6984 = vmatpush1.msra.mxu0 %v4809
        %6985 = vmatprep.subr.mxu0 %v4808
        %6986 = vmatpush1.msra.mxu0 %v4807
        %6987 = vmatprep.subr.mxu0 %v4806
        %6988 = vmatpush1.msra.mxu0 %v4805
        %6989 = vmatprep.subr.mxu0 0.0
        %6990 = vmatpush2.msra.mxu0 0.0
        %6991 = vmatprep.subr.mxu0 0.0
        %6992 = vmatpush2.msra.mxu0 0.0
        %6993 = vmatprep.subr.mxu0 0.0
        %6994 = vmatpush2.msra.mxu0 0.0
        %6995 = vmatprep.subr.mxu0 0.0
        %6996 = vmatpush2.msra.mxu0 0.0
        %6997 = vmatprep.subr.mxu0 0.0
        %6998 = vmatpush2.msra.mxu0 0.0
        %6999 = vmatprep.subr.mxu0 0.0
        %7000 = vmatpush2.msra.mxu0 0.0
        %7001 = vmatprep.subr.mxu0 0.0
        %7002 = vmatpush2.msra.mxu0 0.0
        %7003 = vmatprep.subr.mxu0 0.0
        %7004 = vmatpush2.msra.mxu0 0.0
        %7005 = vmatprep.subr.mxu0 0.0
        %7006 = vmatpush2.msra.mxu0 0.0
        %7007 = vmatprep.subr.mxu0 0.0
        %7008 = vmatpush2.msra.mxu0 0.0
        %7009 = vmatprep.subr.mxu0 0.0
        %7010 = vmatpush2.msra.mxu0 0.0
        %7011 = vmatprep.subr.mxu0 0.0
        %7012 = vmatpush2.msra.mxu0 0.0
        %7013 = vmatprep.subr.mxu0 0.0
        %7014 = vmatpush2.msra.mxu0 0.0
        %7015 = vmatprep.subr.mxu0 0.0
        %7016 = vmatpush2.msra.mxu0 0.0
        %7017 = vmatprep.subr.mxu0 0.0
        %7018 = vmatpush2.msra.mxu0 0.0
        %7019 = vmatprep.subr.mxu0 0.0
        %7020 = vmatpush2.msra.mxu0 0.0
        %7021 = vmatprep.mubr.f32.mxu0 0.0
        %7022 = vmatmul.mubr.f32.gmra.mxu0 %v6860
        %v7023 = vpop.f32.mrf.mxu0
        %v7024 = vadd.f32 0.0, %v7023
        %v7025 = vpop.f32.mrf.mxu0
        %v7026 = vadd.f32 0.0, %v7025
        %7027 = vdwg.mxu0
        %v7028 = vrot.slane %v4781, 6
        %v7029 = vsel %vm4132, %v7028, 0
        %7031 = vmatprep.subr.mxu0 0.0
        %7032 = vmatpush1.msra.mxu0 0.0
        %7033 = vmatprep.subr.mxu0 0.0
        %7034 = vmatpush1.msra.mxu0 0.0
        %7035 = vmatprep.subr.mxu0 0.0
        %7036 = vmatpush1.msra.mxu0 0.0
        %7037 = vmatprep.subr.mxu0 0.0
        %7038 = vmatpush1.msra.mxu0 0.0
        %7039 = vmatprep.subr.mxu0 0.0
        %7040 = vmatpush1.msra.mxu0 0.0
        %7041 = vmatprep.subr.mxu0 0.0
        %7042 = vmatpush1.msra.mxu0 0.0
        %7043 = vmatprep.subr.mxu0 0.0
        %7044 = vmatpush1.msra.mxu0 0.0
        %7045 = vmatprep.subr.mxu0 0.0
        %7046 = vmatpush1.msra.mxu0 0.0
        %7047 = vmatprep.subr.mxu0 0.0
        %7048 = vmatpush1.msra.mxu0 0.0
        %7049 = vmatprep.subr.mxu0 0.0
        %7050 = vmatpush1.msra.mxu0 0.0
        %7051 = vmatprep.subr.mxu0 0.0
        %7052 = vmatpush1.msra.mxu0 0.0
        %7053 = vmatprep.subr.mxu0 0.0
        %7054 = vmatpush1.msra.mxu0 0.0
        %7055 = vmatprep.subr.mxu0 %v4804
        %7056 = vmatpush1.msra.mxu0 %v4803
        %7057 = vmatprep.subr.mxu0 %v4802
        %7058 = vmatpush1.msra.mxu0 %v4801
        %7059 = vmatprep.subr.mxu0 %v4800
        %7060 = vmatpush1.msra.mxu0 %v4799
        %7061 = vmatprep.subr.mxu0 %v4798
        %7062 = vmatpush1.msra.mxu0 %v4797
        %7063 = vmatprep.subr.mxu0 0.0
        %7064 = vmatpush2.msra.mxu0 0.0
        %7065 = vmatprep.subr.mxu0 0.0
        %7066 = vmatpush2.msra.mxu0 0.0
        %7067 = vmatprep.subr.mxu0 0.0
        %7068 = vmatpush2.msra.mxu0 0.0
        %7069 = vmatprep.subr.mxu0 0.0
        %7070 = vmatpush2.msra.mxu0 0.0
        %7071 = vmatprep.subr.mxu0 0.0
        %7072 = vmatpush2.msra.mxu0 0.0
        %7073 = vmatprep.subr.mxu0 0.0
        %7074 = vmatpush2.msra.mxu0 0.0
        %7075 = vmatprep.subr.mxu0 0.0
        %7076 = vmatpush2.msra.mxu0 0.0
        %7077 = vmatprep.subr.mxu0 0.0
        %7078 = vmatpush2.msra.mxu0 0.0
        %7079 = vmatprep.subr.mxu0 0.0
        %7080 = vmatpush2.msra.mxu0 0.0
        %7081 = vmatprep.subr.mxu0 0.0
        %7082 = vmatpush2.msra.mxu0 0.0
        %7083 = vmatprep.subr.mxu0 0.0
        %7084 = vmatpush2.msra.mxu0 0.0
        %7085 = vmatprep.subr.mxu0 0.0
        %7086 = vmatpush2.msra.mxu0 0.0
        %7087 = vmatprep.subr.mxu0 0.0
        %7088 = vmatpush2.msra.mxu0 0.0
        %7089 = vmatprep.subr.mxu0 0.0
        %7090 = vmatpush2.msra.mxu0 0.0
        %7091 = vmatprep.subr.mxu0 0.0
        %7092 = vmatpush2.msra.mxu0 0.0
        %7093 = vmatprep.subr.mxu0 0.0
        %7094 = vmatpush2.msra.mxu0 0.0
        %7095 = vmatprep.mubr.f32.mxu0 0.0
        %7096 = vmatmul.mubr.f32.gmra.mxu0 %v7029
        %v7097 = vpop.f32.mrf.mxu0
        %v7098 = vadd.f32 %v7024, %v7097
        %v7099 = vpop.f32.mrf.mxu0
        %v7100 = vadd.f32 %v7026, %v7099
        %7101 = vdwg.mxu0
        %v7102 = vadd.f32 %v7098, %v5020
        %v7103 = vadd.f32 %v7100, %v5024
        %v7104 = vxor.u32 %v7102, 2147483648
        %v7105 = vmul.f32 %v7104, 1.442695
        %v7106 = vpow.pop %v7105
        %v7107 = vadd.f32 %v7106, 1.0
        %v7108 = vrcp.pop %v7107
        %v7109 = vmul.f32 1.0, %v7108
        %v7110 = vtanh.pop %v7103
        %v7111 = vxor.u32 %v7103, 2147483648
        %v7112 = vmul.f32 %v7111, 1.442695
        %v7113 = vpow.pop %v7112
        %v7114 = vadd.f32 %v7113, 1.0
        %v7115 = vrcp.pop %v7114
        %v7116 = vmul.f32 1.0, %v7115
        %v7117 = vmul.f32 %v7109, %v6778
        %v7118 = vmul.f32 %v7109, %v7110
        %7120 = vrot.lane.b32.xlu0 %v7118, 64
        %v7121 = vpop.permute.xlu0 %7120
        %v7123 = vadd.f32 %v7117, %v7121
        %v7124 = vtanh.pop %v7123
        %v7125 = vmul.f32 %v7116, %v7124
        %7127 = vrot.lane.b32.xlu0 %v6956, 64
        %v7128 = vpop.permute.xlu0 %7127
        %v7129 = vsel %vm1433, %v7128, 0
        %7131 = vmatprep.subr.mxu0 0.0
        %7132 = vmatpush1.msra.mxu0 0.0
        %7133 = vmatprep.subr.mxu0 0.0
        %7134 = vmatpush1.msra.mxu0 0.0
        %7135 = vmatprep.subr.mxu0 0.0
        %7136 = vmatpush1.msra.mxu0 0.0
        %7137 = vmatprep.subr.mxu0 0.0
        %7138 = vmatpush1.msra.mxu0 0.0
        %7139 = vmatprep.subr.mxu0 0.0
        %7140 = vmatpush1.msra.mxu0 0.0
        %7141 = vmatprep.subr.mxu0 0.0
        %7142 = vmatpush1.msra.mxu0 0.0
        %7143 = vmatprep.subr.mxu0 0.0
        %7144 = vmatpush1.msra.mxu0 0.0
        %7145 = vmatprep.subr.mxu0 0.0
        %7146 = vmatpush1.msra.mxu0 0.0
        %7147 = vmatprep.subr.mxu0 %v4852
        %7148 = vmatpush1.msra.mxu0 %v4851
        %7149 = vmatprep.subr.mxu0 %v4850
        %7150 = vmatpush1.msra.mxu0 %v4849
        %7151 = vmatprep.subr.mxu0 %v4848
        %7152 = vmatpush1.msra.mxu0 %v4847
        %7153 = vmatprep.subr.mxu0 %v4846
        %7154 = vmatpush1.msra.mxu0 %v4845
        %7155 = vmatprep.subr.mxu0 %v4844
        %7156 = vmatpush1.msra.mxu0 %v4843
        %7157 = vmatprep.subr.mxu0 %v4842
        %7158 = vmatpush1.msra.mxu0 %v4841
        %7159 = vmatprep.subr.mxu0 %v4840
        %7160 = vmatpush1.msra.mxu0 %v4839
        %7161 = vmatprep.subr.mxu0 %v4838
        %7162 = vmatpush1.msra.mxu0 %v4837
        %7163 = vmatprep.subr.mxu0 0.0
        %7164 = vmatpush2.msra.mxu0 0.0
        %7165 = vmatprep.subr.mxu0 0.0
        %7166 = vmatpush2.msra.mxu0 0.0
        %7167 = vmatprep.subr.mxu0 0.0
        %7168 = vmatpush2.msra.mxu0 0.0
        %7169 = vmatprep.subr.mxu0 0.0
        %7170 = vmatpush2.msra.mxu0 0.0
        %7171 = vmatprep.subr.mxu0 0.0
        %7172 = vmatpush2.msra.mxu0 0.0
        %7173 = vmatprep.subr.mxu0 0.0
        %7174 = vmatpush2.msra.mxu0 0.0
        %7175 = vmatprep.subr.mxu0 0.0
        %7176 = vmatpush2.msra.mxu0 0.0
        %7177 = vmatprep.subr.mxu0 0.0
        %7178 = vmatpush2.msra.mxu0 0.0
        %7179 = vmatprep.subr.mxu0 0.0
        %7180 = vmatpush2.msra.mxu0 0.0
        %7181 = vmatprep.subr.mxu0 0.0
        %7182 = vmatpush2.msra.mxu0 0.0
        %7183 = vmatprep.subr.mxu0 0.0
        %7184 = vmatpush2.msra.mxu0 0.0
        %7185 = vmatprep.subr.mxu0 0.0
        %7186 = vmatpush2.msra.mxu0 0.0
        %7187 = vmatprep.subr.mxu0 0.0
        %7188 = vmatpush2.msra.mxu0 0.0
        %7189 = vmatprep.subr.mxu0 0.0
        %7190 = vmatpush2.msra.mxu0 0.0
        %7191 = vmatprep.subr.mxu0 0.0
        %7192 = vmatpush2.msra.mxu0 0.0
        %7193 = vmatprep.subr.mxu0 0.0
        %7194 = vmatpush2.msra.mxu0 0.0
        %7195 = vmatprep.mubr.f32.mxu0 0.0
        %7196 = vmatmul.mubr.f32.gmra.mxu0 %v7129
        %v7197 = vpop.f32.mrf.mxu0
        %v7198 = vadd.f32 0.0, %v7197
        %v7199 = vpop.f32.mrf.mxu0
        %v7200 = vadd.f32 0.0, %v7199
        %7201 = vdwg.mxu0
        %7203 = vrot.lane.b32.xlu0 %v7125, 64
        %v7204 = vpop.permute.xlu0 %7203
        %v7205 = vsel %vm1433, %v7204, 0
        %7207 = vmatprep.subr.mxu0 0.0
        %7208 = vmatpush1.msra.mxu0 0.0
        %7209 = vmatprep.subr.mxu0 0.0
        %7210 = vmatpush1.msra.mxu0 0.0
        %7211 = vmatprep.subr.mxu0 0.0
        %7212 = vmatpush1.msra.mxu0 0.0
        %7213 = vmatprep.subr.mxu0 0.0
        %7214 = vmatpush1.msra.mxu0 0.0
        %7215 = vmatprep.subr.mxu0 0.0
        %7216 = vmatpush1.msra.mxu0 0.0
        %7217 = vmatprep.subr.mxu0 0.0
        %7218 = vmatpush1.msra.mxu0 0.0
        %7219 = vmatprep.subr.mxu0 0.0
        %7220 = vmatpush1.msra.mxu0 0.0
        %7221 = vmatprep.subr.mxu0 0.0
        %7222 = vmatpush1.msra.mxu0 0.0
        %7223 = vmatprep.subr.mxu0 %v4836
        %7224 = vmatpush1.msra.mxu0 %v4835
        %7225 = vmatprep.subr.mxu0 %v4834
        %7226 = vmatpush1.msra.mxu0 %v4833
        %7227 = vmatprep.subr.mxu0 %v4832
        %7228 = vmatpush1.msra.mxu0 %v4831
        %7229 = vmatprep.subr.mxu0 %v4830
        %7230 = vmatpush1.msra.mxu0 %v4829
        %7231 = vmatprep.subr.mxu0 %v4828
        %7232 = vmatpush1.msra.mxu0 %v4827
        %7233 = vmatprep.subr.mxu0 %v4826
        %7234 = vmatpush1.msra.mxu0 %v4825
        %7235 = vmatprep.subr.mxu0 %v4824
        %7236 = vmatpush1.msra.mxu0 %v4823
        %7237 = vmatprep.subr.mxu0 %v4822
        %7238 = vmatpush1.msra.mxu0 %v4821
        %7239 = vmatprep.subr.mxu0 0.0
        %7240 = vmatpush2.msra.mxu0 0.0
        %7241 = vmatprep.subr.mxu0 0.0
        %7242 = vmatpush2.msra.mxu0 0.0
        %7243 = vmatprep.subr.mxu0 0.0
        %7244 = vmatpush2.msra.mxu0 0.0
        %7245 = vmatprep.subr.mxu0 0.0
        %7246 = vmatpush2.msra.mxu0 0.0
        %7247 = vmatprep.subr.mxu0 0.0
        %7248 = vmatpush2.msra.mxu0 0.0
        %7249 = vmatprep.subr.mxu0 0.0
        %7250 = vmatpush2.msra.mxu0 0.0
        %7251 = vmatprep.subr.mxu0 0.0
        %7252 = vmatpush2.msra.mxu0 0.0
        %7253 = vmatprep.subr.mxu0 0.0
        %7254 = vmatpush2.msra.mxu0 0.0
        %7255 = vmatprep.subr.mxu0 0.0
        %7256 = vmatpush2.msra.mxu0 0.0
        %7257 = vmatprep.subr.mxu0 0.0
        %7258 = vmatpush2.msra.mxu0 0.0
        %7259 = vmatprep.subr.mxu0 0.0
        %7260 = vmatpush2.msra.mxu0 0.0
        %7261 = vmatprep.subr.mxu0 0.0
        %7262 = vmatpush2.msra.mxu0 0.0
        %7263 = vmatprep.subr.mxu0 0.0
        %7264 = vmatpush2.msra.mxu0 0.0
        %7265 = vmatprep.subr.mxu0 0.0
        %7266 = vmatpush2.msra.mxu0 0.0
        %7267 = vmatprep.subr.mxu0 0.0
        %7268 = vmatpush2.msra.mxu0 0.0
        %7269 = vmatprep.subr.mxu0 0.0
        %7270 = vmatpush2.msra.mxu0 0.0
        %7271 = vmatprep.mubr.f32.mxu0 0.0
        %7272 = vmatmul.mubr.f32.gmra.mxu0 %v7205
        %v7273 = vpop.f32.mrf.mxu0
        %v7274 = vadd.f32 %v7198, %v7273
        %v7275 = vpop.f32.mrf.mxu0
        %v7276 = vadd.f32 %v7200, %v7275
        %7277 = vdwg.mxu0
        %v7278 = vadd.f32 %v7274, %v5201
        %v7279 = vadd.f32 %v7276, %v5205
        %v7280 = vxor.u32 %v7278, 2147483648
        %v7281 = vmul.f32 %v7280, 1.442695
        %v7282 = vpow.pop %v7281
        %v7283 = vadd.f32 %v7282, 1.0
        %v7284 = vrcp.pop %v7283
        %v7285 = vmul.f32 1.0, %v7284
        %v7286 = vtanh.pop %v7279
        %v7287 = vxor.u32 %v7279, 2147483648
        %v7288 = vmul.f32 %v7287, 1.442695
        %v7289 = vpow.pop %v7288
        %v7290 = vadd.f32 %v7289, 1.0
        %v7291 = vrcp.pop %v7290
        %v7292 = vmul.f32 1.0, %v7291
        %v7293 = vmul.f32 %v7285, %v6954
        %v7294 = vmul.f32 %v7285, %v7286
        %7296 = vrot.lane.b32.xlu0 %v7294, 64
        %v7297 = vpop.permute.xlu0 %7296
        %v7299 = vadd.f32 %v7293, %v7297
        %v7300 = vtanh.pop %v7299
        %v7301 = vmul.f32 %v7292, %v7300
        %7302 = vmatprep.subr.mxu0 0.0
        %7303 = vmatpush1.msra.mxu0 0.0
        %7304 = vmatprep.subr.mxu0 0.0
        %7305 = vmatpush1.msra.mxu0 0.0
        %7306 = vmatprep.subr.mxu0 0.0
        %7307 = vmatpush1.msra.mxu0 0.0
        %7308 = vmatprep.subr.mxu0 0.0
        %7309 = vmatpush1.msra.mxu0 0.0
        %7310 = vmatprep.subr.mxu0 0.0
        %7311 = vmatpush1.msra.mxu0 0.0
        %7312 = vmatprep.subr.mxu0 0.0
        %7313 = vmatpush1.msra.mxu0 0.0
        %7314 = vmatprep.subr.mxu0 0.0
        %7315 = vmatpush1.msra.mxu0 0.0
        %7316 = vmatprep.subr.mxu0 0.0
        %7317 = vmatpush1.msra.mxu0 0.0
        %7318 = vmatprep.subr.mxu0 %v4820
        %7319 = vmatpush1.msra.mxu0 %v4819
        %7320 = vmatprep.subr.mxu0 %v4818
        %7321 = vmatpush1.msra.mxu0 %v4817
        %7322 = vmatprep.subr.mxu0 %v4816
        %7323 = vmatpush1.msra.mxu0 %v4815
        %7324 = vmatprep.subr.mxu0 %v4814
        %7325 = vmatpush1.msra.mxu0 %v4813
        %7326 = vmatprep.subr.mxu0 %v4812
        %7327 = vmatpush1.msra.mxu0 %v4811
        %7328 = vmatprep.subr.mxu0 %v4810
        %7329 = vmatpush1.msra.mxu0 %v4809
        %7330 = vmatprep.subr.mxu0 %v4808
        %7331 = vmatpush1.msra.mxu0 %v4807
        %7332 = vmatprep.subr.mxu0 %v4806
        %7333 = vmatpush1.msra.mxu0 %v4805
        %7334 = vmatprep.subr.mxu0 0.0
        %7335 = vmatpush2.msra.mxu0 0.0
        %7336 = vmatprep.subr.mxu0 0.0
        %7337 = vmatpush2.msra.mxu0 0.0
        %7338 = vmatprep.subr.mxu0 0.0
        %7339 = vmatpush2.msra.mxu0 0.0
        %7340 = vmatprep.subr.mxu0 0.0
        %7341 = vmatpush2.msra.mxu0 0.0
        %7342 = vmatprep.subr.mxu0 0.0
        %7343 = vmatpush2.msra.mxu0 0.0
        %7344 = vmatprep.subr.mxu0 0.0
        %7345 = vmatpush2.msra.mxu0 0.0
        %7346 = vmatprep.subr.mxu0 0.0
        %7347 = vmatpush2.msra.mxu0 0.0
        %7348 = vmatprep.subr.mxu0 0.0
        %7349 = vmatpush2.msra.mxu0 0.0
        %7350 = vmatprep.subr.mxu0 0.0
        %7351 = vmatpush2.msra.mxu0 0.0
        %7352 = vmatprep.subr.mxu0 0.0
        %7353 = vmatpush2.msra.mxu0 0.0
        %7354 = vmatprep.subr.mxu0 0.0
        %7355 = vmatpush2.msra.mxu0 0.0
        %7356 = vmatprep.subr.mxu0 0.0
        %7357 = vmatpush2.msra.mxu0 0.0
        %7358 = vmatprep.subr.mxu0 0.0
        %7359 = vmatpush2.msra.mxu0 0.0
        %7360 = vmatprep.subr.mxu0 0.0
        %7361 = vmatpush2.msra.mxu0 0.0
        %7362 = vmatprep.subr.mxu0 0.0
        %7363 = vmatpush2.msra.mxu0 0.0
        %7364 = vmatprep.subr.mxu0 0.0
        %7365 = vmatpush2.msra.mxu0 0.0
        %7366 = vmatprep.mubr.f32.mxu0 0.0
        %7367 = vmatmul.mubr.f32.gmra.mxu0 %v7205
        %v7368 = vpop.f32.mrf.mxu0
        %v7369 = vadd.f32 0.0, %v7368
        %v7370 = vpop.f32.mrf.mxu0
        %v7371 = vadd.f32 0.0, %v7370
        %7372 = vdwg.mxu0
        %v7373 = vrot.slane %v4781, 7
        %v7374 = vsel %vm4132, %v7373, 0
        %7376 = vmatprep.subr.mxu0 0.0
        %7377 = vmatpush1.msra.mxu0 0.0
        %7378 = vmatprep.subr.mxu0 0.0
        %7379 = vmatpush1.msra.mxu0 0.0
        %7380 = vmatprep.subr.mxu0 0.0
        %7381 = vmatpush1.msra.mxu0 0.0
        %7382 = vmatprep.subr.mxu0 0.0
        %7383 = vmatpush1.msra.mxu0 0.0
        %7384 = vmatprep.subr.mxu0 0.0
        %7385 = vmatpush1.msra.mxu0 0.0
        %7386 = vmatprep.subr.mxu0 0.0
        %7387 = vmatpush1.msra.mxu0 0.0
        %7388 = vmatprep.subr.mxu0 0.0
        %7389 = vmatpush1.msra.mxu0 0.0
        %7390 = vmatprep.subr.mxu0 0.0
        %7391 = vmatpush1.msra.mxu0 0.0
        %7392 = vmatprep.subr.mxu0 0.0
        %7393 = vmatpush1.msra.mxu0 0.0
        %7394 = vmatprep.subr.mxu0 0.0
        %7395 = vmatpush1.msra.mxu0 0.0
        %7396 = vmatprep.subr.mxu0 0.0
        %7397 = vmatpush1.msra.mxu0 0.0
        %7398 = vmatprep.subr.mxu0 0.0
        %7399 = vmatpush1.msra.mxu0 0.0
        %7400 = vmatprep.subr.mxu0 %v4804
        %7401 = vmatpush1.msra.mxu0 %v4803
        %7402 = vmatprep.subr.mxu0 %v4802
        %7403 = vmatpush1.msra.mxu0 %v4801
        %7404 = vmatprep.subr.mxu0 %v4800
        %7405 = vmatpush1.msra.mxu0 %v4799
        %7406 = vmatprep.subr.mxu0 %v4798
        %7407 = vmatpush1.msra.mxu0 %v4797
        %7408 = vmatprep.subr.mxu0 0.0
        %7409 = vmatpush2.msra.mxu0 0.0
        %7410 = vmatprep.subr.mxu0 0.0
        %7411 = vmatpush2.msra.mxu0 0.0
        %7412 = vmatprep.subr.mxu0 0.0
        %7413 = vmatpush2.msra.mxu0 0.0
        %7414 = vmatprep.subr.mxu0 0.0
        %7415 = vmatpush2.msra.mxu0 0.0
        %7416 = vmatprep.subr.mxu0 0.0
        %7417 = vmatpush2.msra.mxu0 0.0
        %7418 = vmatprep.subr.mxu0 0.0
        %7419 = vmatpush2.msra.mxu0 0.0
        %7420 = vmatprep.subr.mxu0 0.0
        %7421 = vmatpush2.msra.mxu0 0.0
        %7422 = vmatprep.subr.mxu0 0.0
        %7423 = vmatpush2.msra.mxu0 0.0
        %7424 = vmatprep.subr.mxu0 0.0
        %7425 = vmatpush2.msra.mxu0 0.0
        %7426 = vmatprep.subr.mxu0 0.0
        %7427 = vmatpush2.msra.mxu0 0.0
        %7428 = vmatprep.subr.mxu0 0.0
        %7429 = vmatpush2.msra.mxu0 0.0
        %7430 = vmatprep.subr.mxu0 0.0
        %7431 = vmatpush2.msra.mxu0 0.0
        %7432 = vmatprep.subr.mxu0 0.0
        %7433 = vmatpush2.msra.mxu0 0.0
        %7434 = vmatprep.subr.mxu0 0.0
        %7435 = vmatpush2.msra.mxu0 0.0
        %7436 = vmatprep.subr.mxu0 0.0
        %7437 = vmatpush2.msra.mxu0 0.0
        %7438 = vmatprep.subr.mxu0 0.0
        %7439 = vmatpush2.msra.mxu0 0.0
        %7440 = vmatprep.mubr.f32.mxu0 0.0
        %7441 = vmatmul.mubr.f32.gmra.mxu0 %v7374
        %v7442 = vpop.f32.mrf.mxu0
        %v7443 = vadd.f32 %v7369, %v7442
        %v7444 = vpop.f32.mrf.mxu0
        %v7445 = vadd.f32 %v7371, %v7444
        %7446 = vdwg.mxu0
        %v7447 = vadd.f32 %v7443, %v5020
        %v7448 = vadd.f32 %v7445, %v5024
        %v7449 = vxor.u32 %v7447, 2147483648
        %v7450 = vmul.f32 %v7449, 1.442695
        %v7451 = vpow.pop %v7450
        %v7452 = vadd.f32 %v7451, 1.0
        %v7453 = vrcp.pop %v7452
        %v7454 = vmul.f32 1.0, %v7453
        %v7455 = vtanh.pop %v7448
        %v7456 = vxor.u32 %v7448, 2147483648
        %v7457 = vmul.f32 %v7456, 1.442695
        %v7458 = vpow.pop %v7457
        %v7459 = vadd.f32 %v7458, 1.0
        %v7460 = vrcp.pop %v7459
        %v7461 = vmul.f32 1.0, %v7460
        %v7462 = vmul.f32 %v7454, %v7123
        %v7463 = vmul.f32 %v7454, %v7455
        %7465 = vrot.lane.b32.xlu0 %v7463, 64
        %v7466 = vpop.permute.xlu0 %7465
        %v7468 = vadd.f32 %v7462, %v7466
        %v7469 = vtanh.pop %v7468
        %v7470 = vmul.f32 %v7461, %v7469
        %7472 = vrot.lane.b32.xlu0 %v7301, 64
        %v7473 = vpop.permute.xlu0 %7472
        %v7474 = vsel %vm1433, %v7473, 0
        %7476 = vmatprep.subr.mxu0 0.0
        %7477 = vmatpush1.msra.mxu0 0.0
        %7478 = vmatprep.subr.mxu0 0.0
        %7479 = vmatpush1.msra.mxu0 0.0
        %7480 = vmatprep.subr.mxu0 0.0
        %7481 = vmatpush1.msra.mxu0 0.0
        %7482 = vmatprep.subr.mxu0 0.0
        %7483 = vmatpush1.msra.mxu0 0.0
        %7484 = vmatprep.subr.mxu0 0.0
        %7485 = vmatpush1.msra.mxu0 0.0
        %7486 = vmatprep.subr.mxu0 0.0
        %7487 = vmatpush1.msra.mxu0 0.0
        %7488 = vmatprep.subr.mxu0 0.0
        %7489 = vmatpush1.msra.mxu0 0.0
        %7490 = vmatprep.subr.mxu0 0.0
        %7491 = vmatpush1.msra.mxu0 0.0
        %7492 = vmatprep.subr.mxu0 %v4852
        %7493 = vmatpush1.msra.mxu0 %v4851
        %7494 = vmatprep.subr.mxu0 %v4850
        %7495 = vmatpush1.msra.mxu0 %v4849
        %7496 = vmatprep.subr.mxu0 %v4848
        %7497 = vmatpush1.msra.mxu0 %v4847
        %7498 = vmatprep.subr.mxu0 %v4846
        %7499 = vmatpush1.msra.mxu0 %v4845
        %7500 = vmatprep.subr.mxu0 %v4844
        %7501 = vmatpush1.msra.mxu0 %v4843
        %7502 = vmatprep.subr.mxu0 %v4842
        %7503 = vmatpush1.msra.mxu0 %v4841
        %7504 = vmatprep.subr.mxu0 %v4840
        %7505 = vmatpush1.msra.mxu0 %v4839
        %7506 = vmatprep.subr.mxu0 %v4838
        %7507 = vmatpush1.msra.mxu0 %v4837
        %7508 = vmatprep.subr.mxu0 0.0
        %7509 = vmatpush2.msra.mxu0 0.0
        %7510 = vmatprep.subr.mxu0 0.0
        %7511 = vmatpush2.msra.mxu0 0.0
        %7512 = vmatprep.subr.mxu0 0.0
        %7513 = vmatpush2.msra.mxu0 0.0
        %7514 = vmatprep.subr.mxu0 0.0
        %7515 = vmatpush2.msra.mxu0 0.0
        %7516 = vmatprep.subr.mxu0 0.0
        %7517 = vmatpush2.msra.mxu0 0.0
        %7518 = vmatprep.subr.mxu0 0.0
        %7519 = vmatpush2.msra.mxu0 0.0
        %7520 = vmatprep.subr.mxu0 0.0
        %7521 = vmatpush2.msra.mxu0 0.0
        %7522 = vmatprep.subr.mxu0 0.0
        %7523 = vmatpush2.msra.mxu0 0.0
        %7524 = vmatprep.subr.mxu0 0.0
        %7525 = vmatpush2.msra.mxu0 0.0
        %7526 = vmatprep.subr.mxu0 0.0
        %7527 = vmatpush2.msra.mxu0 0.0
        %7528 = vmatprep.subr.mxu0 0.0
        %7529 = vmatpush2.msra.mxu0 0.0
        %7530 = vmatprep.subr.mxu0 0.0
        %7531 = vmatpush2.msra.mxu0 0.0
        %7532 = vmatprep.subr.mxu0 0.0
        %7533 = vmatpush2.msra.mxu0 0.0
        %7534 = vmatprep.subr.mxu0 0.0
        %7535 = vmatpush2.msra.mxu0 0.0
        %7536 = vmatprep.subr.mxu0 0.0
        %7537 = vmatpush2.msra.mxu0 0.0
        %7538 = vmatprep.subr.mxu0 0.0
        %7539 = vmatpush2.msra.mxu0 0.0
        %7540 = vmatprep.mubr.f32.mxu0 0.0
        %7541 = vmatmul.mubr.f32.gmra.mxu0 %v7474
        %v7542 = vpop.f32.mrf.mxu0
        %v7543 = vadd.f32 0.0, %v7542
        %v7544 = vpop.f32.mrf.mxu0
        %v7545 = vadd.f32 0.0, %v7544
        %7546 = vdwg.mxu0
        %7548 = vrot.lane.b32.xlu0 %v7470, 64
        %v7549 = vpop.permute.xlu0 %7548
        %v7550 = vsel %vm1433, %v7549, 0
        %7552 = vmatprep.subr.mxu0 0.0
        %7553 = vmatpush1.msra.mxu0 0.0
        %7554 = vmatprep.subr.mxu0 0.0
        %7555 = vmatpush1.msra.mxu0 0.0
        %7556 = vmatprep.subr.mxu0 0.0
        %7557 = vmatpush1.msra.mxu0 0.0
        %7558 = vmatprep.subr.mxu0 0.0
        %7559 = vmatpush1.msra.mxu0 0.0
        %7560 = vmatprep.subr.mxu0 0.0
        %7561 = vmatpush1.msra.mxu0 0.0
        %7562 = vmatprep.subr.mxu0 0.0
        %7563 = vmatpush1.msra.mxu0 0.0
        %7564 = vmatprep.subr.mxu0 0.0
        %7565 = vmatpush1.msra.mxu0 0.0
        %7566 = vmatprep.subr.mxu0 0.0
        %7567 = vmatpush1.msra.mxu0 0.0
        %7568 = vmatprep.subr.mxu0 %v4836
        %7569 = vmatpush1.msra.mxu0 %v4835
        %7570 = vmatprep.subr.mxu0 %v4834
        %7571 = vmatpush1.msra.mxu0 %v4833
        %7572 = vmatprep.subr.mxu0 %v4832
        %7573 = vmatpush1.msra.mxu0 %v4831
        %7574 = vmatprep.subr.mxu0 %v4830
        %7575 = vmatpush1.msra.mxu0 %v4829
        %7576 = vmatprep.subr.mxu0 %v4828
        %7577 = vmatpush1.msra.mxu0 %v4827
        %7578 = vmatprep.subr.mxu0 %v4826
        %7579 = vmatpush1.msra.mxu0 %v4825
        %7580 = vmatprep.subr.mxu0 %v4824
        %7581 = vmatpush1.msra.mxu0 %v4823
        %7582 = vmatprep.subr.mxu0 %v4822
        %7583 = vmatpush1.msra.mxu0 %v4821
        %7584 = vmatprep.subr.mxu0 0.0
        %7585 = vmatpush2.msra.mxu0 0.0
        %7586 = vmatprep.subr.mxu0 0.0
        %7587 = vmatpush2.msra.mxu0 0.0
        %7588 = vmatprep.subr.mxu0 0.0
        %7589 = vmatpush2.msra.mxu0 0.0
        %7590 = vmatprep.subr.mxu0 0.0
        %7591 = vmatpush2.msra.mxu0 0.0
        %7592 = vmatprep.subr.mxu0 0.0
        %7593 = vmatpush2.msra.mxu0 0.0
        %7594 = vmatprep.subr.mxu0 0.0
        %7595 = vmatpush2.msra.mxu0 0.0
        %7596 = vmatprep.subr.mxu0 0.0
        %7597 = vmatpush2.msra.mxu0 0.0
        %7598 = vmatprep.subr.mxu0 0.0
        %7599 = vmatpush2.msra.mxu0 0.0
        %7600 = vmatprep.subr.mxu0 0.0
        %7601 = vmatpush2.msra.mxu0 0.0
        %7602 = vmatprep.subr.mxu0 0.0
        %7603 = vmatpush2.msra.mxu0 0.0
        %7604 = vmatprep.subr.mxu0 0.0
        %7605 = vmatpush2.msra.mxu0 0.0
        %7606 = vmatprep.subr.mxu0 0.0
        %7607 = vmatpush2.msra.mxu0 0.0
        %7608 = vmatprep.subr.mxu0 0.0
        %7609 = vmatpush2.msra.mxu0 0.0
        %7610 = vmatprep.subr.mxu0 0.0
        %7611 = vmatpush2.msra.mxu0 0.0
        %7612 = vmatprep.subr.mxu0 0.0
        %7613 = vmatpush2.msra.mxu0 0.0
        %7614 = vmatprep.subr.mxu0 0.0
        %7615 = vmatpush2.msra.mxu0 0.0
        %7616 = vmatprep.mubr.f32.mxu0 0.0
        %7617 = vmatmul.mubr.f32.gmra.mxu0 %v7550
        %v7618 = vpop.f32.mrf.mxu0
        %v7619 = vadd.f32 %v7543, %v7618
        %v7620 = vpop.f32.mrf.mxu0
        %v7621 = vadd.f32 %v7545, %v7620
        %7622 = vdwg.mxu0
        %v7623 = vadd.f32 %v7619, %v5201
        %v7624 = vadd.f32 %v7621, %v5205
        %v7625 = vxor.u32 %v7623, 2147483648
        %v7626 = vmul.f32 %v7625, 1.442695
        %v7627 = vpow.pop %v7626
        %v7628 = vadd.f32 %v7627, 1.0
        %v7629 = vrcp.pop %v7628
        %v7630 = vmul.f32 1.0, %v7629
        %v7631 = vtanh.pop %v7624
        %v7632 = vxor.u32 %v7624, 2147483648
        %v7633 = vmul.f32 %v7632, 1.442695
        %v7634 = vpow.pop %v7633
        %v7635 = vadd.f32 %v7634, 1.0
        %v7636 = vrcp.pop %v7635
        %v7637 = vmul.f32 1.0, %v7636
        %v7638 = vmul.f32 %v7630, %v7299
        %v7639 = vmul.f32 %v7630, %v7631
        %7641 = vrot.lane.b32.xlu0 %v7639, 64
        %v7642 = vpop.permute.xlu0 %7641
        %v7644 = vadd.f32 %v7638, %v7642
        %v7645 = vtanh.pop %v7644
        %v7646 = vmul.f32 %v7637, %v7645
        %v7647 = vrot.slane %v5576, 7
        %v7649 = vrot.slane %v5921, 6
        %v7651 = vrot.slane %v6266, 5
        %v7653 = vrot.slane %v6611, 4
        %v7655 = vrot.slane %v6956, 3
        %v7657 = vrot.slane %v7301, 2
        %v7660 = vrot.slane %v7646, 1
        %v7662 = vsel %vm814, %v5231, %v7647
        %vm7663 = vcmask 1041408
        %v7664 = vsel %vm7663, %v7662, %v7649
        %vm7665 = vcmask 1042432
        %v7666 = vsel %vm7665, %v7664, %v7651
        %vm7667 = vcmask 1043456
        %v7668 = vsel %vm7667, %v7666, %v7653
        %vm7669 = vcmask 1044480
        %v7670 = vsel %vm7669, %v7668, %v7655
        %vm7671 = vcmask 1045504
        %v7672 = vsel %vm7671, %v7670, %v7657
        %v7673 = vsel %vm978, %v7672, %v7660
        %v7674 = vlaneseq
        %v7675 = vshrl.u32 %v7674, 7
        %v7676 = vsub.s32 3, %v7675
        %v7677 = vrot.slane %v4869, %v7676
        %v7678 = vlaneseq
        %v7679 = vshrl.u32 %v7678, 7
        %v7680 = vsub.s32 7, %v7679
        %v7681 = vrot.slane %v4869, %v7680
        %v7684 = vlaneseq
        %v7685 = vshrl.u32 %v7684, 7
        %v7686 = vsub.s32 3, %v7685
        %v7687 = vrot.slane %v7677, %v7686
        %v7688 = vlaneseq
        %v7689 = vshrl.u32 %v7688, 7
        %v7690 = vsub.s32 3, %v7689
        %v7691 = vrot.slane %v7681, %v7690
        %7693 = vrot.lane.b32.xlu0 %v7673, 64
        %v7694 = vpop.permute.xlu0 %7693
        %v7695 = vsel %vm1433, %v7694, 0
        %7697 = vmatprep.subr.mxu0 0.0
        %7698 = vmatpush1.msra.mxu0 0.0
        %7699 = vmatprep.subr.mxu0 0.0
        %7700 = vmatpush1.msra.mxu0 0.0
        %7701 = vmatprep.subr.mxu0 0.0
        %7702 = vmatpush1.msra.mxu0 0.0
        %7703 = vmatprep.subr.mxu0 0.0
        %7704 = vmatpush1.msra.mxu0 0.0
        %7705 = vmatprep.subr.mxu0 0.0
        %7706 = vmatpush1.msra.mxu0 0.0
        %7707 = vmatprep.subr.mxu0 0.0
        %7708 = vmatpush1.msra.mxu0 0.0
        %7709 = vmatprep.subr.mxu0 0.0
        %7710 = vmatpush1.msra.mxu0 0.0
        %7711 = vmatprep.subr.mxu0 0.0
        %7712 = vmatpush1.msra.mxu0 0.0
        %7713 = vmatprep.subr.mxu0 %v4868
        %7714 = vmatpush1.msra.mxu0 %v4867
        %7715 = vmatprep.subr.mxu0 %v4866
        %7716 = vmatpush1.msra.mxu0 %v4865
        %7717 = vmatprep.subr.mxu0 %v4864
        %7718 = vmatpush1.msra.mxu0 %v4863
        %7719 = vmatprep.subr.mxu0 %v4862
        %7720 = vmatpush1.msra.mxu0 %v4861
        %7721 = vmatprep.subr.mxu0 %v4860
        %7722 = vmatpush1.msra.mxu0 %v4859
        %7723 = vmatprep.subr.mxu0 %v4858
        %7724 = vmatpush1.msra.mxu0 %v4857
        %7725 = vmatprep.subr.mxu0 %v4856
        %7726 = vmatpush1.msra.mxu0 %v4855
        %7727 = vmatprep.subr.mxu0 %v4854
        %7728 = vmatpush1.msra.mxu0 %v4853
        %7729 = vmatprep.subr.mxu0 0.0
        %7730 = vmatpush2.msra.mxu0 0.0
        %7731 = vmatprep.subr.mxu0 0.0
        %7732 = vmatpush2.msra.mxu0 0.0
        %7733 = vmatprep.subr.mxu0 0.0
        %7734 = vmatpush2.msra.mxu0 0.0
        %7735 = vmatprep.subr.mxu0 0.0
        %7736 = vmatpush2.msra.mxu0 0.0
        %7737 = vmatprep.subr.mxu0 0.0
        %7738 = vmatpush2.msra.mxu0 0.0
        %7739 = vmatprep.subr.mxu0 0.0
        %7740 = vmatpush2.msra.mxu0 0.0
        %7741 = vmatprep.subr.mxu0 0.0
        %7742 = vmatpush2.msra.mxu0 0.0
        %7743 = vmatprep.subr.mxu0 0.0
        %7744 = vmatpush2.msra.mxu0 0.0
        %7745 = vmatprep.subr.mxu0 0.0
        %7746 = vmatpush2.msra.mxu0 0.0
        %7747 = vmatprep.subr.mxu0 0.0
        %7748 = vmatpush2.msra.mxu0 0.0
        %7749 = vmatprep.subr.mxu0 0.0
        %7750 = vmatpush2.msra.mxu0 0.0
        %7751 = vmatprep.subr.mxu0 0.0
        %7752 = vmatpush2.msra.mxu0 0.0
        %7753 = vmatprep.subr.mxu0 0.0
        %7754 = vmatpush2.msra.mxu0 0.0
        %7755 = vmatprep.subr.mxu0 0.0
        %7756 = vmatpush2.msra.mxu0 0.0
        %7757 = vmatprep.subr.mxu0 0.0
        %7758 = vmatpush2.msra.mxu0 0.0
        %7759 = vmatprep.subr.mxu0 0.0
        %7760 = vmatpush2.msra.mxu0 0.0
        %7761 = vmatprep.mubr.f32.mxu0 0.0
        %7762 = vmatmul.mubr.f32.gmra.mxu0 %v7695
        %v7763 = vpop.f32.mrf.mxu0
        %v7764 = vadd.f32 %v7687, %v7763
        %v7765 = vpop.f32.mrf.mxu0
        %v7766 = vadd.f32 %v7691, %v7765
        %7767 = vdwg.mxu0
        %vm7768 = vcmp.gt.f32.partialorder %v7764, 0.0
        %vm7769 = vcmp.gt.f32.partialorder %v7766, 0.0
        %v7770 = vmul.f32 %v7764, 0.1
        %v7771 = vmul.f32 %v7766, 0.1
        %v7772 = vsel %vm7768, %v7764, %v7770
        %v7773 = vsel %vm7769, %v7766, %v7771
        %v7774 = vld [vmem:[%s17] sm:$0xff]
        %v7775 = vld [vmem:[%s17 + $0x8] sm:$0xff]
        %v7776 = vld [vmem:[%s17 + $0x10] sm:$0xff]
        %v7777 = vld [vmem:[%s17 + $0x18] sm:$0xff]
        %v7778 = vld [vmem:[%s17 + $0x20] sm:$0xff]
        %v7779 = vld [vmem:[%s17 + $0x28] sm:$0xff]
        %v7780 = vld [vmem:[%s17 + $0x30] sm:$0xff]
        %v7781 = vld [vmem:[%s17 + $0x38] sm:$0xff]
        %v7782 = vld [vmem:[%s17 + $0x40] sm:$0xff]
        %v7783 = vld [vmem:[%s17 + $0x48] sm:$0xff]
        %v7784 = vld [vmem:[%s17 + $0x50] sm:$0xff]
        %v7785 = vld [vmem:[%s17 + $0x58] sm:$0xff]
        %v7786 = vld [vmem:[%s17 + $0x60] sm:$0xff]
        %v7787 = vld [vmem:[%s17 + $0x68] sm:$0xff]
        %v7788 = vld [vmem:[%s17 + $0x70] sm:$0xff]
        %v7789 = vld [vmem:[%s17 + $0x78] sm:$0xff]
        %v7790 = vld [vmem:[%s17 + $0x80] sm:$0xff]
        %v7791 = vld [vmem:[%s17 + $0x88] sm:$0xff]
        %v7792 = vld [vmem:[%s17 + $0x90] sm:$0xff]
        %v7793 = vld [vmem:[%s17 + $0x98] sm:$0xff]
        %v7794 = vld [vmem:[%s17 + $0xa0] sm:$0xff]
        %v7795 = vld [vmem:[%s17 + $0xa8] sm:$0xff]
        %v7796 = vld [vmem:[%s17 + $0xb0] sm:$0xff]
        %v7797 = vld [vmem:[%s17 + $0xb8] sm:$0xff]
        %v7798 = vld [vmem:[%s17 + $0xc0] sm:$0xff]
        %v7799 = vld [vmem:[%s17 + $0xc8] sm:$0xff]
        %v7800 = vld [vmem:[%s17 + $0xd0] sm:$0xff]
        %v7801 = vld [vmem:[%s17 + $0xd8] sm:$0xff]
        %v7802 = vld [vmem:[%s17 + $0xe0] sm:$0xff]
        %v7803 = vld [vmem:[%s17 + $0xe8] sm:$0xff]
        %v7804 = vld [vmem:[%s17 + $0xf0] sm:$0xff]
        %v7805 = vld [vmem:[%s17 + $0xf8] sm:$0xff]
        %v7806 = vlaneseq
        %v7807 = vshrl.u32 %v7806, 7
        %v7808 = vsub.s32 0, %v7807
        %v7809 = vrot.slane %v4870, %v7808
        %7810 = vmatprep.subr.mxu0 0.0
        %7811 = vmatpush1.msra.mxu0 %v7789
        %7812 = vmatprep.subr.mxu0 0.0
        %7813 = vmatpush1.msra.mxu0 %v7788
        %7814 = vmatprep.subr.mxu0 0.0
        %7815 = vmatpush1.msra.mxu0 %v7787
        %7816 = vmatprep.subr.mxu0 0.0
        %7817 = vmatpush1.msra.mxu0 %v7786
        %7818 = vmatprep.subr.mxu0 0.0
        %7819 = vmatpush1.msra.mxu0 %v7785
        %7820 = vmatprep.subr.mxu0 0.0
        %7821 = vmatpush1.msra.mxu0 %v7784
        %7822 = vmatprep.subr.mxu0 0.0
        %7823 = vmatpush1.msra.mxu0 %v7783
        %7824 = vmatprep.subr.mxu0 0.0
        %7825 = vmatpush1.msra.mxu0 %v7782
        %7826 = vmatprep.subr.mxu0 0.0
        %7827 = vmatpush1.msra.mxu0 %v7781
        %7828 = vmatprep.subr.mxu0 0.0
        %7829 = vmatpush1.msra.mxu0 %v7780
        %7830 = vmatprep.subr.mxu0 0.0
        %7831 = vmatpush1.msra.mxu0 %v7779
        %7832 = vmatprep.subr.mxu0 0.0
        %7833 = vmatpush1.msra.mxu0 %v7778
        %7834 = vmatprep.subr.mxu0 0.0
        %7835 = vmatpush1.msra.mxu0 %v7777
        %7836 = vmatprep.subr.mxu0 0.0
        %7837 = vmatpush1.msra.mxu0 %v7776
        %7838 = vmatprep.subr.mxu0 0.0
        %7839 = vmatpush1.msra.mxu0 %v7775
        %7840 = vmatprep.subr.mxu0 0.0
        %7841 = vmatpush1.msra.mxu0 %v7774
        %7842 = vmatprep.subr.mxu0 0.0
        %7843 = vmatpush2.msra.mxu0 %v7805
        %7844 = vmatprep.subr.mxu0 0.0
        %7845 = vmatpush2.msra.mxu0 %v7804
        %7846 = vmatprep.subr.mxu0 0.0
        %7847 = vmatpush2.msra.mxu0 %v7803
        %7848 = vmatprep.subr.mxu0 0.0
        %7849 = vmatpush2.msra.mxu0 %v7802
        %7850 = vmatprep.subr.mxu0 0.0
        %7851 = vmatpush2.msra.mxu0 %v7801
        %7852 = vmatprep.subr.mxu0 0.0
        %7853 = vmatpush2.msra.mxu0 %v7800
        %7854 = vmatprep.subr.mxu0 0.0
        %7855 = vmatpush2.msra.mxu0 %v7799
        %7856 = vmatprep.subr.mxu0 0.0
        %7857 = vmatpush2.msra.mxu0 %v7798
        %7858 = vmatprep.subr.mxu0 0.0
        %7859 = vmatpush2.msra.mxu0 %v7797
        %7860 = vmatprep.subr.mxu0 0.0
        %7861 = vmatpush2.msra.mxu0 %v7796
        %7862 = vmatprep.subr.mxu0 0.0
        %7863 = vmatpush2.msra.mxu0 %v7795
        %7864 = vmatprep.subr.mxu0 0.0
        %7865 = vmatpush2.msra.mxu0 %v7794
        %7866 = vmatprep.subr.mxu0 0.0
        %7867 = vmatpush2.msra.mxu0 %v7793
        %7868 = vmatprep.subr.mxu0 0.0
        %7869 = vmatpush2.msra.mxu0 %v7792
        %7870 = vmatprep.subr.mxu0 0.0
        %7871 = vmatpush2.msra.mxu0 %v7791
        %7872 = vmatprep.subr.mxu0 0.0
        %7873 = vmatpush2.msra.mxu0 %v7790
        %7874 = vmatprep.mubr.f32.mxu0 %v7773
        %7875 = vmatmul.mubr.f32.gmra.mxu0 %v7772
        %v7876 = vpop.f32.mrf.mxu0
        %v7877 = vadd.f32 %v7809, %v7876
        %v7878 = vpop.f32.mrf.mxu0
        %7879 = vdwg.mxu0
        %7880 = vst [vmem:[%s665] sm:$0xff] %v7877
        %v7881 = vrot.slane %v7646, 7
        %v7883 = vsel %vm814, %v7470, %v7881
        %7885 = vrot.lane.b32.xlu0 %v7883, 64
        %v7886 = vpop.permute.xlu0 %7885
        %vm7888 = vcmask 517120
        %7889 = vst.msk [vmem:[%s645] sm:$0x3] %vm7888, %v7886
        %v7891 = vrot.slane %v7644, 7
        %v7893 = vsel %vm814, %v7468, %v7891
        %7895 = vrot.lane.b32.xlu0 %v7893, 64
        %v7896 = vpop.permute.xlu0 %7895
        %7898 = vst.msk [vmem:[%s652] sm:$0x3] %vm7888, %v7896
        %p7899 = scmp.lt.s32.totalorder %s38, 1
        %s7900 = scalar_select %p7899, %s38, 1
        %s7901 = smul.addr %s7900, 8
        %s7902 = scalar_lea.vmem %s18, %s7901
        %s7903 = sand.u32 %s460, 1
        %s7904 = scalar_lea.sflag [#allocation3], %s7903
        %s7905 = sand.u32 %s460, 1
        %s7906 = smul.addr %s7905, 2
        %s7907 = scalar_lea.vmem [#allocation2], %s7906
        %s7908 = sand.u32 %s486, 1
        %s7909 = scalar_lea.sflag [#allocation5], %s7908
        %s7910 = sand.u32 %s486, 1
        %s7911 = smul.addr %s7910, 2
        %s7912 = scalar_lea.vmem [#allocation4], %s7911
        // Predicated region
        $region93: #{_lambda_.1} parent=91 // pred_check
          %p7913 = pneg %p444
        $region94: #{_lambda_.1} parent=91 // pred_check_branch
          %7915 = sbr.rel (%p7913) target = $region96
        $region95: #{_lambda_.1} parent=91 // pred_region
          _
        $region96: #{_lambda_.1} parent=91 // pred_fallthru
          _
        // Predicated region
        $region97: #{_lambda_.1} parent=91 // pred_check
          %p7916 = pneg %p470
        $region98: #{_lambda_.1} parent=91 // pred_check_branch
          %7918 = sbr.rel (%p7916) target = $region100
        $region99: #{_lambda_.1} parent=91 // pred_region
          %s7920 = ssub.s32 32, 32
          %7921 = vsyncadd %s7904, %s7920
          %s7922 = smul.addr %s38, 32
          %s7923 = scalar_lea.hbm %s19, %s7922
          %s7925 = sshll.u32 %s7907, 4
          %s7926 = int_to_ptr.vmem [resolvable:$true] %s7925
          %7928 = dma.vmem_to_hbm [thread:$0]  %s7926, 32, %s7923, %s7904
        $region100: #{_lambda_.1} parent=91 // pred_fallthru
          _
        // Predicated region
        $region101: #{_lambda_.1} parent=91 // pred_check
          %p7929 = pneg %p496
        $region102: #{_lambda_.1} parent=91 // pred_check_branch
          %7931 = sbr.rel (%p7929) target = $region104
        $region103: #{_lambda_.1} parent=91 // pred_region
          %s7933 = ssub.s32 32, 32
          %7934 = vsyncadd %s7909, %s7933
          %s7935 = smul.addr %s38, 32
          %s7936 = scalar_lea.hbm %s20, %s7935
          %s7938 = sshll.u32 %s7912, 4
          %s7939 = int_to_ptr.vmem [resolvable:$true] %s7938
          %7941 = dma.vmem_to_hbm [thread:$0]  %s7939, 32, %s7936, %s7909
        $region104: #{_lambda_.1} parent=91 // pred_fallthru
          _
      $region92: #{_lambda_.1} parent=5 // pred_fallthru
        _
      %p7942 = scmp.le.s32.totalorder 2, %s33
      // Predicated region
      $region105: #{_lambda_.1} parent=5 // pred_check
        %p7943 = pneg %p7942
      $region106: #{_lambda_.1} parent=5 // pred_check_branch
        %7945 = sbr.rel (%p7943) target = $region108
      $region107: #{_lambda_.1} parent=5 // pred_region
        %s7946 = ssub.s32 %s33, 2
        // Predicated region
        $region109: #{_lambda_.1} parent=107 // pred_check
          %p7947 = pneg %p450
        $region110: #{_lambda_.1} parent=107 // pred_check_branch
          %7949 = sbr.rel (%p7947) target = $region112
        $region111: #{_lambda_.1} parent=107 // pred_region
          %p7950 = scmp.lt.s32.totalorder %s39, 1
          %s7951 = scalar_select %p7950, %s39, 1
          %s7952 = smul.addr %s7951, 8
          %s7953 = scalar_lea.vmem %s18, %s7952
        $region112: #{_lambda_.1} parent=107 // pred_fallthru
          _
        // Predicated region
        $region113: #{_lambda_.1} parent=107 // pred_check
          %p7954 = pneg %p476
        $region114: #{_lambda_.1} parent=107 // pred_check_branch
          %7956 = sbr.rel (%p7954) target = $region116
        $region115: #{_lambda_.1} parent=107 // pred_region
          %s7957 = sand.u32 %s461, 1
          %s7958 = scalar_lea.sflag [#allocation3], %s7957
          %s7959 = sand.u32 %s461, 1
          %s7960 = smul.addr %s7959, 2
          %s7961 = scalar_lea.vmem [#allocation2], %s7960
          %7962 = dma.done %s7958, 32
        $region116: #{_lambda_.1} parent=107 // pred_fallthru
          _
        // Predicated region
        $region117: #{_lambda_.1} parent=107 // pred_check
          %p7963 = pneg %p502
        $region118: #{_lambda_.1} parent=107 // pred_check_branch
          %7965 = sbr.rel (%p7963) target = $region120
        $region119: #{_lambda_.1} parent=107 // pred_region
          %s7966 = sand.u32 %s487, 1
          %s7967 = scalar_lea.sflag [#allocation5], %s7966
          %s7968 = sand.u32 %s487, 1
          %s7969 = smul.addr %s7968, 2
          %s7970 = scalar_lea.vmem [#allocation4], %s7969
          %7971 = dma.done %s7967, 32
        $region120: #{_lambda_.1} parent=107 // pred_fallthru
          _
      $region108: #{_lambda_.1} parent=5 // pred_fallthru
        _
    $region6: #{_lambda_.1} parent=1 // loop_footer
      %s37 = sadd.s32 1, %s33
    $region7: #{_lambda_.1} parent=1 // loop_footer_branch
      %32 = sbr.rel target = $region3
    $region8: #{_lambda_.1} parent=1 // loop_exit
      _
    %7972 = vsyncpa [#allocation3], 1
    %s7973 = scalar_lea.sflag [#allocation3], 1
    %7974 = vsyncpa %s7973, 1
    %7975 = vsyncpa [#allocation5], 1
    %s7976 = scalar_lea.sflag [#allocation5], 1
    %7977 = vsyncpa %s7976, 1

</llo_original>
